<compile_context>
chip_gen: v7x
topology: tpu7x:2x2x1
jax: 0.10.0
libtpu: 0.0.40
codegen_flags: <defaults>
</compile_context>

<pallas_src>
import functools

import jax
import jax.numpy as jnp
import numpy as np
from jax.experimental import pallas as pl
from jax.experimental.pallas import tpu as pltpu


# ----------------------------------------------------------------------------
# Pallas kernel: one grid step = BW windows = R = BW*N token rows.
# ----------------------------------------------------------------------------
def _window_attn_kernel(x_ref, wqkv_ref, bqkv_ref, bias_ref, wproj_ref,
                        bproj_ref, o_ref, *, num_heads, bw, n_tok):
    R, C = x_ref.shape                      # R = bw * n_tok
    H, BW, N = num_heads, bw, n_tok
    hd = C // H
    HB = H * BW

    # f32 from HBM -> bf16 for the MXU (cast is VPU filler under the matmuls).
    rows = x_ref[...].astype(jnp.bfloat16)                       # (R, C)

    # Fused QKV projection: one (R, C) x (C, 3C) MXU pass, f32 accumulate.
    # The 1/sqrt(head_dim) query scale is pre-folded into the Q columns.
    qkv = jnp.dot(rows, wqkv_ref[...],
                  preferred_element_type=jnp.float32) + bqkv_ref[...]  # (R, 3C)
    qkv_bf = qkv.astype(jnp.bfloat16)

    # Head-batched layout (H*BW, N, hd), batch index = h*BW + b.  Lane slices
    # + leading-axis concat in bf16 (proven Mosaic lowering; see TODO above).
    def split_heads(col0):
        return jnp.concatenate(
            [qkv_bf[:, col0 + h * hd: col0 + (h + 1) * hd].reshape(BW, N, hd)
             for h in range(H)], axis=0)                          # (HB, N, hd)

    q_b = split_heads(0)
    k_b = split_heads(C)
    v_b = split_heads(2 * C)

    # Batched scores over the single leading batch dim (MXU, f32 accumulate).
    s = jnp.einsum('bqd,bkd->bqk', q_b, k_b,
                   preferred_element_type=jnp.float32)            # (HB, N, N)

    # Relative-position bias: 4-D leading view + lazy broadcast over windows —
    # no (HB, N, N) bias copy is materialized.
    s = (s.reshape(H, BW, N, N)
         + bias_ref[...].astype(jnp.float32)[:, None, :, :]).reshape(HB, N, N)

    # Numerically-stable softmax in f32 (v5e has no bf16 EUP path);
    # denominator reciprocal on the EUP.
    s = s - jnp.max(s, axis=-1, keepdims=True)
    p = jnp.exp(s)
    p = p * pl.reciprocal(jnp.sum(p, axis=-1, keepdims=True), approx=True)

    ctx = jnp.einsum('bqk,bkd->bqd', p.astype(jnp.bfloat16), v_b,
                     preferred_element_type=jnp.float32)          # (HB, N, hd)
    ctx_bf = ctx.astype(jnp.bfloat16)       # relayout in bf16: half the bytes

    # (HB, N, hd) -> (R, C): row = b*N + n, channel = h*hd + d (matches the
    # (head, dim)-major input-channel order of W_proj).
    merged = jnp.concatenate(
        [ctx_bf[h * BW:(h + 1) * BW].reshape(R, hd) for h in range(H)],
        axis=-1)                                                  # (R, C) bf16

    out = jnp.dot(merged, wproj_ref[...],
                  preferred_element_type=jnp.float32) + bproj_ref[...]
    o_ref[...] = out.astype(o_ref.dtype)


# ----------------------------------------------------------------------------
# Relative position index (same math as the PyTorch buffer).
# ----------------------------------------------------------------------------
def get_position_index(window_size):
    wd, wh, ww = window_size
    coords = np.stack(
        np.meshgrid(np.arange(wd), np.arange(wh), np.arange(ww), indexing="ij"))
    coords_flatten = coords.reshape(3, -1)
    rel = coords_flatten[:, :, None] - coords_flatten[:, None, :]
    rel = rel.transpose(1, 2, 0).astype(np.int64)
    rel[:, :, 0] += wd - 1
    rel[:, :, 1] += wh - 1
    rel[:, :, 2] += ww - 1
    rel[:, :, 0] *= (2 * wh - 1) * (2 * ww - 1)
    rel[:, :, 1] *= 2 * ww - 1
    return rel.sum(-1)                                            # (N, N)


# ----------------------------------------------------------------------------
# Generation-aware tiling helpers.
# ----------------------------------------------------------------------------
def _tpu_vmem_and_rows():
    """(physical VMEM bytes, MXU row target) for the local chip, with fallbacks."""
    try:
        vmem_physical = int(pltpu.get_tpu_info().vmem_capacity_bytes)
    except Exception:
        vmem_physical = 64 * 1024 * 1024          # conservative (v7x-sized)
    try:
        kind = jax.devices()[0].device_kind.lower()
    except Exception:
        kind = ""
    # v5e MXU is 4x128x128 -> 128 rows fill it; v6e/v7x are 2x256x256 -> 256.
    target_rows = 128 if "v5" in kind else 256
    return vmem_physical, target_rows


def _step_vmem_bytes(BW, N, C, H):
    """Rough per-grid-step VMEM footprint (double-buffered I/O + intermediates)."""
    R = BW * N
    io = 2 * (R * C * 4) * 2                        # x + out blocks, f32, 2x buffered
    wts = (3 * C * C + C * C) * 2 + (3 * C + C) * 4   # bf16 weights + f32 biases
    bias = H * N * N * 4
    interm = R * 3 * C * (4 + 2)                    # qkv f32 + head-batched bf16
    scores = 2 * H * BW * N * N * 4                 # scores + probs, f32
    ctx = R * C * (4 + 2)                           # ctx f32 + merged bf16
    return io + wts + bias + interm + scores + ctx


def _pick_window_block(B_, N, C, H, target_rows, vmem_budget):
    """Windows per grid step: smallest divisor of B_ reaching the MXU row
    target while fitting the VMEM budget (no forced >=2-step constraint —
    v5e/v6e have a single TensorCore; on v7x megacore a leading 'parallel'
    axis with >=2 steps could additionally be preferred)."""
    divisors = [d for d in range(1, B_ + 1) if B_ % d == 0]
    legal = [d for d in divisors if (d * N) % 8 == 0 or d == B_]   # (8,128) rule
    if not legal:
        return B_
    fits = [d for d in legal if _step_vmem_bytes(d, N, C, H) <= vmem_budget]
    for d in fits:
        if d * N >= target_rows:
            return d
    if fits:
        return fits[-1]            # can't hit the row target: biggest that fits
    return legal[0]


def _invariant_spec(shape):
    """BlockSpec for a grid-invariant operand: constant index map and a single
    VMEM buffer (no pointless double-buffering)."""
    nd = len(shape)
    return pl.BlockSpec(shape, lambda *_: (0,) * nd,
                        pipeline_mode=pl.Buffered(1))


# ----------------------------------------------------------------------------
# Module factory: precompute per-module constants once, return a jitted forward.
# ----------------------------------------------------------------------------
def make_window_attention_3d(params, window_size, num_heads):
    w_qkv, b_qkv, w_proj, b_proj, rpb_table = params
    C = w_proj.shape[0]
    assert C % num_heads == 0
    hd = C // num_heads
    scale = hd ** (-0.5)
    N = window_size[0] * window_size[1] * window_size[2]

    vmem_physical, target_rows = _tpu_vmem_and_rows()
    vmem_limit = max(min(int(vmem_physical * 0.75), 96 * 1024 * 1024),
                     32 * 1024 * 1024)
    vmem_budget = int(vmem_limit * 0.8)      # headroom for Mosaic scratch/spill

    # Fold the query scaling into the Q columns of the fused QKV projection.
    w_qkv = jnp.asarray(w_qkv).at[:, :C].multiply(scale)
    b_qkv = jnp.asarray(b_qkv).at[:C].multiply(scale)

    # Relative-position bias: gather + transpose ONCE per module.
    rel_idx = jnp.asarray(get_position_index(window_size)).reshape(-1)
    bias = jnp.asarray(rpb_table)[rel_idx].reshape(N, N, num_heads)
    bias = jnp.transpose(bias, (2, 0, 1))                          # (nH, N, N)
    # Store bf16 on small-VMEM chips (v7x: 64 MiB) — the add stays f32 in-kernel.
    bias_dtype = jnp.bfloat16 if vmem_physical <= 80 * 1024 * 1024 else jnp.float32
    bias = bias.astype(bias_dtype)

    # bf16 MXU operands; additive biases stay f32.
    w_qkv_bf = w_qkv.astype(jnp.bfloat16)
    w_proj_bf = jnp.asarray(w_proj).astype(jnp.bfloat16)
    b_qkv_f32 = b_qkv.astype(jnp.float32).reshape(1, 3 * C)
    b_proj_f32 = jnp.asarray(b_proj).astype(jnp.float32).reshape(1, C)

    @jax.jit
    def forward(x):
        B_, N_, C_ = x.shape
        assert N_ == N and C_ == C
        BW = _pick_window_block(B_, N, C, num_heads, target_rows, vmem_budget)
        R = BW * N

        # 2-D I/O slabs: the kernel block (R, C) is exactly the compute layout
        # (one contiguous DMA per step, lane-dense stores when C % 128 == 0).
        x2 = x.reshape(B_ * N, C)

        kernel = functools.partial(_window_attn_kernel,
                                   num_heads=num_heads, bw=BW, n_tok=N)

        out2 = pl.pallas_call(
            kernel,
            out_shape=jax.ShapeDtypeStruct((B_ * N, C), x.dtype),
            grid=(B_ // BW,),
            in_specs=[
                pl.BlockSpec((R, C), lambda i: (i, 0)),            # x rows (f32)
                _invariant_spec((C, 3 * C)),                       # W_qkv (bf16)
                _invariant_spec((1, 3 * C)),                       # b_qkv (f32)
                _invariant_spec((num_heads, N, N)),                # rel-pos bias
                _invariant_spec((C, C)),                           # W_proj (bf16)
                _invariant_spec((1, C)),                           # b_proj (f32)
            ],
            out_specs=pl.BlockSpec((R, C), lambda i: (i, 0)),
            compiler_params=pltpu.CompilerParams(
                dimension_semantics=("parallel",),
                vmem_limit_bytes=vmem_limit,
            ),
        )(x2, w_qkv_bf, b_qkv_f32, bias, w_proj_bf, b_proj_f32)

        return out2.reshape(B_, N, C)

    return forward


# ----------------------------------------------------------------------------
# Pure-JAX reference (PyTorch forward with mask=None, f32 end-to-end).
# ----------------------------------------------------------------------------
def reference(x, params, window_size, num_heads):
    B_, N, C = x.shape
    hd = C // num_heads
    scale = hd ** (-0.5)
    w_qkv, b_qkv, w_proj, b_proj, rpb_table = params

    qkv = x @ w_qkv + b_qkv
    qkv = qkv.reshape(B_, N, 3, num_heads, hd).transpose(2, 0, 3, 1, 4)
    q, k, v = qkv[0], qkv[1], qkv[2]

    attn = jnp.einsum("bhqd,bhkd->bhqk", q * scale, k)

    rel_idx = jnp.asarray(get_position_index(window_size))
    bias = rpb_table[rel_idx.reshape(-1)].reshape(N, N, num_heads)
    bias = jnp.transpose(bias, (2, 0, 1))[None]
    attn = attn + bias
    attn = jax.nn.softmax(attn, axis=-1)

    out = jnp.einsum("bhqk,bhkd->bhqd", attn, v)
    out = out.transpose(0, 2, 1, 3).reshape(B_, N, C)
    return out @ w_proj + b_proj


# ----------------------------------------------------------------------------
if __name__ == "__main__":
    # Correctness smoke test only (per the review, tuning happens at real
    # Swin-3D shapes): dim=32, heads=4, window (2,4,4) -> N=32, B_=8 windows.
    dim = 32
    num_heads = 4
    window_size = (2, 4, 4)
    N = window_size[0] * window_size[1] * window_size[2]
    B_ = 8

    key = jax.random.PRNGKey(0)
    k_x, k_wqkv, k_bqkv, k_wproj, k_bproj, k_tab = jax.random.split(key, 6)

    x = jax.random.normal(k_x, (B_, N, dim), dtype=jnp.float32)

    # Deterministic synthetic parameters (stored as (in, out) for x @ W).
    w_qkv = jax.random.normal(k_wqkv, (dim, 3 * dim), dtype=jnp.float32) * 0.05
    b_qkv = jax.random.normal(k_bqkv, (3 * dim,), dtype=jnp.float32) * 0.05
    w_proj = jax.random.normal(k_wproj, (dim, dim), dtype=jnp.float32) * 0.05
    b_proj = jax.random.normal(k_bproj, (dim,), dtype=jnp.float32) * 0.05
    n_rel = ((2 * window_size[0] - 1) * (2 * window_size[1] - 1)
             * (2 * window_size[2] - 1))
    rpb_table = jax.random.normal(k_tab, (n_rel, num_heads),
                                  dtype=jnp.float32) * 0.02

    params = (w_qkv, b_qkv, w_proj, b_proj, rpb_table)

    attn_fwd = make_window_attention_3d(params, window_size, num_heads)
    out = jax.block_until_ready(attn_fwd(x))

    ref = reference(x, params, window_size, num_heads)
    # Tolerance accounts for bf16 MXU operands (accumulation / softmax in f32)
    # and the approximate EUP reciprocal in the softmax denominator.
    np.testing.assert_allclose(np.asarray(out), np.asarray(ref),
                               rtol=2e-2, atol=2e-2)

    print("KERNEL_OK")
</pallas_src>

<mosaic_0001>
module attributes {stable_mosaic.version = 11 : i64} {
  func.func @_window_attn_kernel(%arg0: i32, %arg1: memref<256x32xf32, #tpu.memory_space<vmem>>, %arg2: memref<32x96xbf16, #tpu.memory_space<vmem>>, %arg3: memref<1x96xf32, #tpu.memory_space<vmem>>, %arg4: memref<4x32x32xbf16, #tpu.memory_space<vmem>>, %arg5: memref<32x32xbf16, #tpu.memory_space<vmem>>, %arg6: memref<1x32xf32, #tpu.memory_space<vmem>>, %arg7: memref<256x32xf32, #tpu.memory_space<vmem>>) attributes {dimension_semantics = [#tpu.dimension_semantics<parallel>], iteration_bounds = array<i64: 1>, scalar_prefetch = 0 : i64, scratch_operands = 0 : i64, tpu.core_type = #tpu.core_type<tc>, window_params = [{transform_indices = @transform_0, window_bounds = array<i64: 256, 32>}, {pipeline_mode = #tpu.pipeline_mode<synchronous>, transform_indices = @transform_1, window_bounds = array<i64: 32, 96>}, {pipeline_mode = #tpu.pipeline_mode<synchronous>, transform_indices = @transform_2, window_bounds = array<i64: 1, 96>}, {pipeline_mode = #tpu.pipeline_mode<synchronous>, transform_indices = @transform_3, window_bounds = array<i64: 4, 32, 32>}, {pipeline_mode = #tpu.pipeline_mode<synchronous>, transform_indices = @transform_4, window_bounds = array<i64: 32, 32>}, {pipeline_mode = #tpu.pipeline_mode<synchronous>, transform_indices = @transform_5, window_bounds = array<i64: 1, 32>}, {transform_indices = @transform_6, window_bounds = array<i64: 256, 32>}]} {
    %c0 = arith.constant 0 : index
    %c0_0 = arith.constant 0 : index
    %0 = vector.load %arg1[%c0, %c0_0] : memref<256x32xf32, #tpu.memory_space<vmem>>, vector<256x32xf32>
    %1 = arith.truncf %0 : vector<256x32xf32> to vector<256x32xbf16>
    %c0_1 = arith.constant 0 : index
    %c0_2 = arith.constant 0 : index
    %2 = vector.load %arg2[%c0_1, %c0_2] : memref<32x96xbf16, #tpu.memory_space<vmem>>, vector<32x96xbf16>
    %cst = arith.constant dense<0.000000e+00> : vector<256x96xf32>
    %3 = tpu.matmul %1, %2, %cst {dimension_numbers = #tpu.dot_dimension_numbers<[1], [0], [0], [1], [0, 0, 1, 1], [], []>} : vector<256x32xbf16>, vector<32x96xbf16>, vector<256x96xf32> -> vector<256x96xf32>
    %c0_3 = arith.constant 0 : index
    %c0_4 = arith.constant 0 : index
    %4 = vector.load %arg3[%c0_3, %c0_4] : memref<1x96xf32, #tpu.memory_space<vmem>>, vector<1x96xf32>
    %5 = vector.broadcast %4 : vector<1x96xf32> to vector<256x96xf32>
    %6 = arith.addf %3, %5 : vector<256x96xf32>
    %7 = arith.truncf %6 : vector<256x96xf32> to vector<256x96xbf16>
    %8 = vector.extract_strided_slice %7 {offsets = [0, 0], sizes = [256, 8], strides = [1, 1]} : vector<256x96xbf16> to vector<256x8xbf16>
    %9 = vector.shape_cast %8 : vector<256x8xbf16> to vector<8x32x8xbf16>
    %10 = vector.extract_strided_slice %7 {offsets = [0, 8], sizes = [256, 8], strides = [1, 1]} : vector<256x96xbf16> to vector<256x8xbf16>
    %11 = vector.shape_cast %10 : vector<256x8xbf16> to vector<8x32x8xbf16>
    %12 = vector.extract_strided_slice %7 {offsets = [0, 16], sizes = [256, 8], strides = [1, 1]} : vector<256x96xbf16> to vector<256x8xbf16>
    %13 = vector.shape_cast %12 : vector<256x8xbf16> to vector<8x32x8xbf16>
    %14 = vector.extract_strided_slice %7 {offsets = [0, 24], sizes = [256, 8], strides = [1, 1]} : vector<256x96xbf16> to vector<256x8xbf16>
    %15 = vector.shape_cast %14 : vector<256x8xbf16> to vector<8x32x8xbf16>
    %16 = tpu.concatenate %9, %11, %13, %15 in 0 : vector<8x32x8xbf16>, vector<8x32x8xbf16>, vector<8x32x8xbf16>, vector<8x32x8xbf16> -> vector<32x32x8xbf16>
    %17 = vector.extract_strided_slice %7 {offsets = [0, 32], sizes = [256, 8], strides = [1, 1]} : vector<256x96xbf16> to vector<256x8xbf16>
    %18 = vector.shape_cast %17 : vector<256x8xbf16> to vector<8x32x8xbf16>
    %19 = vector.extract_strided_slice %7 {offsets = [0, 40], sizes = [256, 8], strides = [1, 1]} : vector<256x96xbf16> to vector<256x8xbf16>
    %20 = vector.shape_cast %19 : vector<256x8xbf16> to vector<8x32x8xbf16>
    %21 = vector.extract_strided_slice %7 {offsets = [0, 48], sizes = [256, 8], strides = [1, 1]} : vector<256x96xbf16> to vector<256x8xbf16>
    %22 = vector.shape_cast %21 : vector<256x8xbf16> to vector<8x32x8xbf16>
    %23 = vector.extract_strided_slice %7 {offsets = [0, 56], sizes = [256, 8], strides = [1, 1]} : vector<256x96xbf16> to vector<256x8xbf16>
    %24 = vector.shape_cast %23 : vector<256x8xbf16> to vector<8x32x8xbf16>
    %25 = tpu.concatenate %18, %20, %22, %24 in 0 : vector<8x32x8xbf16>, vector<8x32x8xbf16>, vector<8x32x8xbf16>, vector<8x32x8xbf16> -> vector<32x32x8xbf16>
    %26 = vector.extract_strided_slice %7 {offsets = [0, 64], sizes = [256, 8], strides = [1, 1]} : vector<256x96xbf16> to vector<256x8xbf16>
    %27 = vector.shape_cast %26 : vector<256x8xbf16> to vector<8x32x8xbf16>
    %28 = vector.extract_strided_slice %7 {offsets = [0, 72], sizes = [256, 8], strides = [1, 1]} : vector<256x96xbf16> to vector<256x8xbf16>
    %29 = vector.shape_cast %28 : vector<256x8xbf16> to vector<8x32x8xbf16>
    %30 = vector.extract_strided_slice %7 {offsets = [0, 80], sizes = [256, 8], strides = [1, 1]} : vector<256x96xbf16> to vector<256x8xbf16>
    %31 = vector.shape_cast %30 : vector<256x8xbf16> to vector<8x32x8xbf16>
    %32 = vector.extract_strided_slice %7 {offsets = [0, 88], sizes = [256, 8], strides = [1, 1]} : vector<256x96xbf16> to vector<256x8xbf16>
    %33 = vector.shape_cast %32 : vector<256x8xbf16> to vector<8x32x8xbf16>
    %34 = tpu.concatenate %27, %29, %31, %33 in 0 : vector<8x32x8xbf16>, vector<8x32x8xbf16>, vector<8x32x8xbf16>, vector<8x32x8xbf16> -> vector<32x32x8xbf16>
    "tpu.trace_start"() <{level = 10 : i32, message = "bqd,bkd->bqk"}> : () -> ()
    %cst_5 = arith.constant dense<0.000000e+00> : vector<32x32x32xf32>
    %35 = tpu.matmul %16, %25, %cst_5 {dimension_numbers = #tpu.dot_dimension_numbers<[2], [2], [1], [1], [0, 0, 0, 1, 1, 1], [0], [0]>} : vector<32x32x8xbf16>, vector<32x32x8xbf16>, vector<32x32x32xf32> -> vector<32x32x32xf32>
    "tpu.trace_stop"() : () -> ()
    %36 = vector.shape_cast %35 : vector<32x32x32xf32> to vector<4x8x32x32xf32>
    %c0_6 = arith.constant 0 : index
    %c0_7 = arith.constant 0 : index
    %c0_8 = arith.constant 0 : index
    %37 = vector.load %arg4[%c0_6, %c0_7, %c0_8] : memref<4x32x32xbf16, #tpu.memory_space<vmem>>, vector<4x32x32xbf16>
    %38 = arith.extf %37 : vector<4x32x32xbf16> to vector<4x32x32xf32>
    %39 = vector.shape_cast %38 : vector<4x32x32xf32> to vector<4x1x32x32xf32>
    %40 = vector.broadcast %39 : vector<4x1x32x32xf32> to vector<4x8x32x32xf32>
    %41 = arith.addf %36, %40 : vector<4x8x32x32xf32>
    %42 = vector.shape_cast %41 : vector<4x8x32x32xf32> to vector<32x32x32xf32>
    %cst_9 = arith.constant dense<0xFF800000> : vector<32x32xf32>
    %43 = vector.multi_reduction <maximumf>, %42, %cst_9 [2] : vector<32x32x32xf32> to vector<32x32xf32>
    %44 = vector.shape_cast %43 : vector<32x32xf32> to vector<32x32x1xf32>
    %45 = vector.broadcast %44 : vector<32x32x1xf32> to vector<32x32x32xf32>
    %46 = arith.subf %42, %45 : vector<32x32x32xf32>
    %47 = math.exp %46 : vector<32x32x32xf32>
    %cst_10 = arith.constant dense<0.000000e+00> : vector<32x32xf32>
    %48 = vector.multi_reduction <add>, %47, %cst_10 [2] : vector<32x32x32xf32> to vector<32x32xf32>
    %49 = vector.shape_cast %48 : vector<32x32xf32> to vector<32x32x1xf32>
    %50 = tpu.reciprocal %49 {approx = true} : vector<32x32x1xf32> -> vector<32x32x1xf32>
    %51 = vector.broadcast %50 : vector<32x32x1xf32> to vector<32x32x32xf32>
    %52 = arith.mulf %47, %51 : vector<32x32x32xf32>
    %53 = arith.truncf %52 : vector<32x32x32xf32> to vector<32x32x32xbf16>
    "tpu.trace_start"() <{level = 10 : i32, message = "bqk,bkd->bqd"}> : () -> ()
    %cst_11 = arith.constant dense<0.000000e+00> : vector<32x32x8xf32>
    %54 = tpu.matmul %53, %34, %cst_11 {dimension_numbers = #tpu.dot_dimension_numbers<[2], [1], [1], [2], [0, 0, 0, 1, 1, 2], [0], [0]>} : vector<32x32x32xbf16>, vector<32x32x8xbf16>, vector<32x32x8xf32> -> vector<32x32x8xf32>
    "tpu.trace_stop"() : () -> ()
    %55 = arith.truncf %54 : vector<32x32x8xf32> to vector<32x32x8xbf16>
    %56 = vector.extract_strided_slice %55 {offsets = [0, 0, 0], sizes = [8, 32, 8], strides = [1, 1, 1]} : vector<32x32x8xbf16> to vector<8x32x8xbf16>
    %57 = vector.shape_cast %56 : vector<8x32x8xbf16> to vector<256x8xbf16>
    %58 = vector.extract_strided_slice %55 {offsets = [8, 0, 0], sizes = [8, 32, 8], strides = [1, 1, 1]} : vector<32x32x8xbf16> to vector<8x32x8xbf16>
    %59 = vector.shape_cast %58 : vector<8x32x8xbf16> to vector<256x8xbf16>
    %60 = vector.extract_strided_slice %55 {offsets = [16, 0, 0], sizes = [8, 32, 8], strides = [1, 1, 1]} : vector<32x32x8xbf16> to vector<8x32x8xbf16>
    %61 = vector.shape_cast %60 : vector<8x32x8xbf16> to vector<256x8xbf16>
    %62 = vector.extract_strided_slice %55 {offsets = [24, 0, 0], sizes = [8, 32, 8], strides = [1, 1, 1]} : vector<32x32x8xbf16> to vector<8x32x8xbf16>
    %63 = vector.shape_cast %62 : vector<8x32x8xbf16> to vector<256x8xbf16>
    %64 = tpu.concatenate %57, %59, %61, %63 in 1 : vector<256x8xbf16>, vector<256x8xbf16>, vector<256x8xbf16>, vector<256x8xbf16> -> vector<256x32xbf16>
    %c0_12 = arith.constant 0 : index
    %c0_13 = arith.constant 0 : index
    %65 = vector.load %arg5[%c0_12, %c0_13] : memref<32x32xbf16, #tpu.memory_space<vmem>>, vector<32x32xbf16>
    %cst_14 = arith.constant dense<0.000000e+00> : vector<256x32xf32>
    %66 = tpu.matmul %64, %65, %cst_14 {dimension_numbers = #tpu.dot_dimension_numbers<[1], [0], [0], [1], [0, 0, 1, 1], [], []>} : vector<256x32xbf16>, vector<32x32xbf16>, vector<256x32xf32> -> vector<256x32xf32>
    %c0_15 = arith.constant 0 : index
    %c0_16 = arith.constant 0 : index
    %67 = vector.load %arg6[%c0_15, %c0_16] : memref<1x32xf32, #tpu.memory_space<vmem>>, vector<1x32xf32>
    %68 = vector.broadcast %67 : vector<1x32xf32> to vector<256x32xf32>
    %69 = arith.addf %66, %68 : vector<256x32xf32>
    %c0_17 = arith.constant 0 : index
    %c0_18 = arith.constant 0 : index
    %70 = vector.load %arg7[%c0_17, %c0_18] : memref<256x32xf32, #tpu.memory_space<vmem>>, vector<256x32xf32>
    tpu.vector_store %arg7[%c0_17, %c0_18], %69 {strides = array<i32>} : memref<256x32xf32, #tpu.memory_space<vmem>>, vector<256x32xf32>,
    return
  }
  func.func @transform_0(%arg0: i32) -> (i32, i32) {
    %c0_i32 = arith.constant 0 : i32
    %c0_i32_0 = arith.constant 0 : i32
    return %arg0, %c0_i32 : i32, i32
  }
  func.func @transform_1(%arg0: i32) -> (i32, i32) {
    %c0_i32 = arith.constant 0 : i32
    %c0_i32_0 = arith.constant 0 : i32
    %c0_i32_1 = arith.constant 0 : i32
    return %c0_i32, %c0_i32_0 : i32, i32
  }
  func.func @transform_2(%arg0: i32) -> (i32, i32) {
    %c0_i32 = arith.constant 0 : i32
    %c0_i32_0 = arith.constant 0 : i32
    %c0_i32_1 = arith.constant 0 : i32
    return %c0_i32, %c0_i32_0 : i32, i32
  }
  func.func @transform_3(%arg0: i32) -> (i32, i32, i32) {
    %c0_i32 = arith.constant 0 : i32
    %c0_i32_0 = arith.constant 0 : i32
    %c0_i32_1 = arith.constant 0 : i32
    %c0_i32_2 = arith.constant 0 : i32
    return %c0_i32, %c0_i32_0, %c0_i32_1 : i32, i32, i32
  }
  func.func @transform_4(%arg0: i32) -> (i32, i32) {
    %c0_i32 = arith.constant 0 : i32
    %c0_i32_0 = arith.constant 0 : i32
    %c0_i32_1 = arith.constant 0 : i32
    return %c0_i32, %c0_i32_0 : i32, i32
  }
  func.func @transform_5(%arg0: i32) -> (i32, i32) {
    %c0_i32 = arith.constant 0 : i32
    %c0_i32_0 = arith.constant 0 : i32
    %c0_i32_1 = arith.constant 0 : i32
    return %c0_i32, %c0_i32_0 : i32, i32
  }
  func.func @transform_6(%arg0: i32) -> (i32, i32) {
    %c0_i32 = arith.constant 0 : i32
    %c0_i32_0 = arith.constant 0 : i32
    return %arg0, %c0_i32 : i32, i32
  }
}

</mosaic_0001>

<llo_original>
// kernel: forward.1
$region0: #{forward.1}
  #allocation0 [shape = 'u32[]', space=smem, size = 0x4, offset = 0x4, fixed_abs, tag = 'smem constant byte address 0x4 - core index']
  #allocation1 [shape = 'u32[144,128]{1,0:T(1,128)}', space=vmem, size = 0x12000, scoped, tag = 'internal scratch']
  %s0 = inlined_call_operand.hbm [shape: f32[256,32], index: 0, kind: input, shape index: {}]
  %s1 = inlined_call_operand.hbm [shape: bf16[32,96], index: 1, kind: input, shape index: {}]
  %s2 = inlined_call_operand.vmem [shape: f32[1,96], index: 2, kind: input, shape index: {}]
  %s3 = inlined_call_operand.hbm [shape: bf16[4,32,32], index: 3, kind: input, shape index: {}]
  %s4 = inlined_call_operand.vmem [shape: bf16[32,32], index: 4, kind: input, shape index: {}]
  %s5 = inlined_call_operand.vmem [shape: f32[1,32], index: 5, kind: input, shape index: {}]
  %s6 = inlined_call_operand.hbm [shape: f32[256,32], index: 6, kind: output, shape index: {}]
  %s7 = sld [smem:[#allocation0]]
  $region46: #{forward.1} parent=0
    _
  %s9 = ssub.s32 1, %s7
  %s10 = scalar_select 0, %s9, %s7
  $region1: #{forward.1} parent=0
    #allocation2 [shape = 'u8[131072]{0}', space=vmem, size = 0x20000, scoped, tag = 'input window, operand 0, single buffered']
    #allocation3 [shape = 's32[1]{0}', space=sflag, size = 0x4, scoped, tag = 'scoped memory for forward.1']
    #allocation4 [shape = 's32[1]{0}', space=sflag, size = 0x4, scoped, tag = 'scoped memory for forward.1']
    #allocation5 [shape = 'u8[8192]{0}', space=vmem, size = 0x2000, scoped, tag = 'input window, operand 1, single buffered']
    #allocation6 [shape = 's32[1]{0}', space=sflag, size = 0x4, scoped, tag = 'scoped memory for forward.1']
    #allocation7 [shape = 'u8[32768]{0}', space=vmem, size = 0x8000, scoped, tag = 'input window, operand 3, single buffered']
    #allocation8 [shape = 'u8[131072]{0}', space=vmem, size = 0x20000, scoped, tag = 'output window, operand 0, single buffered']
    %11 = vsyncpa [#allocation3], 0
    %12 = vsyncpa [#allocation6], 0
    %13 = vsyncpa [#allocation4], 0
    // Predicated region
    $region2: #{forward.1} parent=1 // pred_check
      _
    $region3: #{forward.1} parent=1 // pred_check_branch
      %15 = sbr.rel (0) target = $region5
    $region4: #{forward.1} parent=1 // pred_region
      %s17 = ssub.s32 4096, 4096
      %18 = vsyncadd [#allocation3], %s17
      %s19 = sshll.u32 [#allocation2], 4
      %s20 = int_to_ptr.vmem [resolvable:$true] %s19
      %25 = dma.hbm_to_vmem [thread:$0]  %s0, 4096, %s20, [#allocation3], 128, 128, 8
    $region5: #{forward.1} parent=1 // pred_fallthru
      _
    // Predicated region
    $region6: #{forward.1} parent=1 // pred_check
      _
    $region7: #{forward.1} parent=1 // pred_check_branch
      %27 = sbr.rel (0) target = $region9
    $region8: #{forward.1} parent=1 // pred_region
      %s29 = ssub.s32 256, 256
      %30 = vsyncadd [#allocation6], %s29
      %s31 = sshll.u32 [#allocation5], 4
      %s32 = int_to_ptr.vmem [resolvable:$true] %s31
      %37 = dma.hbm_to_vmem [thread:$0]  %s1, 256, %s32, [#allocation6], 64, 64, 4
    $region9: #{forward.1} parent=1 // pred_fallthru
      _
    // Predicated region
    $region10: #{forward.1} parent=1 // pred_check
      _
    $region11: #{forward.1} parent=1 // pred_check_branch
      %39 = sbr.rel (0) target = $region13
    $region12: #{forward.1} parent=1 // pred_region
      _
    $region13: #{forward.1} parent=1 // pred_fallthru
      _
    // Predicated region
    $region14: #{forward.1} parent=1 // pred_check
      _
    $region15: #{forward.1} parent=1 // pred_check_branch
      %41 = sbr.rel (0) target = $region17
    $region16: #{forward.1} parent=1 // pred_region
      %s43 = ssub.s32 1024, 1024
      %44 = vsyncadd [#allocation6], %s43
      %s45 = sshll.u32 [#allocation7], 4
      %s46 = int_to_ptr.vmem [resolvable:$true] %s45
      %51 = dma.hbm_to_vmem [thread:$0]  %s3, 1024, %s46, [#allocation6], 64, 64, 4
    $region17: #{forward.1} parent=1 // pred_fallthru
      _
    // Predicated region
    $region18: #{forward.1} parent=1 // pred_check
      _
    $region19: #{forward.1} parent=1 // pred_check_branch
      %53 = sbr.rel (0) target = $region21
    $region20: #{forward.1} parent=1 // pred_region
      _
    $region21: #{forward.1} parent=1 // pred_fallthru
      _
    // Predicated region
    $region22: #{forward.1} parent=1 // pred_check
      _
    $region23: #{forward.1} parent=1 // pred_check_branch
      %55 = sbr.rel (0) target = $region25
    $region24: #{forward.1} parent=1 // pred_region
      _
    $region25: #{forward.1} parent=1 // pred_fallthru
      _
    // Predicated region
    $region26: #{forward.1} parent=1 // pred_check
      _
    $region27: #{forward.1} parent=1 // pred_check_branch
      %57 = sbr.rel (0) target = $region29
    $region28: #{forward.1} parent=1 // pred_region
      %58 = dma.done [#allocation3], 4096
    $region29: #{forward.1} parent=1 // pred_fallthru
      _
    // Predicated region
    $region30: #{forward.1} parent=1 // pred_check
      _
    $region31: #{forward.1} parent=1 // pred_check_branch
      %60 = sbr.rel (0) target = $region33
    $region32: #{forward.1} parent=1 // pred_region
      %61 = dma.done [#allocation6], 256
    $region33: #{forward.1} parent=1 // pred_fallthru
      _
    // Predicated region
    $region34: #{forward.1} parent=1 // pred_check
      _
    $region35: #{forward.1} parent=1 // pred_check_branch
      %63 = sbr.rel (0) target = $region37
    $region36: #{forward.1} parent=1 // pred_region
      %64 = dma.done [#allocation6], 1024
    $region37: #{forward.1} parent=1 // pred_fallthru
      _
    %v66 = vld [vmem:[#allocation2] sm:$0xff]
    %v67 = vld [vmem:[#allocation2 + $0x8] sm:$0xff]
    %v68 = vld [vmem:[#allocation2 + $0x10] sm:$0xff]
    %v69 = vld [vmem:[#allocation2 + $0x18] sm:$0xff]
    %v70 = vld [vmem:[#allocation2 + $0x20] sm:$0xff]
    %v71 = vld [vmem:[#allocation2 + $0x28] sm:$0xff]
    %v72 = vld [vmem:[#allocation2 + $0x30] sm:$0xff]
    %v73 = vld [vmem:[#allocation2 + $0x38] sm:$0xff]
    %v74 = vld [vmem:[#allocation2 + $0x40] sm:$0xff]
    %v75 = vld [vmem:[#allocation2 + $0x48] sm:$0xff]
    %v76 = vld [vmem:[#allocation2 + $0x50] sm:$0xff]
    %v77 = vld [vmem:[#allocation2 + $0x58] sm:$0xff]
    %v78 = vld [vmem:[#allocation2 + $0x60] sm:$0xff]
    %v79 = vld [vmem:[#allocation2 + $0x68] sm:$0xff]
    %v80 = vld [vmem:[#allocation2 + $0x70] sm:$0xff]
    %v81 = vld [vmem:[#allocation2 + $0x78] sm:$0xff]
    %v82 = vld [vmem:[#allocation2 + $0x80] sm:$0xff]
    %v83 = vld [vmem:[#allocation2 + $0x88] sm:$0xff]
    %v84 = vld [vmem:[#allocation2 + $0x90] sm:$0xff]
    %v85 = vld [vmem:[#allocation2 + $0x98] sm:$0xff]
    %v86 = vld [vmem:[#allocation2 + $0xa0] sm:$0xff]
    %v87 = vld [vmem:[#allocation2 + $0xa8] sm:$0xff]
    %v88 = vld [vmem:[#allocation2 + $0xb0] sm:$0xff]
    %v89 = vld [vmem:[#allocation2 + $0xb8] sm:$0xff]
    %v90 = vld [vmem:[#allocation2 + $0xc0] sm:$0xff]
    %v91 = vld [vmem:[#allocation2 + $0xc8] sm:$0xff]
    %v92 = vld [vmem:[#allocation2 + $0xd0] sm:$0xff]
    %v93 = vld [vmem:[#allocation2 + $0xd8] sm:$0xff]
    %v94 = vld [vmem:[#allocation2 + $0xe0] sm:$0xff]
    %v95 = vld [vmem:[#allocation2 + $0xe8] sm:$0xff]
    %v96 = vld [vmem:[#allocation2 + $0xf0] sm:$0xff]
    %v97 = vld [vmem:[#allocation2 + $0xf8] sm:$0xff]
    %v98 = vpack.c.bf16 %v67, %v66
    %v99 = vpack.c.bf16 %v69, %v68
    %v100 = vpack.c.bf16 %v71, %v70
    %v101 = vpack.c.bf16 %v73, %v72
    %v102 = vpack.c.bf16 %v75, %v74
    %v103 = vpack.c.bf16 %v77, %v76
    %v104 = vpack.c.bf16 %v79, %v78
    %v105 = vpack.c.bf16 %v81, %v80
    %v106 = vpack.c.bf16 %v83, %v82
    %v107 = vpack.c.bf16 %v85, %v84
    %v108 = vpack.c.bf16 %v87, %v86
    %v109 = vpack.c.bf16 %v89, %v88
    %v110 = vpack.c.bf16 %v91, %v90
    %v111 = vpack.c.bf16 %v93, %v92
    %v112 = vpack.c.bf16 %v95, %v94
    %v113 = vpack.c.bf16 %v97, %v96
    %v114 = vld [vmem:[#allocation5] sm:$0xf]
    %v115 = vld [vmem:[#allocation5 + $0x4] sm:$0xf]
    %v116 = vld [vmem:[#allocation5 + $0x8] sm:$0xf]
    %v117 = vld [vmem:[#allocation5 + $0xc] sm:$0xf]
    %v118 = vld [vmem:[%s2] sm:$0x1]
    %v120 = vlaneseq
    %v121 = vshrl.u32 %v120, 7
    %v122 = vsub.s32 0, %v121
    %v123 = vrot.slane %v118, %v122
    %v129 = vunpack.c.l.b16 %v114
    %v130 = vunpack.c.l.b16 %v115
    %v131 = vunpack.c.l.b16 %v116
    %v132 = vunpack.c.l.b16 %v117
    %v133 = vpack.c.b16 %v130, %v129
    %v134 = vpack.c.b16 %v132, %v131
    %vm137 = vcmask 261120
    %v139 = vsel %vm137, %v98, 0
    %v142 = vsel %vm137, %v99, 0
    %v145 = vsel %vm137, %v100, 0
    %v148 = vsel %vm137, %v101, 0
    %v151 = vsel %vm137, %v102, 0
    %v154 = vsel %vm137, %v103, 0
    %v157 = vsel %vm137, %v104, 0
    %v160 = vsel %vm137, %v105, 0
    %v163 = vsel %vm137, %v106, 0
    %v166 = vsel %vm137, %v107, 0
    %v169 = vsel %vm137, %v108, 0
    %v172 = vsel %vm137, %v109, 0
    %v175 = vsel %vm137, %v110, 0
    %v178 = vsel %vm137, %v111, 0
    %v181 = vsel %vm137, %v112, 0
    %v184 = vsel %vm137, %v113, 0
    %186 = vmatprep.subr.bf16.mxu0 0
    %187 = vmatpush1.bf16.msra.mxu0 %v133
    %188 = vmatprep.subr.bf16.mxu0 0
    %189 = vmatpush1.bf16.msra.mxu0 %v134
    %190 = vmatprep.subr.bf16.mxu0 0
    %191 = vmatpush1.bf16.msra.mxu0 0
    %192 = vmatprep.subr.bf16.mxu0 0
    %193 = vmatpush1.bf16.msra.mxu0 0
    %194 = vmatprep.subr.bf16.mxu0 0
    %195 = vmatpush1.bf16.msra.mxu0 0
    %196 = vmatprep.subr.bf16.mxu0 0
    %197 = vmatpush1.bf16.msra.mxu0 0
    %198 = vmatprep.subr.bf16.mxu0 0
    %199 = vmatpush1.bf16.msra.mxu0 0
    %200 = vmatprep.subr.bf16.mxu0 0
    %201 = vmatpush1.bf16.msra.mxu0 0
    %202 = vmatprep.subr.bf16.mxu0 0
    %203 = vmatpush1.bf16.msra.mxu0 0
    %204 = vmatprep.subr.bf16.mxu0 0
    %205 = vmatpush1.bf16.msra.mxu0 0
    %206 = vmatprep.subr.bf16.mxu0 0
    %207 = vmatpush1.bf16.msra.mxu0 0
    %208 = vmatprep.subr.bf16.mxu0 0
    %209 = vmatpush1.bf16.msra.mxu0 0
    %210 = vmatprep.subr.bf16.mxu0 0
    %211 = vmatpush1.bf16.msra.mxu0 0
    %212 = vmatprep.subr.bf16.mxu0 0
    %213 = vmatpush1.bf16.msra.mxu0 0
    %214 = vmatprep.subr.bf16.mxu0 0
    %215 = vmatpush1.bf16.msra.mxu0 0
    %216 = vmatprep.subr.bf16.mxu0 0
    %217 = vmatpush1.bf16.msra.mxu0 0
    %218 = vmatprep.mubr.bf16.mxu0 0
    %219 = vmatmul.mubr.bf16.gmra.mrb[0].mxu0 %v139
    %v220 = vpop.f32.mrb[0].mxu0
    %v221 = vadd.f32 %v123, %v220
    %v222 = vpop.f32.mrb[0].mxu0
    %v223 = vpop.f32.mrb[0].mxu0
    %v224 = vadd.f32 %v123, %v223
    %v225 = vpop.f32.mrb[0].mxu0
    %226 = vmatprep.mubr.bf16.mxu0 0
    %227 = vmatmul.mubr.bf16.gmra.mrb[0].mxu0 %v142
    %v228 = vpop.f32.mrb[0].mxu0
    %v229 = vadd.f32 %v123, %v228
    %v230 = vpop.f32.mrb[0].mxu0
    %v231 = vpop.f32.mrb[0].mxu0
    %v232 = vadd.f32 %v123, %v231
    %v233 = vpop.f32.mrb[0].mxu0
    %234 = vmatprep.mubr.bf16.mxu0 0
    %235 = vmatmul.mubr.bf16.gmra.mrb[0].mxu0 %v145
    %v236 = vpop.f32.mrb[0].mxu0
    %v237 = vadd.f32 %v123, %v236
    %v238 = vpop.f32.mrb[0].mxu0
    %v239 = vpop.f32.mrb[0].mxu0
    %v240 = vadd.f32 %v123, %v239
    %v241 = vpop.f32.mrb[0].mxu0
    %242 = vmatprep.mubr.bf16.mxu0 0
    %243 = vmatmul.mubr.bf16.gmra.mrb[0].mxu0 %v148
    %v244 = vpop.f32.mrb[0].mxu0
    %v245 = vadd.f32 %v123, %v244
    %v246 = vpop.f32.mrb[0].mxu0
    %v247 = vpop.f32.mrb[0].mxu0
    %v248 = vadd.f32 %v123, %v247
    %v249 = vpop.f32.mrb[0].mxu0
    %250 = vmatprep.mubr.bf16.mxu0 0
    %251 = vmatmul.mubr.bf16.gmra.mrb[0].mxu0 %v151
    %v252 = vpop.f32.mrb[0].mxu0
    %v253 = vadd.f32 %v123, %v252
    %v254 = vpop.f32.mrb[0].mxu0
    %v255 = vpop.f32.mrb[0].mxu0
    %v256 = vadd.f32 %v123, %v255
    %v257 = vpop.f32.mrb[0].mxu0
    %258 = vmatprep.mubr.bf16.mxu0 0
    %259 = vmatmul.mubr.bf16.gmra.mrb[0].mxu0 %v154
    %v260 = vpop.f32.mrb[0].mxu0
    %v261 = vadd.f32 %v123, %v260
    %v262 = vpop.f32.mrb[0].mxu0
    %v263 = vpop.f32.mrb[0].mxu0
    %v264 = vadd.f32 %v123, %v263
    %v265 = vpop.f32.mrb[0].mxu0
    %266 = vmatprep.mubr.bf16.mxu0 0
    %267 = vmatmul.mubr.bf16.gmra.mrb[0].mxu0 %v157
    %v268 = vpop.f32.mrb[0].mxu0
    %v269 = vadd.f32 %v123, %v268
    %v270 = vpop.f32.mrb[0].mxu0
    %v271 = vpop.f32.mrb[0].mxu0
    %v272 = vadd.f32 %v123, %v271
    %v273 = vpop.f32.mrb[0].mxu0
    %274 = vmatprep.mubr.bf16.mxu0 0
    %275 = vmatmul.mubr.bf16.gmra.mrb[0].mxu0 %v160
    %v276 = vpop.f32.mrb[0].mxu0
    %v277 = vadd.f32 %v123, %v276
    %v278 = vpop.f32.mrb[0].mxu0
    %v279 = vpop.f32.mrb[0].mxu0
    %v280 = vadd.f32 %v123, %v279
    %v281 = vpop.f32.mrb[0].mxu0
    %282 = vmatprep.mubr.bf16.mxu0 0
    %283 = vmatmul.mubr.bf16.gmra.mrb[0].mxu0 %v163
    %v284 = vpop.f32.mrb[0].mxu0
    %v285 = vadd.f32 %v123, %v284
    %v286 = vpop.f32.mrb[0].mxu0
    %v287 = vpop.f32.mrb[0].mxu0
    %v288 = vadd.f32 %v123, %v287
    %v289 = vpop.f32.mrb[0].mxu0
    %290 = vmatprep.mubr.bf16.mxu0 0
    %291 = vmatmul.mubr.bf16.gmra.mrb[0].mxu0 %v166
    %v292 = vpop.f32.mrb[0].mxu0
    %v293 = vadd.f32 %v123, %v292
    %v294 = vpop.f32.mrb[0].mxu0
    %v295 = vpop.f32.mrb[0].mxu0
    %v296 = vadd.f32 %v123, %v295
    %v297 = vpop.f32.mrb[0].mxu0
    %298 = vmatprep.mubr.bf16.mxu0 0
    %299 = vmatmul.mubr.bf16.gmra.mrb[0].mxu0 %v169
    %v300 = vpop.f32.mrb[0].mxu0
    %v301 = vadd.f32 %v123, %v300
    %v302 = vpop.f32.mrb[0].mxu0
    %v303 = vpop.f32.mrb[0].mxu0
    %v304 = vadd.f32 %v123, %v303
    %v305 = vpop.f32.mrb[0].mxu0
    %306 = vmatprep.mubr.bf16.mxu0 0
    %307 = vmatmul.mubr.bf16.gmra.mrb[0].mxu0 %v172
    %v308 = vpop.f32.mrb[0].mxu0
    %v309 = vadd.f32 %v123, %v308
    %v310 = vpop.f32.mrb[0].mxu0
    %v311 = vpop.f32.mrb[0].mxu0
    %v312 = vadd.f32 %v123, %v311
    %v313 = vpop.f32.mrb[0].mxu0
    %314 = vmatprep.mubr.bf16.mxu0 0
    %315 = vmatmul.mubr.bf16.gmra.mrb[0].mxu0 %v175
    %v316 = vpop.f32.mrb[0].mxu0
    %v317 = vadd.f32 %v123, %v316
    %v318 = vpop.f32.mrb[0].mxu0
    %v319 = vpop.f32.mrb[0].mxu0
    %v320 = vadd.f32 %v123, %v319
    %v321 = vpop.f32.mrb[0].mxu0
    %322 = vmatprep.mubr.bf16.mxu0 0
    %323 = vmatmul.mubr.bf16.gmra.mrb[0].mxu0 %v178
    %v324 = vpop.f32.mrb[0].mxu0
    %v325 = vadd.f32 %v123, %v324
    %v326 = vpop.f32.mrb[0].mxu0
    %v327 = vpop.f32.mrb[0].mxu0
    %v328 = vadd.f32 %v123, %v327
    %v329 = vpop.f32.mrb[0].mxu0
    %330 = vmatprep.mubr.bf16.mxu0 0
    %331 = vmatmul.mubr.bf16.gmra.mrb[0].mxu0 %v181
    %v332 = vpop.f32.mrb[0].mxu0
    %v333 = vadd.f32 %v123, %v332
    %v334 = vpop.f32.mrb[0].mxu0
    %v335 = vpop.f32.mrb[0].mxu0
    %v336 = vadd.f32 %v123, %v335
    %v337 = vpop.f32.mrb[0].mxu0
    %338 = vmatprep.mubr.bf16.mxu0 0
    %339 = vmatmul.mubr.bf16.gmra.mrb[0].mxu0 %v184
    %v340 = vpop.f32.mrb[0].mxu0
    %v341 = vadd.f32 %v123, %v340
    %v342 = vpop.f32.mrb[0].mxu0
    %v343 = vpop.f32.mrb[0].mxu0
    %v344 = vadd.f32 %v123, %v343
    %v345 = vpop.f32.mrb[0].mxu0
    %346 = vdwg.mxu0
    %v347 = vpack.c.bf16 %v224, %v221
    %v348 = vpack.c.bf16 %v232, %v229
    %v349 = vpack.c.bf16 %v240, %v237
    %v350 = vpack.c.bf16 %v248, %v245
    %v351 = vpack.c.bf16 %v256, %v253
    %v352 = vpack.c.bf16 %v264, %v261
    %v353 = vpack.c.bf16 %v272, %v269
    %v354 = vpack.c.bf16 %v280, %v277
    %v355 = vpack.c.bf16 %v288, %v285
    %v356 = vpack.c.bf16 %v296, %v293
    %v357 = vpack.c.bf16 %v304, %v301
    %v358 = vpack.c.bf16 %v312, %v309
    %v359 = vpack.c.bf16 %v320, %v317
    %v360 = vpack.c.bf16 %v328, %v325
    %v361 = vpack.c.bf16 %v336, %v333
    %v362 = vpack.c.bf16 %v344, %v341
    %379 = vrot.lane.b32.xlu0 %v347, 120
    %v380 = vpop.permute.xlu0 %379
    %381 = vrot.lane.b32.xlu0 %v348, 120
    %v382 = vpop.permute.xlu0 %381
    %383 = vrot.lane.b32.xlu0 %v349, 120
    %v384 = vpop.permute.xlu0 %383
    %385 = vrot.lane.b32.xlu0 %v350, 120
    %v386 = vpop.permute.xlu0 %385
    %387 = vrot.lane.b32.xlu0 %v351, 120
    %v388 = vpop.permute.xlu0 %387
    %389 = vrot.lane.b32.xlu0 %v352, 120
    %v390 = vpop.permute.xlu0 %389
    %391 = vrot.lane.b32.xlu0 %v353, 120
    %v392 = vpop.permute.xlu0 %391
    %393 = vrot.lane.b32.xlu0 %v354, 120
    %v394 = vpop.permute.xlu0 %393
    %395 = vrot.lane.b32.xlu0 %v355, 120
    %v396 = vpop.permute.xlu0 %395
    %397 = vrot.lane.b32.xlu0 %v356, 120
    %v398 = vpop.permute.xlu0 %397
    %399 = vrot.lane.b32.xlu0 %v357, 120
    %v400 = vpop.permute.xlu0 %399
    %401 = vrot.lane.b32.xlu0 %v358, 120
    %v402 = vpop.permute.xlu0 %401
    %403 = vrot.lane.b32.xlu0 %v359, 120
    %v404 = vpop.permute.xlu0 %403
    %405 = vrot.lane.b32.xlu0 %v360, 120
    %v406 = vpop.permute.xlu0 %405
    %407 = vrot.lane.b32.xlu0 %v361, 120
    %v408 = vpop.permute.xlu0 %407
    %409 = vrot.lane.b32.xlu0 %v362, 120
    %v410 = vpop.permute.xlu0 %409
    %411 = vrot.lane.b32.xlu0 %v347, 112
    %v412 = vpop.permute.xlu0 %411
    %413 = vrot.lane.b32.xlu0 %v348, 112
    %v414 = vpop.permute.xlu0 %413
    %415 = vrot.lane.b32.xlu0 %v349, 112
    %v416 = vpop.permute.xlu0 %415
    %417 = vrot.lane.b32.xlu0 %v350, 112
    %v418 = vpop.permute.xlu0 %417
    %419 = vrot.lane.b32.xlu0 %v351, 112
    %v420 = vpop.permute.xlu0 %419
    %421 = vrot.lane.b32.xlu0 %v352, 112
    %v422 = vpop.permute.xlu0 %421
    %423 = vrot.lane.b32.xlu0 %v353, 112
    %v424 = vpop.permute.xlu0 %423
    %425 = vrot.lane.b32.xlu0 %v354, 112
    %v426 = vpop.permute.xlu0 %425
    %427 = vrot.lane.b32.xlu0 %v355, 112
    %v428 = vpop.permute.xlu0 %427
    %429 = vrot.lane.b32.xlu0 %v356, 112
    %v430 = vpop.permute.xlu0 %429
    %431 = vrot.lane.b32.xlu0 %v357, 112
    %v432 = vpop.permute.xlu0 %431
    %433 = vrot.lane.b32.xlu0 %v358, 112
    %v434 = vpop.permute.xlu0 %433
    %435 = vrot.lane.b32.xlu0 %v359, 112
    %v436 = vpop.permute.xlu0 %435
    %437 = vrot.lane.b32.xlu0 %v360, 112
    %v438 = vpop.permute.xlu0 %437
    %439 = vrot.lane.b32.xlu0 %v361, 112
    %v440 = vpop.permute.xlu0 %439
    %441 = vrot.lane.b32.xlu0 %v362, 112
    %v442 = vpop.permute.xlu0 %441
    %443 = vrot.lane.b32.xlu0 %v347, 104
    %v444 = vpop.permute.xlu0 %443
    %445 = vrot.lane.b32.xlu0 %v348, 104
    %v446 = vpop.permute.xlu0 %445
    %447 = vrot.lane.b32.xlu0 %v349, 104
    %v448 = vpop.permute.xlu0 %447
    %449 = vrot.lane.b32.xlu0 %v350, 104
    %v450 = vpop.permute.xlu0 %449
    %451 = vrot.lane.b32.xlu0 %v351, 104
    %v452 = vpop.permute.xlu0 %451
    %453 = vrot.lane.b32.xlu0 %v352, 104
    %v454 = vpop.permute.xlu0 %453
    %455 = vrot.lane.b32.xlu0 %v353, 104
    %v456 = vpop.permute.xlu0 %455
    %457 = vrot.lane.b32.xlu0 %v354, 104
    %v458 = vpop.permute.xlu0 %457
    %459 = vrot.lane.b32.xlu0 %v355, 104
    %v460 = vpop.permute.xlu0 %459
    %461 = vrot.lane.b32.xlu0 %v356, 104
    %v462 = vpop.permute.xlu0 %461
    %463 = vrot.lane.b32.xlu0 %v357, 104
    %v464 = vpop.permute.xlu0 %463
    %465 = vrot.lane.b32.xlu0 %v358, 104
    %v466 = vpop.permute.xlu0 %465
    %467 = vrot.lane.b32.xlu0 %v359, 104
    %v468 = vpop.permute.xlu0 %467
    %469 = vrot.lane.b32.xlu0 %v360, 104
    %v470 = vpop.permute.xlu0 %469
    %471 = vrot.lane.b32.xlu0 %v361, 104
    %v472 = vpop.permute.xlu0 %471
    %473 = vrot.lane.b32.xlu0 %v362, 104
    %v474 = vpop.permute.xlu0 %473
    %475 = vrot.lane.b32.xlu0 %v347, 96
    %v476 = vpop.permute.xlu0 %475
    %477 = vrot.lane.b32.xlu0 %v348, 96
    %v478 = vpop.permute.xlu0 %477
    %vm479 = vcmask 64512
    %v481 = vsel %vm479, %v347, 0
    %v484 = vsel %vm479, %v348, 0
    %v487 = vsel %vm479, %v476, 0
    %v490 = vsel %vm479, %v478, 0
    %492 = vmatprep.subr.bf16.mxu0 0
    %493 = vmatpush1.bf16.xpose.msra.mxu0 %v487
    %494 = vmatprep.subr.bf16.mxu0 0
    %495 = vmatpush1.bf16.xpose.msra.mxu0 %v490
    %496 = vmatprep.subr.bf16.mxu0 0
    %497 = vmatpush1.bf16.xpose.msra.mxu0 0
    %498 = vmatprep.subr.bf16.mxu0 0
    %499 = vmatpush1.bf16.xpose.msra.mxu0 0
    %500 = vmatprep.subr.bf16.mxu0 0
    %501 = vmatpush1.bf16.xpose.msra.mxu0 0
    %502 = vmatprep.subr.bf16.mxu0 0
    %503 = vmatpush1.bf16.xpose.msra.mxu0 0
    %504 = vmatprep.subr.bf16.mxu0 0
    %505 = vmatpush1.bf16.xpose.msra.mxu0 0
    %506 = vmatprep.subr.bf16.mxu0 0
    %507 = vmatpush1.bf16.xpose.msra.mxu0 0
    %508 = vmatprep.subr.bf16.mxu0 0
    %509 = vmatpush1.bf16.xpose.msra.mxu0 0
    %510 = vmatprep.subr.bf16.mxu0 0
    %511 = vmatpush1.bf16.xpose.msra.mxu0 0
    %512 = vmatprep.subr.bf16.mxu0 0
    %513 = vmatpush1.bf16.xpose.msra.mxu0 0
    %514 = vmatprep.subr.bf16.mxu0 0
    %515 = vmatpush1.bf16.xpose.msra.mxu0 0
    %516 = vmatprep.subr.bf16.mxu0 0
    %517 = vmatpush1.bf16.xpose.msra.mxu0 0
    %518 = vmatprep.subr.bf16.mxu0 0
    %519 = vmatpush1.bf16.xpose.msra.mxu0 0
    %520 = vmatprep.subr.bf16.mxu0 0
    %521 = vmatpush1.bf16.xpose.msra.mxu0 0
    %522 = vmatprep.subr.bf16.mxu0 0
    %523 = vmatpush1.bf16.xpose.msra.mxu0 0
    %524 = vmatprep.mubr.bf16.mxu0 0
    %525 = vmatmul.mubr.bf16.gmra.mrb[0].mxu0 %v481
    %v526 = vpop.f32.mrb[0].mxu0
    %v527 = vadd.f32 0.0, %v526
    %v528 = vpop.f32.mrb[0].mxu0
    %v529 = vpop.f32.mrb[0].mxu0
    %v530 = vadd.f32 0.0, %v529
    %v531 = vpop.f32.mrb[0].mxu0
    %532 = vmatprep.mubr.bf16.mxu0 0
    %533 = vmatmul.mubr.bf16.gmra.mrb[0].mxu0 %v484
    %v534 = vpop.f32.mrb[0].mxu0
    %v535 = vadd.f32 0.0, %v534
    %v536 = vpop.f32.mrb[0].mxu0
    %v537 = vpop.f32.mrb[0].mxu0
    %v538 = vadd.f32 0.0, %v537
    %v539 = vpop.f32.mrb[0].mxu0
    %540 = vdwg.mxu0
    %541 = vrot.lane.b32.xlu0 %v349, 96
    %v542 = vpop.permute.xlu0 %541
    %543 = vrot.lane.b32.xlu0 %v350, 96
    %v544 = vpop.permute.xlu0 %543
    %v546 = vsel %vm479, %v349, 0
    %v549 = vsel %vm479, %v350, 0
    %v552 = vsel %vm479, %v542, 0
    %v555 = vsel %vm479, %v544, 0
    %557 = vmatprep.subr.bf16.mxu0 0
    %558 = vmatpush1.bf16.xpose.msra.mxu0 %v552
    %559 = vmatprep.subr.bf16.mxu0 0
    %560 = vmatpush1.bf16.xpose.msra.mxu0 %v555
    %561 = vmatprep.subr.bf16.mxu0 0
    %562 = vmatpush1.bf16.xpose.msra.mxu0 0
    %563 = vmatprep.subr.bf16.mxu0 0
    %564 = vmatpush1.bf16.xpose.msra.mxu0 0
    %565 = vmatprep.subr.bf16.mxu0 0
    %566 = vmatpush1.bf16.xpose.msra.mxu0 0
    %567 = vmatprep.subr.bf16.mxu0 0
    %568 = vmatpush1.bf16.xpose.msra.mxu0 0
    %569 = vmatprep.subr.bf16.mxu0 0
    %570 = vmatpush1.bf16.xpose.msra.mxu0 0
    %571 = vmatprep.subr.bf16.mxu0 0
    %572 = vmatpush1.bf16.xpose.msra.mxu0 0
    %573 = vmatprep.subr.bf16.mxu0 0
    %574 = vmatpush1.bf16.xpose.msra.mxu0 0
    %575 = vmatprep.subr.bf16.mxu0 0
    %576 = vmatpush1.bf16.xpose.msra.mxu0 0
    %577 = vmatprep.subr.bf16.mxu0 0
    %578 = vmatpush1.bf16.xpose.msra.mxu0 0
    %579 = vmatprep.subr.bf16.mxu0 0
    %580 = vmatpush1.bf16.xpose.msra.mxu0 0
    %581 = vmatprep.subr.bf16.mxu0 0
    %582 = vmatpush1.bf16.xpose.msra.mxu0 0
    %583 = vmatprep.subr.bf16.mxu0 0
    %584 = vmatpush1.bf16.xpose.msra.mxu0 0
    %585 = vmatprep.subr.bf16.mxu0 0
    %586 = vmatpush1.bf16.xpose.msra.mxu0 0
    %587 = vmatprep.subr.bf16.mxu0 0
    %588 = vmatpush1.bf16.xpose.msra.mxu0 0
    %589 = vmatprep.mubr.bf16.mxu0 0
    %590 = vmatmul.mubr.bf16.gmra.mrb[0].mxu0 %v546
    %v591 = vpop.f32.mrb[0].mxu0
    %v592 = vadd.f32 0.0, %v591
    %v593 = vpop.f32.mrb[0].mxu0
    %v594 = vpop.f32.mrb[0].mxu0
    %v595 = vadd.f32 0.0, %v594
    %v596 = vpop.f32.mrb[0].mxu0
    %597 = vmatprep.mubr.bf16.mxu0 0
    %598 = vmatmul.mubr.bf16.gmra.mrb[0].mxu0 %v549
    %v599 = vpop.f32.mrb[0].mxu0
    %v600 = vadd.f32 0.0, %v599
    %v601 = vpop.f32.mrb[0].mxu0
    %v602 = vpop.f32.mrb[0].mxu0
    %v603 = vadd.f32 0.0, %v602
    %v604 = vpop.f32.mrb[0].mxu0
    %605 = vdwg.mxu0
    %606 = vrot.lane.b32.xlu0 %v351, 96
    %v607 = vpop.permute.xlu0 %606
    %608 = vrot.lane.b32.xlu0 %v352, 96
    %v609 = vpop.permute.xlu0 %608
    %v611 = vsel %vm479, %v351, 0
    %v614 = vsel %vm479, %v352, 0
    %v617 = vsel %vm479, %v607, 0
    %v620 = vsel %vm479, %v609, 0
    %622 = vmatprep.subr.bf16.mxu0 0
    %623 = vmatpush1.bf16.xpose.msra.mxu0 %v617
    %624 = vmatprep.subr.bf16.mxu0 0
    %625 = vmatpush1.bf16.xpose.msra.mxu0 %v620
    %626 = vmatprep.subr.bf16.mxu0 0
    %627 = vmatpush1.bf16.xpose.msra.mxu0 0
    %628 = vmatprep.subr.bf16.mxu0 0
    %629 = vmatpush1.bf16.xpose.msra.mxu0 0
    %630 = vmatprep.subr.bf16.mxu0 0
    %631 = vmatpush1.bf16.xpose.msra.mxu0 0
    %632 = vmatprep.subr.bf16.mxu0 0
    %633 = vmatpush1.bf16.xpose.msra.mxu0 0
    %634 = vmatprep.subr.bf16.mxu0 0
    %635 = vmatpush1.bf16.xpose.msra.mxu0 0
    %636 = vmatprep.subr.bf16.mxu0 0
    %637 = vmatpush1.bf16.xpose.msra.mxu0 0
    %638 = vmatprep.subr.bf16.mxu0 0
    %639 = vmatpush1.bf16.xpose.msra.mxu0 0
    %640 = vmatprep.subr.bf16.mxu0 0
    %641 = vmatpush1.bf16.xpose.msra.mxu0 0
    %642 = vmatprep.subr.bf16.mxu0 0
    %643 = vmatpush1.bf16.xpose.msra.mxu0 0
    %644 = vmatprep.subr.bf16.mxu0 0
    %645 = vmatpush1.bf16.xpose.msra.mxu0 0
    %646 = vmatprep.subr.bf16.mxu0 0
    %647 = vmatpush1.bf16.xpose.msra.mxu0 0
    %648 = vmatprep.subr.bf16.mxu0 0
    %649 = vmatpush1.bf16.xpose.msra.mxu0 0
    %650 = vmatprep.subr.bf16.mxu0 0
    %651 = vmatpush1.bf16.xpose.msra.mxu0 0
    %652 = vmatprep.subr.bf16.mxu0 0
    %653 = vmatpush1.bf16.xpose.msra.mxu0 0
    %654 = vmatprep.mubr.bf16.mxu0 0
    %655 = vmatmul.mubr.bf16.gmra.mrb[0].mxu0 %v611
    %v656 = vpop.f32.mrb[0].mxu0
    %v657 = vadd.f32 0.0, %v656
    %v658 = vpop.f32.mrb[0].mxu0
    %v659 = vpop.f32.mrb[0].mxu0
    %v660 = vadd.f32 0.0, %v659
    %v661 = vpop.f32.mrb[0].mxu0
    %662 = vmatprep.mubr.bf16.mxu0 0
    %663 = vmatmul.mubr.bf16.gmra.mrb[0].mxu0 %v614
    %v664 = vpop.f32.mrb[0].mxu0
    %v665 = vadd.f32 0.0, %v664
    %v666 = vpop.f32.mrb[0].mxu0
    %v667 = vpop.f32.mrb[0].mxu0
    %v668 = vadd.f32 0.0, %v667
    %v669 = vpop.f32.mrb[0].mxu0
    %670 = vdwg.mxu0
    %671 = vrot.lane.b32.xlu0 %v353, 96
    %v672 = vpop.permute.xlu0 %671
    %673 = vrot.lane.b32.xlu0 %v354, 96
    %v674 = vpop.permute.xlu0 %673
    %v676 = vsel %vm479, %v353, 0
    %v679 = vsel %vm479, %v354, 0
    %v682 = vsel %vm479, %v672, 0
    %v685 = vsel %vm479, %v674, 0
    %687 = vmatprep.subr.bf16.mxu0 0
    %688 = vmatpush1.bf16.xpose.msra.mxu0 %v682
    %689 = vmatprep.subr.bf16.mxu0 0
    %690 = vmatpush1.bf16.xpose.msra.mxu0 %v685
    %691 = vmatprep.subr.bf16.mxu0 0
    %692 = vmatpush1.bf16.xpose.msra.mxu0 0
    %693 = vmatprep.subr.bf16.mxu0 0
    %694 = vmatpush1.bf16.xpose.msra.mxu0 0
    %695 = vmatprep.subr.bf16.mxu0 0
    %696 = vmatpush1.bf16.xpose.msra.mxu0 0
    %697 = vmatprep.subr.bf16.mxu0 0
    %698 = vmatpush1.bf16.xpose.msra.mxu0 0
    %699 = vmatprep.subr.bf16.mxu0 0
    %700 = vmatpush1.bf16.xpose.msra.mxu0 0
    %701 = vmatprep.subr.bf16.mxu0 0
    %702 = vmatpush1.bf16.xpose.msra.mxu0 0
    %703 = vmatprep.subr.bf16.mxu0 0
    %704 = vmatpush1.bf16.xpose.msra.mxu0 0
    %705 = vmatprep.subr.bf16.mxu0 0
    %706 = vmatpush1.bf16.xpose.msra.mxu0 0
    %707 = vmatprep.subr.bf16.mxu0 0
    %708 = vmatpush1.bf16.xpose.msra.mxu0 0
    %709 = vmatprep.subr.bf16.mxu0 0
    %710 = vmatpush1.bf16.xpose.msra.mxu0 0
    %711 = vmatprep.subr.bf16.mxu0 0
    %712 = vmatpush1.bf16.xpose.msra.mxu0 0
    %713 = vmatprep.subr.bf16.mxu0 0
    %714 = vmatpush1.bf16.xpose.msra.mxu0 0
    %715 = vmatprep.subr.bf16.mxu0 0
    %716 = vmatpush1.bf16.xpose.msra.mxu0 0
    %717 = vmatprep.subr.bf16.mxu0 0
    %718 = vmatpush1.bf16.xpose.msra.mxu0 0
    %719 = vmatprep.mubr.bf16.mxu0 0
    %720 = vmatmul.mubr.bf16.gmra.mrb[0].mxu0 %v676
    %v721 = vpop.f32.mrb[0].mxu0
    %v722 = vadd.f32 0.0, %v721
    %v723 = vpop.f32.mrb[0].mxu0
    %v724 = vpop.f32.mrb[0].mxu0
    %v725 = vadd.f32 0.0, %v724
    %v726 = vpop.f32.mrb[0].mxu0
    %727 = vmatprep.mubr.bf16.mxu0 0
    %728 = vmatmul.mubr.bf16.gmra.mrb[0].mxu0 %v679
    %v729 = vpop.f32.mrb[0].mxu0
    %v730 = vadd.f32 0.0, %v729
    %v731 = vpop.f32.mrb[0].mxu0
    %v732 = vpop.f32.mrb[0].mxu0
    %v733 = vadd.f32 0.0, %v732
    %v734 = vpop.f32.mrb[0].mxu0
    %735 = vdwg.mxu0
    %736 = vrot.lane.b32.xlu0 %v355, 96
    %v737 = vpop.permute.xlu0 %736
    %738 = vrot.lane.b32.xlu0 %v356, 96
    %v739 = vpop.permute.xlu0 %738
    %v741 = vsel %vm479, %v355, 0
    %v744 = vsel %vm479, %v356, 0
    %v747 = vsel %vm479, %v737, 0
    %v750 = vsel %vm479, %v739, 0
    %752 = vmatprep.subr.bf16.mxu0 0
    %753 = vmatpush1.bf16.xpose.msra.mxu0 %v747
    %754 = vmatprep.subr.bf16.mxu0 0
    %755 = vmatpush1.bf16.xpose.msra.mxu0 %v750
    %756 = vmatprep.subr.bf16.mxu0 0
    %757 = vmatpush1.bf16.xpose.msra.mxu0 0
    %758 = vmatprep.subr.bf16.mxu0 0
    %759 = vmatpush1.bf16.xpose.msra.mxu0 0
    %760 = vmatprep.subr.bf16.mxu0 0
    %761 = vmatpush1.bf16.xpose.msra.mxu0 0
    %762 = vmatprep.subr.bf16.mxu0 0
    %763 = vmatpush1.bf16.xpose.msra.mxu0 0
    %764 = vmatprep.subr.bf16.mxu0 0
    %765 = vmatpush1.bf16.xpose.msra.mxu0 0
    %766 = vmatprep.subr.bf16.mxu0 0
    %767 = vmatpush1.bf16.xpose.msra.mxu0 0
    %768 = vmatprep.subr.bf16.mxu0 0
    %769 = vmatpush1.bf16.xpose.msra.mxu0 0
    %770 = vmatprep.subr.bf16.mxu0 0
    %771 = vmatpush1.bf16.xpose.msra.mxu0 0
    %772 = vmatprep.subr.bf16.mxu0 0
    %773 = vmatpush1.bf16.xpose.msra.mxu0 0
    %774 = vmatprep.subr.bf16.mxu0 0
    %775 = vmatpush1.bf16.xpose.msra.mxu0 0
    %776 = vmatprep.subr.bf16.mxu0 0
    %777 = vmatpush1.bf16.xpose.msra.mxu0 0
    %778 = vmatprep.subr.bf16.mxu0 0
    %779 = vmatpush1.bf16.xpose.msra.mxu0 0
    %780 = vmatprep.subr.bf16.mxu0 0
    %781 = vmatpush1.bf16.xpose.msra.mxu0 0
    %782 = vmatprep.subr.bf16.mxu0 0
    %783 = vmatpush1.bf16.xpose.msra.mxu0 0
    %784 = vmatprep.mubr.bf16.mxu0 0
    %785 = vmatmul.mubr.bf16.gmra.mrb[0].mxu0 %v741
    %v786 = vpop.f32.mrb[0].mxu0
    %v787 = vadd.f32 0.0, %v786
    %v788 = vpop.f32.mrb[0].mxu0
    %v789 = vpop.f32.mrb[0].mxu0
    %v790 = vadd.f32 0.0, %v789
    %v791 = vpop.f32.mrb[0].mxu0
    %792 = vmatprep.mubr.bf16.mxu0 0
    %793 = vmatmul.mubr.bf16.gmra.mrb[0].mxu0 %v744
    %v794 = vpop.f32.mrb[0].mxu0
    %v795 = vadd.f32 0.0, %v794
    %v796 = vpop.f32.mrb[0].mxu0
    %v797 = vpop.f32.mrb[0].mxu0
    %v798 = vadd.f32 0.0, %v797
    %v799 = vpop.f32.mrb[0].mxu0
    %800 = vdwg.mxu0
    %801 = vrot.lane.b32.xlu0 %v357, 96
    %v802 = vpop.permute.xlu0 %801
    %803 = vrot.lane.b32.xlu0 %v358, 96
    %v804 = vpop.permute.xlu0 %803
    %v806 = vsel %vm479, %v357, 0
    %v809 = vsel %vm479, %v358, 0
    %v812 = vsel %vm479, %v802, 0
    %v815 = vsel %vm479, %v804, 0
    %817 = vmatprep.subr.bf16.mxu0 0
    %818 = vmatpush1.bf16.xpose.msra.mxu0 %v812
    %819 = vmatprep.subr.bf16.mxu0 0
    %820 = vmatpush1.bf16.xpose.msra.mxu0 %v815
    %821 = vmatprep.subr.bf16.mxu0 0
    %822 = vmatpush1.bf16.xpose.msra.mxu0 0
    %823 = vmatprep.subr.bf16.mxu0 0
    %824 = vmatpush1.bf16.xpose.msra.mxu0 0
    %825 = vmatprep.subr.bf16.mxu0 0
    %826 = vmatpush1.bf16.xpose.msra.mxu0 0
    %827 = vmatprep.subr.bf16.mxu0 0
    %828 = vmatpush1.bf16.xpose.msra.mxu0 0
    %829 = vmatprep.subr.bf16.mxu0 0
    %830 = vmatpush1.bf16.xpose.msra.mxu0 0
    %831 = vmatprep.subr.bf16.mxu0 0
    %832 = vmatpush1.bf16.xpose.msra.mxu0 0
    %833 = vmatprep.subr.bf16.mxu0 0
    %834 = vmatpush1.bf16.xpose.msra.mxu0 0
    %835 = vmatprep.subr.bf16.mxu0 0
    %836 = vmatpush1.bf16.xpose.msra.mxu0 0
    %837 = vmatprep.subr.bf16.mxu0 0
    %838 = vmatpush1.bf16.xpose.msra.mxu0 0
    %839 = vmatprep.subr.bf16.mxu0 0
    %840 = vmatpush1.bf16.xpose.msra.mxu0 0
    %841 = vmatprep.subr.bf16.mxu0 0
    %842 = vmatpush1.bf16.xpose.msra.mxu0 0
    %843 = vmatprep.subr.bf16.mxu0 0
    %844 = vmatpush1.bf16.xpose.msra.mxu0 0
    %845 = vmatprep.subr.bf16.mxu0 0
    %846 = vmatpush1.bf16.xpose.msra.mxu0 0
    %847 = vmatprep.subr.bf16.mxu0 0
    %848 = vmatpush1.bf16.xpose.msra.mxu0 0
    %849 = vmatprep.mubr.bf16.mxu0 0
    %850 = vmatmul.mubr.bf16.gmra.mrb[0].mxu0 %v806
    %v851 = vpop.f32.mrb[0].mxu0
    %v852 = vadd.f32 0.0, %v851
    %v853 = vpop.f32.mrb[0].mxu0
    %v854 = vpop.f32.mrb[0].mxu0
    %v855 = vadd.f32 0.0, %v854
    %v856 = vpop.f32.mrb[0].mxu0
    %857 = vmatprep.mubr.bf16.mxu0 0
    %858 = vmatmul.mubr.bf16.gmra.mrb[0].mxu0 %v809
    %v859 = vpop.f32.mrb[0].mxu0
    %v860 = vadd.f32 0.0, %v859
    %v861 = vpop.f32.mrb[0].mxu0
    %v862 = vpop.f32.mrb[0].mxu0
    %v863 = vadd.f32 0.0, %v862
    %v864 = vpop.f32.mrb[0].mxu0
    %865 = vdwg.mxu0
    %866 = vrot.lane.b32.xlu0 %v359, 96
    %v867 = vpop.permute.xlu0 %866
    %868 = vrot.lane.b32.xlu0 %v360, 96
    %v869 = vpop.permute.xlu0 %868
    %v871 = vsel %vm479, %v359, 0
    %v874 = vsel %vm479, %v360, 0
    %v877 = vsel %vm479, %v867, 0
    %v880 = vsel %vm479, %v869, 0
    %882 = vmatprep.subr.bf16.mxu0 0
    %883 = vmatpush1.bf16.xpose.msra.mxu0 %v877
    %884 = vmatprep.subr.bf16.mxu0 0
    %885 = vmatpush1.bf16.xpose.msra.mxu0 %v880
    %886 = vmatprep.subr.bf16.mxu0 0
    %887 = vmatpush1.bf16.xpose.msra.mxu0 0
    %888 = vmatprep.subr.bf16.mxu0 0
    %889 = vmatpush1.bf16.xpose.msra.mxu0 0
    %890 = vmatprep.subr.bf16.mxu0 0
    %891 = vmatpush1.bf16.xpose.msra.mxu0 0
    %892 = vmatprep.subr.bf16.mxu0 0
    %893 = vmatpush1.bf16.xpose.msra.mxu0 0
    %894 = vmatprep.subr.bf16.mxu0 0
    %895 = vmatpush1.bf16.xpose.msra.mxu0 0
    %896 = vmatprep.subr.bf16.mxu0 0
    %897 = vmatpush1.bf16.xpose.msra.mxu0 0
    %898 = vmatprep.subr.bf16.mxu0 0
    %899 = vmatpush1.bf16.xpose.msra.mxu0 0
    %900 = vmatprep.subr.bf16.mxu0 0
    %901 = vmatpush1.bf16.xpose.msra.mxu0 0
    %902 = vmatprep.subr.bf16.mxu0 0
    %903 = vmatpush1.bf16.xpose.msra.mxu0 0
    %904 = vmatprep.subr.bf16.mxu0 0
    %905 = vmatpush1.bf16.xpose.msra.mxu0 0
    %906 = vmatprep.subr.bf16.mxu0 0
    %907 = vmatpush1.bf16.xpose.msra.mxu0 0
    %908 = vmatprep.subr.bf16.mxu0 0
    %909 = vmatpush1.bf16.xpose.msra.mxu0 0
    %910 = vmatprep.subr.bf16.mxu0 0
    %911 = vmatpush1.bf16.xpose.msra.mxu0 0
    %912 = vmatprep.subr.bf16.mxu0 0
    %913 = vmatpush1.bf16.xpose.msra.mxu0 0
    %914 = vmatprep.mubr.bf16.mxu0 0
    %915 = vmatmul.mubr.bf16.gmra.mrb[0].mxu0 %v871
    %v916 = vpop.f32.mrb[0].mxu0
    %v917 = vadd.f32 0.0, %v916
    %v918 = vpop.f32.mrb[0].mxu0
    %v919 = vpop.f32.mrb[0].mxu0
    %v920 = vadd.f32 0.0, %v919
    %v921 = vpop.f32.mrb[0].mxu0
    %922 = vmatprep.mubr.bf16.mxu0 0
    %923 = vmatmul.mubr.bf16.gmra.mrb[0].mxu0 %v874
    %v924 = vpop.f32.mrb[0].mxu0
    %v925 = vadd.f32 0.0, %v924
    %v926 = vpop.f32.mrb[0].mxu0
    %v927 = vpop.f32.mrb[0].mxu0
    %v928 = vadd.f32 0.0, %v927
    %v929 = vpop.f32.mrb[0].mxu0
    %930 = vdwg.mxu0
    %931 = vrot.lane.b32.xlu0 %v361, 96
    %v932 = vpop.permute.xlu0 %931
    %933 = vrot.lane.b32.xlu0 %v362, 96
    %v934 = vpop.permute.xlu0 %933
    %v936 = vsel %vm479, %v361, 0
    %v939 = vsel %vm479, %v362, 0
    %v942 = vsel %vm479, %v932, 0
    %v945 = vsel %vm479, %v934, 0
    %947 = vmatprep.subr.bf16.mxu0 0
    %948 = vmatpush1.bf16.xpose.msra.mxu0 %v942
    %949 = vmatprep.subr.bf16.mxu0 0
    %950 = vmatpush1.bf16.xpose.msra.mxu0 %v945
    %951 = vmatprep.subr.bf16.mxu0 0
    %952 = vmatpush1.bf16.xpose.msra.mxu0 0
    %953 = vmatprep.subr.bf16.mxu0 0
    %954 = vmatpush1.bf16.xpose.msra.mxu0 0
    %955 = vmatprep.subr.bf16.mxu0 0
    %956 = vmatpush1.bf16.xpose.msra.mxu0 0
    %957 = vmatprep.subr.bf16.mxu0 0
    %958 = vmatpush1.bf16.xpose.msra.mxu0 0
    %959 = vmatprep.subr.bf16.mxu0 0
    %960 = vmatpush1.bf16.xpose.msra.mxu0 0
    %961 = vmatprep.subr.bf16.mxu0 0
    %962 = vmatpush1.bf16.xpose.msra.mxu0 0
    %963 = vmatprep.subr.bf16.mxu0 0
    %964 = vmatpush1.bf16.xpose.msra.mxu0 0
    %965 = vmatprep.subr.bf16.mxu0 0
    %966 = vmatpush1.bf16.xpose.msra.mxu0 0
    %967 = vmatprep.subr.bf16.mxu0 0
    %968 = vmatpush1.bf16.xpose.msra.mxu0 0
    %969 = vmatprep.subr.bf16.mxu0 0
    %970 = vmatpush1.bf16.xpose.msra.mxu0 0
    %971 = vmatprep.subr.bf16.mxu0 0
    %972 = vmatpush1.bf16.xpose.msra.mxu0 0
    %973 = vmatprep.subr.bf16.mxu0 0
    %974 = vmatpush1.bf16.xpose.msra.mxu0 0
    %975 = vmatprep.subr.bf16.mxu0 0
    %976 = vmatpush1.bf16.xpose.msra.mxu0 0
    %977 = vmatprep.subr.bf16.mxu0 0
    %978 = vmatpush1.bf16.xpose.msra.mxu0 0
    %979 = vmatprep.mubr.bf16.mxu0 0
    %980 = vmatmul.mubr.bf16.gmra.mrb[0].mxu0 %v936
    %v981 = vpop.f32.mrb[0].mxu0
    %v982 = vadd.f32 0.0, %v981
    %v983 = vpop.f32.mrb[0].mxu0
    %v984 = vpop.f32.mrb[0].mxu0
    %v985 = vadd.f32 0.0, %v984
    %v986 = vpop.f32.mrb[0].mxu0
    %987 = vmatprep.mubr.bf16.mxu0 0
    %988 = vmatmul.mubr.bf16.gmra.mrb[0].mxu0 %v939
    %v989 = vpop.f32.mrb[0].mxu0
    %v990 = vadd.f32 0.0, %v989
    %v991 = vpop.f32.mrb[0].mxu0
    %v992 = vpop.f32.mrb[0].mxu0
    %v993 = vadd.f32 0.0, %v992
    %v994 = vpop.f32.mrb[0].mxu0
    %995 = vdwg.mxu0
    %996 = vrot.lane.b32.xlu0 %v380, 96
    %v997 = vpop.permute.xlu0 %996
    %998 = vrot.lane.b32.xlu0 %v382, 96
    %v999 = vpop.permute.xlu0 %998
    %v1001 = vsel %vm479, %v380, 0
    %v1004 = vsel %vm479, %v382, 0
    %v1007 = vsel %vm479, %v997, 0
    %v1010 = vsel %vm479, %v999, 0
    %1012 = vmatprep.subr.bf16.mxu0 0
    %1013 = vmatpush1.bf16.xpose.msra.mxu0 %v1007
    %1014 = vmatprep.subr.bf16.mxu0 0
    %1015 = vmatpush1.bf16.xpose.msra.mxu0 %v1010
    %1016 = vmatprep.subr.bf16.mxu0 0
    %1017 = vmatpush1.bf16.xpose.msra.mxu0 0
    %1018 = vmatprep.subr.bf16.mxu0 0
    %1019 = vmatpush1.bf16.xpose.msra.mxu0 0
    %1020 = vmatprep.subr.bf16.mxu0 0
    %1021 = vmatpush1.bf16.xpose.msra.mxu0 0
    %1022 = vmatprep.subr.bf16.mxu0 0
    %1023 = vmatpush1.bf16.xpose.msra.mxu0 0
    %1024 = vmatprep.subr.bf16.mxu0 0
    %1025 = vmatpush1.bf16.xpose.msra.mxu0 0
    %1026 = vmatprep.subr.bf16.mxu0 0
    %1027 = vmatpush1.bf16.xpose.msra.mxu0 0
    %1028 = vmatprep.subr.bf16.mxu0 0
    %1029 = vmatpush1.bf16.xpose.msra.mxu0 0
    %1030 = vmatprep.subr.bf16.mxu0 0
    %1031 = vmatpush1.bf16.xpose.msra.mxu0 0
    %1032 = vmatprep.subr.bf16.mxu0 0
    %1033 = vmatpush1.bf16.xpose.msra.mxu0 0
    %1034 = vmatprep.subr.bf16.mxu0 0
    %1035 = vmatpush1.bf16.xpose.msra.mxu0 0
    %1036 = vmatprep.subr.bf16.mxu0 0
    %1037 = vmatpush1.bf16.xpose.msra.mxu0 0
    %1038 = vmatprep.subr.bf16.mxu0 0
    %1039 = vmatpush1.bf16.xpose.msra.mxu0 0
    %1040 = vmatprep.subr.bf16.mxu0 0
    %1041 = vmatpush1.bf16.xpose.msra.mxu0 0
    %1042 = vmatprep.subr.bf16.mxu0 0
    %1043 = vmatpush1.bf16.xpose.msra.mxu0 0
    %1044 = vmatprep.mubr.bf16.mxu0 0
    %1045 = vmatmul.mubr.bf16.gmra.mrb[0].mxu0 %v1001
    %v1046 = vpop.f32.mrb[0].mxu0
    %v1047 = vadd.f32 0.0, %v1046
    %v1048 = vpop.f32.mrb[0].mxu0
    %v1049 = vpop.f32.mrb[0].mxu0
    %v1050 = vadd.f32 0.0, %v1049
    %v1051 = vpop.f32.mrb[0].mxu0
    %1052 = vmatprep.mubr.bf16.mxu0 0
    %1053 = vmatmul.mubr.bf16.gmra.mrb[0].mxu0 %v1004
    %v1054 = vpop.f32.mrb[0].mxu0
    %v1055 = vadd.f32 0.0, %v1054
    %v1056 = vpop.f32.mrb[0].mxu0
    %v1057 = vpop.f32.mrb[0].mxu0
    %v1058 = vadd.f32 0.0, %v1057
    %v1059 = vpop.f32.mrb[0].mxu0
    %1060 = vdwg.mxu0
    %1061 = vrot.lane.b32.xlu0 %v384, 96
    %v1062 = vpop.permute.xlu0 %1061
    %1063 = vrot.lane.b32.xlu0 %v386, 96
    %v1064 = vpop.permute.xlu0 %1063
    %v1066 = vsel %vm479, %v384, 0
    %v1069 = vsel %vm479, %v386, 0
    %v1072 = vsel %vm479, %v1062, 0
    %v1075 = vsel %vm479, %v1064, 0
    %1077 = vmatprep.subr.bf16.mxu0 0
    %1078 = vmatpush1.bf16.xpose.msra.mxu0 %v1072
    %1079 = vmatprep.subr.bf16.mxu0 0
    %1080 = vmatpush1.bf16.xpose.msra.mxu0 %v1075
    %1081 = vmatprep.subr.bf16.mxu0 0
    %1082 = vmatpush1.bf16.xpose.msra.mxu0 0
    %1083 = vmatprep.subr.bf16.mxu0 0
    %1084 = vmatpush1.bf16.xpose.msra.mxu0 0
    %1085 = vmatprep.subr.bf16.mxu0 0
    %1086 = vmatpush1.bf16.xpose.msra.mxu0 0
    %1087 = vmatprep.subr.bf16.mxu0 0
    %1088 = vmatpush1.bf16.xpose.msra.mxu0 0
    %1089 = vmatprep.subr.bf16.mxu0 0
    %1090 = vmatpush1.bf16.xpose.msra.mxu0 0
    %1091 = vmatprep.subr.bf16.mxu0 0
    %1092 = vmatpush1.bf16.xpose.msra.mxu0 0
    %1093 = vmatprep.subr.bf16.mxu0 0
    %1094 = vmatpush1.bf16.xpose.msra.mxu0 0
    %1095 = vmatprep.subr.bf16.mxu0 0
    %1096 = vmatpush1.bf16.xpose.msra.mxu0 0
    %1097 = vmatprep.subr.bf16.mxu0 0
    %1098 = vmatpush1.bf16.xpose.msra.mxu0 0
    %1099 = vmatprep.subr.bf16.mxu0 0
    %1100 = vmatpush1.bf16.xpose.msra.mxu0 0
    %1101 = vmatprep.subr.bf16.mxu0 0
    %1102 = vmatpush1.bf16.xpose.msra.mxu0 0
    %1103 = vmatprep.subr.bf16.mxu0 0
    %1104 = vmatpush1.bf16.xpose.msra.mxu0 0
    %1105 = vmatprep.subr.bf16.mxu0 0
    %1106 = vmatpush1.bf16.xpose.msra.mxu0 0
    %1107 = vmatprep.subr.bf16.mxu0 0
    %1108 = vmatpush1.bf16.xpose.msra.mxu0 0
    %1109 = vmatprep.mubr.bf16.mxu0 0
    %1110 = vmatmul.mubr.bf16.gmra.mrb[0].mxu0 %v1066
    %v1111 = vpop.f32.mrb[0].mxu0
    %v1112 = vadd.f32 0.0, %v1111
    %v1113 = vpop.f32.mrb[0].mxu0
    %v1114 = vpop.f32.mrb[0].mxu0
    %v1115 = vadd.f32 0.0, %v1114
    %v1116 = vpop.f32.mrb[0].mxu0
    %1117 = vmatprep.mubr.bf16.mxu0 0
    %1118 = vmatmul.mubr.bf16.gmra.mrb[0].mxu0 %v1069
    %v1119 = vpop.f32.mrb[0].mxu0
    %v1120 = vadd.f32 0.0, %v1119
    %v1121 = vpop.f32.mrb[0].mxu0
    %v1122 = vpop.f32.mrb[0].mxu0
    %v1123 = vadd.f32 0.0, %v1122
    %v1124 = vpop.f32.mrb[0].mxu0
    %1125 = vdwg.mxu0
    %1126 = vrot.lane.b32.xlu0 %v388, 96
    %v1127 = vpop.permute.xlu0 %1126
    %1128 = vrot.lane.b32.xlu0 %v390, 96
    %v1129 = vpop.permute.xlu0 %1128
    %v1131 = vsel %vm479, %v388, 0
    %v1134 = vsel %vm479, %v390, 0
    %v1137 = vsel %vm479, %v1127, 0
    %v1140 = vsel %vm479, %v1129, 0
    %1142 = vmatprep.subr.bf16.mxu0 0
    %1143 = vmatpush1.bf16.xpose.msra.mxu0 %v1137
    %1144 = vmatprep.subr.bf16.mxu0 0
    %1145 = vmatpush1.bf16.xpose.msra.mxu0 %v1140
    %1146 = vmatprep.subr.bf16.mxu0 0
    %1147 = vmatpush1.bf16.xpose.msra.mxu0 0
    %1148 = vmatprep.subr.bf16.mxu0 0
    %1149 = vmatpush1.bf16.xpose.msra.mxu0 0
    %1150 = vmatprep.subr.bf16.mxu0 0
    %1151 = vmatpush1.bf16.xpose.msra.mxu0 0
    %1152 = vmatprep.subr.bf16.mxu0 0
    %1153 = vmatpush1.bf16.xpose.msra.mxu0 0
    %1154 = vmatprep.subr.bf16.mxu0 0
    %1155 = vmatpush1.bf16.xpose.msra.mxu0 0
    %1156 = vmatprep.subr.bf16.mxu0 0
    %1157 = vmatpush1.bf16.xpose.msra.mxu0 0
    %1158 = vmatprep.subr.bf16.mxu0 0
    %1159 = vmatpush1.bf16.xpose.msra.mxu0 0
    %1160 = vmatprep.subr.bf16.mxu0 0
    %1161 = vmatpush1.bf16.xpose.msra.mxu0 0
    %1162 = vmatprep.subr.bf16.mxu0 0
    %1163 = vmatpush1.bf16.xpose.msra.mxu0 0
    %1164 = vmatprep.subr.bf16.mxu0 0
    %1165 = vmatpush1.bf16.xpose.msra.mxu0 0
    %1166 = vmatprep.subr.bf16.mxu0 0
    %1167 = vmatpush1.bf16.xpose.msra.mxu0 0
    %1168 = vmatprep.subr.bf16.mxu0 0
    %1169 = vmatpush1.bf16.xpose.msra.mxu0 0
    %1170 = vmatprep.subr.bf16.mxu0 0
    %1171 = vmatpush1.bf16.xpose.msra.mxu0 0
    %1172 = vmatprep.subr.bf16.mxu0 0
    %1173 = vmatpush1.bf16.xpose.msra.mxu0 0
    %1174 = vmatprep.mubr.bf16.mxu0 0
    %1175 = vmatmul.mubr.bf16.gmra.mrb[0].mxu0 %v1131
    %v1176 = vpop.f32.mrb[0].mxu0
    %v1177 = vadd.f32 0.0, %v1176
    %v1178 = vpop.f32.mrb[0].mxu0
    %v1179 = vpop.f32.mrb[0].mxu0
    %v1180 = vadd.f32 0.0, %v1179
    %v1181 = vpop.f32.mrb[0].mxu0
    %1182 = vmatprep.mubr.bf16.mxu0 0
    %1183 = vmatmul.mubr.bf16.gmra.mrb[0].mxu0 %v1134
    %v1184 = vpop.f32.mrb[0].mxu0
    %v1185 = vadd.f32 0.0, %v1184
    %v1186 = vpop.f32.mrb[0].mxu0
    %v1187 = vpop.f32.mrb[0].mxu0
    %v1188 = vadd.f32 0.0, %v1187
    %v1189 = vpop.f32.mrb[0].mxu0
    %1190 = vdwg.mxu0
    %1191 = vrot.lane.b32.xlu0 %v392, 96
    %v1192 = vpop.permute.xlu0 %1191
    %1193 = vrot.lane.b32.xlu0 %v394, 96
    %v1194 = vpop.permute.xlu0 %1193
    %v1196 = vsel %vm479, %v392, 0
    %v1199 = vsel %vm479, %v394, 0
    %v1202 = vsel %vm479, %v1192, 0
    %v1205 = vsel %vm479, %v1194, 0
    %1207 = vmatprep.subr.bf16.mxu0 0
    %1208 = vmatpush1.bf16.xpose.msra.mxu0 %v1202
    %1209 = vmatprep.subr.bf16.mxu0 0
    %1210 = vmatpush1.bf16.xpose.msra.mxu0 %v1205
    %1211 = vmatprep.subr.bf16.mxu0 0
    %1212 = vmatpush1.bf16.xpose.msra.mxu0 0
    %1213 = vmatprep.subr.bf16.mxu0 0
    %1214 = vmatpush1.bf16.xpose.msra.mxu0 0
    %1215 = vmatprep.subr.bf16.mxu0 0
    %1216 = vmatpush1.bf16.xpose.msra.mxu0 0
    %1217 = vmatprep.subr.bf16.mxu0 0
    %1218 = vmatpush1.bf16.xpose.msra.mxu0 0
    %1219 = vmatprep.subr.bf16.mxu0 0
    %1220 = vmatpush1.bf16.xpose.msra.mxu0 0
    %1221 = vmatprep.subr.bf16.mxu0 0
    %1222 = vmatpush1.bf16.xpose.msra.mxu0 0
    %1223 = vmatprep.subr.bf16.mxu0 0
    %1224 = vmatpush1.bf16.xpose.msra.mxu0 0
    %1225 = vmatprep.subr.bf16.mxu0 0
    %1226 = vmatpush1.bf16.xpose.msra.mxu0 0
    %1227 = vmatprep.subr.bf16.mxu0 0
    %1228 = vmatpush1.bf16.xpose.msra.mxu0 0
    %1229 = vmatprep.subr.bf16.mxu0 0
    %1230 = vmatpush1.bf16.xpose.msra.mxu0 0
    %1231 = vmatprep.subr.bf16.mxu0 0
    %1232 = vmatpush1.bf16.xpose.msra.mxu0 0
    %1233 = vmatprep.subr.bf16.mxu0 0
    %1234 = vmatpush1.bf16.xpose.msra.mxu0 0
    %1235 = vmatprep.subr.bf16.mxu0 0
    %1236 = vmatpush1.bf16.xpose.msra.mxu0 0
    %1237 = vmatprep.subr.bf16.mxu0 0
    %1238 = vmatpush1.bf16.xpose.msra.mxu0 0
    %1239 = vmatprep.mubr.bf16.mxu0 0
    %1240 = vmatmul.mubr.bf16.gmra.mrb[0].mxu0 %v1196
    %v1241 = vpop.f32.mrb[0].mxu0
    %v1242 = vadd.f32 0.0, %v1241
    %v1243 = vpop.f32.mrb[0].mxu0
    %v1244 = vpop.f32.mrb[0].mxu0
    %v1245 = vadd.f32 0.0, %v1244
    %v1246 = vpop.f32.mrb[0].mxu0
    %1247 = vmatprep.mubr.bf16.mxu0 0
    %1248 = vmatmul.mubr.bf16.gmra.mrb[0].mxu0 %v1199
    %v1249 = vpop.f32.mrb[0].mxu0
    %v1250 = vadd.f32 0.0, %v1249
    %v1251 = vpop.f32.mrb[0].mxu0
    %v1252 = vpop.f32.mrb[0].mxu0
    %v1253 = vadd.f32 0.0, %v1252
    %v1254 = vpop.f32.mrb[0].mxu0
    %1255 = vdwg.mxu0
    %1256 = vrot.lane.b32.xlu0 %v396, 96
    %v1257 = vpop.permute.xlu0 %1256
    %1258 = vrot.lane.b32.xlu0 %v398, 96
    %v1259 = vpop.permute.xlu0 %1258
    %v1261 = vsel %vm479, %v396, 0
    %v1264 = vsel %vm479, %v398, 0
    %v1267 = vsel %vm479, %v1257, 0
    %v1270 = vsel %vm479, %v1259, 0
    %1272 = vmatprep.subr.bf16.mxu0 0
    %1273 = vmatpush1.bf16.xpose.msra.mxu0 %v1267
    %1274 = vmatprep.subr.bf16.mxu0 0
    %1275 = vmatpush1.bf16.xpose.msra.mxu0 %v1270
    %1276 = vmatprep.subr.bf16.mxu0 0
    %1277 = vmatpush1.bf16.xpose.msra.mxu0 0
    %1278 = vmatprep.subr.bf16.mxu0 0
    %1279 = vmatpush1.bf16.xpose.msra.mxu0 0
    %1280 = vmatprep.subr.bf16.mxu0 0
    %1281 = vmatpush1.bf16.xpose.msra.mxu0 0
    %1282 = vmatprep.subr.bf16.mxu0 0
    %1283 = vmatpush1.bf16.xpose.msra.mxu0 0
    %1284 = vmatprep.subr.bf16.mxu0 0
    %1285 = vmatpush1.bf16.xpose.msra.mxu0 0
    %1286 = vmatprep.subr.bf16.mxu0 0
    %1287 = vmatpush1.bf16.xpose.msra.mxu0 0
    %1288 = vmatprep.subr.bf16.mxu0 0
    %1289 = vmatpush1.bf16.xpose.msra.mxu0 0
    %1290 = vmatprep.subr.bf16.mxu0 0
    %1291 = vmatpush1.bf16.xpose.msra.mxu0 0
    %1292 = vmatprep.subr.bf16.mxu0 0
    %1293 = vmatpush1.bf16.xpose.msra.mxu0 0
    %1294 = vmatprep.subr.bf16.mxu0 0
    %1295 = vmatpush1.bf16.xpose.msra.mxu0 0
    %1296 = vmatprep.subr.bf16.mxu0 0
    %1297 = vmatpush1.bf16.xpose.msra.mxu0 0
    %1298 = vmatprep.subr.bf16.mxu0 0
    %1299 = vmatpush1.bf16.xpose.msra.mxu0 0
    %1300 = vmatprep.subr.bf16.mxu0 0
    %1301 = vmatpush1.bf16.xpose.msra.mxu0 0
    %1302 = vmatprep.subr.bf16.mxu0 0
    %1303 = vmatpush1.bf16.xpose.msra.mxu0 0
    %1304 = vmatprep.mubr.bf16.mxu0 0
    %1305 = vmatmul.mubr.bf16.gmra.mrb[0].mxu0 %v1261
    %v1306 = vpop.f32.mrb[0].mxu0
    %v1307 = vadd.f32 0.0, %v1306
    %v1308 = vpop.f32.mrb[0].mxu0
    %v1309 = vpop.f32.mrb[0].mxu0
    %v1310 = vadd.f32 0.0, %v1309
    %v1311 = vpop.f32.mrb[0].mxu0
    %1312 = vmatprep.mubr.bf16.mxu0 0
    %1313 = vmatmul.mubr.bf16.gmra.mrb[0].mxu0 %v1264
    %v1314 = vpop.f32.mrb[0].mxu0
    %v1315 = vadd.f32 0.0, %v1314
    %v1316 = vpop.f32.mrb[0].mxu0
    %v1317 = vpop.f32.mrb[0].mxu0
    %v1318 = vadd.f32 0.0, %v1317
    %v1319 = vpop.f32.mrb[0].mxu0
    %1320 = vdwg.mxu0
    %1321 = vrot.lane.b32.xlu0 %v400, 96
    %v1322 = vpop.permute.xlu0 %1321
    %1323 = vrot.lane.b32.xlu0 %v402, 96
    %v1324 = vpop.permute.xlu0 %1323
    %v1326 = vsel %vm479, %v400, 0
    %v1329 = vsel %vm479, %v402, 0
    %v1332 = vsel %vm479, %v1322, 0
    %v1335 = vsel %vm479, %v1324, 0
    %1337 = vmatprep.subr.bf16.mxu0 0
    %1338 = vmatpush1.bf16.xpose.msra.mxu0 %v1332
    %1339 = vmatprep.subr.bf16.mxu0 0
    %1340 = vmatpush1.bf16.xpose.msra.mxu0 %v1335
    %1341 = vmatprep.subr.bf16.mxu0 0
    %1342 = vmatpush1.bf16.xpose.msra.mxu0 0
    %1343 = vmatprep.subr.bf16.mxu0 0
    %1344 = vmatpush1.bf16.xpose.msra.mxu0 0
    %1345 = vmatprep.subr.bf16.mxu0 0
    %1346 = vmatpush1.bf16.xpose.msra.mxu0 0
    %1347 = vmatprep.subr.bf16.mxu0 0
    %1348 = vmatpush1.bf16.xpose.msra.mxu0 0
    %1349 = vmatprep.subr.bf16.mxu0 0
    %1350 = vmatpush1.bf16.xpose.msra.mxu0 0
    %1351 = vmatprep.subr.bf16.mxu0 0
    %1352 = vmatpush1.bf16.xpose.msra.mxu0 0
    %1353 = vmatprep.subr.bf16.mxu0 0
    %1354 = vmatpush1.bf16.xpose.msra.mxu0 0
    %1355 = vmatprep.subr.bf16.mxu0 0
    %1356 = vmatpush1.bf16.xpose.msra.mxu0 0
    %1357 = vmatprep.subr.bf16.mxu0 0
    %1358 = vmatpush1.bf16.xpose.msra.mxu0 0
    %1359 = vmatprep.subr.bf16.mxu0 0
    %1360 = vmatpush1.bf16.xpose.msra.mxu0 0
    %1361 = vmatprep.subr.bf16.mxu0 0
    %1362 = vmatpush1.bf16.xpose.msra.mxu0 0
    %1363 = vmatprep.subr.bf16.mxu0 0
    %1364 = vmatpush1.bf16.xpose.msra.mxu0 0
    %1365 = vmatprep.subr.bf16.mxu0 0
    %1366 = vmatpush1.bf16.xpose.msra.mxu0 0
    %1367 = vmatprep.subr.bf16.mxu0 0
    %1368 = vmatpush1.bf16.xpose.msra.mxu0 0
    %1369 = vmatprep.mubr.bf16.mxu0 0
    %1370 = vmatmul.mubr.bf16.gmra.mrb[0].mxu0 %v1326
    %v1371 = vpop.f32.mrb[0].mxu0
    %v1372 = vadd.f32 0.0, %v1371
    %v1373 = vpop.f32.mrb[0].mxu0
    %v1374 = vpop.f32.mrb[0].mxu0
    %v1375 = vadd.f32 0.0, %v1374
    %v1376 = vpop.f32.mrb[0].mxu0
    %1377 = vmatprep.mubr.bf16.mxu0 0
    %1378 = vmatmul.mubr.bf16.gmra.mrb[0].mxu0 %v1329
    %v1379 = vpop.f32.mrb[0].mxu0
    %v1380 = vadd.f32 0.0, %v1379
    %v1381 = vpop.f32.mrb[0].mxu0
    %v1382 = vpop.f32.mrb[0].mxu0
    %v1383 = vadd.f32 0.0, %v1382
    %v1384 = vpop.f32.mrb[0].mxu0
    %1385 = vdwg.mxu0
    %1386 = vrot.lane.b32.xlu0 %v404, 96
    %v1387 = vpop.permute.xlu0 %1386
    %1388 = vrot.lane.b32.xlu0 %v406, 96
    %v1389 = vpop.permute.xlu0 %1388
    %v1391 = vsel %vm479, %v404, 0
    %v1394 = vsel %vm479, %v406, 0
    %v1397 = vsel %vm479, %v1387, 0
    %v1400 = vsel %vm479, %v1389, 0
    %1402 = vmatprep.subr.bf16.mxu0 0
    %1403 = vmatpush1.bf16.xpose.msra.mxu0 %v1397
    %1404 = vmatprep.subr.bf16.mxu0 0
    %1405 = vmatpush1.bf16.xpose.msra.mxu0 %v1400
    %1406 = vmatprep.subr.bf16.mxu0 0
    %1407 = vmatpush1.bf16.xpose.msra.mxu0 0
    %1408 = vmatprep.subr.bf16.mxu0 0
    %1409 = vmatpush1.bf16.xpose.msra.mxu0 0
    %1410 = vmatprep.subr.bf16.mxu0 0
    %1411 = vmatpush1.bf16.xpose.msra.mxu0 0
    %1412 = vmatprep.subr.bf16.mxu0 0
    %1413 = vmatpush1.bf16.xpose.msra.mxu0 0
    %1414 = vmatprep.subr.bf16.mxu0 0
    %1415 = vmatpush1.bf16.xpose.msra.mxu0 0
    %1416 = vmatprep.subr.bf16.mxu0 0
    %1417 = vmatpush1.bf16.xpose.msra.mxu0 0
    %1418 = vmatprep.subr.bf16.mxu0 0
    %1419 = vmatpush1.bf16.xpose.msra.mxu0 0
    %1420 = vmatprep.subr.bf16.mxu0 0
    %1421 = vmatpush1.bf16.xpose.msra.mxu0 0
    %1422 = vmatprep.subr.bf16.mxu0 0
    %1423 = vmatpush1.bf16.xpose.msra.mxu0 0
    %1424 = vmatprep.subr.bf16.mxu0 0
    %1425 = vmatpush1.bf16.xpose.msra.mxu0 0
    %1426 = vmatprep.subr.bf16.mxu0 0
    %1427 = vmatpush1.bf16.xpose.msra.mxu0 0
    %1428 = vmatprep.subr.bf16.mxu0 0
    %1429 = vmatpush1.bf16.xpose.msra.mxu0 0
    %1430 = vmatprep.subr.bf16.mxu0 0
    %1431 = vmatpush1.bf16.xpose.msra.mxu0 0
    %1432 = vmatprep.subr.bf16.mxu0 0
    %1433 = vmatpush1.bf16.xpose.msra.mxu0 0
    %1434 = vmatprep.mubr.bf16.mxu0 0
    %1435 = vmatmul.mubr.bf16.gmra.mrb[0].mxu0 %v1391
    %v1436 = vpop.f32.mrb[0].mxu0
    %v1437 = vadd.f32 0.0, %v1436
    %v1438 = vpop.f32.mrb[0].mxu0
    %v1439 = vpop.f32.mrb[0].mxu0
    %v1440 = vadd.f32 0.0, %v1439
    %v1441 = vpop.f32.mrb[0].mxu0
    %1442 = vmatprep.mubr.bf16.mxu0 0
    %1443 = vmatmul.mubr.bf16.gmra.mrb[0].mxu0 %v1394
    %v1444 = vpop.f32.mrb[0].mxu0
    %v1445 = vadd.f32 0.0, %v1444
    %v1446 = vpop.f32.mrb[0].mxu0
    %v1447 = vpop.f32.mrb[0].mxu0
    %v1448 = vadd.f32 0.0, %v1447
    %v1449 = vpop.f32.mrb[0].mxu0
    %1450 = vdwg.mxu0
    %1451 = vrot.lane.b32.xlu0 %v408, 96
    %v1452 = vpop.permute.xlu0 %1451
    %1453 = vrot.lane.b32.xlu0 %v410, 96
    %v1454 = vpop.permute.xlu0 %1453
    %v1456 = vsel %vm479, %v408, 0
    %v1459 = vsel %vm479, %v410, 0
    %v1462 = vsel %vm479, %v1452, 0
    %v1465 = vsel %vm479, %v1454, 0
    %1467 = vmatprep.subr.bf16.mxu0 0
    %1468 = vmatpush1.bf16.xpose.msra.mxu0 %v1462
    %1469 = vmatprep.subr.bf16.mxu0 0
    %1470 = vmatpush1.bf16.xpose.msra.mxu0 %v1465
    %1471 = vmatprep.subr.bf16.mxu0 0
    %1472 = vmatpush1.bf16.xpose.msra.mxu0 0
    %1473 = vmatprep.subr.bf16.mxu0 0
    %1474 = vmatpush1.bf16.xpose.msra.mxu0 0
    %1475 = vmatprep.subr.bf16.mxu0 0
    %1476 = vmatpush1.bf16.xpose.msra.mxu0 0
    %1477 = vmatprep.subr.bf16.mxu0 0
    %1478 = vmatpush1.bf16.xpose.msra.mxu0 0
    %1479 = vmatprep.subr.bf16.mxu0 0
    %1480 = vmatpush1.bf16.xpose.msra.mxu0 0
    %1481 = vmatprep.subr.bf16.mxu0 0
    %1482 = vmatpush1.bf16.xpose.msra.mxu0 0
    %1483 = vmatprep.subr.bf16.mxu0 0
    %1484 = vmatpush1.bf16.xpose.msra.mxu0 0
    %1485 = vmatprep.subr.bf16.mxu0 0
    %1486 = vmatpush1.bf16.xpose.msra.mxu0 0
    %1487 = vmatprep.subr.bf16.mxu0 0
    %1488 = vmatpush1.bf16.xpose.msra.mxu0 0
    %1489 = vmatprep.subr.bf16.mxu0 0
    %1490 = vmatpush1.bf16.xpose.msra.mxu0 0
    %1491 = vmatprep.subr.bf16.mxu0 0
    %1492 = vmatpush1.bf16.xpose.msra.mxu0 0
    %1493 = vmatprep.subr.bf16.mxu0 0
    %1494 = vmatpush1.bf16.xpose.msra.mxu0 0
    %1495 = vmatprep.subr.bf16.mxu0 0
    %1496 = vmatpush1.bf16.xpose.msra.mxu0 0
    %1497 = vmatprep.subr.bf16.mxu0 0
    %1498 = vmatpush1.bf16.xpose.msra.mxu0 0
    %1499 = vmatprep.mubr.bf16.mxu0 0
    %1500 = vmatmul.mubr.bf16.gmra.mrb[0].mxu0 %v1456
    %v1501 = vpop.f32.mrb[0].mxu0
    %v1502 = vadd.f32 0.0, %v1501
    %v1503 = vpop.f32.mrb[0].mxu0
    %v1504 = vpop.f32.mrb[0].mxu0
    %v1505 = vadd.f32 0.0, %v1504
    %v1506 = vpop.f32.mrb[0].mxu0
    %1507 = vmatprep.mubr.bf16.mxu0 0
    %1508 = vmatmul.mubr.bf16.gmra.mrb[0].mxu0 %v1459
    %v1509 = vpop.f32.mrb[0].mxu0
    %v1510 = vadd.f32 0.0, %v1509
    %v1511 = vpop.f32.mrb[0].mxu0
    %v1512 = vpop.f32.mrb[0].mxu0
    %v1513 = vadd.f32 0.0, %v1512
    %v1514 = vpop.f32.mrb[0].mxu0
    %1515 = vdwg.mxu0
    %1516 = vrot.lane.b32.xlu0 %v412, 96
    %v1517 = vpop.permute.xlu0 %1516
    %1518 = vrot.lane.b32.xlu0 %v414, 96
    %v1519 = vpop.permute.xlu0 %1518
    %v1521 = vsel %vm479, %v412, 0
    %v1524 = vsel %vm479, %v414, 0
    %v1527 = vsel %vm479, %v1517, 0
    %v1530 = vsel %vm479, %v1519, 0
    %1532 = vmatprep.subr.bf16.mxu0 0
    %1533 = vmatpush1.bf16.xpose.msra.mxu0 %v1527
    %1534 = vmatprep.subr.bf16.mxu0 0
    %1535 = vmatpush1.bf16.xpose.msra.mxu0 %v1530
    %1536 = vmatprep.subr.bf16.mxu0 0
    %1537 = vmatpush1.bf16.xpose.msra.mxu0 0
    %1538 = vmatprep.subr.bf16.mxu0 0
    %1539 = vmatpush1.bf16.xpose.msra.mxu0 0
    %1540 = vmatprep.subr.bf16.mxu0 0
    %1541 = vmatpush1.bf16.xpose.msra.mxu0 0
    %1542 = vmatprep.subr.bf16.mxu0 0
    %1543 = vmatpush1.bf16.xpose.msra.mxu0 0
    %1544 = vmatprep.subr.bf16.mxu0 0
    %1545 = vmatpush1.bf16.xpose.msra.mxu0 0
    %1546 = vmatprep.subr.bf16.mxu0 0
    %1547 = vmatpush1.bf16.xpose.msra.mxu0 0
    %1548 = vmatprep.subr.bf16.mxu0 0
    %1549 = vmatpush1.bf16.xpose.msra.mxu0 0
    %1550 = vmatprep.subr.bf16.mxu0 0
    %1551 = vmatpush1.bf16.xpose.msra.mxu0 0
    %1552 = vmatprep.subr.bf16.mxu0 0
    %1553 = vmatpush1.bf16.xpose.msra.mxu0 0
    %1554 = vmatprep.subr.bf16.mxu0 0
    %1555 = vmatpush1.bf16.xpose.msra.mxu0 0
    %1556 = vmatprep.subr.bf16.mxu0 0
    %1557 = vmatpush1.bf16.xpose.msra.mxu0 0
    %1558 = vmatprep.subr.bf16.mxu0 0
    %1559 = vmatpush1.bf16.xpose.msra.mxu0 0
    %1560 = vmatprep.subr.bf16.mxu0 0
    %1561 = vmatpush1.bf16.xpose.msra.mxu0 0
    %1562 = vmatprep.subr.bf16.mxu0 0
    %1563 = vmatpush1.bf16.xpose.msra.mxu0 0
    %1564 = vmatprep.mubr.bf16.mxu0 0
    %1565 = vmatmul.mubr.bf16.gmra.mrb[0].mxu0 %v1521
    %v1566 = vpop.f32.mrb[0].mxu0
    %v1567 = vadd.f32 0.0, %v1566
    %v1568 = vpop.f32.mrb[0].mxu0
    %v1569 = vpop.f32.mrb[0].mxu0
    %v1570 = vadd.f32 0.0, %v1569
    %v1571 = vpop.f32.mrb[0].mxu0
    %1572 = vmatprep.mubr.bf16.mxu0 0
    %1573 = vmatmul.mubr.bf16.gmra.mrb[0].mxu0 %v1524
    %v1574 = vpop.f32.mrb[0].mxu0
    %v1575 = vadd.f32 0.0, %v1574
    %v1576 = vpop.f32.mrb[0].mxu0
    %v1577 = vpop.f32.mrb[0].mxu0
    %v1578 = vadd.f32 0.0, %v1577
    %v1579 = vpop.f32.mrb[0].mxu0
    %1580 = vdwg.mxu0
    %1581 = vrot.lane.b32.xlu0 %v416, 96
    %v1582 = vpop.permute.xlu0 %1581
    %1583 = vrot.lane.b32.xlu0 %v418, 96
    %v1584 = vpop.permute.xlu0 %1583
    %v1586 = vsel %vm479, %v416, 0
    %v1589 = vsel %vm479, %v418, 0
    %v1592 = vsel %vm479, %v1582, 0
    %v1595 = vsel %vm479, %v1584, 0
    %1597 = vmatprep.subr.bf16.mxu0 0
    %1598 = vmatpush1.bf16.xpose.msra.mxu0 %v1592
    %1599 = vmatprep.subr.bf16.mxu0 0
    %1600 = vmatpush1.bf16.xpose.msra.mxu0 %v1595
    %1601 = vmatprep.subr.bf16.mxu0 0
    %1602 = vmatpush1.bf16.xpose.msra.mxu0 0
    %1603 = vmatprep.subr.bf16.mxu0 0
    %1604 = vmatpush1.bf16.xpose.msra.mxu0 0
    %1605 = vmatprep.subr.bf16.mxu0 0
    %1606 = vmatpush1.bf16.xpose.msra.mxu0 0
    %1607 = vmatprep.subr.bf16.mxu0 0
    %1608 = vmatpush1.bf16.xpose.msra.mxu0 0
    %1609 = vmatprep.subr.bf16.mxu0 0
    %1610 = vmatpush1.bf16.xpose.msra.mxu0 0
    %1611 = vmatprep.subr.bf16.mxu0 0
    %1612 = vmatpush1.bf16.xpose.msra.mxu0 0
    %1613 = vmatprep.subr.bf16.mxu0 0
    %1614 = vmatpush1.bf16.xpose.msra.mxu0 0
    %1615 = vmatprep.subr.bf16.mxu0 0
    %1616 = vmatpush1.bf16.xpose.msra.mxu0 0
    %1617 = vmatprep.subr.bf16.mxu0 0
    %1618 = vmatpush1.bf16.xpose.msra.mxu0 0
    %1619 = vmatprep.subr.bf16.mxu0 0
    %1620 = vmatpush1.bf16.xpose.msra.mxu0 0
    %1621 = vmatprep.subr.bf16.mxu0 0
    %1622 = vmatpush1.bf16.xpose.msra.mxu0 0
    %1623 = vmatprep.subr.bf16.mxu0 0
    %1624 = vmatpush1.bf16.xpose.msra.mxu0 0
    %1625 = vmatprep.subr.bf16.mxu0 0
    %1626 = vmatpush1.bf16.xpose.msra.mxu0 0
    %1627 = vmatprep.subr.bf16.mxu0 0
    %1628 = vmatpush1.bf16.xpose.msra.mxu0 0
    %1629 = vmatprep.mubr.bf16.mxu0 0
    %1630 = vmatmul.mubr.bf16.gmra.mrb[0].mxu0 %v1586
    %v1631 = vpop.f32.mrb[0].mxu0
    %v1632 = vadd.f32 0.0, %v1631
    %v1633 = vpop.f32.mrb[0].mxu0
    %v1634 = vpop.f32.mrb[0].mxu0
    %v1635 = vadd.f32 0.0, %v1634
    %v1636 = vpop.f32.mrb[0].mxu0
    %1637 = vmatprep.mubr.bf16.mxu0 0
    %1638 = vmatmul.mubr.bf16.gmra.mrb[0].mxu0 %v1589
    %v1639 = vpop.f32.mrb[0].mxu0
    %v1640 = vadd.f32 0.0, %v1639
    %v1641 = vpop.f32.mrb[0].mxu0
    %v1642 = vpop.f32.mrb[0].mxu0
    %v1643 = vadd.f32 0.0, %v1642
    %v1644 = vpop.f32.mrb[0].mxu0
    %1645 = vdwg.mxu0
    %1646 = vrot.lane.b32.xlu0 %v420, 96
    %v1647 = vpop.permute.xlu0 %1646
    %1648 = vrot.lane.b32.xlu0 %v422, 96
    %v1649 = vpop.permute.xlu0 %1648
    %v1651 = vsel %vm479, %v420, 0
    %v1654 = vsel %vm479, %v422, 0
    %v1657 = vsel %vm479, %v1647, 0
    %v1660 = vsel %vm479, %v1649, 0
    %1662 = vmatprep.subr.bf16.mxu0 0
    %1663 = vmatpush1.bf16.xpose.msra.mxu0 %v1657
    %1664 = vmatprep.subr.bf16.mxu0 0
    %1665 = vmatpush1.bf16.xpose.msra.mxu0 %v1660
    %1666 = vmatprep.subr.bf16.mxu0 0
    %1667 = vmatpush1.bf16.xpose.msra.mxu0 0
    %1668 = vmatprep.subr.bf16.mxu0 0
    %1669 = vmatpush1.bf16.xpose.msra.mxu0 0
    %1670 = vmatprep.subr.bf16.mxu0 0
    %1671 = vmatpush1.bf16.xpose.msra.mxu0 0
    %1672 = vmatprep.subr.bf16.mxu0 0
    %1673 = vmatpush1.bf16.xpose.msra.mxu0 0
    %1674 = vmatprep.subr.bf16.mxu0 0
    %1675 = vmatpush1.bf16.xpose.msra.mxu0 0
    %1676 = vmatprep.subr.bf16.mxu0 0
    %1677 = vmatpush1.bf16.xpose.msra.mxu0 0
    %1678 = vmatprep.subr.bf16.mxu0 0
    %1679 = vmatpush1.bf16.xpose.msra.mxu0 0
    %1680 = vmatprep.subr.bf16.mxu0 0
    %1681 = vmatpush1.bf16.xpose.msra.mxu0 0
    %1682 = vmatprep.subr.bf16.mxu0 0
    %1683 = vmatpush1.bf16.xpose.msra.mxu0 0
    %1684 = vmatprep.subr.bf16.mxu0 0
    %1685 = vmatpush1.bf16.xpose.msra.mxu0 0
    %1686 = vmatprep.subr.bf16.mxu0 0
    %1687 = vmatpush1.bf16.xpose.msra.mxu0 0
    %1688 = vmatprep.subr.bf16.mxu0 0
    %1689 = vmatpush1.bf16.xpose.msra.mxu0 0
    %1690 = vmatprep.subr.bf16.mxu0 0
    %1691 = vmatpush1.bf16.xpose.msra.mxu0 0
    %1692 = vmatprep.subr.bf16.mxu0 0
    %1693 = vmatpush1.bf16.xpose.msra.mxu0 0
    %1694 = vmatprep.mubr.bf16.mxu0 0
    %1695 = vmatmul.mubr.bf16.gmra.mrb[0].mxu0 %v1651
    %v1696 = vpop.f32.mrb[0].mxu0
    %v1697 = vadd.f32 0.0, %v1696
    %v1698 = vpop.f32.mrb[0].mxu0
    %v1699 = vpop.f32.mrb[0].mxu0
    %v1700 = vadd.f32 0.0, %v1699
    %v1701 = vpop.f32.mrb[0].mxu0
    %1702 = vmatprep.mubr.bf16.mxu0 0
    %1703 = vmatmul.mubr.bf16.gmra.mrb[0].mxu0 %v1654
    %v1704 = vpop.f32.mrb[0].mxu0
    %v1705 = vadd.f32 0.0, %v1704
    %v1706 = vpop.f32.mrb[0].mxu0
    %v1707 = vpop.f32.mrb[0].mxu0
    %v1708 = vadd.f32 0.0, %v1707
    %v1709 = vpop.f32.mrb[0].mxu0
    %1710 = vdwg.mxu0
    %1711 = vrot.lane.b32.xlu0 %v424, 96
    %v1712 = vpop.permute.xlu0 %1711
    %1713 = vrot.lane.b32.xlu0 %v426, 96
    %v1714 = vpop.permute.xlu0 %1713
    %v1716 = vsel %vm479, %v424, 0
    %v1719 = vsel %vm479, %v426, 0
    %v1722 = vsel %vm479, %v1712, 0
    %v1725 = vsel %vm479, %v1714, 0
    %1727 = vmatprep.subr.bf16.mxu0 0
    %1728 = vmatpush1.bf16.xpose.msra.mxu0 %v1722
    %1729 = vmatprep.subr.bf16.mxu0 0
    %1730 = vmatpush1.bf16.xpose.msra.mxu0 %v1725
    %1731 = vmatprep.subr.bf16.mxu0 0
    %1732 = vmatpush1.bf16.xpose.msra.mxu0 0
    %1733 = vmatprep.subr.bf16.mxu0 0
    %1734 = vmatpush1.bf16.xpose.msra.mxu0 0
    %1735 = vmatprep.subr.bf16.mxu0 0
    %1736 = vmatpush1.bf16.xpose.msra.mxu0 0
    %1737 = vmatprep.subr.bf16.mxu0 0
    %1738 = vmatpush1.bf16.xpose.msra.mxu0 0
    %1739 = vmatprep.subr.bf16.mxu0 0
    %1740 = vmatpush1.bf16.xpose.msra.mxu0 0
    %1741 = vmatprep.subr.bf16.mxu0 0
    %1742 = vmatpush1.bf16.xpose.msra.mxu0 0
    %1743 = vmatprep.subr.bf16.mxu0 0
    %1744 = vmatpush1.bf16.xpose.msra.mxu0 0
    %1745 = vmatprep.subr.bf16.mxu0 0
    %1746 = vmatpush1.bf16.xpose.msra.mxu0 0
    %1747 = vmatprep.subr.bf16.mxu0 0
    %1748 = vmatpush1.bf16.xpose.msra.mxu0 0
    %1749 = vmatprep.subr.bf16.mxu0 0
    %1750 = vmatpush1.bf16.xpose.msra.mxu0 0
    %1751 = vmatprep.subr.bf16.mxu0 0
    %1752 = vmatpush1.bf16.xpose.msra.mxu0 0
    %1753 = vmatprep.subr.bf16.mxu0 0
    %1754 = vmatpush1.bf16.xpose.msra.mxu0 0
    %1755 = vmatprep.subr.bf16.mxu0 0
    %1756 = vmatpush1.bf16.xpose.msra.mxu0 0
    %1757 = vmatprep.subr.bf16.mxu0 0
    %1758 = vmatpush1.bf16.xpose.msra.mxu0 0
    %1759 = vmatprep.mubr.bf16.mxu0 0
    %1760 = vmatmul.mubr.bf16.gmra.mrb[0].mxu0 %v1716
    %v1761 = vpop.f32.mrb[0].mxu0
    %v1762 = vadd.f32 0.0, %v1761
    %v1763 = vpop.f32.mrb[0].mxu0
    %v1764 = vpop.f32.mrb[0].mxu0
    %v1765 = vadd.f32 0.0, %v1764
    %v1766 = vpop.f32.mrb[0].mxu0
    %1767 = vmatprep.mubr.bf16.mxu0 0
    %1768 = vmatmul.mubr.bf16.gmra.mrb[0].mxu0 %v1719
    %v1769 = vpop.f32.mrb[0].mxu0
    %v1770 = vadd.f32 0.0, %v1769
    %v1771 = vpop.f32.mrb[0].mxu0
    %v1772 = vpop.f32.mrb[0].mxu0
    %v1773 = vadd.f32 0.0, %v1772
    %v1774 = vpop.f32.mrb[0].mxu0
    %1775 = vdwg.mxu0
    %1776 = vrot.lane.b32.xlu0 %v428, 96
    %v1777 = vpop.permute.xlu0 %1776
    %1778 = vrot.lane.b32.xlu0 %v430, 96
    %v1779 = vpop.permute.xlu0 %1778
    %v1781 = vsel %vm479, %v428, 0
    %v1784 = vsel %vm479, %v430, 0
    %v1787 = vsel %vm479, %v1777, 0
    %v1790 = vsel %vm479, %v1779, 0
    %1792 = vmatprep.subr.bf16.mxu0 0
    %1793 = vmatpush1.bf16.xpose.msra.mxu0 %v1787
    %1794 = vmatprep.subr.bf16.mxu0 0
    %1795 = vmatpush1.bf16.xpose.msra.mxu0 %v1790
    %1796 = vmatprep.subr.bf16.mxu0 0
    %1797 = vmatpush1.bf16.xpose.msra.mxu0 0
    %1798 = vmatprep.subr.bf16.mxu0 0
    %1799 = vmatpush1.bf16.xpose.msra.mxu0 0
    %1800 = vmatprep.subr.bf16.mxu0 0
    %1801 = vmatpush1.bf16.xpose.msra.mxu0 0
    %1802 = vmatprep.subr.bf16.mxu0 0
    %1803 = vmatpush1.bf16.xpose.msra.mxu0 0
    %1804 = vmatprep.subr.bf16.mxu0 0
    %1805 = vmatpush1.bf16.xpose.msra.mxu0 0
    %1806 = vmatprep.subr.bf16.mxu0 0
    %1807 = vmatpush1.bf16.xpose.msra.mxu0 0
    %1808 = vmatprep.subr.bf16.mxu0 0
    %1809 = vmatpush1.bf16.xpose.msra.mxu0 0
    %1810 = vmatprep.subr.bf16.mxu0 0
    %1811 = vmatpush1.bf16.xpose.msra.mxu0 0
    %1812 = vmatprep.subr.bf16.mxu0 0
    %1813 = vmatpush1.bf16.xpose.msra.mxu0 0
    %1814 = vmatprep.subr.bf16.mxu0 0
    %1815 = vmatpush1.bf16.xpose.msra.mxu0 0
    %1816 = vmatprep.subr.bf16.mxu0 0
    %1817 = vmatpush1.bf16.xpose.msra.mxu0 0
    %1818 = vmatprep.subr.bf16.mxu0 0
    %1819 = vmatpush1.bf16.xpose.msra.mxu0 0
    %1820 = vmatprep.subr.bf16.mxu0 0
    %1821 = vmatpush1.bf16.xpose.msra.mxu0 0
    %1822 = vmatprep.subr.bf16.mxu0 0
    %1823 = vmatpush1.bf16.xpose.msra.mxu0 0
    %1824 = vmatprep.mubr.bf16.mxu0 0
    %1825 = vmatmul.mubr.bf16.gmra.mrb[0].mxu0 %v1781
    %v1826 = vpop.f32.mrb[0].mxu0
    %v1827 = vadd.f32 0.0, %v1826
    %v1828 = vpop.f32.mrb[0].mxu0
    %v1829 = vpop.f32.mrb[0].mxu0
    %v1830 = vadd.f32 0.0, %v1829
    %v1831 = vpop.f32.mrb[0].mxu0
    %1832 = vmatprep.mubr.bf16.mxu0 0
    %1833 = vmatmul.mubr.bf16.gmra.mrb[0].mxu0 %v1784
    %v1834 = vpop.f32.mrb[0].mxu0
    %v1835 = vadd.f32 0.0, %v1834
    %v1836 = vpop.f32.mrb[0].mxu0
    %v1837 = vpop.f32.mrb[0].mxu0
    %v1838 = vadd.f32 0.0, %v1837
    %v1839 = vpop.f32.mrb[0].mxu0
    %1840 = vdwg.mxu0
    %1841 = vrot.lane.b32.xlu0 %v432, 96
    %v1842 = vpop.permute.xlu0 %1841
    %1843 = vrot.lane.b32.xlu0 %v434, 96
    %v1844 = vpop.permute.xlu0 %1843
    %v1846 = vsel %vm479, %v432, 0
    %v1849 = vsel %vm479, %v434, 0
    %v1852 = vsel %vm479, %v1842, 0
    %v1855 = vsel %vm479, %v1844, 0
    %1857 = vmatprep.subr.bf16.mxu0 0
    %1858 = vmatpush1.bf16.xpose.msra.mxu0 %v1852
    %1859 = vmatprep.subr.bf16.mxu0 0
    %1860 = vmatpush1.bf16.xpose.msra.mxu0 %v1855
    %1861 = vmatprep.subr.bf16.mxu0 0
    %1862 = vmatpush1.bf16.xpose.msra.mxu0 0
    %1863 = vmatprep.subr.bf16.mxu0 0
    %1864 = vmatpush1.bf16.xpose.msra.mxu0 0
    %1865 = vmatprep.subr.bf16.mxu0 0
    %1866 = vmatpush1.bf16.xpose.msra.mxu0 0
    %1867 = vmatprep.subr.bf16.mxu0 0
    %1868 = vmatpush1.bf16.xpose.msra.mxu0 0
    %1869 = vmatprep.subr.bf16.mxu0 0
    %1870 = vmatpush1.bf16.xpose.msra.mxu0 0
    %1871 = vmatprep.subr.bf16.mxu0 0
    %1872 = vmatpush1.bf16.xpose.msra.mxu0 0
    %1873 = vmatprep.subr.bf16.mxu0 0
    %1874 = vmatpush1.bf16.xpose.msra.mxu0 0
    %1875 = vmatprep.subr.bf16.mxu0 0
    %1876 = vmatpush1.bf16.xpose.msra.mxu0 0
    %1877 = vmatprep.subr.bf16.mxu0 0
    %1878 = vmatpush1.bf16.xpose.msra.mxu0 0
    %1879 = vmatprep.subr.bf16.mxu0 0
    %1880 = vmatpush1.bf16.xpose.msra.mxu0 0
    %1881 = vmatprep.subr.bf16.mxu0 0
    %1882 = vmatpush1.bf16.xpose.msra.mxu0 0
    %1883 = vmatprep.subr.bf16.mxu0 0
    %1884 = vmatpush1.bf16.xpose.msra.mxu0 0
    %1885 = vmatprep.subr.bf16.mxu0 0
    %1886 = vmatpush1.bf16.xpose.msra.mxu0 0
    %1887 = vmatprep.subr.bf16.mxu0 0
    %1888 = vmatpush1.bf16.xpose.msra.mxu0 0
    %1889 = vmatprep.mubr.bf16.mxu0 0
    %1890 = vmatmul.mubr.bf16.gmra.mrb[0].mxu0 %v1846
    %v1891 = vpop.f32.mrb[0].mxu0
    %v1892 = vadd.f32 0.0, %v1891
    %v1893 = vpop.f32.mrb[0].mxu0
    %v1894 = vpop.f32.mrb[0].mxu0
    %v1895 = vadd.f32 0.0, %v1894
    %v1896 = vpop.f32.mrb[0].mxu0
    %1897 = vmatprep.mubr.bf16.mxu0 0
    %1898 = vmatmul.mubr.bf16.gmra.mrb[0].mxu0 %v1849
    %v1899 = vpop.f32.mrb[0].mxu0
    %v1900 = vadd.f32 0.0, %v1899
    %v1901 = vpop.f32.mrb[0].mxu0
    %v1902 = vpop.f32.mrb[0].mxu0
    %v1903 = vadd.f32 0.0, %v1902
    %v1904 = vpop.f32.mrb[0].mxu0
    %1905 = vdwg.mxu0
    %1906 = vrot.lane.b32.xlu0 %v436, 96
    %v1907 = vpop.permute.xlu0 %1906
    %1908 = vrot.lane.b32.xlu0 %v438, 96
    %v1909 = vpop.permute.xlu0 %1908
    %v1911 = vsel %vm479, %v436, 0
    %v1914 = vsel %vm479, %v438, 0
    %v1917 = vsel %vm479, %v1907, 0
    %v1920 = vsel %vm479, %v1909, 0
    %1922 = vmatprep.subr.bf16.mxu0 0
    %1923 = vmatpush1.bf16.xpose.msra.mxu0 %v1917
    %1924 = vmatprep.subr.bf16.mxu0 0
    %1925 = vmatpush1.bf16.xpose.msra.mxu0 %v1920
    %1926 = vmatprep.subr.bf16.mxu0 0
    %1927 = vmatpush1.bf16.xpose.msra.mxu0 0
    %1928 = vmatprep.subr.bf16.mxu0 0
    %1929 = vmatpush1.bf16.xpose.msra.mxu0 0
    %1930 = vmatprep.subr.bf16.mxu0 0
    %1931 = vmatpush1.bf16.xpose.msra.mxu0 0
    %1932 = vmatprep.subr.bf16.mxu0 0
    %1933 = vmatpush1.bf16.xpose.msra.mxu0 0
    %1934 = vmatprep.subr.bf16.mxu0 0
    %1935 = vmatpush1.bf16.xpose.msra.mxu0 0
    %1936 = vmatprep.subr.bf16.mxu0 0
    %1937 = vmatpush1.bf16.xpose.msra.mxu0 0
    %1938 = vmatprep.subr.bf16.mxu0 0
    %1939 = vmatpush1.bf16.xpose.msra.mxu0 0
    %1940 = vmatprep.subr.bf16.mxu0 0
    %1941 = vmatpush1.bf16.xpose.msra.mxu0 0
    %1942 = vmatprep.subr.bf16.mxu0 0
    %1943 = vmatpush1.bf16.xpose.msra.mxu0 0
    %1944 = vmatprep.subr.bf16.mxu0 0
    %1945 = vmatpush1.bf16.xpose.msra.mxu0 0
    %1946 = vmatprep.subr.bf16.mxu0 0
    %1947 = vmatpush1.bf16.xpose.msra.mxu0 0
    %1948 = vmatprep.subr.bf16.mxu0 0
    %1949 = vmatpush1.bf16.xpose.msra.mxu0 0
    %1950 = vmatprep.subr.bf16.mxu0 0
    %1951 = vmatpush1.bf16.xpose.msra.mxu0 0
    %1952 = vmatprep.subr.bf16.mxu0 0
    %1953 = vmatpush1.bf16.xpose.msra.mxu0 0
    %1954 = vmatprep.mubr.bf16.mxu0 0
    %1955 = vmatmul.mubr.bf16.gmra.mrb[0].mxu0 %v1911
    %v1956 = vpop.f32.mrb[0].mxu0
    %v1957 = vadd.f32 0.0, %v1956
    %v1958 = vpop.f32.mrb[0].mxu0
    %v1959 = vpop.f32.mrb[0].mxu0
    %v1960 = vadd.f32 0.0, %v1959
    %v1961 = vpop.f32.mrb[0].mxu0
    %1962 = vmatprep.mubr.bf16.mxu0 0
    %1963 = vmatmul.mubr.bf16.gmra.mrb[0].mxu0 %v1914
    %v1964 = vpop.f32.mrb[0].mxu0
    %v1965 = vadd.f32 0.0, %v1964
    %v1966 = vpop.f32.mrb[0].mxu0
    %v1967 = vpop.f32.mrb[0].mxu0
    %v1968 = vadd.f32 0.0, %v1967
    %v1969 = vpop.f32.mrb[0].mxu0
    %1970 = vdwg.mxu0
    %1971 = vrot.lane.b32.xlu0 %v440, 96
    %v1972 = vpop.permute.xlu0 %1971
    %1973 = vrot.lane.b32.xlu0 %v442, 96
    %v1974 = vpop.permute.xlu0 %1973
    %v1976 = vsel %vm479, %v440, 0
    %v1979 = vsel %vm479, %v442, 0
    %v1982 = vsel %vm479, %v1972, 0
    %v1985 = vsel %vm479, %v1974, 0
    %1987 = vmatprep.subr.bf16.mxu0 0
    %1988 = vmatpush1.bf16.xpose.msra.mxu0 %v1982
    %1989 = vmatprep.subr.bf16.mxu0 0
    %1990 = vmatpush1.bf16.xpose.msra.mxu0 %v1985
    %1991 = vmatprep.subr.bf16.mxu0 0
    %1992 = vmatpush1.bf16.xpose.msra.mxu0 0
    %1993 = vmatprep.subr.bf16.mxu0 0
    %1994 = vmatpush1.bf16.xpose.msra.mxu0 0
    %1995 = vmatprep.subr.bf16.mxu0 0
    %1996 = vmatpush1.bf16.xpose.msra.mxu0 0
    %1997 = vmatprep.subr.bf16.mxu0 0
    %1998 = vmatpush1.bf16.xpose.msra.mxu0 0
    %1999 = vmatprep.subr.bf16.mxu0 0
    %2000 = vmatpush1.bf16.xpose.msra.mxu0 0
    %2001 = vmatprep.subr.bf16.mxu0 0
    %2002 = vmatpush1.bf16.xpose.msra.mxu0 0
    %2003 = vmatprep.subr.bf16.mxu0 0
    %2004 = vmatpush1.bf16.xpose.msra.mxu0 0
    %2005 = vmatprep.subr.bf16.mxu0 0
    %2006 = vmatpush1.bf16.xpose.msra.mxu0 0
    %2007 = vmatprep.subr.bf16.mxu0 0
    %2008 = vmatpush1.bf16.xpose.msra.mxu0 0
    %2009 = vmatprep.subr.bf16.mxu0 0
    %2010 = vmatpush1.bf16.xpose.msra.mxu0 0
    %2011 = vmatprep.subr.bf16.mxu0 0
    %2012 = vmatpush1.bf16.xpose.msra.mxu0 0
    %2013 = vmatprep.subr.bf16.mxu0 0
    %2014 = vmatpush1.bf16.xpose.msra.mxu0 0
    %2015 = vmatprep.subr.bf16.mxu0 0
    %2016 = vmatpush1.bf16.xpose.msra.mxu0 0
    %2017 = vmatprep.subr.bf16.mxu0 0
    %2018 = vmatpush1.bf16.xpose.msra.mxu0 0
    %2019 = vmatprep.mubr.bf16.mxu0 0
    %2020 = vmatmul.mubr.bf16.gmra.mrb[0].mxu0 %v1976
    %v2021 = vpop.f32.mrb[0].mxu0
    %v2022 = vadd.f32 0.0, %v2021
    %v2023 = vpop.f32.mrb[0].mxu0
    %v2024 = vpop.f32.mrb[0].mxu0
    %v2025 = vadd.f32 0.0, %v2024
    %v2026 = vpop.f32.mrb[0].mxu0
    %2027 = vmatprep.mubr.bf16.mxu0 0
    %2028 = vmatmul.mubr.bf16.gmra.mrb[0].mxu0 %v1979
    %v2029 = vpop.f32.mrb[0].mxu0
    %v2030 = vadd.f32 0.0, %v2029
    %v2031 = vpop.f32.mrb[0].mxu0
    %v2032 = vpop.f32.mrb[0].mxu0
    %v2033 = vadd.f32 0.0, %v2032
    %v2034 = vpop.f32.mrb[0].mxu0
    %2035 = vdwg.mxu0
    %2036 = vrot.lane.b32.xlu0 %v444, 96
    %v2037 = vpop.permute.xlu0 %2036
    %2038 = vrot.lane.b32.xlu0 %v446, 96
    %v2039 = vpop.permute.xlu0 %2038
    %v2041 = vsel %vm479, %v444, 0
    %v2044 = vsel %vm479, %v446, 0
    %v2047 = vsel %vm479, %v2037, 0
    %v2050 = vsel %vm479, %v2039, 0
    %2052 = vmatprep.subr.bf16.mxu0 0
    %2053 = vmatpush1.bf16.xpose.msra.mxu0 %v2047
    %2054 = vmatprep.subr.bf16.mxu0 0
    %2055 = vmatpush1.bf16.xpose.msra.mxu0 %v2050
    %2056 = vmatprep.subr.bf16.mxu0 0
    %2057 = vmatpush1.bf16.xpose.msra.mxu0 0
    %2058 = vmatprep.subr.bf16.mxu0 0
    %2059 = vmatpush1.bf16.xpose.msra.mxu0 0
    %2060 = vmatprep.subr.bf16.mxu0 0
    %2061 = vmatpush1.bf16.xpose.msra.mxu0 0
    %2062 = vmatprep.subr.bf16.mxu0 0
    %2063 = vmatpush1.bf16.xpose.msra.mxu0 0
    %2064 = vmatprep.subr.bf16.mxu0 0
    %2065 = vmatpush1.bf16.xpose.msra.mxu0 0
    %2066 = vmatprep.subr.bf16.mxu0 0
    %2067 = vmatpush1.bf16.xpose.msra.mxu0 0
    %2068 = vmatprep.subr.bf16.mxu0 0
    %2069 = vmatpush1.bf16.xpose.msra.mxu0 0
    %2070 = vmatprep.subr.bf16.mxu0 0
    %2071 = vmatpush1.bf16.xpose.msra.mxu0 0
    %2072 = vmatprep.subr.bf16.mxu0 0
    %2073 = vmatpush1.bf16.xpose.msra.mxu0 0
    %2074 = vmatprep.subr.bf16.mxu0 0
    %2075 = vmatpush1.bf16.xpose.msra.mxu0 0
    %2076 = vmatprep.subr.bf16.mxu0 0
    %2077 = vmatpush1.bf16.xpose.msra.mxu0 0
    %2078 = vmatprep.subr.bf16.mxu0 0
    %2079 = vmatpush1.bf16.xpose.msra.mxu0 0
    %2080 = vmatprep.subr.bf16.mxu0 0
    %2081 = vmatpush1.bf16.xpose.msra.mxu0 0
    %2082 = vmatprep.subr.bf16.mxu0 0
    %2083 = vmatpush1.bf16.xpose.msra.mxu0 0
    %2084 = vmatprep.mubr.bf16.mxu0 0
    %2085 = vmatmul.mubr.bf16.gmra.mrb[0].mxu0 %v2041
    %v2086 = vpop.f32.mrb[0].mxu0
    %v2087 = vadd.f32 0.0, %v2086
    %v2088 = vpop.f32.mrb[0].mxu0
    %v2089 = vpop.f32.mrb[0].mxu0
    %v2090 = vadd.f32 0.0, %v2089
    %v2091 = vpop.f32.mrb[0].mxu0
    %2092 = vmatprep.mubr.bf16.mxu0 0
    %2093 = vmatmul.mubr.bf16.gmra.mrb[0].mxu0 %v2044
    %v2094 = vpop.f32.mrb[0].mxu0
    %v2095 = vadd.f32 0.0, %v2094
    %v2096 = vpop.f32.mrb[0].mxu0
    %v2097 = vpop.f32.mrb[0].mxu0
    %v2098 = vadd.f32 0.0, %v2097
    %v2099 = vpop.f32.mrb[0].mxu0
    %2100 = vdwg.mxu0
    %2101 = vrot.lane.b32.xlu0 %v448, 96
    %v2102 = vpop.permute.xlu0 %2101
    %2103 = vrot.lane.b32.xlu0 %v450, 96
    %v2104 = vpop.permute.xlu0 %2103
    %v2106 = vsel %vm479, %v448, 0
    %v2109 = vsel %vm479, %v450, 0
    %v2112 = vsel %vm479, %v2102, 0
    %v2115 = vsel %vm479, %v2104, 0
    %2117 = vmatprep.subr.bf16.mxu0 0
    %2118 = vmatpush1.bf16.xpose.msra.mxu0 %v2112
    %2119 = vmatprep.subr.bf16.mxu0 0
    %2120 = vmatpush1.bf16.xpose.msra.mxu0 %v2115
    %2121 = vmatprep.subr.bf16.mxu0 0
    %2122 = vmatpush1.bf16.xpose.msra.mxu0 0
    %2123 = vmatprep.subr.bf16.mxu0 0
    %2124 = vmatpush1.bf16.xpose.msra.mxu0 0
    %2125 = vmatprep.subr.bf16.mxu0 0
    %2126 = vmatpush1.bf16.xpose.msra.mxu0 0
    %2127 = vmatprep.subr.bf16.mxu0 0
    %2128 = vmatpush1.bf16.xpose.msra.mxu0 0
    %2129 = vmatprep.subr.bf16.mxu0 0
    %2130 = vmatpush1.bf16.xpose.msra.mxu0 0
    %2131 = vmatprep.subr.bf16.mxu0 0
    %2132 = vmatpush1.bf16.xpose.msra.mxu0 0
    %2133 = vmatprep.subr.bf16.mxu0 0
    %2134 = vmatpush1.bf16.xpose.msra.mxu0 0
    %2135 = vmatprep.subr.bf16.mxu0 0
    %2136 = vmatpush1.bf16.xpose.msra.mxu0 0
    %2137 = vmatprep.subr.bf16.mxu0 0
    %2138 = vmatpush1.bf16.xpose.msra.mxu0 0
    %2139 = vmatprep.subr.bf16.mxu0 0
    %2140 = vmatpush1.bf16.xpose.msra.mxu0 0
    %2141 = vmatprep.subr.bf16.mxu0 0
    %2142 = vmatpush1.bf16.xpose.msra.mxu0 0
    %2143 = vmatprep.subr.bf16.mxu0 0
    %2144 = vmatpush1.bf16.xpose.msra.mxu0 0
    %2145 = vmatprep.subr.bf16.mxu0 0
    %2146 = vmatpush1.bf16.xpose.msra.mxu0 0
    %2147 = vmatprep.subr.bf16.mxu0 0
    %2148 = vmatpush1.bf16.xpose.msra.mxu0 0
    %2149 = vmatprep.mubr.bf16.mxu0 0
    %2150 = vmatmul.mubr.bf16.gmra.mrb[0].mxu0 %v2106
    %v2151 = vpop.f32.mrb[0].mxu0
    %v2152 = vadd.f32 0.0, %v2151
    %v2153 = vpop.f32.mrb[0].mxu0
    %v2154 = vpop.f32.mrb[0].mxu0
    %v2155 = vadd.f32 0.0, %v2154
    %v2156 = vpop.f32.mrb[0].mxu0
    %2157 = vmatprep.mubr.bf16.mxu0 0
    %2158 = vmatmul.mubr.bf16.gmra.mrb[0].mxu0 %v2109
    %v2159 = vpop.f32.mrb[0].mxu0
    %v2160 = vadd.f32 0.0, %v2159
    %v2161 = vpop.f32.mrb[0].mxu0
    %v2162 = vpop.f32.mrb[0].mxu0
    %v2163 = vadd.f32 0.0, %v2162
    %v2164 = vpop.f32.mrb[0].mxu0
    %2165 = vdwg.mxu0
    %2166 = vrot.lane.b32.xlu0 %v452, 96
    %v2167 = vpop.permute.xlu0 %2166
    %2168 = vrot.lane.b32.xlu0 %v454, 96
    %v2169 = vpop.permute.xlu0 %2168
    %v2171 = vsel %vm479, %v452, 0
    %v2174 = vsel %vm479, %v454, 0
    %v2177 = vsel %vm479, %v2167, 0
    %v2180 = vsel %vm479, %v2169, 0
    %2182 = vmatprep.subr.bf16.mxu0 0
    %2183 = vmatpush1.bf16.xpose.msra.mxu0 %v2177
    %2184 = vmatprep.subr.bf16.mxu0 0
    %2185 = vmatpush1.bf16.xpose.msra.mxu0 %v2180
    %2186 = vmatprep.subr.bf16.mxu0 0
    %2187 = vmatpush1.bf16.xpose.msra.mxu0 0
    %2188 = vmatprep.subr.bf16.mxu0 0
    %2189 = vmatpush1.bf16.xpose.msra.mxu0 0
    %2190 = vmatprep.subr.bf16.mxu0 0
    %2191 = vmatpush1.bf16.xpose.msra.mxu0 0
    %2192 = vmatprep.subr.bf16.mxu0 0
    %2193 = vmatpush1.bf16.xpose.msra.mxu0 0
    %2194 = vmatprep.subr.bf16.mxu0 0
    %2195 = vmatpush1.bf16.xpose.msra.mxu0 0
    %2196 = vmatprep.subr.bf16.mxu0 0
    %2197 = vmatpush1.bf16.xpose.msra.mxu0 0
    %2198 = vmatprep.subr.bf16.mxu0 0
    %2199 = vmatpush1.bf16.xpose.msra.mxu0 0
    %2200 = vmatprep.subr.bf16.mxu0 0
    %2201 = vmatpush1.bf16.xpose.msra.mxu0 0
    %2202 = vmatprep.subr.bf16.mxu0 0
    %2203 = vmatpush1.bf16.xpose.msra.mxu0 0
    %2204 = vmatprep.subr.bf16.mxu0 0
    %2205 = vmatpush1.bf16.xpose.msra.mxu0 0
    %2206 = vmatprep.subr.bf16.mxu0 0
    %2207 = vmatpush1.bf16.xpose.msra.mxu0 0
    %2208 = vmatprep.subr.bf16.mxu0 0
    %2209 = vmatpush1.bf16.xpose.msra.mxu0 0
    %2210 = vmatprep.subr.bf16.mxu0 0
    %2211 = vmatpush1.bf16.xpose.msra.mxu0 0
    %2212 = vmatprep.subr.bf16.mxu0 0
    %2213 = vmatpush1.bf16.xpose.msra.mxu0 0
    %2214 = vmatprep.mubr.bf16.mxu0 0
    %2215 = vmatmul.mubr.bf16.gmra.mrb[0].mxu0 %v2171
    %v2216 = vpop.f32.mrb[0].mxu0
    %v2217 = vadd.f32 0.0, %v2216
    %v2218 = vpop.f32.mrb[0].mxu0
    %v2219 = vpop.f32.mrb[0].mxu0
    %v2220 = vadd.f32 0.0, %v2219
    %v2221 = vpop.f32.mrb[0].mxu0
    %2222 = vmatprep.mubr.bf16.mxu0 0
    %2223 = vmatmul.mubr.bf16.gmra.mrb[0].mxu0 %v2174
    %v2224 = vpop.f32.mrb[0].mxu0
    %v2225 = vadd.f32 0.0, %v2224
    %v2226 = vpop.f32.mrb[0].mxu0
    %v2227 = vpop.f32.mrb[0].mxu0
    %v2228 = vadd.f32 0.0, %v2227
    %v2229 = vpop.f32.mrb[0].mxu0
    %2230 = vdwg.mxu0
    %2231 = vrot.lane.b32.xlu0 %v456, 96
    %v2232 = vpop.permute.xlu0 %2231
    %2233 = vrot.lane.b32.xlu0 %v458, 96
    %v2234 = vpop.permute.xlu0 %2233
    %v2236 = vsel %vm479, %v456, 0
    %v2239 = vsel %vm479, %v458, 0
    %v2242 = vsel %vm479, %v2232, 0
    %v2245 = vsel %vm479, %v2234, 0
    %2247 = vmatprep.subr.bf16.mxu0 0
    %2248 = vmatpush1.bf16.xpose.msra.mxu0 %v2242
    %2249 = vmatprep.subr.bf16.mxu0 0
    %2250 = vmatpush1.bf16.xpose.msra.mxu0 %v2245
    %2251 = vmatprep.subr.bf16.mxu0 0
    %2252 = vmatpush1.bf16.xpose.msra.mxu0 0
    %2253 = vmatprep.subr.bf16.mxu0 0
    %2254 = vmatpush1.bf16.xpose.msra.mxu0 0
    %2255 = vmatprep.subr.bf16.mxu0 0
    %2256 = vmatpush1.bf16.xpose.msra.mxu0 0
    %2257 = vmatprep.subr.bf16.mxu0 0
    %2258 = vmatpush1.bf16.xpose.msra.mxu0 0
    %2259 = vmatprep.subr.bf16.mxu0 0
    %2260 = vmatpush1.bf16.xpose.msra.mxu0 0
    %2261 = vmatprep.subr.bf16.mxu0 0
    %2262 = vmatpush1.bf16.xpose.msra.mxu0 0
    %2263 = vmatprep.subr.bf16.mxu0 0
    %2264 = vmatpush1.bf16.xpose.msra.mxu0 0
    %2265 = vmatprep.subr.bf16.mxu0 0
    %2266 = vmatpush1.bf16.xpose.msra.mxu0 0
    %2267 = vmatprep.subr.bf16.mxu0 0
    %2268 = vmatpush1.bf16.xpose.msra.mxu0 0
    %2269 = vmatprep.subr.bf16.mxu0 0
    %2270 = vmatpush1.bf16.xpose.msra.mxu0 0
    %2271 = vmatprep.subr.bf16.mxu0 0
    %2272 = vmatpush1.bf16.xpose.msra.mxu0 0
    %2273 = vmatprep.subr.bf16.mxu0 0
    %2274 = vmatpush1.bf16.xpose.msra.mxu0 0
    %2275 = vmatprep.subr.bf16.mxu0 0
    %2276 = vmatpush1.bf16.xpose.msra.mxu0 0
    %2277 = vmatprep.subr.bf16.mxu0 0
    %2278 = vmatpush1.bf16.xpose.msra.mxu0 0
    %2279 = vmatprep.mubr.bf16.mxu0 0
    %2280 = vmatmul.mubr.bf16.gmra.mrb[0].mxu0 %v2236
    %v2281 = vpop.f32.mrb[0].mxu0
    %v2282 = vadd.f32 0.0, %v2281
    %v2283 = vpop.f32.mrb[0].mxu0
    %v2284 = vpop.f32.mrb[0].mxu0
    %v2285 = vadd.f32 0.0, %v2284
    %v2286 = vpop.f32.mrb[0].mxu0
    %2287 = vmatprep.mubr.bf16.mxu0 0
    %2288 = vmatmul.mubr.bf16.gmra.mrb[0].mxu0 %v2239
    %v2289 = vpop.f32.mrb[0].mxu0
    %v2290 = vadd.f32 0.0, %v2289
    %v2291 = vpop.f32.mrb[0].mxu0
    %v2292 = vpop.f32.mrb[0].mxu0
    %v2293 = vadd.f32 0.0, %v2292
    %v2294 = vpop.f32.mrb[0].mxu0
    %2295 = vdwg.mxu0
    %2296 = vrot.lane.b32.xlu0 %v460, 96
    %v2297 = vpop.permute.xlu0 %2296
    %2298 = vrot.lane.b32.xlu0 %v462, 96
    %v2299 = vpop.permute.xlu0 %2298
    %v2301 = vsel %vm479, %v460, 0
    %v2304 = vsel %vm479, %v462, 0
    %v2307 = vsel %vm479, %v2297, 0
    %v2310 = vsel %vm479, %v2299, 0
    %2312 = vmatprep.subr.bf16.mxu0 0
    %2313 = vmatpush1.bf16.xpose.msra.mxu0 %v2307
    %2314 = vmatprep.subr.bf16.mxu0 0
    %2315 = vmatpush1.bf16.xpose.msra.mxu0 %v2310
    %2316 = vmatprep.subr.bf16.mxu0 0
    %2317 = vmatpush1.bf16.xpose.msra.mxu0 0
    %2318 = vmatprep.subr.bf16.mxu0 0
    %2319 = vmatpush1.bf16.xpose.msra.mxu0 0
    %2320 = vmatprep.subr.bf16.mxu0 0
    %2321 = vmatpush1.bf16.xpose.msra.mxu0 0
    %2322 = vmatprep.subr.bf16.mxu0 0
    %2323 = vmatpush1.bf16.xpose.msra.mxu0 0
    %2324 = vmatprep.subr.bf16.mxu0 0
    %2325 = vmatpush1.bf16.xpose.msra.mxu0 0
    %2326 = vmatprep.subr.bf16.mxu0 0
    %2327 = vmatpush1.bf16.xpose.msra.mxu0 0
    %2328 = vmatprep.subr.bf16.mxu0 0
    %2329 = vmatpush1.bf16.xpose.msra.mxu0 0
    %2330 = vmatprep.subr.bf16.mxu0 0
    %2331 = vmatpush1.bf16.xpose.msra.mxu0 0
    %2332 = vmatprep.subr.bf16.mxu0 0
    %2333 = vmatpush1.bf16.xpose.msra.mxu0 0
    %2334 = vmatprep.subr.bf16.mxu0 0
    %2335 = vmatpush1.bf16.xpose.msra.mxu0 0
    %2336 = vmatprep.subr.bf16.mxu0 0
    %2337 = vmatpush1.bf16.xpose.msra.mxu0 0
    %2338 = vmatprep.subr.bf16.mxu0 0
    %2339 = vmatpush1.bf16.xpose.msra.mxu0 0
    %2340 = vmatprep.subr.bf16.mxu0 0
    %2341 = vmatpush1.bf16.xpose.msra.mxu0 0
    %2342 = vmatprep.subr.bf16.mxu0 0
    %2343 = vmatpush1.bf16.xpose.msra.mxu0 0
    %2344 = vmatprep.mubr.bf16.mxu0 0
    %2345 = vmatmul.mubr.bf16.gmra.mrb[0].mxu0 %v2301
    %v2346 = vpop.f32.mrb[0].mxu0
    %v2347 = vadd.f32 0.0, %v2346
    %v2348 = vpop.f32.mrb[0].mxu0
    %v2349 = vpop.f32.mrb[0].mxu0
    %v2350 = vadd.f32 0.0, %v2349
    %v2351 = vpop.f32.mrb[0].mxu0
    %2352 = vmatprep.mubr.bf16.mxu0 0
    %2353 = vmatmul.mubr.bf16.gmra.mrb[0].mxu0 %v2304
    %v2354 = vpop.f32.mrb[0].mxu0
    %v2355 = vadd.f32 0.0, %v2354
    %v2356 = vpop.f32.mrb[0].mxu0
    %v2357 = vpop.f32.mrb[0].mxu0
    %v2358 = vadd.f32 0.0, %v2357
    %v2359 = vpop.f32.mrb[0].mxu0
    %2360 = vdwg.mxu0
    %2361 = vrot.lane.b32.xlu0 %v464, 96
    %v2362 = vpop.permute.xlu0 %2361
    %2363 = vrot.lane.b32.xlu0 %v466, 96
    %v2364 = vpop.permute.xlu0 %2363
    %v2366 = vsel %vm479, %v464, 0
    %v2369 = vsel %vm479, %v466, 0
    %v2372 = vsel %vm479, %v2362, 0
    %v2375 = vsel %vm479, %v2364, 0
    %2377 = vmatprep.subr.bf16.mxu0 0
    %2378 = vmatpush1.bf16.xpose.msra.mxu0 %v2372
    %2379 = vmatprep.subr.bf16.mxu0 0
    %2380 = vmatpush1.bf16.xpose.msra.mxu0 %v2375
    %2381 = vmatprep.subr.bf16.mxu0 0
    %2382 = vmatpush1.bf16.xpose.msra.mxu0 0
    %2383 = vmatprep.subr.bf16.mxu0 0
    %2384 = vmatpush1.bf16.xpose.msra.mxu0 0
    %2385 = vmatprep.subr.bf16.mxu0 0
    %2386 = vmatpush1.bf16.xpose.msra.mxu0 0
    %2387 = vmatprep.subr.bf16.mxu0 0
    %2388 = vmatpush1.bf16.xpose.msra.mxu0 0
    %2389 = vmatprep.subr.bf16.mxu0 0
    %2390 = vmatpush1.bf16.xpose.msra.mxu0 0
    %2391 = vmatprep.subr.bf16.mxu0 0
    %2392 = vmatpush1.bf16.xpose.msra.mxu0 0
    %2393 = vmatprep.subr.bf16.mxu0 0
    %2394 = vmatpush1.bf16.xpose.msra.mxu0 0
    %2395 = vmatprep.subr.bf16.mxu0 0
    %2396 = vmatpush1.bf16.xpose.msra.mxu0 0
    %2397 = vmatprep.subr.bf16.mxu0 0
    %2398 = vmatpush1.bf16.xpose.msra.mxu0 0
    %2399 = vmatprep.subr.bf16.mxu0 0
    %2400 = vmatpush1.bf16.xpose.msra.mxu0 0
    %2401 = vmatprep.subr.bf16.mxu0 0
    %2402 = vmatpush1.bf16.xpose.msra.mxu0 0
    %2403 = vmatprep.subr.bf16.mxu0 0
    %2404 = vmatpush1.bf16.xpose.msra.mxu0 0
    %2405 = vmatprep.subr.bf16.mxu0 0
    %2406 = vmatpush1.bf16.xpose.msra.mxu0 0
    %2407 = vmatprep.subr.bf16.mxu0 0
    %2408 = vmatpush1.bf16.xpose.msra.mxu0 0
    %2409 = vmatprep.mubr.bf16.mxu0 0
    %2410 = vmatmul.mubr.bf16.gmra.mrb[0].mxu0 %v2366
    %v2411 = vpop.f32.mrb[0].mxu0
    %v2412 = vadd.f32 0.0, %v2411
    %v2413 = vpop.f32.mrb[0].mxu0
    %v2414 = vpop.f32.mrb[0].mxu0
    %v2415 = vadd.f32 0.0, %v2414
    %v2416 = vpop.f32.mrb[0].mxu0
    %2417 = vmatprep.mubr.bf16.mxu0 0
    %2418 = vmatmul.mubr.bf16.gmra.mrb[0].mxu0 %v2369
    %v2419 = vpop.f32.mrb[0].mxu0
    %v2420 = vadd.f32 0.0, %v2419
    %v2421 = vpop.f32.mrb[0].mxu0
    %v2422 = vpop.f32.mrb[0].mxu0
    %v2423 = vadd.f32 0.0, %v2422
    %v2424 = vpop.f32.mrb[0].mxu0
    %2425 = vdwg.mxu0
    %2426 = vrot.lane.b32.xlu0 %v468, 96
    %v2427 = vpop.permute.xlu0 %2426
    %2428 = vrot.lane.b32.xlu0 %v470, 96
    %v2429 = vpop.permute.xlu0 %2428
    %v2431 = vsel %vm479, %v468, 0
    %v2434 = vsel %vm479, %v470, 0
    %v2437 = vsel %vm479, %v2427, 0
    %v2440 = vsel %vm479, %v2429, 0
    %2442 = vmatprep.subr.bf16.mxu0 0
    %2443 = vmatpush1.bf16.xpose.msra.mxu0 %v2437
    %2444 = vmatprep.subr.bf16.mxu0 0
    %2445 = vmatpush1.bf16.xpose.msra.mxu0 %v2440
    %2446 = vmatprep.subr.bf16.mxu0 0
    %2447 = vmatpush1.bf16.xpose.msra.mxu0 0
    %2448 = vmatprep.subr.bf16.mxu0 0
    %2449 = vmatpush1.bf16.xpose.msra.mxu0 0
    %2450 = vmatprep.subr.bf16.mxu0 0
    %2451 = vmatpush1.bf16.xpose.msra.mxu0 0
    %2452 = vmatprep.subr.bf16.mxu0 0
    %2453 = vmatpush1.bf16.xpose.msra.mxu0 0
    %2454 = vmatprep.subr.bf16.mxu0 0
    %2455 = vmatpush1.bf16.xpose.msra.mxu0 0
    %2456 = vmatprep.subr.bf16.mxu0 0
    %2457 = vmatpush1.bf16.xpose.msra.mxu0 0
    %2458 = vmatprep.subr.bf16.mxu0 0
    %2459 = vmatpush1.bf16.xpose.msra.mxu0 0
    %2460 = vmatprep.subr.bf16.mxu0 0
    %2461 = vmatpush1.bf16.xpose.msra.mxu0 0
    %2462 = vmatprep.subr.bf16.mxu0 0
    %2463 = vmatpush1.bf16.xpose.msra.mxu0 0
    %2464 = vmatprep.subr.bf16.mxu0 0
    %2465 = vmatpush1.bf16.xpose.msra.mxu0 0
    %2466 = vmatprep.subr.bf16.mxu0 0
    %2467 = vmatpush1.bf16.xpose.msra.mxu0 0
    %2468 = vmatprep.subr.bf16.mxu0 0
    %2469 = vmatpush1.bf16.xpose.msra.mxu0 0
    %2470 = vmatprep.subr.bf16.mxu0 0
    %2471 = vmatpush1.bf16.xpose.msra.mxu0 0
    %2472 = vmatprep.subr.bf16.mxu0 0
    %2473 = vmatpush1.bf16.xpose.msra.mxu0 0
    %2474 = vmatprep.mubr.bf16.mxu0 0
    %2475 = vmatmul.mubr.bf16.gmra.mrb[0].mxu0 %v2431
    %v2476 = vpop.f32.mrb[0].mxu0
    %v2477 = vadd.f32 0.0, %v2476
    %v2478 = vpop.f32.mrb[0].mxu0
    %v2479 = vpop.f32.mrb[0].mxu0
    %v2480 = vadd.f32 0.0, %v2479
    %v2481 = vpop.f32.mrb[0].mxu0
    %2482 = vmatprep.mubr.bf16.mxu0 0
    %2483 = vmatmul.mubr.bf16.gmra.mrb[0].mxu0 %v2434
    %v2484 = vpop.f32.mrb[0].mxu0
    %v2485 = vadd.f32 0.0, %v2484
    %v2486 = vpop.f32.mrb[0].mxu0
    %v2487 = vpop.f32.mrb[0].mxu0
    %v2488 = vadd.f32 0.0, %v2487
    %v2489 = vpop.f32.mrb[0].mxu0
    %2490 = vdwg.mxu0
    %2491 = vrot.lane.b32.xlu0 %v472, 96
    %v2492 = vpop.permute.xlu0 %2491
    %2493 = vrot.lane.b32.xlu0 %v474, 96
    %v2494 = vpop.permute.xlu0 %2493
    %v2496 = vsel %vm479, %v472, 0
    %v2499 = vsel %vm479, %v474, 0
    %v2502 = vsel %vm479, %v2492, 0
    %v2505 = vsel %vm479, %v2494, 0
    %2507 = vmatprep.subr.bf16.mxu0 0
    %2508 = vmatpush1.bf16.xpose.msra.mxu0 %v2502
    %2509 = vmatprep.subr.bf16.mxu0 0
    %2510 = vmatpush1.bf16.xpose.msra.mxu0 %v2505
    %2511 = vmatprep.subr.bf16.mxu0 0
    %2512 = vmatpush1.bf16.xpose.msra.mxu0 0
    %2513 = vmatprep.subr.bf16.mxu0 0
    %2514 = vmatpush1.bf16.xpose.msra.mxu0 0
    %2515 = vmatprep.subr.bf16.mxu0 0
    %2516 = vmatpush1.bf16.xpose.msra.mxu0 0
    %2517 = vmatprep.subr.bf16.mxu0 0
    %2518 = vmatpush1.bf16.xpose.msra.mxu0 0
    %2519 = vmatprep.subr.bf16.mxu0 0
    %2520 = vmatpush1.bf16.xpose.msra.mxu0 0
    %2521 = vmatprep.subr.bf16.mxu0 0
    %2522 = vmatpush1.bf16.xpose.msra.mxu0 0
    %2523 = vmatprep.subr.bf16.mxu0 0
    %2524 = vmatpush1.bf16.xpose.msra.mxu0 0
    %2525 = vmatprep.subr.bf16.mxu0 0
    %2526 = vmatpush1.bf16.xpose.msra.mxu0 0
    %2527 = vmatprep.subr.bf16.mxu0 0
    %2528 = vmatpush1.bf16.xpose.msra.mxu0 0
    %2529 = vmatprep.subr.bf16.mxu0 0
    %2530 = vmatpush1.bf16.xpose.msra.mxu0 0
    %2531 = vmatprep.subr.bf16.mxu0 0
    %2532 = vmatpush1.bf16.xpose.msra.mxu0 0
    %2533 = vmatprep.subr.bf16.mxu0 0
    %2534 = vmatpush1.bf16.xpose.msra.mxu0 0
    %2535 = vmatprep.subr.bf16.mxu0 0
    %2536 = vmatpush1.bf16.xpose.msra.mxu0 0
    %2537 = vmatprep.subr.bf16.mxu0 0
    %2538 = vmatpush1.bf16.xpose.msra.mxu0 0
    %2539 = vmatprep.mubr.bf16.mxu0 0
    %2540 = vmatmul.mubr.bf16.gmra.mrb[0].mxu0 %v2496
    %v2541 = vpop.f32.mrb[0].mxu0
    %v2542 = vadd.f32 0.0, %v2541
    %v2543 = vpop.f32.mrb[0].mxu0
    %v2544 = vpop.f32.mrb[0].mxu0
    %v2545 = vadd.f32 0.0, %v2544
    %v2546 = vpop.f32.mrb[0].mxu0
    %2547 = vmatprep.mubr.bf16.mxu0 0
    %2548 = vmatmul.mubr.bf16.gmra.mrb[0].mxu0 %v2499
    %v2549 = vpop.f32.mrb[0].mxu0
    %v2550 = vadd.f32 0.0, %v2549
    %v2551 = vpop.f32.mrb[0].mxu0
    %v2552 = vpop.f32.mrb[0].mxu0
    %v2553 = vadd.f32 0.0, %v2552
    %v2554 = vpop.f32.mrb[0].mxu0
    %2555 = vdwg.mxu0
    %v2556 = vld [vmem:[#allocation7] sm:$0xf]
    %v2557 = vld [vmem:[#allocation7 + $0x4] sm:$0xf]
    %v2558 = vld [vmem:[#allocation7 + $0x8] sm:$0xf]
    %v2559 = vld [vmem:[#allocation7 + $0xc] sm:$0xf]
    %v2560 = vld [vmem:[#allocation7 + $0x10] sm:$0xf]
    %v2561 = vld [vmem:[#allocation7 + $0x14] sm:$0xf]
    %v2562 = vld [vmem:[#allocation7 + $0x18] sm:$0xf]
    %v2563 = vld [vmem:[#allocation7 + $0x1c] sm:$0xf]
    %v2564 = vld [vmem:[#allocation7 + $0x20] sm:$0xf]
    %v2565 = vld [vmem:[#allocation7 + $0x24] sm:$0xf]
    %v2566 = vld [vmem:[#allocation7 + $0x28] sm:$0xf]
    %v2567 = vld [vmem:[#allocation7 + $0x2c] sm:$0xf]
    %v2568 = vld [vmem:[#allocation7 + $0x30] sm:$0xf]
    %v2569 = vld [vmem:[#allocation7 + $0x34] sm:$0xf]
    %v2570 = vld [vmem:[#allocation7 + $0x38] sm:$0xf]
    %v2571 = vld [vmem:[#allocation7 + $0x3c] sm:$0xf]
    %v2572 = vunpack.c.l.bf16 %v2556
    %v2573 = vunpack.c.l.bf16 %v2557
    %v2574 = vunpack.c.l.bf16 %v2558
    %v2575 = vunpack.c.l.bf16 %v2559
    %v2576 = vunpack.c.l.bf16 %v2560
    %v2577 = vunpack.c.l.bf16 %v2561
    %v2578 = vunpack.c.l.bf16 %v2562
    %v2579 = vunpack.c.l.bf16 %v2563
    %v2580 = vunpack.c.l.bf16 %v2564
    %v2581 = vunpack.c.l.bf16 %v2565
    %v2582 = vunpack.c.l.bf16 %v2566
    %v2583 = vunpack.c.l.bf16 %v2567
    %v2584 = vunpack.c.l.bf16 %v2568
    %v2585 = vunpack.c.l.bf16 %v2569
    %v2586 = vunpack.c.l.bf16 %v2570
    %v2587 = vunpack.c.l.bf16 %v2571
    %v2588 = vadd.f32 %v527, %v2572
    %v2589 = vadd.f32 %v530, %v2573
    %v2590 = vadd.f32 %v535, %v2574
    %v2591 = vadd.f32 %v538, %v2575
    %v2592 = vadd.f32 %v592, %v2572
    %v2593 = vadd.f32 %v595, %v2573
    %v2594 = vadd.f32 %v600, %v2574
    %v2595 = vadd.f32 %v603, %v2575
    %v2596 = vadd.f32 %v657, %v2572
    %v2597 = vadd.f32 %v660, %v2573
    %v2598 = vadd.f32 %v665, %v2574
    %v2599 = vadd.f32 %v668, %v2575
    %v2600 = vadd.f32 %v722, %v2572
    %v2601 = vadd.f32 %v725, %v2573
    %v2602 = vadd.f32 %v730, %v2574
    %v2603 = vadd.f32 %v733, %v2575
    %v2604 = vadd.f32 %v787, %v2572
    %v2605 = vadd.f32 %v790, %v2573
    %v2606 = vadd.f32 %v795, %v2574
    %v2607 = vadd.f32 %v798, %v2575
    %v2608 = vadd.f32 %v852, %v2572
    %v2609 = vadd.f32 %v855, %v2573
    %v2610 = vadd.f32 %v860, %v2574
    %v2611 = vadd.f32 %v863, %v2575
    %v2612 = vadd.f32 %v917, %v2572
    %v2613 = vadd.f32 %v920, %v2573
    %v2614 = vadd.f32 %v925, %v2574
    %v2615 = vadd.f32 %v928, %v2575
    %v2616 = vadd.f32 %v982, %v2572
    %v2617 = vadd.f32 %v985, %v2573
    %v2618 = vadd.f32 %v990, %v2574
    %v2619 = vadd.f32 %v993, %v2575
    %v2620 = vadd.f32 %v1047, %v2576
    %v2621 = vadd.f32 %v1050, %v2577
    %v2622 = vadd.f32 %v1055, %v2578
    %v2623 = vadd.f32 %v1058, %v2579
    %v2624 = vadd.f32 %v1112, %v2576
    %v2625 = vadd.f32 %v1115, %v2577
    %v2626 = vadd.f32 %v1120, %v2578
    %v2627 = vadd.f32 %v1123, %v2579
    %v2628 = vadd.f32 %v1177, %v2576
    %v2629 = vadd.f32 %v1180, %v2577
    %v2630 = vadd.f32 %v1185, %v2578
    %v2631 = vadd.f32 %v1188, %v2579
    %v2632 = vadd.f32 %v1242, %v2576
    %v2633 = vadd.f32 %v1245, %v2577
    %v2634 = vadd.f32 %v1250, %v2578
    %v2635 = vadd.f32 %v1253, %v2579
    %v2636 = vadd.f32 %v1307, %v2576
    %v2637 = vadd.f32 %v1310, %v2577
    %v2638 = vadd.f32 %v1315, %v2578
    %v2639 = vadd.f32 %v1318, %v2579
    %v2640 = vadd.f32 %v1372, %v2576
    %v2641 = vadd.f32 %v1375, %v2577
    %v2642 = vadd.f32 %v1380, %v2578
    %v2643 = vadd.f32 %v1383, %v2579
    %v2644 = vadd.f32 %v1437, %v2576
    %v2645 = vadd.f32 %v1440, %v2577
    %v2646 = vadd.f32 %v1445, %v2578
    %v2647 = vadd.f32 %v1448, %v2579
    %v2648 = vadd.f32 %v1502, %v2576
    %v2649 = vadd.f32 %v1505, %v2577
    %v2650 = vadd.f32 %v1510, %v2578
    %v2651 = vadd.f32 %v1513, %v2579
    %v2652 = vadd.f32 %v1567, %v2580
    %v2653 = vadd.f32 %v1570, %v2581
    %v2654 = vadd.f32 %v1575, %v2582
    %v2655 = vadd.f32 %v1578, %v2583
    %v2656 = vadd.f32 %v1632, %v2580
    %v2657 = vadd.f32 %v1635, %v2581
    %v2658 = vadd.f32 %v1640, %v2582
    %v2659 = vadd.f32 %v1643, %v2583
    %v2660 = vadd.f32 %v1697, %v2580
    %v2661 = vadd.f32 %v1700, %v2581
    %v2662 = vadd.f32 %v1705, %v2582
    %v2663 = vadd.f32 %v1708, %v2583
    %v2664 = vadd.f32 %v1762, %v2580
    %v2665 = vadd.f32 %v1765, %v2581
    %v2666 = vadd.f32 %v1770, %v2582
    %v2667 = vadd.f32 %v1773, %v2583
    %v2668 = vadd.f32 %v1827, %v2580
    %v2669 = vadd.f32 %v1830, %v2581
    %v2670 = vadd.f32 %v1835, %v2582
    %v2671 = vadd.f32 %v1838, %v2583
    %v2672 = vadd.f32 %v1892, %v2580
    %v2673 = vadd.f32 %v1895, %v2581
    %v2674 = vadd.f32 %v1900, %v2582
    %v2675 = vadd.f32 %v1903, %v2583
    %v2676 = vadd.f32 %v1957, %v2580
    %v2677 = vadd.f32 %v1960, %v2581
    %v2678 = vadd.f32 %v1965, %v2582
    %v2679 = vadd.f32 %v1968, %v2583
    %v2680 = vadd.f32 %v2022, %v2580
    %v2681 = vadd.f32 %v2025, %v2581
    %v2682 = vadd.f32 %v2030, %v2582
    %v2683 = vadd.f32 %v2033, %v2583
    %v2684 = vadd.f32 %v2087, %v2584
    %v2685 = vadd.f32 %v2090, %v2585
    %v2686 = vadd.f32 %v2095, %v2586
    %v2687 = vadd.f32 %v2098, %v2587
    %v2688 = vadd.f32 %v2152, %v2584
    %v2689 = vadd.f32 %v2155, %v2585
    %v2690 = vadd.f32 %v2160, %v2586
    %v2691 = vadd.f32 %v2163, %v2587
    %v2692 = vadd.f32 %v2217, %v2584
    %v2693 = vadd.f32 %v2220, %v2585
    %v2694 = vadd.f32 %v2225, %v2586
    %v2695 = vadd.f32 %v2228, %v2587
    %v2696 = vadd.f32 %v2282, %v2584
    %v2697 = vadd.f32 %v2285, %v2585
    %v2698 = vadd.f32 %v2290, %v2586
    %v2699 = vadd.f32 %v2293, %v2587
    %v2700 = vadd.f32 %v2347, %v2584
    %v2701 = vadd.f32 %v2350, %v2585
    %v2702 = vadd.f32 %v2355, %v2586
    %v2703 = vadd.f32 %v2358, %v2587
    %v2704 = vadd.f32 %v2412, %v2584
    %v2705 = vadd.f32 %v2415, %v2585
    %v2706 = vadd.f32 %v2420, %v2586
    %v2707 = vadd.f32 %v2423, %v2587
    %v2708 = vadd.f32 %v2477, %v2584
    %v2709 = vadd.f32 %v2480, %v2585
    %v2710 = vadd.f32 %v2485, %v2586
    %v2711 = vadd.f32 %v2488, %v2587
    %v2712 = vadd.f32 %v2542, %v2584
    %v2713 = vadd.f32 %v2545, %v2585
    %v2714 = vadd.f32 %v2550, %v2586
    %v2715 = vadd.f32 %v2553, %v2587
    %v2716 = vsel %vm137, %v2588, -inf
    %2717 = vmax.xlane.f32.xlu0 %v2716
    %v2718 = vpop.xlane.xlu0 %2717
    %v2719 = vsel %vm137, %v2589, -inf
    %2720 = vmax.xlane.f32.xlu0 %v2719
    %v2721 = vpop.xlane.xlu0 %2720
    %v2722 = vsel %vm137, %v2590, -inf
    %2723 = vmax.xlane.f32.xlu0 %v2722
    %v2724 = vpop.xlane.xlu0 %2723
    %v2725 = vsel %vm137, %v2591, -inf
    %2726 = vmax.xlane.f32.xlu0 %v2725
    %v2727 = vpop.xlane.xlu0 %2726
    %v2728 = vsel %vm137, %v2592, -inf
    %2729 = vmax.xlane.f32.xlu0 %v2728
    %v2730 = vpop.xlane.xlu0 %2729
    %v2731 = vsel %vm137, %v2593, -inf
    %2732 = vmax.xlane.f32.xlu0 %v2731
    %v2733 = vpop.xlane.xlu0 %2732
    %v2734 = vsel %vm137, %v2594, -inf
    %2735 = vmax.xlane.f32.xlu0 %v2734
    %v2736 = vpop.xlane.xlu0 %2735
    %v2737 = vsel %vm137, %v2595, -inf
    %2738 = vmax.xlane.f32.xlu0 %v2737
    %v2739 = vpop.xlane.xlu0 %2738
    %v2740 = vsel %vm137, %v2596, -inf
    %2741 = vmax.xlane.f32.xlu0 %v2740
    %v2742 = vpop.xlane.xlu0 %2741
    %v2743 = vsel %vm137, %v2597, -inf
    %2744 = vmax.xlane.f32.xlu0 %v2743
    %v2745 = vpop.xlane.xlu0 %2744
    %v2746 = vsel %vm137, %v2598, -inf
    %2747 = vmax.xlane.f32.xlu0 %v2746
    %v2748 = vpop.xlane.xlu0 %2747
    %v2749 = vsel %vm137, %v2599, -inf
    %2750 = vmax.xlane.f32.xlu0 %v2749
    %v2751 = vpop.xlane.xlu0 %2750
    %v2752 = vsel %vm137, %v2600, -inf
    %2753 = vmax.xlane.f32.xlu0 %v2752
    %v2754 = vpop.xlane.xlu0 %2753
    %v2755 = vsel %vm137, %v2601, -inf
    %2756 = vmax.xlane.f32.xlu0 %v2755
    %v2757 = vpop.xlane.xlu0 %2756
    %v2758 = vsel %vm137, %v2602, -inf
    %2759 = vmax.xlane.f32.xlu0 %v2758
    %v2760 = vpop.xlane.xlu0 %2759
    %v2761 = vsel %vm137, %v2603, -inf
    %2762 = vmax.xlane.f32.xlu0 %v2761
    %v2763 = vpop.xlane.xlu0 %2762
    %v2764 = vsel %vm137, %v2604, -inf
    %2765 = vmax.xlane.f32.xlu0 %v2764
    %v2766 = vpop.xlane.xlu0 %2765
    %v2767 = vsel %vm137, %v2605, -inf
    %2768 = vmax.xlane.f32.xlu0 %v2767
    %v2769 = vpop.xlane.xlu0 %2768
    %v2770 = vsel %vm137, %v2606, -inf
    %2771 = vmax.xlane.f32.xlu0 %v2770
    %v2772 = vpop.xlane.xlu0 %2771
    %v2773 = vsel %vm137, %v2607, -inf
    %2774 = vmax.xlane.f32.xlu0 %v2773
    %v2775 = vpop.xlane.xlu0 %2774
    %v2776 = vsel %vm137, %v2608, -inf
    %2777 = vmax.xlane.f32.xlu0 %v2776
    %v2778 = vpop.xlane.xlu0 %2777
    %v2779 = vsel %vm137, %v2609, -inf
    %2780 = vmax.xlane.f32.xlu0 %v2779
    %v2781 = vpop.xlane.xlu0 %2780
    %v2782 = vsel %vm137, %v2610, -inf
    %2783 = vmax.xlane.f32.xlu0 %v2782
    %v2784 = vpop.xlane.xlu0 %2783
    %v2785 = vsel %vm137, %v2611, -inf
    %2786 = vmax.xlane.f32.xlu0 %v2785
    %v2787 = vpop.xlane.xlu0 %2786
    %v2788 = vsel %vm137, %v2612, -inf
    %2789 = vmax.xlane.f32.xlu0 %v2788
    %v2790 = vpop.xlane.xlu0 %2789
    %v2791 = vsel %vm137, %v2613, -inf
    %2792 = vmax.xlane.f32.xlu0 %v2791
    %v2793 = vpop.xlane.xlu0 %2792
    %v2794 = vsel %vm137, %v2614, -inf
    %2795 = vmax.xlane.f32.xlu0 %v2794
    %v2796 = vpop.xlane.xlu0 %2795
    %v2797 = vsel %vm137, %v2615, -inf
    %2798 = vmax.xlane.f32.xlu0 %v2797
    %v2799 = vpop.xlane.xlu0 %2798
    %v2800 = vsel %vm137, %v2616, -inf
    %2801 = vmax.xlane.f32.xlu0 %v2800
    %v2802 = vpop.xlane.xlu0 %2801
    %v2803 = vsel %vm137, %v2617, -inf
    %2804 = vmax.xlane.f32.xlu0 %v2803
    %v2805 = vpop.xlane.xlu0 %2804
    %v2806 = vsel %vm137, %v2618, -inf
    %2807 = vmax.xlane.f32.xlu0 %v2806
    %v2808 = vpop.xlane.xlu0 %2807
    %v2809 = vsel %vm137, %v2619, -inf
    %2810 = vmax.xlane.f32.xlu0 %v2809
    %v2811 = vpop.xlane.xlu0 %2810
    %v2812 = vsel %vm137, %v2620, -inf
    %2813 = vmax.xlane.f32.xlu0 %v2812
    %v2814 = vpop.xlane.xlu0 %2813
    %v2815 = vsel %vm137, %v2621, -inf
    %2816 = vmax.xlane.f32.xlu0 %v2815
    %v2817 = vpop.xlane.xlu0 %2816
    %v2818 = vsel %vm137, %v2622, -inf
    %2819 = vmax.xlane.f32.xlu0 %v2818
    %v2820 = vpop.xlane.xlu0 %2819
    %v2821 = vsel %vm137, %v2623, -inf
    %2822 = vmax.xlane.f32.xlu0 %v2821
    %v2823 = vpop.xlane.xlu0 %2822
    %v2824 = vsel %vm137, %v2624, -inf
    %2825 = vmax.xlane.f32.xlu0 %v2824
    %v2826 = vpop.xlane.xlu0 %2825
    %v2827 = vsel %vm137, %v2625, -inf
    %2828 = vmax.xlane.f32.xlu0 %v2827
    %v2829 = vpop.xlane.xlu0 %2828
    %v2830 = vsel %vm137, %v2626, -inf
    %2831 = vmax.xlane.f32.xlu0 %v2830
    %v2832 = vpop.xlane.xlu0 %2831
    %v2833 = vsel %vm137, %v2627, -inf
    %2834 = vmax.xlane.f32.xlu0 %v2833
    %v2835 = vpop.xlane.xlu0 %2834
    %v2836 = vsel %vm137, %v2628, -inf
    %2837 = vmax.xlane.f32.xlu0 %v2836
    %v2838 = vpop.xlane.xlu0 %2837
    %v2839 = vsel %vm137, %v2629, -inf
    %2840 = vmax.xlane.f32.xlu0 %v2839
    %v2841 = vpop.xlane.xlu0 %2840
    %v2842 = vsel %vm137, %v2630, -inf
    %2843 = vmax.xlane.f32.xlu0 %v2842
    %v2844 = vpop.xlane.xlu0 %2843
    %v2845 = vsel %vm137, %v2631, -inf
    %2846 = vmax.xlane.f32.xlu0 %v2845
    %v2847 = vpop.xlane.xlu0 %2846
    %v2848 = vsel %vm137, %v2632, -inf
    %2849 = vmax.xlane.f32.xlu0 %v2848
    %v2850 = vpop.xlane.xlu0 %2849
    %v2851 = vsel %vm137, %v2633, -inf
    %2852 = vmax.xlane.f32.xlu0 %v2851
    %v2853 = vpop.xlane.xlu0 %2852
    %v2854 = vsel %vm137, %v2634, -inf
    %2855 = vmax.xlane.f32.xlu0 %v2854
    %v2856 = vpop.xlane.xlu0 %2855
    %v2857 = vsel %vm137, %v2635, -inf
    %2858 = vmax.xlane.f32.xlu0 %v2857
    %v2859 = vpop.xlane.xlu0 %2858
    %v2860 = vsel %vm137, %v2636, -inf
    %2861 = vmax.xlane.f32.xlu0 %v2860
    %v2862 = vpop.xlane.xlu0 %2861
    %v2863 = vsel %vm137, %v2637, -inf
    %2864 = vmax.xlane.f32.xlu0 %v2863
    %v2865 = vpop.xlane.xlu0 %2864
    %v2866 = vsel %vm137, %v2638, -inf
    %2867 = vmax.xlane.f32.xlu0 %v2866
    %v2868 = vpop.xlane.xlu0 %2867
    %v2869 = vsel %vm137, %v2639, -inf
    %2870 = vmax.xlane.f32.xlu0 %v2869
    %v2871 = vpop.xlane.xlu0 %2870
    %v2872 = vsel %vm137, %v2640, -inf
    %2873 = vmax.xlane.f32.xlu0 %v2872
    %v2874 = vpop.xlane.xlu0 %2873
    %v2875 = vsel %vm137, %v2641, -inf
    %2876 = vmax.xlane.f32.xlu0 %v2875
    %v2877 = vpop.xlane.xlu0 %2876
    %v2878 = vsel %vm137, %v2642, -inf
    %2879 = vmax.xlane.f32.xlu0 %v2878
    %v2880 = vpop.xlane.xlu0 %2879
    %v2881 = vsel %vm137, %v2643, -inf
    %2882 = vmax.xlane.f32.xlu0 %v2881
    %v2883 = vpop.xlane.xlu0 %2882
    %v2884 = vsel %vm137, %v2644, -inf
    %2885 = vmax.xlane.f32.xlu0 %v2884
    %v2886 = vpop.xlane.xlu0 %2885
    %v2887 = vsel %vm137, %v2645, -inf
    %2888 = vmax.xlane.f32.xlu0 %v2887
    %v2889 = vpop.xlane.xlu0 %2888
    %v2890 = vsel %vm137, %v2646, -inf
    %2891 = vmax.xlane.f32.xlu0 %v2890
    %v2892 = vpop.xlane.xlu0 %2891
    %v2893 = vsel %vm137, %v2647, -inf
    %2894 = vmax.xlane.f32.xlu0 %v2893
    %v2895 = vpop.xlane.xlu0 %2894
    %v2896 = vsel %vm137, %v2648, -inf
    %2897 = vmax.xlane.f32.xlu0 %v2896
    %v2898 = vpop.xlane.xlu0 %2897
    %v2899 = vsel %vm137, %v2649, -inf
    %2900 = vmax.xlane.f32.xlu0 %v2899
    %v2901 = vpop.xlane.xlu0 %2900
    %v2902 = vsel %vm137, %v2650, -inf
    %2903 = vmax.xlane.f32.xlu0 %v2902
    %v2904 = vpop.xlane.xlu0 %2903
    %v2905 = vsel %vm137, %v2651, -inf
    %2906 = vmax.xlane.f32.xlu0 %v2905
    %v2907 = vpop.xlane.xlu0 %2906
    %v2908 = vsel %vm137, %v2652, -inf
    %2909 = vmax.xlane.f32.xlu0 %v2908
    %v2910 = vpop.xlane.xlu0 %2909
    %v2911 = vsel %vm137, %v2653, -inf
    %2912 = vmax.xlane.f32.xlu0 %v2911
    %v2913 = vpop.xlane.xlu0 %2912
    %v2914 = vsel %vm137, %v2654, -inf
    %2915 = vmax.xlane.f32.xlu0 %v2914
    %v2916 = vpop.xlane.xlu0 %2915
    %v2917 = vsel %vm137, %v2655, -inf
    %2918 = vmax.xlane.f32.xlu0 %v2917
    %v2919 = vpop.xlane.xlu0 %2918
    %v2920 = vsel %vm137, %v2656, -inf
    %2921 = vmax.xlane.f32.xlu0 %v2920
    %v2922 = vpop.xlane.xlu0 %2921
    %v2923 = vsel %vm137, %v2657, -inf
    %2924 = vmax.xlane.f32.xlu0 %v2923
    %v2925 = vpop.xlane.xlu0 %2924
    %v2926 = vsel %vm137, %v2658, -inf
    %2927 = vmax.xlane.f32.xlu0 %v2926
    %v2928 = vpop.xlane.xlu0 %2927
    %v2929 = vsel %vm137, %v2659, -inf
    %2930 = vmax.xlane.f32.xlu0 %v2929
    %v2931 = vpop.xlane.xlu0 %2930
    %v2932 = vsel %vm137, %v2660, -inf
    %2933 = vmax.xlane.f32.xlu0 %v2932
    %v2934 = vpop.xlane.xlu0 %2933
    %v2935 = vsel %vm137, %v2661, -inf
    %2936 = vmax.xlane.f32.xlu0 %v2935
    %v2937 = vpop.xlane.xlu0 %2936
    %v2938 = vsel %vm137, %v2662, -inf
    %2939 = vmax.xlane.f32.xlu0 %v2938
    %v2940 = vpop.xlane.xlu0 %2939
    %v2941 = vsel %vm137, %v2663, -inf
    %2942 = vmax.xlane.f32.xlu0 %v2941
    %v2943 = vpop.xlane.xlu0 %2942
    %v2944 = vsel %vm137, %v2664, -inf
    %2945 = vmax.xlane.f32.xlu0 %v2944
    %v2946 = vpop.xlane.xlu0 %2945
    %v2947 = vsel %vm137, %v2665, -inf
    %2948 = vmax.xlane.f32.xlu0 %v2947
    %v2949 = vpop.xlane.xlu0 %2948
    %v2950 = vsel %vm137, %v2666, -inf
    %2951 = vmax.xlane.f32.xlu0 %v2950
    %v2952 = vpop.xlane.xlu0 %2951
    %v2953 = vsel %vm137, %v2667, -inf
    %2954 = vmax.xlane.f32.xlu0 %v2953
    %v2955 = vpop.xlane.xlu0 %2954
    %v2956 = vsel %vm137, %v2668, -inf
    %2957 = vmax.xlane.f32.xlu0 %v2956
    %v2958 = vpop.xlane.xlu0 %2957
    %v2959 = vsel %vm137, %v2669, -inf
    %2960 = vmax.xlane.f32.xlu0 %v2959
    %v2961 = vpop.xlane.xlu0 %2960
    %v2962 = vsel %vm137, %v2670, -inf
    %2963 = vmax.xlane.f32.xlu0 %v2962
    %v2964 = vpop.xlane.xlu0 %2963
    %v2965 = vsel %vm137, %v2671, -inf
    %2966 = vmax.xlane.f32.xlu0 %v2965
    %v2967 = vpop.xlane.xlu0 %2966
    %v2968 = vsel %vm137, %v2672, -inf
    %2969 = vmax.xlane.f32.xlu0 %v2968
    %v2970 = vpop.xlane.xlu0 %2969
    %v2971 = vsel %vm137, %v2673, -inf
    %2972 = vmax.xlane.f32.xlu0 %v2971
    %v2973 = vpop.xlane.xlu0 %2972
    %v2974 = vsel %vm137, %v2674, -inf
    %2975 = vmax.xlane.f32.xlu0 %v2974
    %v2976 = vpop.xlane.xlu0 %2975
    %v2977 = vsel %vm137, %v2675, -inf
    %2978 = vmax.xlane.f32.xlu0 %v2977
    %v2979 = vpop.xlane.xlu0 %2978
    %v2980 = vsel %vm137, %v2676, -inf
    %2981 = vmax.xlane.f32.xlu0 %v2980
    %v2982 = vpop.xlane.xlu0 %2981
    %v2983 = vsel %vm137, %v2677, -inf
    %2984 = vmax.xlane.f32.xlu0 %v2983
    %v2985 = vpop.xlane.xlu0 %2984
    %v2986 = vsel %vm137, %v2678, -inf
    %2987 = vmax.xlane.f32.xlu0 %v2986
    %v2988 = vpop.xlane.xlu0 %2987
    %v2989 = vsel %vm137, %v2679, -inf
    %2990 = vmax.xlane.f32.xlu0 %v2989
    %v2991 = vpop.xlane.xlu0 %2990
    %v2992 = vsel %vm137, %v2680, -inf
    %2993 = vmax.xlane.f32.xlu0 %v2992
    %v2994 = vpop.xlane.xlu0 %2993
    %v2995 = vsel %vm137, %v2681, -inf
    %2996 = vmax.xlane.f32.xlu0 %v2995
    %v2997 = vpop.xlane.xlu0 %2996
    %v2998 = vsel %vm137, %v2682, -inf
    %2999 = vmax.xlane.f32.xlu0 %v2998
    %v3000 = vpop.xlane.xlu0 %2999
    %v3001 = vsel %vm137, %v2683, -inf
    %3002 = vmax.xlane.f32.xlu0 %v3001
    %v3003 = vpop.xlane.xlu0 %3002
    %v3004 = vsel %vm137, %v2684, -inf
    %3005 = vmax.xlane.f32.xlu0 %v3004
    %v3006 = vpop.xlane.xlu0 %3005
    %v3007 = vsel %vm137, %v2685, -inf
    %3008 = vmax.xlane.f32.xlu0 %v3007
    %v3009 = vpop.xlane.xlu0 %3008
    %v3010 = vsel %vm137, %v2686, -inf
    %3011 = vmax.xlane.f32.xlu0 %v3010
    %v3012 = vpop.xlane.xlu0 %3011
    %v3013 = vsel %vm137, %v2687, -inf
    %3014 = vmax.xlane.f32.xlu0 %v3013
    %v3015 = vpop.xlane.xlu0 %3014
    %v3016 = vsel %vm137, %v2688, -inf
    %3017 = vmax.xlane.f32.xlu0 %v3016
    %v3018 = vpop.xlane.xlu0 %3017
    %v3019 = vsel %vm137, %v2689, -inf
    %3020 = vmax.xlane.f32.xlu0 %v3019
    %v3021 = vpop.xlane.xlu0 %3020
    %v3022 = vsel %vm137, %v2690, -inf
    %3023 = vmax.xlane.f32.xlu0 %v3022
    %v3024 = vpop.xlane.xlu0 %3023
    %v3025 = vsel %vm137, %v2691, -inf
    %3026 = vmax.xlane.f32.xlu0 %v3025
    %v3027 = vpop.xlane.xlu0 %3026
    %v3028 = vsel %vm137, %v2692, -inf
    %3029 = vmax.xlane.f32.xlu0 %v3028
    %v3030 = vpop.xlane.xlu0 %3029
    %v3031 = vsel %vm137, %v2693, -inf
    %3032 = vmax.xlane.f32.xlu0 %v3031
    %v3033 = vpop.xlane.xlu0 %3032
    %v3034 = vsel %vm137, %v2694, -inf
    %3035 = vmax.xlane.f32.xlu0 %v3034
    %v3036 = vpop.xlane.xlu0 %3035
    %v3037 = vsel %vm137, %v2695, -inf
    %3038 = vmax.xlane.f32.xlu0 %v3037
    %v3039 = vpop.xlane.xlu0 %3038
    %v3040 = vsel %vm137, %v2696, -inf
    %3041 = vmax.xlane.f32.xlu0 %v3040
    %v3042 = vpop.xlane.xlu0 %3041
    %v3043 = vsel %vm137, %v2697, -inf
    %3044 = vmax.xlane.f32.xlu0 %v3043
    %v3045 = vpop.xlane.xlu0 %3044
    %v3046 = vsel %vm137, %v2698, -inf
    %3047 = vmax.xlane.f32.xlu0 %v3046
    %v3048 = vpop.xlane.xlu0 %3047
    %v3049 = vsel %vm137, %v2699, -inf
    %3050 = vmax.xlane.f32.xlu0 %v3049
    %v3051 = vpop.xlane.xlu0 %3050
    %v3052 = vsel %vm137, %v2700, -inf
    %3053 = vmax.xlane.f32.xlu0 %v3052
    %v3054 = vpop.xlane.xlu0 %3053
    %v3055 = vsel %vm137, %v2701, -inf
    %3056 = vmax.xlane.f32.xlu0 %v3055
    %v3057 = vpop.xlane.xlu0 %3056
    %v3058 = vsel %vm137, %v2702, -inf
    %3059 = vmax.xlane.f32.xlu0 %v3058
    %v3060 = vpop.xlane.xlu0 %3059
    %v3061 = vsel %vm137, %v2703, -inf
    %3062 = vmax.xlane.f32.xlu0 %v3061
    %v3063 = vpop.xlane.xlu0 %3062
    %v3064 = vsel %vm137, %v2704, -inf
    %3065 = vmax.xlane.f32.xlu0 %v3064
    %v3066 = vpop.xlane.xlu0 %3065
    %v3067 = vsel %vm137, %v2705, -inf
    %3068 = vmax.xlane.f32.xlu0 %v3067
    %v3069 = vpop.xlane.xlu0 %3068
    %v3070 = vsel %vm137, %v2706, -inf
    %3071 = vmax.xlane.f32.xlu0 %v3070
    %v3072 = vpop.xlane.xlu0 %3071
    %v3073 = vsel %vm137, %v2707, -inf
    %3074 = vmax.xlane.f32.xlu0 %v3073
    %v3075 = vpop.xlane.xlu0 %3074
    %v3076 = vsel %vm137, %v2708, -inf
    %3077 = vmax.xlane.f32.xlu0 %v3076
    %v3078 = vpop.xlane.xlu0 %3077
    %v3079 = vsel %vm137, %v2709, -inf
    %3080 = vmax.xlane.f32.xlu0 %v3079
    %v3081 = vpop.xlane.xlu0 %3080
    %v3082 = vsel %vm137, %v2710, -inf
    %3083 = vmax.xlane.f32.xlu0 %v3082
    %v3084 = vpop.xlane.xlu0 %3083
    %v3085 = vsel %vm137, %v2711, -inf
    %3086 = vmax.xlane.f32.xlu0 %v3085
    %v3087 = vpop.xlane.xlu0 %3086
    %v3088 = vsel %vm137, %v2712, -inf
    %3089 = vmax.xlane.f32.xlu0 %v3088
    %v3090 = vpop.xlane.xlu0 %3089
    %v3091 = vsel %vm137, %v2713, -inf
    %3092 = vmax.xlane.f32.xlu0 %v3091
    %v3093 = vpop.xlane.xlu0 %3092
    %v3094 = vsel %vm137, %v2714, -inf
    %3095 = vmax.xlane.f32.xlu0 %v3094
    %v3096 = vpop.xlane.xlu0 %3095
    %v3097 = vsel %vm137, %v2715, -inf
    %3098 = vmax.xlane.f32.xlu0 %v3097
    %v3099 = vpop.xlane.xlu0 %3098
    %v3100 = vsub.f32 %v2588, %v2718
    %v3101 = vsub.f32 %v2589, %v2721
    %v3102 = vsub.f32 %v2590, %v2724
    %v3103 = vsub.f32 %v2591, %v2727
    %v3104 = vsub.f32 %v2592, %v2730
    %v3105 = vsub.f32 %v2593, %v2733
    %v3106 = vsub.f32 %v2594, %v2736
    %v3107 = vsub.f32 %v2595, %v2739
    %v3108 = vsub.f32 %v2596, %v2742
    %v3109 = vsub.f32 %v2597, %v2745
    %v3110 = vsub.f32 %v2598, %v2748
    %v3111 = vsub.f32 %v2599, %v2751
    %v3112 = vsub.f32 %v2600, %v2754
    %v3113 = vsub.f32 %v2601, %v2757
    %v3114 = vsub.f32 %v2602, %v2760
    %v3115 = vsub.f32 %v2603, %v2763
    %v3116 = vsub.f32 %v2604, %v2766
    %v3117 = vsub.f32 %v2605, %v2769
    %v3118 = vsub.f32 %v2606, %v2772
    %v3119 = vsub.f32 %v2607, %v2775
    %v3120 = vsub.f32 %v2608, %v2778
    %v3121 = vsub.f32 %v2609, %v2781
    %v3122 = vsub.f32 %v2610, %v2784
    %v3123 = vsub.f32 %v2611, %v2787
    %v3124 = vsub.f32 %v2612, %v2790
    %v3125 = vsub.f32 %v2613, %v2793
    %v3126 = vsub.f32 %v2614, %v2796
    %v3127 = vsub.f32 %v2615, %v2799
    %v3128 = vsub.f32 %v2616, %v2802
    %v3129 = vsub.f32 %v2617, %v2805
    %v3130 = vsub.f32 %v2618, %v2808
    %v3131 = vsub.f32 %v2619, %v2811
    %v3132 = vsub.f32 %v2620, %v2814
    %v3133 = vsub.f32 %v2621, %v2817
    %v3134 = vsub.f32 %v2622, %v2820
    %v3135 = vsub.f32 %v2623, %v2823
    %v3136 = vsub.f32 %v2624, %v2826
    %v3137 = vsub.f32 %v2625, %v2829
    %v3138 = vsub.f32 %v2626, %v2832
    %v3139 = vsub.f32 %v2627, %v2835
    %v3140 = vsub.f32 %v2628, %v2838
    %v3141 = vsub.f32 %v2629, %v2841
    %v3142 = vsub.f32 %v2630, %v2844
    %v3143 = vsub.f32 %v2631, %v2847
    %v3144 = vsub.f32 %v2632, %v2850
    %v3145 = vsub.f32 %v2633, %v2853
    %v3146 = vsub.f32 %v2634, %v2856
    %v3147 = vsub.f32 %v2635, %v2859
    %v3148 = vsub.f32 %v2636, %v2862
    %v3149 = vsub.f32 %v2637, %v2865
    %v3150 = vsub.f32 %v2638, %v2868
    %v3151 = vsub.f32 %v2639, %v2871
    %v3152 = vsub.f32 %v2640, %v2874
    %v3153 = vsub.f32 %v2641, %v2877
    %v3154 = vsub.f32 %v2642, %v2880
    %v3155 = vsub.f32 %v2643, %v2883
    %v3156 = vsub.f32 %v2644, %v2886
    %v3157 = vsub.f32 %v2645, %v2889
    %v3158 = vsub.f32 %v2646, %v2892
    %v3159 = vsub.f32 %v2647, %v2895
    %v3160 = vsub.f32 %v2648, %v2898
    %v3161 = vsub.f32 %v2649, %v2901
    %v3162 = vsub.f32 %v2650, %v2904
    %v3163 = vsub.f32 %v2651, %v2907
    %v3164 = vsub.f32 %v2652, %v2910
    %v3165 = vsub.f32 %v2653, %v2913
    %v3166 = vsub.f32 %v2654, %v2916
    %v3167 = vsub.f32 %v2655, %v2919
    %v3168 = vsub.f32 %v2656, %v2922
    %v3169 = vsub.f32 %v2657, %v2925
    %v3170 = vsub.f32 %v2658, %v2928
    %v3171 = vsub.f32 %v2659, %v2931
    %v3172 = vsub.f32 %v2660, %v2934
    %v3173 = vsub.f32 %v2661, %v2937
    %v3174 = vsub.f32 %v2662, %v2940
    %v3175 = vsub.f32 %v2663, %v2943
    %v3176 = vsub.f32 %v2664, %v2946
    %v3177 = vsub.f32 %v2665, %v2949
    %v3178 = vsub.f32 %v2666, %v2952
    %v3179 = vsub.f32 %v2667, %v2955
    %v3180 = vsub.f32 %v2668, %v2958
    %v3181 = vsub.f32 %v2669, %v2961
    %v3182 = vsub.f32 %v2670, %v2964
    %v3183 = vsub.f32 %v2671, %v2967
    %v3184 = vsub.f32 %v2672, %v2970
    %v3185 = vsub.f32 %v2673, %v2973
    %v3186 = vsub.f32 %v2674, %v2976
    %v3187 = vsub.f32 %v2675, %v2979
    %v3188 = vsub.f32 %v2676, %v2982
    %v3189 = vsub.f32 %v2677, %v2985
    %v3190 = vsub.f32 %v2678, %v2988
    %v3191 = vsub.f32 %v2679, %v2991
    %v3192 = vsub.f32 %v2680, %v2994
    %v3193 = vsub.f32 %v2681, %v2997
    %v3194 = vsub.f32 %v2682, %v3000
    %v3195 = vsub.f32 %v2683, %v3003
    %v3196 = vsub.f32 %v2684, %v3006
    %v3197 = vsub.f32 %v2685, %v3009
    %v3198 = vsub.f32 %v2686, %v3012
    %v3199 = vsub.f32 %v2687, %v3015
    %v3200 = vsub.f32 %v2688, %v3018
    %v3201 = vsub.f32 %v2689, %v3021
    %v3202 = vsub.f32 %v2690, %v3024
    %v3203 = vsub.f32 %v2691, %v3027
    %v3204 = vsub.f32 %v2692, %v3030
    %v3205 = vsub.f32 %v2693, %v3033
    %v3206 = vsub.f32 %v2694, %v3036
    %v3207 = vsub.f32 %v2695, %v3039
    %v3208 = vsub.f32 %v2696, %v3042
    %v3209 = vsub.f32 %v2697, %v3045
    %v3210 = vsub.f32 %v2698, %v3048
    %v3211 = vsub.f32 %v2699, %v3051
    %v3212 = vsub.f32 %v2700, %v3054
    %v3213 = vsub.f32 %v2701, %v3057
    %v3214 = vsub.f32 %v2702, %v3060
    %v3215 = vsub.f32 %v2703, %v3063
    %v3216 = vsub.f32 %v2704, %v3066
    %v3217 = vsub.f32 %v2705, %v3069
    %v3218 = vsub.f32 %v2706, %v3072
    %v3219 = vsub.f32 %v2707, %v3075
    %v3220 = vsub.f32 %v2708, %v3078
    %v3221 = vsub.f32 %v2709, %v3081
    %v3222 = vsub.f32 %v2710, %v3084
    %v3223 = vsub.f32 %v2711, %v3087
    %v3224 = vsub.f32 %v2712, %v3090
    %v3225 = vsub.f32 %v2713, %v3093
    %v3226 = vsub.f32 %v2714, %v3096
    %v3227 = vsub.f32 %v2715, %v3099
    %v3228 = vmul.f32 %v3100, 1.442695
    %v3229 = vpow.pop %v3228
    %v3230 = vmul.f32 %v3101, 1.442695
    %v3231 = vpow.pop %v3230
    %v3232 = vmul.f32 %v3102, 1.442695
    %v3233 = vpow.pop %v3232
    %v3234 = vmul.f32 %v3103, 1.442695
    %v3235 = vpow.pop %v3234
    %v3236 = vmul.f32 %v3104, 1.442695
    %v3237 = vpow.pop %v3236
    %v3238 = vmul.f32 %v3105, 1.442695
    %v3239 = vpow.pop %v3238
    %v3240 = vmul.f32 %v3106, 1.442695
    %v3241 = vpow.pop %v3240
    %v3242 = vmul.f32 %v3107, 1.442695
    %v3243 = vpow.pop %v3242
    %v3244 = vmul.f32 %v3108, 1.442695
    %v3245 = vpow.pop %v3244
    %v3246 = vmul.f32 %v3109, 1.442695
    %v3247 = vpow.pop %v3246
    %v3248 = vmul.f32 %v3110, 1.442695
    %v3249 = vpow.pop %v3248
    %v3250 = vmul.f32 %v3111, 1.442695
    %v3251 = vpow.pop %v3250
    %v3252 = vmul.f32 %v3112, 1.442695
    %v3253 = vpow.pop %v3252
    %v3254 = vmul.f32 %v3113, 1.442695
    %v3255 = vpow.pop %v3254
    %v3256 = vmul.f32 %v3114, 1.442695
    %v3257 = vpow.pop %v3256
    %v3258 = vmul.f32 %v3115, 1.442695
    %v3259 = vpow.pop %v3258
    %v3260 = vmul.f32 %v3116, 1.442695
    %v3261 = vpow.pop %v3260
    %v3262 = vmul.f32 %v3117, 1.442695
    %v3263 = vpow.pop %v3262
    %v3264 = vmul.f32 %v3118, 1.442695
    %v3265 = vpow.pop %v3264
    %v3266 = vmul.f32 %v3119, 1.442695
    %v3267 = vpow.pop %v3266
    %v3268 = vmul.f32 %v3120, 1.442695
    %v3269 = vpow.pop %v3268
    %v3270 = vmul.f32 %v3121, 1.442695
    %v3271 = vpow.pop %v3270
    %v3272 = vmul.f32 %v3122, 1.442695
    %v3273 = vpow.pop %v3272
    %v3274 = vmul.f32 %v3123, 1.442695
    %v3275 = vpow.pop %v3274
    %v3276 = vmul.f32 %v3124, 1.442695
    %v3277 = vpow.pop %v3276
    %v3278 = vmul.f32 %v3125, 1.442695
    %v3279 = vpow.pop %v3278
    %v3280 = vmul.f32 %v3126, 1.442695
    %v3281 = vpow.pop %v3280
    %v3282 = vmul.f32 %v3127, 1.442695
    %v3283 = vpow.pop %v3282
    %v3284 = vmul.f32 %v3128, 1.442695
    %v3285 = vpow.pop %v3284
    %v3286 = vmul.f32 %v3129, 1.442695
    %v3287 = vpow.pop %v3286
    %v3288 = vmul.f32 %v3130, 1.442695
    %v3289 = vpow.pop %v3288
    %v3290 = vmul.f32 %v3131, 1.442695
    %v3291 = vpow.pop %v3290
    %v3292 = vmul.f32 %v3132, 1.442695
    %v3293 = vpow.pop %v3292
    %v3294 = vmul.f32 %v3133, 1.442695
    %v3295 = vpow.pop %v3294
    %v3296 = vmul.f32 %v3134, 1.442695
    %v3297 = vpow.pop %v3296
    %v3298 = vmul.f32 %v3135, 1.442695
    %v3299 = vpow.pop %v3298
    %v3300 = vmul.f32 %v3136, 1.442695
    %v3301 = vpow.pop %v3300
    %v3302 = vmul.f32 %v3137, 1.442695
    %v3303 = vpow.pop %v3302
    %v3304 = vmul.f32 %v3138, 1.442695
    %v3305 = vpow.pop %v3304
    %v3306 = vmul.f32 %v3139, 1.442695
    %v3307 = vpow.pop %v3306
    %v3308 = vmul.f32 %v3140, 1.442695
    %v3309 = vpow.pop %v3308
    %v3310 = vmul.f32 %v3141, 1.442695
    %v3311 = vpow.pop %v3310
    %v3312 = vmul.f32 %v3142, 1.442695
    %v3313 = vpow.pop %v3312
    %v3314 = vmul.f32 %v3143, 1.442695
    %v3315 = vpow.pop %v3314
    %v3316 = vmul.f32 %v3144, 1.442695
    %v3317 = vpow.pop %v3316
    %v3318 = vmul.f32 %v3145, 1.442695
    %v3319 = vpow.pop %v3318
    %v3320 = vmul.f32 %v3146, 1.442695
    %v3321 = vpow.pop %v3320
    %v3322 = vmul.f32 %v3147, 1.442695
    %v3323 = vpow.pop %v3322
    %v3324 = vmul.f32 %v3148, 1.442695
    %v3325 = vpow.pop %v3324
    %v3326 = vmul.f32 %v3149, 1.442695
    %v3327 = vpow.pop %v3326
    %v3328 = vmul.f32 %v3150, 1.442695
    %v3329 = vpow.pop %v3328
    %v3330 = vmul.f32 %v3151, 1.442695
    %v3331 = vpow.pop %v3330
    %v3332 = vmul.f32 %v3152, 1.442695
    %v3333 = vpow.pop %v3332
    %v3334 = vmul.f32 %v3153, 1.442695
    %v3335 = vpow.pop %v3334
    %v3336 = vmul.f32 %v3154, 1.442695
    %v3337 = vpow.pop %v3336
    %v3338 = vmul.f32 %v3155, 1.442695
    %v3339 = vpow.pop %v3338
    %v3340 = vmul.f32 %v3156, 1.442695
    %v3341 = vpow.pop %v3340
    %v3342 = vmul.f32 %v3157, 1.442695
    %v3343 = vpow.pop %v3342
    %v3344 = vmul.f32 %v3158, 1.442695
    %v3345 = vpow.pop %v3344
    %v3346 = vmul.f32 %v3159, 1.442695
    %v3347 = vpow.pop %v3346
    %v3348 = vmul.f32 %v3160, 1.442695
    %v3349 = vpow.pop %v3348
    %v3350 = vmul.f32 %v3161, 1.442695
    %v3351 = vpow.pop %v3350
    %v3352 = vmul.f32 %v3162, 1.442695
    %v3353 = vpow.pop %v3352
    %v3354 = vmul.f32 %v3163, 1.442695
    %v3355 = vpow.pop %v3354
    %v3356 = vmul.f32 %v3164, 1.442695
    %v3357 = vpow.pop %v3356
    %v3358 = vmul.f32 %v3165, 1.442695
    %v3359 = vpow.pop %v3358
    %v3360 = vmul.f32 %v3166, 1.442695
    %v3361 = vpow.pop %v3360
    %v3362 = vmul.f32 %v3167, 1.442695
    %v3363 = vpow.pop %v3362
    %v3364 = vmul.f32 %v3168, 1.442695
    %v3365 = vpow.pop %v3364
    %v3366 = vmul.f32 %v3169, 1.442695
    %v3367 = vpow.pop %v3366
    %v3368 = vmul.f32 %v3170, 1.442695
    %v3369 = vpow.pop %v3368
    %v3370 = vmul.f32 %v3171, 1.442695
    %v3371 = vpow.pop %v3370
    %v3372 = vmul.f32 %v3172, 1.442695
    %v3373 = vpow.pop %v3372
    %v3374 = vmul.f32 %v3173, 1.442695
    %v3375 = vpow.pop %v3374
    %v3376 = vmul.f32 %v3174, 1.442695
    %v3377 = vpow.pop %v3376
    %v3378 = vmul.f32 %v3175, 1.442695
    %v3379 = vpow.pop %v3378
    %v3380 = vmul.f32 %v3176, 1.442695
    %v3381 = vpow.pop %v3380
    %v3382 = vmul.f32 %v3177, 1.442695
    %v3383 = vpow.pop %v3382
    %v3384 = vmul.f32 %v3178, 1.442695
    %v3385 = vpow.pop %v3384
    %v3386 = vmul.f32 %v3179, 1.442695
    %v3387 = vpow.pop %v3386
    %v3388 = vmul.f32 %v3180, 1.442695
    %v3389 = vpow.pop %v3388
    %v3390 = vmul.f32 %v3181, 1.442695
    %v3391 = vpow.pop %v3390
    %v3392 = vmul.f32 %v3182, 1.442695
    %v3393 = vpow.pop %v3392
    %v3394 = vmul.f32 %v3183, 1.442695
    %v3395 = vpow.pop %v3394
    %v3396 = vmul.f32 %v3184, 1.442695
    %v3397 = vpow.pop %v3396
    %v3398 = vmul.f32 %v3185, 1.442695
    %v3399 = vpow.pop %v3398
    %v3400 = vmul.f32 %v3186, 1.442695
    %v3401 = vpow.pop %v3400
    %v3402 = vmul.f32 %v3187, 1.442695
    %v3403 = vpow.pop %v3402
    %v3404 = vmul.f32 %v3188, 1.442695
    %v3405 = vpow.pop %v3404
    %v3406 = vmul.f32 %v3189, 1.442695
    %v3407 = vpow.pop %v3406
    %v3408 = vmul.f32 %v3190, 1.442695
    %v3409 = vpow.pop %v3408
    %v3410 = vmul.f32 %v3191, 1.442695
    %v3411 = vpow.pop %v3410
    %v3412 = vmul.f32 %v3192, 1.442695
    %v3413 = vpow.pop %v3412
    %v3414 = vmul.f32 %v3193, 1.442695
    %v3415 = vpow.pop %v3414
    %v3416 = vmul.f32 %v3194, 1.442695
    %v3417 = vpow.pop %v3416
    %v3418 = vmul.f32 %v3195, 1.442695
    %v3419 = vpow.pop %v3418
    %v3420 = vmul.f32 %v3196, 1.442695
    %v3421 = vpow.pop %v3420
    %v3422 = vmul.f32 %v3197, 1.442695
    %v3423 = vpow.pop %v3422
    %v3424 = vmul.f32 %v3198, 1.442695
    %v3425 = vpow.pop %v3424
    %v3426 = vmul.f32 %v3199, 1.442695
    %v3427 = vpow.pop %v3426
    %v3428 = vmul.f32 %v3200, 1.442695
    %v3429 = vpow.pop %v3428
    %v3430 = vmul.f32 %v3201, 1.442695
    %v3431 = vpow.pop %v3430
    %v3432 = vmul.f32 %v3202, 1.442695
    %v3433 = vpow.pop %v3432
    %v3434 = vmul.f32 %v3203, 1.442695
    %v3435 = vpow.pop %v3434
    %v3436 = vmul.f32 %v3204, 1.442695
    %v3437 = vpow.pop %v3436
    %v3438 = vmul.f32 %v3205, 1.442695
    %v3439 = vpow.pop %v3438
    %v3440 = vmul.f32 %v3206, 1.442695
    %v3441 = vpow.pop %v3440
    %v3442 = vmul.f32 %v3207, 1.442695
    %v3443 = vpow.pop %v3442
    %v3444 = vmul.f32 %v3208, 1.442695
    %v3445 = vpow.pop %v3444
    %v3446 = vmul.f32 %v3209, 1.442695
    %v3447 = vpow.pop %v3446
    %v3448 = vmul.f32 %v3210, 1.442695
    %v3449 = vpow.pop %v3448
    %v3450 = vmul.f32 %v3211, 1.442695
    %v3451 = vpow.pop %v3450
    %v3452 = vmul.f32 %v3212, 1.442695
    %v3453 = vpow.pop %v3452
    %v3454 = vmul.f32 %v3213, 1.442695
    %v3455 = vpow.pop %v3454
    %v3456 = vmul.f32 %v3214, 1.442695
    %v3457 = vpow.pop %v3456
    %v3458 = vmul.f32 %v3215, 1.442695
    %v3459 = vpow.pop %v3458
    %v3460 = vmul.f32 %v3216, 1.442695
    %v3461 = vpow.pop %v3460
    %v3462 = vmul.f32 %v3217, 1.442695
    %v3463 = vpow.pop %v3462
    %v3464 = vmul.f32 %v3218, 1.442695
    %v3465 = vpow.pop %v3464
    %v3466 = vmul.f32 %v3219, 1.442695
    %v3467 = vpow.pop %v3466
    %v3468 = vmul.f32 %v3220, 1.442695
    %v3469 = vpow.pop %v3468
    %v3470 = vmul.f32 %v3221, 1.442695
    %v3471 = vpow.pop %v3470
    %v3472 = vmul.f32 %v3222, 1.442695
    %v3473 = vpow.pop %v3472
    %v3474 = vmul.f32 %v3223, 1.442695
    %v3475 = vpow.pop %v3474
    %v3476 = vmul.f32 %v3224, 1.442695
    %v3477 = vpow.pop %v3476
    %v3478 = vmul.f32 %v3225, 1.442695
    %v3479 = vpow.pop %v3478
    %v3480 = vmul.f32 %v3226, 1.442695
    %v3481 = vpow.pop %v3480
    %v3482 = vmul.f32 %v3227, 1.442695
    %v3483 = vpow.pop %v3482
    %v3484 = vsel %vm137, %v3229, 0.0
    %3485 = vadd.xlane.f32.xlu0 %v3484
    %v3486 = vpop.xlane.xlu0 %3485
    %v3487 = vsel %vm137, %v3231, 0.0
    %3488 = vadd.xlane.f32.xlu0 %v3487
    %v3489 = vpop.xlane.xlu0 %3488
    %v3490 = vsel %vm137, %v3233, 0.0
    %3491 = vadd.xlane.f32.xlu0 %v3490
    %v3492 = vpop.xlane.xlu0 %3491
    %v3493 = vsel %vm137, %v3235, 0.0
    %3494 = vadd.xlane.f32.xlu0 %v3493
    %v3495 = vpop.xlane.xlu0 %3494
    %v3496 = vsel %vm137, %v3237, 0.0
    %3497 = vadd.xlane.f32.xlu0 %v3496
    %v3498 = vpop.xlane.xlu0 %3497
    %v3499 = vsel %vm137, %v3239, 0.0
    %3500 = vadd.xlane.f32.xlu0 %v3499
    %v3501 = vpop.xlane.xlu0 %3500
    %v3502 = vsel %vm137, %v3241, 0.0
    %3503 = vadd.xlane.f32.xlu0 %v3502
    %v3504 = vpop.xlane.xlu0 %3503
    %v3505 = vsel %vm137, %v3243, 0.0
    %3506 = vadd.xlane.f32.xlu0 %v3505
    %v3507 = vpop.xlane.xlu0 %3506
    %v3508 = vsel %vm137, %v3245, 0.0
    %3509 = vadd.xlane.f32.xlu0 %v3508
    %v3510 = vpop.xlane.xlu0 %3509
    %v3511 = vsel %vm137, %v3247, 0.0
    %3512 = vadd.xlane.f32.xlu0 %v3511
    %v3513 = vpop.xlane.xlu0 %3512
    %v3514 = vsel %vm137, %v3249, 0.0
    %3515 = vadd.xlane.f32.xlu0 %v3514
    %v3516 = vpop.xlane.xlu0 %3515
    %v3517 = vsel %vm137, %v3251, 0.0
    %3518 = vadd.xlane.f32.xlu0 %v3517
    %v3519 = vpop.xlane.xlu0 %3518
    %v3520 = vsel %vm137, %v3253, 0.0
    %3521 = vadd.xlane.f32.xlu0 %v3520
    %v3522 = vpop.xlane.xlu0 %3521
    %v3523 = vsel %vm137, %v3255, 0.0
    %3524 = vadd.xlane.f32.xlu0 %v3523
    %v3525 = vpop.xlane.xlu0 %3524
    %v3526 = vsel %vm137, %v3257, 0.0
    %3527 = vadd.xlane.f32.xlu0 %v3526
    %v3528 = vpop.xlane.xlu0 %3527
    %v3529 = vsel %vm137, %v3259, 0.0
    %3530 = vadd.xlane.f32.xlu0 %v3529
    %v3531 = vpop.xlane.xlu0 %3530
    %v3532 = vsel %vm137, %v3261, 0.0
    %3533 = vadd.xlane.f32.xlu0 %v3532
    %v3534 = vpop.xlane.xlu0 %3533
    %v3535 = vsel %vm137, %v3263, 0.0
    %3536 = vadd.xlane.f32.xlu0 %v3535
    %v3537 = vpop.xlane.xlu0 %3536
    %v3538 = vsel %vm137, %v3265, 0.0
    %3539 = vadd.xlane.f32.xlu0 %v3538
    %v3540 = vpop.xlane.xlu0 %3539
    %v3541 = vsel %vm137, %v3267, 0.0
    %3542 = vadd.xlane.f32.xlu0 %v3541
    %v3543 = vpop.xlane.xlu0 %3542
    %v3544 = vsel %vm137, %v3269, 0.0
    %3545 = vadd.xlane.f32.xlu0 %v3544
    %v3546 = vpop.xlane.xlu0 %3545
    %v3547 = vsel %vm137, %v3271, 0.0
    %3548 = vadd.xlane.f32.xlu0 %v3547
    %v3549 = vpop.xlane.xlu0 %3548
    %v3550 = vsel %vm137, %v3273, 0.0
    %3551 = vadd.xlane.f32.xlu0 %v3550
    %v3552 = vpop.xlane.xlu0 %3551
    %v3553 = vsel %vm137, %v3275, 0.0
    %3554 = vadd.xlane.f32.xlu0 %v3553
    %v3555 = vpop.xlane.xlu0 %3554
    %v3556 = vsel %vm137, %v3277, 0.0
    %3557 = vadd.xlane.f32.xlu0 %v3556
    %v3558 = vpop.xlane.xlu0 %3557
    %v3559 = vsel %vm137, %v3279, 0.0
    %3560 = vadd.xlane.f32.xlu0 %v3559
    %v3561 = vpop.xlane.xlu0 %3560
    %v3562 = vsel %vm137, %v3281, 0.0
    %3563 = vadd.xlane.f32.xlu0 %v3562
    %v3564 = vpop.xlane.xlu0 %3563
    %v3565 = vsel %vm137, %v3283, 0.0
    %3566 = vadd.xlane.f32.xlu0 %v3565
    %v3567 = vpop.xlane.xlu0 %3566
    %v3568 = vsel %vm137, %v3285, 0.0
    %3569 = vadd.xlane.f32.xlu0 %v3568
    %v3570 = vpop.xlane.xlu0 %3569
    %v3571 = vsel %vm137, %v3287, 0.0
    %3572 = vadd.xlane.f32.xlu0 %v3571
    %v3573 = vpop.xlane.xlu0 %3572
    %v3574 = vsel %vm137, %v3289, 0.0
    %3575 = vadd.xlane.f32.xlu0 %v3574
    %v3576 = vpop.xlane.xlu0 %3575
    %v3577 = vsel %vm137, %v3291, 0.0
    %3578 = vadd.xlane.f32.xlu0 %v3577
    %v3579 = vpop.xlane.xlu0 %3578
    %v3580 = vsel %vm137, %v3293, 0.0
    %3581 = vadd.xlane.f32.xlu0 %v3580
    %v3582 = vpop.xlane.xlu0 %3581
    %v3583 = vsel %vm137, %v3295, 0.0
    %3584 = vadd.xlane.f32.xlu0 %v3583
    %v3585 = vpop.xlane.xlu0 %3584
    %v3586 = vsel %vm137, %v3297, 0.0
    %3587 = vadd.xlane.f32.xlu0 %v3586
    %v3588 = vpop.xlane.xlu0 %3587
    %v3589 = vsel %vm137, %v3299, 0.0
    %3590 = vadd.xlane.f32.xlu0 %v3589
    %v3591 = vpop.xlane.xlu0 %3590
    %v3592 = vsel %vm137, %v3301, 0.0
    %3593 = vadd.xlane.f32.xlu0 %v3592
    %v3594 = vpop.xlane.xlu0 %3593
    %v3595 = vsel %vm137, %v3303, 0.0
    %3596 = vadd.xlane.f32.xlu0 %v3595
    %v3597 = vpop.xlane.xlu0 %3596
    %v3598 = vsel %vm137, %v3305, 0.0
    %3599 = vadd.xlane.f32.xlu0 %v3598
    %v3600 = vpop.xlane.xlu0 %3599
    %v3601 = vsel %vm137, %v3307, 0.0
    %3602 = vadd.xlane.f32.xlu0 %v3601
    %v3603 = vpop.xlane.xlu0 %3602
    %v3604 = vsel %vm137, %v3309, 0.0
    %3605 = vadd.xlane.f32.xlu0 %v3604
    %v3606 = vpop.xlane.xlu0 %3605
    %v3607 = vsel %vm137, %v3311, 0.0
    %3608 = vadd.xlane.f32.xlu0 %v3607
    %v3609 = vpop.xlane.xlu0 %3608
    %v3610 = vsel %vm137, %v3313, 0.0
    %3611 = vadd.xlane.f32.xlu0 %v3610
    %v3612 = vpop.xlane.xlu0 %3611
    %v3613 = vsel %vm137, %v3315, 0.0
    %3614 = vadd.xlane.f32.xlu0 %v3613
    %v3615 = vpop.xlane.xlu0 %3614
    %v3616 = vsel %vm137, %v3317, 0.0
    %3617 = vadd.xlane.f32.xlu0 %v3616
    %v3618 = vpop.xlane.xlu0 %3617
    %v3619 = vsel %vm137, %v3319, 0.0
    %3620 = vadd.xlane.f32.xlu0 %v3619
    %v3621 = vpop.xlane.xlu0 %3620
    %v3622 = vsel %vm137, %v3321, 0.0
    %3623 = vadd.xlane.f32.xlu0 %v3622
    %v3624 = vpop.xlane.xlu0 %3623
    %v3625 = vsel %vm137, %v3323, 0.0
    %3626 = vadd.xlane.f32.xlu0 %v3625
    %v3627 = vpop.xlane.xlu0 %3626
    %v3628 = vsel %vm137, %v3325, 0.0
    %3629 = vadd.xlane.f32.xlu0 %v3628
    %v3630 = vpop.xlane.xlu0 %3629
    %v3631 = vsel %vm137, %v3327, 0.0
    %3632 = vadd.xlane.f32.xlu0 %v3631
    %v3633 = vpop.xlane.xlu0 %3632
    %v3634 = vsel %vm137, %v3329, 0.0
    %3635 = vadd.xlane.f32.xlu0 %v3634
    %v3636 = vpop.xlane.xlu0 %3635
    %v3637 = vsel %vm137, %v3331, 0.0
    %3638 = vadd.xlane.f32.xlu0 %v3637
    %v3639 = vpop.xlane.xlu0 %3638
    %v3640 = vsel %vm137, %v3333, 0.0
    %3641 = vadd.xlane.f32.xlu0 %v3640
    %v3642 = vpop.xlane.xlu0 %3641
    %v3643 = vsel %vm137, %v3335, 0.0
    %3644 = vadd.xlane.f32.xlu0 %v3643
    %v3645 = vpop.xlane.xlu0 %3644
    %v3646 = vsel %vm137, %v3337, 0.0
    %3647 = vadd.xlane.f32.xlu0 %v3646
    %v3648 = vpop.xlane.xlu0 %3647
    %v3649 = vsel %vm137, %v3339, 0.0
    %3650 = vadd.xlane.f32.xlu0 %v3649
    %v3651 = vpop.xlane.xlu0 %3650
    %v3652 = vsel %vm137, %v3341, 0.0
    %3653 = vadd.xlane.f32.xlu0 %v3652
    %v3654 = vpop.xlane.xlu0 %3653
    %v3655 = vsel %vm137, %v3343, 0.0
    %3656 = vadd.xlane.f32.xlu0 %v3655
    %v3657 = vpop.xlane.xlu0 %3656
    %v3658 = vsel %vm137, %v3345, 0.0
    %3659 = vadd.xlane.f32.xlu0 %v3658
    %v3660 = vpop.xlane.xlu0 %3659
    %v3661 = vsel %vm137, %v3347, 0.0
    %3662 = vadd.xlane.f32.xlu0 %v3661
    %v3663 = vpop.xlane.xlu0 %3662
    %v3664 = vsel %vm137, %v3349, 0.0
    %3665 = vadd.xlane.f32.xlu0 %v3664
    %v3666 = vpop.xlane.xlu0 %3665
    %v3667 = vsel %vm137, %v3351, 0.0
    %3668 = vadd.xlane.f32.xlu0 %v3667
    %v3669 = vpop.xlane.xlu0 %3668
    %v3670 = vsel %vm137, %v3353, 0.0
    %3671 = vadd.xlane.f32.xlu0 %v3670
    %v3672 = vpop.xlane.xlu0 %3671
    %v3673 = vsel %vm137, %v3355, 0.0
    %3674 = vadd.xlane.f32.xlu0 %v3673
    %v3675 = vpop.xlane.xlu0 %3674
    %v3676 = vsel %vm137, %v3357, 0.0
    %3677 = vadd.xlane.f32.xlu0 %v3676
    %v3678 = vpop.xlane.xlu0 %3677
    %v3679 = vsel %vm137, %v3359, 0.0
    %3680 = vadd.xlane.f32.xlu0 %v3679
    %v3681 = vpop.xlane.xlu0 %3680
    %v3682 = vsel %vm137, %v3361, 0.0
    %3683 = vadd.xlane.f32.xlu0 %v3682
    %v3684 = vpop.xlane.xlu0 %3683
    %v3685 = vsel %vm137, %v3363, 0.0
    %3686 = vadd.xlane.f32.xlu0 %v3685
    %v3687 = vpop.xlane.xlu0 %3686
    %v3688 = vsel %vm137, %v3365, 0.0
    %3689 = vadd.xlane.f32.xlu0 %v3688
    %v3690 = vpop.xlane.xlu0 %3689
    %v3691 = vsel %vm137, %v3367, 0.0
    %3692 = vadd.xlane.f32.xlu0 %v3691
    %v3693 = vpop.xlane.xlu0 %3692
    %v3694 = vsel %vm137, %v3369, 0.0
    %3695 = vadd.xlane.f32.xlu0 %v3694
    %v3696 = vpop.xlane.xlu0 %3695
    %v3697 = vsel %vm137, %v3371, 0.0
    %3698 = vadd.xlane.f32.xlu0 %v3697
    %v3699 = vpop.xlane.xlu0 %3698
    %v3700 = vsel %vm137, %v3373, 0.0
    %3701 = vadd.xlane.f32.xlu0 %v3700
    %v3702 = vpop.xlane.xlu0 %3701
    %v3703 = vsel %vm137, %v3375, 0.0
    %3704 = vadd.xlane.f32.xlu0 %v3703
    %v3705 = vpop.xlane.xlu0 %3704
    %v3706 = vsel %vm137, %v3377, 0.0
    %3707 = vadd.xlane.f32.xlu0 %v3706
    %v3708 = vpop.xlane.xlu0 %3707
    %v3709 = vsel %vm137, %v3379, 0.0
    %3710 = vadd.xlane.f32.xlu0 %v3709
    %v3711 = vpop.xlane.xlu0 %3710
    %v3712 = vsel %vm137, %v3381, 0.0
    %3713 = vadd.xlane.f32.xlu0 %v3712
    %v3714 = vpop.xlane.xlu0 %3713
    %v3715 = vsel %vm137, %v3383, 0.0
    %3716 = vadd.xlane.f32.xlu0 %v3715
    %v3717 = vpop.xlane.xlu0 %3716
    %v3718 = vsel %vm137, %v3385, 0.0
    %3719 = vadd.xlane.f32.xlu0 %v3718
    %v3720 = vpop.xlane.xlu0 %3719
    %v3721 = vsel %vm137, %v3387, 0.0
    %3722 = vadd.xlane.f32.xlu0 %v3721
    %v3723 = vpop.xlane.xlu0 %3722
    %v3724 = vsel %vm137, %v3389, 0.0
    %3725 = vadd.xlane.f32.xlu0 %v3724
    %v3726 = vpop.xlane.xlu0 %3725
    %v3727 = vsel %vm137, %v3391, 0.0
    %3728 = vadd.xlane.f32.xlu0 %v3727
    %v3729 = vpop.xlane.xlu0 %3728
    %v3730 = vsel %vm137, %v3393, 0.0
    %3731 = vadd.xlane.f32.xlu0 %v3730
    %v3732 = vpop.xlane.xlu0 %3731
    %v3733 = vsel %vm137, %v3395, 0.0
    %3734 = vadd.xlane.f32.xlu0 %v3733
    %v3735 = vpop.xlane.xlu0 %3734
    %v3736 = vsel %vm137, %v3397, 0.0
    %3737 = vadd.xlane.f32.xlu0 %v3736
    %v3738 = vpop.xlane.xlu0 %3737
    %v3739 = vsel %vm137, %v3399, 0.0
    %3740 = vadd.xlane.f32.xlu0 %v3739
    %v3741 = vpop.xlane.xlu0 %3740
    %v3742 = vsel %vm137, %v3401, 0.0
    %3743 = vadd.xlane.f32.xlu0 %v3742
    %v3744 = vpop.xlane.xlu0 %3743
    %v3745 = vsel %vm137, %v3403, 0.0
    %3746 = vadd.xlane.f32.xlu0 %v3745
    %v3747 = vpop.xlane.xlu0 %3746
    %v3748 = vsel %vm137, %v3405, 0.0
    %3749 = vadd.xlane.f32.xlu0 %v3748
    %v3750 = vpop.xlane.xlu0 %3749
    %v3751 = vsel %vm137, %v3407, 0.0
    %3752 = vadd.xlane.f32.xlu0 %v3751
    %v3753 = vpop.xlane.xlu0 %3752
    %v3754 = vsel %vm137, %v3409, 0.0
    %3755 = vadd.xlane.f32.xlu0 %v3754
    %v3756 = vpop.xlane.xlu0 %3755
    %v3757 = vsel %vm137, %v3411, 0.0
    %3758 = vadd.xlane.f32.xlu0 %v3757
    %v3759 = vpop.xlane.xlu0 %3758
    %v3760 = vsel %vm137, %v3413, 0.0
    %3761 = vadd.xlane.f32.xlu0 %v3760
    %v3762 = vpop.xlane.xlu0 %3761
    %v3763 = vsel %vm137, %v3415, 0.0
    %3764 = vadd.xlane.f32.xlu0 %v3763
    %v3765 = vpop.xlane.xlu0 %3764
    %v3766 = vsel %vm137, %v3417, 0.0
    %3767 = vadd.xlane.f32.xlu0 %v3766
    %v3768 = vpop.xlane.xlu0 %3767
    %v3769 = vsel %vm137, %v3419, 0.0
    %3770 = vadd.xlane.f32.xlu0 %v3769
    %v3771 = vpop.xlane.xlu0 %3770
    %v3772 = vsel %vm137, %v3421, 0.0
    %3773 = vadd.xlane.f32.xlu0 %v3772
    %v3774 = vpop.xlane.xlu0 %3773
    %v3775 = vsel %vm137, %v3423, 0.0
    %3776 = vadd.xlane.f32.xlu0 %v3775
    %v3777 = vpop.xlane.xlu0 %3776
    %v3778 = vsel %vm137, %v3425, 0.0
    %3779 = vadd.xlane.f32.xlu0 %v3778
    %v3780 = vpop.xlane.xlu0 %3779
    %v3781 = vsel %vm137, %v3427, 0.0
    %3782 = vadd.xlane.f32.xlu0 %v3781
    %v3783 = vpop.xlane.xlu0 %3782
    %v3784 = vsel %vm137, %v3429, 0.0
    %3785 = vadd.xlane.f32.xlu0 %v3784
    %v3786 = vpop.xlane.xlu0 %3785
    %v3787 = vsel %vm137, %v3431, 0.0
    %3788 = vadd.xlane.f32.xlu0 %v3787
    %v3789 = vpop.xlane.xlu0 %3788
    %v3790 = vsel %vm137, %v3433, 0.0
    %3791 = vadd.xlane.f32.xlu0 %v3790
    %v3792 = vpop.xlane.xlu0 %3791
    %v3793 = vsel %vm137, %v3435, 0.0
    %3794 = vadd.xlane.f32.xlu0 %v3793
    %v3795 = vpop.xlane.xlu0 %3794
    %v3796 = vsel %vm137, %v3437, 0.0
    %3797 = vadd.xlane.f32.xlu0 %v3796
    %v3798 = vpop.xlane.xlu0 %3797
    %v3799 = vsel %vm137, %v3439, 0.0
    %3800 = vadd.xlane.f32.xlu0 %v3799
    %v3801 = vpop.xlane.xlu0 %3800
    %v3802 = vsel %vm137, %v3441, 0.0
    %3803 = vadd.xlane.f32.xlu0 %v3802
    %v3804 = vpop.xlane.xlu0 %3803
    %v3805 = vsel %vm137, %v3443, 0.0
    %3806 = vadd.xlane.f32.xlu0 %v3805
    %v3807 = vpop.xlane.xlu0 %3806
    %v3808 = vsel %vm137, %v3445, 0.0
    %3809 = vadd.xlane.f32.xlu0 %v3808
    %v3810 = vpop.xlane.xlu0 %3809
    %v3811 = vsel %vm137, %v3447, 0.0
    %3812 = vadd.xlane.f32.xlu0 %v3811
    %v3813 = vpop.xlane.xlu0 %3812
    %v3814 = vsel %vm137, %v3449, 0.0
    %3815 = vadd.xlane.f32.xlu0 %v3814
    %v3816 = vpop.xlane.xlu0 %3815
    %v3817 = vsel %vm137, %v3451, 0.0
    %3818 = vadd.xlane.f32.xlu0 %v3817
    %v3819 = vpop.xlane.xlu0 %3818
    %v3820 = vsel %vm137, %v3453, 0.0
    %3821 = vadd.xlane.f32.xlu0 %v3820
    %v3822 = vpop.xlane.xlu0 %3821
    %v3823 = vsel %vm137, %v3455, 0.0
    %3824 = vadd.xlane.f32.xlu0 %v3823
    %v3825 = vpop.xlane.xlu0 %3824
    %v3826 = vsel %vm137, %v3457, 0.0
    %3827 = vadd.xlane.f32.xlu0 %v3826
    %v3828 = vpop.xlane.xlu0 %3827
    %v3829 = vsel %vm137, %v3459, 0.0
    %3830 = vadd.xlane.f32.xlu0 %v3829
    %v3831 = vpop.xlane.xlu0 %3830
    %v3832 = vsel %vm137, %v3461, 0.0
    %3833 = vadd.xlane.f32.xlu0 %v3832
    %v3834 = vpop.xlane.xlu0 %3833
    %v3835 = vsel %vm137, %v3463, 0.0
    %3836 = vadd.xlane.f32.xlu0 %v3835
    %v3837 = vpop.xlane.xlu0 %3836
    %v3838 = vsel %vm137, %v3465, 0.0
    %3839 = vadd.xlane.f32.xlu0 %v3838
    %v3840 = vpop.xlane.xlu0 %3839
    %v3841 = vsel %vm137, %v3467, 0.0
    %3842 = vadd.xlane.f32.xlu0 %v3841
    %v3843 = vpop.xlane.xlu0 %3842
    %v3844 = vsel %vm137, %v3469, 0.0
    %3845 = vadd.xlane.f32.xlu0 %v3844
    %v3846 = vpop.xlane.xlu0 %3845
    %v3847 = vsel %vm137, %v3471, 0.0
    %3848 = vadd.xlane.f32.xlu0 %v3847
    %v3849 = vpop.xlane.xlu0 %3848
    %v3850 = vsel %vm137, %v3473, 0.0
    %3851 = vadd.xlane.f32.xlu0 %v3850
    %v3852 = vpop.xlane.xlu0 %3851
    %v3853 = vsel %vm137, %v3475, 0.0
    %3854 = vadd.xlane.f32.xlu0 %v3853
    %v3855 = vpop.xlane.xlu0 %3854
    %v3856 = vsel %vm137, %v3477, 0.0
    %3857 = vadd.xlane.f32.xlu0 %v3856
    %v3858 = vpop.xlane.xlu0 %3857
    %v3859 = vsel %vm137, %v3479, 0.0
    %3860 = vadd.xlane.f32.xlu0 %v3859
    %v3861 = vpop.xlane.xlu0 %3860
    %v3862 = vsel %vm137, %v3481, 0.0
    %3863 = vadd.xlane.f32.xlu0 %v3862
    %v3864 = vpop.xlane.xlu0 %3863
    %v3865 = vsel %vm137, %v3483, 0.0
    %3866 = vadd.xlane.f32.xlu0 %v3865
    %v3867 = vpop.xlane.xlu0 %3866
    %v3868 = vrcp.pop %v3486
    %v3869 = vrcp.pop %v3489
    %v3870 = vrcp.pop %v3492
    %v3871 = vrcp.pop %v3495
    %v3872 = vrcp.pop %v3498
    %v3873 = vrcp.pop %v3501
    %v3874 = vrcp.pop %v3504
    %v3875 = vrcp.pop %v3507
    %v3876 = vrcp.pop %v3510
    %v3877 = vrcp.pop %v3513
    %v3878 = vrcp.pop %v3516
    %v3879 = vrcp.pop %v3519
    %v3880 = vrcp.pop %v3522
    %v3881 = vrcp.pop %v3525
    %v3882 = vrcp.pop %v3528
    %v3883 = vrcp.pop %v3531
    %v3884 = vrcp.pop %v3534
    %v3885 = vrcp.pop %v3537
    %v3886 = vrcp.pop %v3540
    %v3887 = vrcp.pop %v3543
    %v3888 = vrcp.pop %v3546
    %v3889 = vrcp.pop %v3549
    %v3890 = vrcp.pop %v3552
    %v3891 = vrcp.pop %v3555
    %v3892 = vrcp.pop %v3558
    %v3893 = vrcp.pop %v3561
    %v3894 = vrcp.pop %v3564
    %v3895 = vrcp.pop %v3567
    %v3896 = vrcp.pop %v3570
    %v3897 = vrcp.pop %v3573
    %v3898 = vrcp.pop %v3576
    %v3899 = vrcp.pop %v3579
    %v3900 = vrcp.pop %v3582
    %v3901 = vrcp.pop %v3585
    %v3902 = vrcp.pop %v3588
    %v3903 = vrcp.pop %v3591
    %v3904 = vrcp.pop %v3594
    %v3905 = vrcp.pop %v3597
    %v3906 = vrcp.pop %v3600
    %v3907 = vrcp.pop %v3603
    %v3908 = vrcp.pop %v3606
    %v3909 = vrcp.pop %v3609
    %v3910 = vrcp.pop %v3612
    %v3911 = vrcp.pop %v3615
    %v3912 = vrcp.pop %v3618
    %v3913 = vrcp.pop %v3621
    %v3914 = vrcp.pop %v3624
    %v3915 = vrcp.pop %v3627
    %v3916 = vrcp.pop %v3630
    %v3917 = vrcp.pop %v3633
    %v3918 = vrcp.pop %v3636
    %v3919 = vrcp.pop %v3639
    %v3920 = vrcp.pop %v3642
    %v3921 = vrcp.pop %v3645
    %v3922 = vrcp.pop %v3648
    %v3923 = vrcp.pop %v3651
    %v3924 = vrcp.pop %v3654
    %v3925 = vrcp.pop %v3657
    %v3926 = vrcp.pop %v3660
    %v3927 = vrcp.pop %v3663
    %v3928 = vrcp.pop %v3666
    %v3929 = vrcp.pop %v3669
    %v3930 = vrcp.pop %v3672
    %v3931 = vrcp.pop %v3675
    %v3932 = vrcp.pop %v3678
    %v3933 = vrcp.pop %v3681
    %v3934 = vrcp.pop %v3684
    %v3935 = vrcp.pop %v3687
    %v3936 = vrcp.pop %v3690
    %v3937 = vrcp.pop %v3693
    %v3938 = vrcp.pop %v3696
    %v3939 = vrcp.pop %v3699
    %v3940 = vrcp.pop %v3702
    %v3941 = vrcp.pop %v3705
    %v3942 = vrcp.pop %v3708
    %v3943 = vrcp.pop %v3711
    %v3944 = vrcp.pop %v3714
    %v3945 = vrcp.pop %v3717
    %v3946 = vrcp.pop %v3720
    %v3947 = vrcp.pop %v3723
    %v3948 = vrcp.pop %v3726
    %v3949 = vrcp.pop %v3729
    %v3950 = vrcp.pop %v3732
    %v3951 = vrcp.pop %v3735
    %v3952 = vrcp.pop %v3738
    %v3953 = vrcp.pop %v3741
    %v3954 = vrcp.pop %v3744
    %v3955 = vrcp.pop %v3747
    %v3956 = vrcp.pop %v3750
    %v3957 = vrcp.pop %v3753
    %v3958 = vrcp.pop %v3756
    %v3959 = vrcp.pop %v3759
    %v3960 = vrcp.pop %v3762
    %v3961 = vrcp.pop %v3765
    %v3962 = vrcp.pop %v3768
    %v3963 = vrcp.pop %v3771
    %v3964 = vrcp.pop %v3774
    %v3965 = vrcp.pop %v3777
    %v3966 = vrcp.pop %v3780
    %v3967 = vrcp.pop %v3783
    %v3968 = vrcp.pop %v3786
    %v3969 = vrcp.pop %v3789
    %v3970 = vrcp.pop %v3792
    %v3971 = vrcp.pop %v3795
    %v3972 = vrcp.pop %v3798
    %v3973 = vrcp.pop %v3801
    %v3974 = vrcp.pop %v3804
    %v3975 = vrcp.pop %v3807
    %v3976 = vrcp.pop %v3810
    %v3977 = vrcp.pop %v3813
    %v3978 = vrcp.pop %v3816
    %v3979 = vrcp.pop %v3819
    %v3980 = vrcp.pop %v3822
    %v3981 = vrcp.pop %v3825
    %v3982 = vrcp.pop %v3828
    %v3983 = vrcp.pop %v3831
    %v3984 = vrcp.pop %v3834
    %v3985 = vrcp.pop %v3837
    %v3986 = vrcp.pop %v3840
    %v3987 = vrcp.pop %v3843
    %v3988 = vrcp.pop %v3846
    %v3989 = vrcp.pop %v3849
    %v3990 = vrcp.pop %v3852
    %v3991 = vrcp.pop %v3855
    %v3992 = vrcp.pop %v3858
    %v3993 = vrcp.pop %v3861
    %v3994 = vrcp.pop %v3864
    %v3995 = vrcp.pop %v3867
    %v3996 = vmul.f32 %v3229, %v3868
    %v3997 = vmul.f32 %v3231, %v3869
    %v3998 = vmul.f32 %v3233, %v3870
    %v3999 = vmul.f32 %v3235, %v3871
    %v4000 = vmul.f32 %v3237, %v3872
    %v4001 = vmul.f32 %v3239, %v3873
    %v4002 = vmul.f32 %v3241, %v3874
    %v4003 = vmul.f32 %v3243, %v3875
    %v4004 = vmul.f32 %v3245, %v3876
    %v4005 = vmul.f32 %v3247, %v3877
    %v4006 = vmul.f32 %v3249, %v3878
    %v4007 = vmul.f32 %v3251, %v3879
    %v4008 = vmul.f32 %v3253, %v3880
    %v4009 = vmul.f32 %v3255, %v3881
    %v4010 = vmul.f32 %v3257, %v3882
    %v4011 = vmul.f32 %v3259, %v3883
    %v4012 = vmul.f32 %v3261, %v3884
    %v4013 = vmul.f32 %v3263, %v3885
    %v4014 = vmul.f32 %v3265, %v3886
    %v4015 = vmul.f32 %v3267, %v3887
    %v4016 = vmul.f32 %v3269, %v3888
    %v4017 = vmul.f32 %v3271, %v3889
    %v4018 = vmul.f32 %v3273, %v3890
    %v4019 = vmul.f32 %v3275, %v3891
    %v4020 = vmul.f32 %v3277, %v3892
    %v4021 = vmul.f32 %v3279, %v3893
    %v4022 = vmul.f32 %v3281, %v3894
    %v4023 = vmul.f32 %v3283, %v3895
    %v4024 = vmul.f32 %v3285, %v3896
    %v4025 = vmul.f32 %v3287, %v3897
    %v4026 = vmul.f32 %v3289, %v3898
    %v4027 = vmul.f32 %v3291, %v3899
    %v4028 = vmul.f32 %v3293, %v3900
    %v4029 = vmul.f32 %v3295, %v3901
    %v4030 = vmul.f32 %v3297, %v3902
    %v4031 = vmul.f32 %v3299, %v3903
    %v4032 = vmul.f32 %v3301, %v3904
    %v4033 = vmul.f32 %v3303, %v3905
    %v4034 = vmul.f32 %v3305, %v3906
    %v4035 = vmul.f32 %v3307, %v3907
    %v4036 = vmul.f32 %v3309, %v3908
    %v4037 = vmul.f32 %v3311, %v3909
    %v4038 = vmul.f32 %v3313, %v3910
    %v4039 = vmul.f32 %v3315, %v3911
    %v4040 = vmul.f32 %v3317, %v3912
    %v4041 = vmul.f32 %v3319, %v3913
    %v4042 = vmul.f32 %v3321, %v3914
    %v4043 = vmul.f32 %v3323, %v3915
    %v4044 = vmul.f32 %v3325, %v3916
    %v4045 = vmul.f32 %v3327, %v3917
    %v4046 = vmul.f32 %v3329, %v3918
    %v4047 = vmul.f32 %v3331, %v3919
    %v4048 = vmul.f32 %v3333, %v3920
    %v4049 = vmul.f32 %v3335, %v3921
    %v4050 = vmul.f32 %v3337, %v3922
    %v4051 = vmul.f32 %v3339, %v3923
    %v4052 = vmul.f32 %v3341, %v3924
    %v4053 = vmul.f32 %v3343, %v3925
    %v4054 = vmul.f32 %v3345, %v3926
    %v4055 = vmul.f32 %v3347, %v3927
    %v4056 = vmul.f32 %v3349, %v3928
    %v4057 = vmul.f32 %v3351, %v3929
    %v4058 = vmul.f32 %v3353, %v3930
    %v4059 = vmul.f32 %v3355, %v3931
    %v4060 = vmul.f32 %v3357, %v3932
    %v4061 = vmul.f32 %v3359, %v3933
    %v4062 = vmul.f32 %v3361, %v3934
    %v4063 = vmul.f32 %v3363, %v3935
    %v4064 = vmul.f32 %v3365, %v3936
    %v4065 = vmul.f32 %v3367, %v3937
    %v4066 = vmul.f32 %v3369, %v3938
    %v4067 = vmul.f32 %v3371, %v3939
    %v4068 = vmul.f32 %v3373, %v3940
    %v4069 = vmul.f32 %v3375, %v3941
    %v4070 = vmul.f32 %v3377, %v3942
    %v4071 = vmul.f32 %v3379, %v3943
    %v4072 = vmul.f32 %v3381, %v3944
    %v4073 = vmul.f32 %v3383, %v3945
    %v4074 = vmul.f32 %v3385, %v3946
    %v4075 = vmul.f32 %v3387, %v3947
    %v4076 = vmul.f32 %v3389, %v3948
    %v4077 = vmul.f32 %v3391, %v3949
    %v4078 = vmul.f32 %v3393, %v3950
    %v4079 = vmul.f32 %v3395, %v3951
    %v4080 = vmul.f32 %v3397, %v3952
    %v4081 = vmul.f32 %v3399, %v3953
    %v4082 = vmul.f32 %v3401, %v3954
    %v4083 = vmul.f32 %v3403, %v3955
    %v4084 = vmul.f32 %v3405, %v3956
    %v4085 = vmul.f32 %v3407, %v3957
    %v4086 = vmul.f32 %v3409, %v3958
    %v4087 = vmul.f32 %v3411, %v3959
    %v4088 = vmul.f32 %v3413, %v3960
    %v4089 = vmul.f32 %v3415, %v3961
    %v4090 = vmul.f32 %v3417, %v3962
    %v4091 = vmul.f32 %v3419, %v3963
    %v4092 = vmul.f32 %v3421, %v3964
    %v4093 = vmul.f32 %v3423, %v3965
    %v4094 = vmul.f32 %v3425, %v3966
    %v4095 = vmul.f32 %v3427, %v3967
    %v4096 = vmul.f32 %v3429, %v3968
    %v4097 = vmul.f32 %v3431, %v3969
    %v4098 = vmul.f32 %v3433, %v3970
    %v4099 = vmul.f32 %v3435, %v3971
    %v4100 = vmul.f32 %v3437, %v3972
    %v4101 = vmul.f32 %v3439, %v3973
    %v4102 = vmul.f32 %v3441, %v3974
    %v4103 = vmul.f32 %v3443, %v3975
    %v4104 = vmul.f32 %v3445, %v3976
    %v4105 = vmul.f32 %v3447, %v3977
    %v4106 = vmul.f32 %v3449, %v3978
    %v4107 = vmul.f32 %v3451, %v3979
    %v4108 = vmul.f32 %v3453, %v3980
    %v4109 = vmul.f32 %v3455, %v3981
    %v4110 = vmul.f32 %v3457, %v3982
    %v4111 = vmul.f32 %v3459, %v3983
    %v4112 = vmul.f32 %v3461, %v3984
    %v4113 = vmul.f32 %v3463, %v3985
    %v4114 = vmul.f32 %v3465, %v3986
    %v4115 = vmul.f32 %v3467, %v3987
    %v4116 = vmul.f32 %v3469, %v3988
    %v4117 = vmul.f32 %v3471, %v3989
    %v4118 = vmul.f32 %v3473, %v3990
    %v4119 = vmul.f32 %v3475, %v3991
    %v4120 = vmul.f32 %v3477, %v3992
    %v4121 = vmul.f32 %v3479, %v3993
    %v4122 = vmul.f32 %v3481, %v3994
    %v4123 = vmul.f32 %v3483, %v3995
    %v4124 = vpack.c.bf16 %v3997, %v3996
    %v4125 = vpack.c.bf16 %v3999, %v3998
    %v4126 = vpack.c.bf16 %v4001, %v4000
    %v4127 = vpack.c.bf16 %v4003, %v4002
    %v4128 = vpack.c.bf16 %v4005, %v4004
    %v4129 = vpack.c.bf16 %v4007, %v4006
    %v4130 = vpack.c.bf16 %v4009, %v4008
    %v4131 = vpack.c.bf16 %v4011, %v4010
    %v4132 = vpack.c.bf16 %v4013, %v4012
    %v4133 = vpack.c.bf16 %v4015, %v4014
    %v4134 = vpack.c.bf16 %v4017, %v4016
    %v4135 = vpack.c.bf16 %v4019, %v4018
    %v4136 = vpack.c.bf16 %v4021, %v4020
    %v4137 = vpack.c.bf16 %v4023, %v4022
    %v4138 = vpack.c.bf16 %v4025, %v4024
    %v4139 = vpack.c.bf16 %v4027, %v4026
    %v4140 = vpack.c.bf16 %v4029, %v4028
    %v4141 = vpack.c.bf16 %v4031, %v4030
    %v4142 = vpack.c.bf16 %v4033, %v4032
    %v4143 = vpack.c.bf16 %v4035, %v4034
    %v4144 = vpack.c.bf16 %v4037, %v4036
    %v4145 = vpack.c.bf16 %v4039, %v4038
    %v4146 = vpack.c.bf16 %v4041, %v4040
    %v4147 = vpack.c.bf16 %v4043, %v4042
    %v4148 = vpack.c.bf16 %v4045, %v4044
    %v4149 = vpack.c.bf16 %v4047, %v4046
    %v4150 = vpack.c.bf16 %v4049, %v4048
    %v4151 = vpack.c.bf16 %v4051, %v4050
    %v4152 = vpack.c.bf16 %v4053, %v4052
    %v4153 = vpack.c.bf16 %v4055, %v4054
    %v4154 = vpack.c.bf16 %v4057, %v4056
    %v4155 = vpack.c.bf16 %v4059, %v4058
    %v4156 = vpack.c.bf16 %v4061, %v4060
    %v4157 = vpack.c.bf16 %v4063, %v4062
    %v4158 = vpack.c.bf16 %v4065, %v4064
    %v4159 = vpack.c.bf16 %v4067, %v4066
    %v4160 = vpack.c.bf16 %v4069, %v4068
    %v4161 = vpack.c.bf16 %v4071, %v4070
    %v4162 = vpack.c.bf16 %v4073, %v4072
    %v4163 = vpack.c.bf16 %v4075, %v4074
    %v4164 = vpack.c.bf16 %v4077, %v4076
    %v4165 = vpack.c.bf16 %v4079, %v4078
    %v4166 = vpack.c.bf16 %v4081, %v4080
    %v4167 = vpack.c.bf16 %v4083, %v4082
    %v4168 = vpack.c.bf16 %v4085, %v4084
    %v4169 = vpack.c.bf16 %v4087, %v4086
    %v4170 = vpack.c.bf16 %v4089, %v4088
    %v4171 = vpack.c.bf16 %v4091, %v4090
    %v4172 = vpack.c.bf16 %v4093, %v4092
    %v4173 = vpack.c.bf16 %v4095, %v4094
    %v4174 = vpack.c.bf16 %v4097, %v4096
    %v4175 = vpack.c.bf16 %v4099, %v4098
    %v4176 = vpack.c.bf16 %v4101, %v4100
    %v4177 = vpack.c.bf16 %v4103, %v4102
    %v4178 = vpack.c.bf16 %v4105, %v4104
    %v4179 = vpack.c.bf16 %v4107, %v4106
    %v4180 = vpack.c.bf16 %v4109, %v4108
    %v4181 = vpack.c.bf16 %v4111, %v4110
    %v4182 = vpack.c.bf16 %v4113, %v4112
    %v4183 = vpack.c.bf16 %v4115, %v4114
    %v4184 = vpack.c.bf16 %v4117, %v4116
    %v4185 = vpack.c.bf16 %v4119, %v4118
    %v4186 = vpack.c.bf16 %v4121, %v4120
    %v4187 = vpack.c.bf16 %v4123, %v4122
    %4188 = vrot.lane.b32.xlu0 %v347, 64
    %v4189 = vpop.permute.xlu0 %4188
    %4190 = vrot.lane.b32.xlu0 %v348, 64
    %v4191 = vpop.permute.xlu0 %4190
    %v4195 = vsel %vm137, %v4124, 0
    %v4198 = vsel %vm137, %v4125, 0
    %4200 = vmatprep.subr.bf16.mxu0 0
    %4201 = vmatpush1.bf16.msra.mxu0 %v4189
    %4202 = vmatprep.subr.bf16.mxu0 0
    %4203 = vmatpush1.bf16.msra.mxu0 %v4191
    %4204 = vmatprep.subr.bf16.mxu0 0
    %4205 = vmatpush1.bf16.msra.mxu0 0
    %4206 = vmatprep.subr.bf16.mxu0 0
    %4207 = vmatpush1.bf16.msra.mxu0 0
    %4208 = vmatprep.subr.bf16.mxu0 0
    %4209 = vmatpush1.bf16.msra.mxu0 0
    %4210 = vmatprep.subr.bf16.mxu0 0
    %4211 = vmatpush1.bf16.msra.mxu0 0
    %4212 = vmatprep.subr.bf16.mxu0 0
    %4213 = vmatpush1.bf16.msra.mxu0 0
    %4214 = vmatprep.subr.bf16.mxu0 0
    %4215 = vmatpush1.bf16.msra.mxu0 0
    %4216 = vmatprep.subr.bf16.mxu0 0
    %4217 = vmatpush1.bf16.msra.mxu0 0
    %4218 = vmatprep.subr.bf16.mxu0 0
    %4219 = vmatpush1.bf16.msra.mxu0 0
    %4220 = vmatprep.subr.bf16.mxu0 0
    %4221 = vmatpush1.bf16.msra.mxu0 0
    %4222 = vmatprep.subr.bf16.mxu0 0
    %4223 = vmatpush1.bf16.msra.mxu0 0
    %4224 = vmatprep.subr.bf16.mxu0 0
    %4225 = vmatpush1.bf16.msra.mxu0 0
    %4226 = vmatprep.subr.bf16.mxu0 0
    %4227 = vmatpush1.bf16.msra.mxu0 0
    %4228 = vmatprep.subr.bf16.mxu0 0
    %4229 = vmatpush1.bf16.msra.mxu0 0
    %4230 = vmatprep.subr.bf16.mxu0 0
    %4231 = vmatpush1.bf16.msra.mxu0 0
    %4232 = vmatprep.mubr.bf16.mxu0 0
    %4233 = vmatmul.mubr.bf16.gmra.mrb[0].mxu0 %v4195
    %v4234 = vpop.f32.mrb[0].mxu0
    %v4235 = vadd.f32 0.0, %v4234
    %v4236 = vpop.f32.mrb[0].mxu0
    %v4237 = vpop.f32.mrb[0].mxu0
    %v4238 = vadd.f32 0.0, %v4237
    %v4239 = vpop.f32.mrb[0].mxu0
    %4240 = vmatprep.mubr.bf16.mxu0 0
    %4241 = vmatmul.mubr.bf16.gmra.mrb[0].mxu0 %v4198
    %v4242 = vpop.f32.mrb[0].mxu0
    %v4243 = vadd.f32 0.0, %v4242
    %v4244 = vpop.f32.mrb[0].mxu0
    %v4245 = vpop.f32.mrb[0].mxu0
    %v4246 = vadd.f32 0.0, %v4245
    %v4247 = vpop.f32.mrb[0].mxu0
    %4248 = vdwg.mxu0
    %4249 = vrot.lane.b32.xlu0 %v349, 64
    %v4250 = vpop.permute.xlu0 %4249
    %4251 = vrot.lane.b32.xlu0 %v350, 64
    %v4252 = vpop.permute.xlu0 %4251
    %v4256 = vsel %vm137, %v4126, 0
    %v4259 = vsel %vm137, %v4127, 0
    %4261 = vmatprep.subr.bf16.mxu0 0
    %4262 = vmatpush1.bf16.msra.mxu0 %v4250
    %4263 = vmatprep.subr.bf16.mxu0 0
    %4264 = vmatpush1.bf16.msra.mxu0 %v4252
    %4265 = vmatprep.subr.bf16.mxu0 0
    %4266 = vmatpush1.bf16.msra.mxu0 0
    %4267 = vmatprep.subr.bf16.mxu0 0
    %4268 = vmatpush1.bf16.msra.mxu0 0
    %4269 = vmatprep.subr.bf16.mxu0 0
    %4270 = vmatpush1.bf16.msra.mxu0 0
    %4271 = vmatprep.subr.bf16.mxu0 0
    %4272 = vmatpush1.bf16.msra.mxu0 0
    %4273 = vmatprep.subr.bf16.mxu0 0
    %4274 = vmatpush1.bf16.msra.mxu0 0
    %4275 = vmatprep.subr.bf16.mxu0 0
    %4276 = vmatpush1.bf16.msra.mxu0 0
    %4277 = vmatprep.subr.bf16.mxu0 0
    %4278 = vmatpush1.bf16.msra.mxu0 0
    %4279 = vmatprep.subr.bf16.mxu0 0
    %4280 = vmatpush1.bf16.msra.mxu0 0
    %4281 = vmatprep.subr.bf16.mxu0 0
    %4282 = vmatpush1.bf16.msra.mxu0 0
    %4283 = vmatprep.subr.bf16.mxu0 0
    %4284 = vmatpush1.bf16.msra.mxu0 0
    %4285 = vmatprep.subr.bf16.mxu0 0
    %4286 = vmatpush1.bf16.msra.mxu0 0
    %4287 = vmatprep.subr.bf16.mxu0 0
    %4288 = vmatpush1.bf16.msra.mxu0 0
    %4289 = vmatprep.subr.bf16.mxu0 0
    %4290 = vmatpush1.bf16.msra.mxu0 0
    %4291 = vmatprep.subr.bf16.mxu0 0
    %4292 = vmatpush1.bf16.msra.mxu0 0
    %4293 = vmatprep.mubr.bf16.mxu0 0
    %4294 = vmatmul.mubr.bf16.gmra.mrb[0].mxu0 %v4256
    %v4295 = vpop.f32.mrb[0].mxu0
    %v4296 = vadd.f32 0.0, %v4295
    %v4297 = vpop.f32.mrb[0].mxu0
    %v4298 = vpop.f32.mrb[0].mxu0
    %v4299 = vadd.f32 0.0, %v4298
    %v4300 = vpop.f32.mrb[0].mxu0
    %4301 = vmatprep.mubr.bf16.mxu0 0
    %4302 = vmatmul.mubr.bf16.gmra.mrb[0].mxu0 %v4259
    %v4303 = vpop.f32.mrb[0].mxu0
    %v4304 = vadd.f32 0.0, %v4303
    %v4305 = vpop.f32.mrb[0].mxu0
    %v4306 = vpop.f32.mrb[0].mxu0
    %v4307 = vadd.f32 0.0, %v4306
    %v4308 = vpop.f32.mrb[0].mxu0
    %4309 = vdwg.mxu0
    %4310 = vrot.lane.b32.xlu0 %v351, 64
    %v4311 = vpop.permute.xlu0 %4310
    %4312 = vrot.lane.b32.xlu0 %v352, 64
    %v4313 = vpop.permute.xlu0 %4312
    %v4317 = vsel %vm137, %v4128, 0
    %v4320 = vsel %vm137, %v4129, 0
    %4322 = vmatprep.subr.bf16.mxu0 0
    %4323 = vmatpush1.bf16.msra.mxu0 %v4311
    %4324 = vmatprep.subr.bf16.mxu0 0
    %4325 = vmatpush1.bf16.msra.mxu0 %v4313
    %4326 = vmatprep.subr.bf16.mxu0 0
    %4327 = vmatpush1.bf16.msra.mxu0 0
    %4328 = vmatprep.subr.bf16.mxu0 0
    %4329 = vmatpush1.bf16.msra.mxu0 0
    %4330 = vmatprep.subr.bf16.mxu0 0
    %4331 = vmatpush1.bf16.msra.mxu0 0
    %4332 = vmatprep.subr.bf16.mxu0 0
    %4333 = vmatpush1.bf16.msra.mxu0 0
    %4334 = vmatprep.subr.bf16.mxu0 0
    %4335 = vmatpush1.bf16.msra.mxu0 0
    %4336 = vmatprep.subr.bf16.mxu0 0
    %4337 = vmatpush1.bf16.msra.mxu0 0
    %4338 = vmatprep.subr.bf16.mxu0 0
    %4339 = vmatpush1.bf16.msra.mxu0 0
    %4340 = vmatprep.subr.bf16.mxu0 0
    %4341 = vmatpush1.bf16.msra.mxu0 0
    %4342 = vmatprep.subr.bf16.mxu0 0
    %4343 = vmatpush1.bf16.msra.mxu0 0
    %4344 = vmatprep.subr.bf16.mxu0 0
    %4345 = vmatpush1.bf16.msra.mxu0 0
    %4346 = vmatprep.subr.bf16.mxu0 0
    %4347 = vmatpush1.bf16.msra.mxu0 0
    %4348 = vmatprep.subr.bf16.mxu0 0
    %4349 = vmatpush1.bf16.msra.mxu0 0
    %4350 = vmatprep.subr.bf16.mxu0 0
    %4351 = vmatpush1.bf16.msra.mxu0 0
    %4352 = vmatprep.subr.bf16.mxu0 0
    %4353 = vmatpush1.bf16.msra.mxu0 0
    %4354 = vmatprep.mubr.bf16.mxu0 0
    %4355 = vmatmul.mubr.bf16.gmra.mrb[0].mxu0 %v4317
    %v4356 = vpop.f32.mrb[0].mxu0
    %v4357 = vadd.f32 0.0, %v4356
    %v4358 = vpop.f32.mrb[0].mxu0
    %v4359 = vpop.f32.mrb[0].mxu0
    %v4360 = vadd.f32 0.0, %v4359
    %v4361 = vpop.f32.mrb[0].mxu0
    %4362 = vmatprep.mubr.bf16.mxu0 0
    %4363 = vmatmul.mubr.bf16.gmra.mrb[0].mxu0 %v4320
    %v4364 = vpop.f32.mrb[0].mxu0
    %v4365 = vadd.f32 0.0, %v4364
    %v4366 = vpop.f32.mrb[0].mxu0
    %v4367 = vpop.f32.mrb[0].mxu0
    %v4368 = vadd.f32 0.0, %v4367
    %v4369 = vpop.f32.mrb[0].mxu0
    %4370 = vdwg.mxu0
    %4371 = vrot.lane.b32.xlu0 %v353, 64
    %v4372 = vpop.permute.xlu0 %4371
    %4373 = vrot.lane.b32.xlu0 %v354, 64
    %v4374 = vpop.permute.xlu0 %4373
    %v4378 = vsel %vm137, %v4130, 0
    %v4381 = vsel %vm137, %v4131, 0
    %4383 = vmatprep.subr.bf16.mxu0 0
    %4384 = vmatpush1.bf16.msra.mxu0 %v4372
    %4385 = vmatprep.subr.bf16.mxu0 0
    %4386 = vmatpush1.bf16.msra.mxu0 %v4374
    %4387 = vmatprep.subr.bf16.mxu0 0
    %4388 = vmatpush1.bf16.msra.mxu0 0
    %4389 = vmatprep.subr.bf16.mxu0 0
    %4390 = vmatpush1.bf16.msra.mxu0 0
    %4391 = vmatprep.subr.bf16.mxu0 0
    %4392 = vmatpush1.bf16.msra.mxu0 0
    %4393 = vmatprep.subr.bf16.mxu0 0
    %4394 = vmatpush1.bf16.msra.mxu0 0
    %4395 = vmatprep.subr.bf16.mxu0 0
    %4396 = vmatpush1.bf16.msra.mxu0 0
    %4397 = vmatprep.subr.bf16.mxu0 0
    %4398 = vmatpush1.bf16.msra.mxu0 0
    %4399 = vmatprep.subr.bf16.mxu0 0
    %4400 = vmatpush1.bf16.msra.mxu0 0
    %4401 = vmatprep.subr.bf16.mxu0 0
    %4402 = vmatpush1.bf16.msra.mxu0 0
    %4403 = vmatprep.subr.bf16.mxu0 0
    %4404 = vmatpush1.bf16.msra.mxu0 0
    %4405 = vmatprep.subr.bf16.mxu0 0
    %4406 = vmatpush1.bf16.msra.mxu0 0
    %4407 = vmatprep.subr.bf16.mxu0 0
    %4408 = vmatpush1.bf16.msra.mxu0 0
    %4409 = vmatprep.subr.bf16.mxu0 0
    %4410 = vmatpush1.bf16.msra.mxu0 0
    %4411 = vmatprep.subr.bf16.mxu0 0
    %4412 = vmatpush1.bf16.msra.mxu0 0
    %4413 = vmatprep.subr.bf16.mxu0 0
    %4414 = vmatpush1.bf16.msra.mxu0 0
    %4415 = vmatprep.mubr.bf16.mxu0 0
    %4416 = vmatmul.mubr.bf16.gmra.mrb[0].mxu0 %v4378
    %v4417 = vpop.f32.mrb[0].mxu0
    %v4418 = vadd.f32 0.0, %v4417
    %v4419 = vpop.f32.mrb[0].mxu0
    %v4420 = vpop.f32.mrb[0].mxu0
    %v4421 = vadd.f32 0.0, %v4420
    %v4422 = vpop.f32.mrb[0].mxu0
    %4423 = vmatprep.mubr.bf16.mxu0 0
    %4424 = vmatmul.mubr.bf16.gmra.mrb[0].mxu0 %v4381
    %v4425 = vpop.f32.mrb[0].mxu0
    %v4426 = vadd.f32 0.0, %v4425
    %v4427 = vpop.f32.mrb[0].mxu0
    %v4428 = vpop.f32.mrb[0].mxu0
    %v4429 = vadd.f32 0.0, %v4428
    %v4430 = vpop.f32.mrb[0].mxu0
    %4431 = vdwg.mxu0
    %4432 = vrot.lane.b32.xlu0 %v355, 64
    %v4433 = vpop.permute.xlu0 %4432
    %4434 = vrot.lane.b32.xlu0 %v356, 64
    %v4435 = vpop.permute.xlu0 %4434
    %v4439 = vsel %vm137, %v4132, 0
    %v4442 = vsel %vm137, %v4133, 0
    %4444 = vmatprep.subr.bf16.mxu0 0
    %4445 = vmatpush1.bf16.msra.mxu0 %v4433
    %4446 = vmatprep.subr.bf16.mxu0 0
    %4447 = vmatpush1.bf16.msra.mxu0 %v4435
    %4448 = vmatprep.subr.bf16.mxu0 0
    %4449 = vmatpush1.bf16.msra.mxu0 0
    %4450 = vmatprep.subr.bf16.mxu0 0
    %4451 = vmatpush1.bf16.msra.mxu0 0
    %4452 = vmatprep.subr.bf16.mxu0 0
    %4453 = vmatpush1.bf16.msra.mxu0 0
    %4454 = vmatprep.subr.bf16.mxu0 0
    %4455 = vmatpush1.bf16.msra.mxu0 0
    %4456 = vmatprep.subr.bf16.mxu0 0
    %4457 = vmatpush1.bf16.msra.mxu0 0
    %4458 = vmatprep.subr.bf16.mxu0 0
    %4459 = vmatpush1.bf16.msra.mxu0 0
    %4460 = vmatprep.subr.bf16.mxu0 0
    %4461 = vmatpush1.bf16.msra.mxu0 0
    %4462 = vmatprep.subr.bf16.mxu0 0
    %4463 = vmatpush1.bf16.msra.mxu0 0
    %4464 = vmatprep.subr.bf16.mxu0 0
    %4465 = vmatpush1.bf16.msra.mxu0 0
    %4466 = vmatprep.subr.bf16.mxu0 0
    %4467 = vmatpush1.bf16.msra.mxu0 0
    %4468 = vmatprep.subr.bf16.mxu0 0
    %4469 = vmatpush1.bf16.msra.mxu0 0
    %4470 = vmatprep.subr.bf16.mxu0 0
    %4471 = vmatpush1.bf16.msra.mxu0 0
    %4472 = vmatprep.subr.bf16.mxu0 0
    %4473 = vmatpush1.bf16.msra.mxu0 0
    %4474 = vmatprep.subr.bf16.mxu0 0
    %4475 = vmatpush1.bf16.msra.mxu0 0
    %4476 = vmatprep.mubr.bf16.mxu0 0
    %4477 = vmatmul.mubr.bf16.gmra.mrb[0].mxu0 %v4439
    %v4478 = vpop.f32.mrb[0].mxu0
    %v4479 = vadd.f32 0.0, %v4478
    %v4480 = vpop.f32.mrb[0].mxu0
    %v4481 = vpop.f32.mrb[0].mxu0
    %v4482 = vadd.f32 0.0, %v4481
    %v4483 = vpop.f32.mrb[0].mxu0
    %4484 = vmatprep.mubr.bf16.mxu0 0
    %4485 = vmatmul.mubr.bf16.gmra.mrb[0].mxu0 %v4442
    %v4486 = vpop.f32.mrb[0].mxu0
    %v4487 = vadd.f32 0.0, %v4486
    %v4488 = vpop.f32.mrb[0].mxu0
    %v4489 = vpop.f32.mrb[0].mxu0
    %v4490 = vadd.f32 0.0, %v4489
    %v4491 = vpop.f32.mrb[0].mxu0
    %4492 = vdwg.mxu0
    %4493 = vrot.lane.b32.xlu0 %v357, 64
    %v4494 = vpop.permute.xlu0 %4493
    %4495 = vrot.lane.b32.xlu0 %v358, 64
    %v4496 = vpop.permute.xlu0 %4495
    %v4500 = vsel %vm137, %v4134, 0
    %v4503 = vsel %vm137, %v4135, 0
    %4505 = vmatprep.subr.bf16.mxu0 0
    %4506 = vmatpush1.bf16.msra.mxu0 %v4494
    %4507 = vmatprep.subr.bf16.mxu0 0
    %4508 = vmatpush1.bf16.msra.mxu0 %v4496
    %4509 = vmatprep.subr.bf16.mxu0 0
    %4510 = vmatpush1.bf16.msra.mxu0 0
    %4511 = vmatprep.subr.bf16.mxu0 0
    %4512 = vmatpush1.bf16.msra.mxu0 0
    %4513 = vmatprep.subr.bf16.mxu0 0
    %4514 = vmatpush1.bf16.msra.mxu0 0
    %4515 = vmatprep.subr.bf16.mxu0 0
    %4516 = vmatpush1.bf16.msra.mxu0 0
    %4517 = vmatprep.subr.bf16.mxu0 0
    %4518 = vmatpush1.bf16.msra.mxu0 0
    %4519 = vmatprep.subr.bf16.mxu0 0
    %4520 = vmatpush1.bf16.msra.mxu0 0
    %4521 = vmatprep.subr.bf16.mxu0 0
    %4522 = vmatpush1.bf16.msra.mxu0 0
    %4523 = vmatprep.subr.bf16.mxu0 0
    %4524 = vmatpush1.bf16.msra.mxu0 0
    %4525 = vmatprep.subr.bf16.mxu0 0
    %4526 = vmatpush1.bf16.msra.mxu0 0
    %4527 = vmatprep.subr.bf16.mxu0 0
    %4528 = vmatpush1.bf16.msra.mxu0 0
    %4529 = vmatprep.subr.bf16.mxu0 0
    %4530 = vmatpush1.bf16.msra.mxu0 0
    %4531 = vmatprep.subr.bf16.mxu0 0
    %4532 = vmatpush1.bf16.msra.mxu0 0
    %4533 = vmatprep.subr.bf16.mxu0 0
    %4534 = vmatpush1.bf16.msra.mxu0 0
    %4535 = vmatprep.subr.bf16.mxu0 0
    %4536 = vmatpush1.bf16.msra.mxu0 0
    %4537 = vmatprep.mubr.bf16.mxu0 0
    %4538 = vmatmul.mubr.bf16.gmra.mrb[0].mxu0 %v4500
    %v4539 = vpop.f32.mrb[0].mxu0
    %v4540 = vadd.f32 0.0, %v4539
    %v4541 = vpop.f32.mrb[0].mxu0
    %v4542 = vpop.f32.mrb[0].mxu0
    %v4543 = vadd.f32 0.0, %v4542
    %v4544 = vpop.f32.mrb[0].mxu0
    %4545 = vmatprep.mubr.bf16.mxu0 0
    %4546 = vmatmul.mubr.bf16.gmra.mrb[0].mxu0 %v4503
    %v4547 = vpop.f32.mrb[0].mxu0
    %v4548 = vadd.f32 0.0, %v4547
    %v4549 = vpop.f32.mrb[0].mxu0
    %v4550 = vpop.f32.mrb[0].mxu0
    %v4551 = vadd.f32 0.0, %v4550
    %v4552 = vpop.f32.mrb[0].mxu0
    %4553 = vdwg.mxu0
    %4554 = vrot.lane.b32.xlu0 %v359, 64
    %v4555 = vpop.permute.xlu0 %4554
    %4556 = vrot.lane.b32.xlu0 %v360, 64
    %v4557 = vpop.permute.xlu0 %4556
    %v4561 = vsel %vm137, %v4136, 0
    %v4564 = vsel %vm137, %v4137, 0
    %4566 = vmatprep.subr.bf16.mxu0 0
    %4567 = vmatpush1.bf16.msra.mxu0 %v4555
    %4568 = vmatprep.subr.bf16.mxu0 0
    %4569 = vmatpush1.bf16.msra.mxu0 %v4557
    %4570 = vmatprep.subr.bf16.mxu0 0
    %4571 = vmatpush1.bf16.msra.mxu0 0
    %4572 = vmatprep.subr.bf16.mxu0 0
    %4573 = vmatpush1.bf16.msra.mxu0 0
    %4574 = vmatprep.subr.bf16.mxu0 0
    %4575 = vmatpush1.bf16.msra.mxu0 0
    %4576 = vmatprep.subr.bf16.mxu0 0
    %4577 = vmatpush1.bf16.msra.mxu0 0
    %4578 = vmatprep.subr.bf16.mxu0 0
    %4579 = vmatpush1.bf16.msra.mxu0 0
    %4580 = vmatprep.subr.bf16.mxu0 0
    %4581 = vmatpush1.bf16.msra.mxu0 0
    %4582 = vmatprep.subr.bf16.mxu0 0
    %4583 = vmatpush1.bf16.msra.mxu0 0
    %4584 = vmatprep.subr.bf16.mxu0 0
    %4585 = vmatpush1.bf16.msra.mxu0 0
    %4586 = vmatprep.subr.bf16.mxu0 0
    %4587 = vmatpush1.bf16.msra.mxu0 0
    %4588 = vmatprep.subr.bf16.mxu0 0
    %4589 = vmatpush1.bf16.msra.mxu0 0
    %4590 = vmatprep.subr.bf16.mxu0 0
    %4591 = vmatpush1.bf16.msra.mxu0 0
    %4592 = vmatprep.subr.bf16.mxu0 0
    %4593 = vmatpush1.bf16.msra.mxu0 0
    %4594 = vmatprep.subr.bf16.mxu0 0
    %4595 = vmatpush1.bf16.msra.mxu0 0
    %4596 = vmatprep.subr.bf16.mxu0 0
    %4597 = vmatpush1.bf16.msra.mxu0 0
    %4598 = vmatprep.mubr.bf16.mxu0 0
    %4599 = vmatmul.mubr.bf16.gmra.mrb[0].mxu0 %v4561
    %v4600 = vpop.f32.mrb[0].mxu0
    %v4601 = vadd.f32 0.0, %v4600
    %v4602 = vpop.f32.mrb[0].mxu0
    %v4603 = vpop.f32.mrb[0].mxu0
    %v4604 = vadd.f32 0.0, %v4603
    %v4605 = vpop.f32.mrb[0].mxu0
    %4606 = vmatprep.mubr.bf16.mxu0 0
    %4607 = vmatmul.mubr.bf16.gmra.mrb[0].mxu0 %v4564
    %v4608 = vpop.f32.mrb[0].mxu0
    %v4609 = vadd.f32 0.0, %v4608
    %v4610 = vpop.f32.mrb[0].mxu0
    %v4611 = vpop.f32.mrb[0].mxu0
    %v4612 = vadd.f32 0.0, %v4611
    %v4613 = vpop.f32.mrb[0].mxu0
    %4614 = vdwg.mxu0
    %4615 = vrot.lane.b32.xlu0 %v361, 64
    %v4616 = vpop.permute.xlu0 %4615
    %4617 = vrot.lane.b32.xlu0 %v362, 64
    %v4618 = vpop.permute.xlu0 %4617
    %v4622 = vsel %vm137, %v4138, 0
    %v4625 = vsel %vm137, %v4139, 0
    %4627 = vmatprep.subr.bf16.mxu0 0
    %4628 = vmatpush1.bf16.msra.mxu0 %v4616
    %4629 = vmatprep.subr.bf16.mxu0 0
    %4630 = vmatpush1.bf16.msra.mxu0 %v4618
    %4631 = vmatprep.subr.bf16.mxu0 0
    %4632 = vmatpush1.bf16.msra.mxu0 0
    %4633 = vmatprep.subr.bf16.mxu0 0
    %4634 = vmatpush1.bf16.msra.mxu0 0
    %4635 = vmatprep.subr.bf16.mxu0 0
    %4636 = vmatpush1.bf16.msra.mxu0 0
    %4637 = vmatprep.subr.bf16.mxu0 0
    %4638 = vmatpush1.bf16.msra.mxu0 0
    %4639 = vmatprep.subr.bf16.mxu0 0
    %4640 = vmatpush1.bf16.msra.mxu0 0
    %4641 = vmatprep.subr.bf16.mxu0 0
    %4642 = vmatpush1.bf16.msra.mxu0 0
    %4643 = vmatprep.subr.bf16.mxu0 0
    %4644 = vmatpush1.bf16.msra.mxu0 0
    %4645 = vmatprep.subr.bf16.mxu0 0
    %4646 = vmatpush1.bf16.msra.mxu0 0
    %4647 = vmatprep.subr.bf16.mxu0 0
    %4648 = vmatpush1.bf16.msra.mxu0 0
    %4649 = vmatprep.subr.bf16.mxu0 0
    %4650 = vmatpush1.bf16.msra.mxu0 0
    %4651 = vmatprep.subr.bf16.mxu0 0
    %4652 = vmatpush1.bf16.msra.mxu0 0
    %4653 = vmatprep.subr.bf16.mxu0 0
    %4654 = vmatpush1.bf16.msra.mxu0 0
    %4655 = vmatprep.subr.bf16.mxu0 0
    %4656 = vmatpush1.bf16.msra.mxu0 0
    %4657 = vmatprep.subr.bf16.mxu0 0
    %4658 = vmatpush1.bf16.msra.mxu0 0
    %4659 = vmatprep.mubr.bf16.mxu0 0
    %4660 = vmatmul.mubr.bf16.gmra.mrb[0].mxu0 %v4622
    %v4661 = vpop.f32.mrb[0].mxu0
    %v4662 = vadd.f32 0.0, %v4661
    %v4663 = vpop.f32.mrb[0].mxu0
    %v4664 = vpop.f32.mrb[0].mxu0
    %v4665 = vadd.f32 0.0, %v4664
    %v4666 = vpop.f32.mrb[0].mxu0
    %4667 = vmatprep.mubr.bf16.mxu0 0
    %4668 = vmatmul.mubr.bf16.gmra.mrb[0].mxu0 %v4625
    %v4669 = vpop.f32.mrb[0].mxu0
    %v4670 = vadd.f32 0.0, %v4669
    %v4671 = vpop.f32.mrb[0].mxu0
    %v4672 = vpop.f32.mrb[0].mxu0
    %v4673 = vadd.f32 0.0, %v4672
    %v4674 = vpop.f32.mrb[0].mxu0
    %4675 = vdwg.mxu0
    %4676 = vrot.lane.b32.xlu0 %v380, 64
    %v4677 = vpop.permute.xlu0 %4676
    %4678 = vrot.lane.b32.xlu0 %v382, 64
    %v4679 = vpop.permute.xlu0 %4678
    %v4683 = vsel %vm137, %v4140, 0
    %v4686 = vsel %vm137, %v4141, 0
    %4688 = vmatprep.subr.bf16.mxu0 0
    %4689 = vmatpush1.bf16.msra.mxu0 %v4677
    %4690 = vmatprep.subr.bf16.mxu0 0
    %4691 = vmatpush1.bf16.msra.mxu0 %v4679
    %4692 = vmatprep.subr.bf16.mxu0 0
    %4693 = vmatpush1.bf16.msra.mxu0 0
    %4694 = vmatprep.subr.bf16.mxu0 0
    %4695 = vmatpush1.bf16.msra.mxu0 0
    %4696 = vmatprep.subr.bf16.mxu0 0
    %4697 = vmatpush1.bf16.msra.mxu0 0
    %4698 = vmatprep.subr.bf16.mxu0 0
    %4699 = vmatpush1.bf16.msra.mxu0 0
    %4700 = vmatprep.subr.bf16.mxu0 0
    %4701 = vmatpush1.bf16.msra.mxu0 0
    %4702 = vmatprep.subr.bf16.mxu0 0
    %4703 = vmatpush1.bf16.msra.mxu0 0
    %4704 = vmatprep.subr.bf16.mxu0 0
    %4705 = vmatpush1.bf16.msra.mxu0 0
    %4706 = vmatprep.subr.bf16.mxu0 0
    %4707 = vmatpush1.bf16.msra.mxu0 0
    %4708 = vmatprep.subr.bf16.mxu0 0
    %4709 = vmatpush1.bf16.msra.mxu0 0
    %4710 = vmatprep.subr.bf16.mxu0 0
    %4711 = vmatpush1.bf16.msra.mxu0 0
    %4712 = vmatprep.subr.bf16.mxu0 0
    %4713 = vmatpush1.bf16.msra.mxu0 0
    %4714 = vmatprep.subr.bf16.mxu0 0
    %4715 = vmatpush1.bf16.msra.mxu0 0
    %4716 = vmatprep.subr.bf16.mxu0 0
    %4717 = vmatpush1.bf16.msra.mxu0 0
    %4718 = vmatprep.subr.bf16.mxu0 0
    %4719 = vmatpush1.bf16.msra.mxu0 0
    %4720 = vmatprep.mubr.bf16.mxu0 0
    %4721 = vmatmul.mubr.bf16.gmra.mrb[0].mxu0 %v4683
    %v4722 = vpop.f32.mrb[0].mxu0
    %v4723 = vadd.f32 0.0, %v4722
    %v4724 = vpop.f32.mrb[0].mxu0
    %v4725 = vpop.f32.mrb[0].mxu0
    %v4726 = vadd.f32 0.0, %v4725
    %v4727 = vpop.f32.mrb[0].mxu0
    %4728 = vmatprep.mubr.bf16.mxu0 0
    %4729 = vmatmul.mubr.bf16.gmra.mrb[0].mxu0 %v4686
    %v4730 = vpop.f32.mrb[0].mxu0
    %v4731 = vadd.f32 0.0, %v4730
    %v4732 = vpop.f32.mrb[0].mxu0
    %v4733 = vpop.f32.mrb[0].mxu0
    %v4734 = vadd.f32 0.0, %v4733
    %v4735 = vpop.f32.mrb[0].mxu0
    %4736 = vdwg.mxu0
    %4737 = vrot.lane.b32.xlu0 %v384, 64
    %v4738 = vpop.permute.xlu0 %4737
    %4739 = vrot.lane.b32.xlu0 %v386, 64
    %v4740 = vpop.permute.xlu0 %4739
    %v4744 = vsel %vm137, %v4142, 0
    %v4747 = vsel %vm137, %v4143, 0
    %4749 = vmatprep.subr.bf16.mxu0 0
    %4750 = vmatpush1.bf16.msra.mxu0 %v4738
    %4751 = vmatprep.subr.bf16.mxu0 0
    %4752 = vmatpush1.bf16.msra.mxu0 %v4740
    %4753 = vmatprep.subr.bf16.mxu0 0
    %4754 = vmatpush1.bf16.msra.mxu0 0
    %4755 = vmatprep.subr.bf16.mxu0 0
    %4756 = vmatpush1.bf16.msra.mxu0 0
    %4757 = vmatprep.subr.bf16.mxu0 0
    %4758 = vmatpush1.bf16.msra.mxu0 0
    %4759 = vmatprep.subr.bf16.mxu0 0
    %4760 = vmatpush1.bf16.msra.mxu0 0
    %4761 = vmatprep.subr.bf16.mxu0 0
    %4762 = vmatpush1.bf16.msra.mxu0 0
    %4763 = vmatprep.subr.bf16.mxu0 0
    %4764 = vmatpush1.bf16.msra.mxu0 0
    %4765 = vmatprep.subr.bf16.mxu0 0
    %4766 = vmatpush1.bf16.msra.mxu0 0
    %4767 = vmatprep.subr.bf16.mxu0 0
    %4768 = vmatpush1.bf16.msra.mxu0 0
    %4769 = vmatprep.subr.bf16.mxu0 0
    %4770 = vmatpush1.bf16.msra.mxu0 0
    %4771 = vmatprep.subr.bf16.mxu0 0
    %4772 = vmatpush1.bf16.msra.mxu0 0
    %4773 = vmatprep.subr.bf16.mxu0 0
    %4774 = vmatpush1.bf16.msra.mxu0 0
    %4775 = vmatprep.subr.bf16.mxu0 0
    %4776 = vmatpush1.bf16.msra.mxu0 0
    %4777 = vmatprep.subr.bf16.mxu0 0
    %4778 = vmatpush1.bf16.msra.mxu0 0
    %4779 = vmatprep.subr.bf16.mxu0 0
    %4780 = vmatpush1.bf16.msra.mxu0 0
    %4781 = vmatprep.mubr.bf16.mxu0 0
    %4782 = vmatmul.mubr.bf16.gmra.mrb[0].mxu0 %v4744
    %v4783 = vpop.f32.mrb[0].mxu0
    %v4784 = vadd.f32 0.0, %v4783
    %v4785 = vpop.f32.mrb[0].mxu0
    %v4786 = vpop.f32.mrb[0].mxu0
    %v4787 = vadd.f32 0.0, %v4786
    %v4788 = vpop.f32.mrb[0].mxu0
    %4789 = vmatprep.mubr.bf16.mxu0 0
    %4790 = vmatmul.mubr.bf16.gmra.mrb[0].mxu0 %v4747
    %v4791 = vpop.f32.mrb[0].mxu0
    %v4792 = vadd.f32 0.0, %v4791
    %v4793 = vpop.f32.mrb[0].mxu0
    %v4794 = vpop.f32.mrb[0].mxu0
    %v4795 = vadd.f32 0.0, %v4794
    %v4796 = vpop.f32.mrb[0].mxu0
    %4797 = vdwg.mxu0
    %4798 = vrot.lane.b32.xlu0 %v388, 64
    %v4799 = vpop.permute.xlu0 %4798
    %4800 = vrot.lane.b32.xlu0 %v390, 64
    %v4801 = vpop.permute.xlu0 %4800
    %v4805 = vsel %vm137, %v4144, 0
    %v4808 = vsel %vm137, %v4145, 0
    %4810 = vmatprep.subr.bf16.mxu0 0
    %4811 = vmatpush1.bf16.msra.mxu0 %v4799
    %4812 = vmatprep.subr.bf16.mxu0 0
    %4813 = vmatpush1.bf16.msra.mxu0 %v4801
    %4814 = vmatprep.subr.bf16.mxu0 0
    %4815 = vmatpush1.bf16.msra.mxu0 0
    %4816 = vmatprep.subr.bf16.mxu0 0
    %4817 = vmatpush1.bf16.msra.mxu0 0
    %4818 = vmatprep.subr.bf16.mxu0 0
    %4819 = vmatpush1.bf16.msra.mxu0 0
    %4820 = vmatprep.subr.bf16.mxu0 0
    %4821 = vmatpush1.bf16.msra.mxu0 0
    %4822 = vmatprep.subr.bf16.mxu0 0
    %4823 = vmatpush1.bf16.msra.mxu0 0
    %4824 = vmatprep.subr.bf16.mxu0 0
    %4825 = vmatpush1.bf16.msra.mxu0 0
    %4826 = vmatprep.subr.bf16.mxu0 0
    %4827 = vmatpush1.bf16.msra.mxu0 0
    %4828 = vmatprep.subr.bf16.mxu0 0
    %4829 = vmatpush1.bf16.msra.mxu0 0
    %4830 = vmatprep.subr.bf16.mxu0 0
    %4831 = vmatpush1.bf16.msra.mxu0 0
    %4832 = vmatprep.subr.bf16.mxu0 0
    %4833 = vmatpush1.bf16.msra.mxu0 0
    %4834 = vmatprep.subr.bf16.mxu0 0
    %4835 = vmatpush1.bf16.msra.mxu0 0
    %4836 = vmatprep.subr.bf16.mxu0 0
    %4837 = vmatpush1.bf16.msra.mxu0 0
    %4838 = vmatprep.subr.bf16.mxu0 0
    %4839 = vmatpush1.bf16.msra.mxu0 0
    %4840 = vmatprep.subr.bf16.mxu0 0
    %4841 = vmatpush1.bf16.msra.mxu0 0
    %4842 = vmatprep.mubr.bf16.mxu0 0
    %4843 = vmatmul.mubr.bf16.gmra.mrb[0].mxu0 %v4805
    %v4844 = vpop.f32.mrb[0].mxu0
    %v4845 = vadd.f32 0.0, %v4844
    %v4846 = vpop.f32.mrb[0].mxu0
    %v4847 = vpop.f32.mrb[0].mxu0
    %v4848 = vadd.f32 0.0, %v4847
    %v4849 = vpop.f32.mrb[0].mxu0
    %4850 = vmatprep.mubr.bf16.mxu0 0
    %4851 = vmatmul.mubr.bf16.gmra.mrb[0].mxu0 %v4808
    %v4852 = vpop.f32.mrb[0].mxu0
    %v4853 = vadd.f32 0.0, %v4852
    %v4854 = vpop.f32.mrb[0].mxu0
    %v4855 = vpop.f32.mrb[0].mxu0
    %v4856 = vadd.f32 0.0, %v4855
    %v4857 = vpop.f32.mrb[0].mxu0
    %4858 = vdwg.mxu0
    %4859 = vrot.lane.b32.xlu0 %v392, 64
    %v4860 = vpop.permute.xlu0 %4859
    %4861 = vrot.lane.b32.xlu0 %v394, 64
    %v4862 = vpop.permute.xlu0 %4861
    %v4866 = vsel %vm137, %v4146, 0
    %v4869 = vsel %vm137, %v4147, 0
    %4871 = vmatprep.subr.bf16.mxu0 0
    %4872 = vmatpush1.bf16.msra.mxu0 %v4860
    %4873 = vmatprep.subr.bf16.mxu0 0
    %4874 = vmatpush1.bf16.msra.mxu0 %v4862
    %4875 = vmatprep.subr.bf16.mxu0 0
    %4876 = vmatpush1.bf16.msra.mxu0 0
    %4877 = vmatprep.subr.bf16.mxu0 0
    %4878 = vmatpush1.bf16.msra.mxu0 0
    %4879 = vmatprep.subr.bf16.mxu0 0
    %4880 = vmatpush1.bf16.msra.mxu0 0
    %4881 = vmatprep.subr.bf16.mxu0 0
    %4882 = vmatpush1.bf16.msra.mxu0 0
    %4883 = vmatprep.subr.bf16.mxu0 0
    %4884 = vmatpush1.bf16.msra.mxu0 0
    %4885 = vmatprep.subr.bf16.mxu0 0
    %4886 = vmatpush1.bf16.msra.mxu0 0
    %4887 = vmatprep.subr.bf16.mxu0 0
    %4888 = vmatpush1.bf16.msra.mxu0 0
    %4889 = vmatprep.subr.bf16.mxu0 0
    %4890 = vmatpush1.bf16.msra.mxu0 0
    %4891 = vmatprep.subr.bf16.mxu0 0
    %4892 = vmatpush1.bf16.msra.mxu0 0
    %4893 = vmatprep.subr.bf16.mxu0 0
    %4894 = vmatpush1.bf16.msra.mxu0 0
    %4895 = vmatprep.subr.bf16.mxu0 0
    %4896 = vmatpush1.bf16.msra.mxu0 0
    %4897 = vmatprep.subr.bf16.mxu0 0
    %4898 = vmatpush1.bf16.msra.mxu0 0
    %4899 = vmatprep.subr.bf16.mxu0 0
    %4900 = vmatpush1.bf16.msra.mxu0 0
    %4901 = vmatprep.subr.bf16.mxu0 0
    %4902 = vmatpush1.bf16.msra.mxu0 0
    %4903 = vmatprep.mubr.bf16.mxu0 0
    %4904 = vmatmul.mubr.bf16.gmra.mrb[0].mxu0 %v4866
    %v4905 = vpop.f32.mrb[0].mxu0
    %v4906 = vadd.f32 0.0, %v4905
    %v4907 = vpop.f32.mrb[0].mxu0
    %v4908 = vpop.f32.mrb[0].mxu0
    %v4909 = vadd.f32 0.0, %v4908
    %v4910 = vpop.f32.mrb[0].mxu0
    %4911 = vmatprep.mubr.bf16.mxu0 0
    %4912 = vmatmul.mubr.bf16.gmra.mrb[0].mxu0 %v4869
    %v4913 = vpop.f32.mrb[0].mxu0
    %v4914 = vadd.f32 0.0, %v4913
    %v4915 = vpop.f32.mrb[0].mxu0
    %v4916 = vpop.f32.mrb[0].mxu0
    %v4917 = vadd.f32 0.0, %v4916
    %v4918 = vpop.f32.mrb[0].mxu0
    %4919 = vdwg.mxu0
    %4920 = vrot.lane.b32.xlu0 %v396, 64
    %v4921 = vpop.permute.xlu0 %4920
    %4922 = vrot.lane.b32.xlu0 %v398, 64
    %v4923 = vpop.permute.xlu0 %4922
    %v4927 = vsel %vm137, %v4148, 0
    %v4930 = vsel %vm137, %v4149, 0
    %4932 = vmatprep.subr.bf16.mxu0 0
    %4933 = vmatpush1.bf16.msra.mxu0 %v4921
    %4934 = vmatprep.subr.bf16.mxu0 0
    %4935 = vmatpush1.bf16.msra.mxu0 %v4923
    %4936 = vmatprep.subr.bf16.mxu0 0
    %4937 = vmatpush1.bf16.msra.mxu0 0
    %4938 = vmatprep.subr.bf16.mxu0 0
    %4939 = vmatpush1.bf16.msra.mxu0 0
    %4940 = vmatprep.subr.bf16.mxu0 0
    %4941 = vmatpush1.bf16.msra.mxu0 0
    %4942 = vmatprep.subr.bf16.mxu0 0
    %4943 = vmatpush1.bf16.msra.mxu0 0
    %4944 = vmatprep.subr.bf16.mxu0 0
    %4945 = vmatpush1.bf16.msra.mxu0 0
    %4946 = vmatprep.subr.bf16.mxu0 0
    %4947 = vmatpush1.bf16.msra.mxu0 0
    %4948 = vmatprep.subr.bf16.mxu0 0
    %4949 = vmatpush1.bf16.msra.mxu0 0
    %4950 = vmatprep.subr.bf16.mxu0 0
    %4951 = vmatpush1.bf16.msra.mxu0 0
    %4952 = vmatprep.subr.bf16.mxu0 0
    %4953 = vmatpush1.bf16.msra.mxu0 0
    %4954 = vmatprep.subr.bf16.mxu0 0
    %4955 = vmatpush1.bf16.msra.mxu0 0
    %4956 = vmatprep.subr.bf16.mxu0 0
    %4957 = vmatpush1.bf16.msra.mxu0 0
    %4958 = vmatprep.subr.bf16.mxu0 0
    %4959 = vmatpush1.bf16.msra.mxu0 0
    %4960 = vmatprep.subr.bf16.mxu0 0
    %4961 = vmatpush1.bf16.msra.mxu0 0
    %4962 = vmatprep.subr.bf16.mxu0 0
    %4963 = vmatpush1.bf16.msra.mxu0 0
    %4964 = vmatprep.mubr.bf16.mxu0 0
    %4965 = vmatmul.mubr.bf16.gmra.mrb[0].mxu0 %v4927
    %v4966 = vpop.f32.mrb[0].mxu0
    %v4967 = vadd.f32 0.0, %v4966
    %v4968 = vpop.f32.mrb[0].mxu0
    %v4969 = vpop.f32.mrb[0].mxu0
    %v4970 = vadd.f32 0.0, %v4969
    %v4971 = vpop.f32.mrb[0].mxu0
    %4972 = vmatprep.mubr.bf16.mxu0 0
    %4973 = vmatmul.mubr.bf16.gmra.mrb[0].mxu0 %v4930
    %v4974 = vpop.f32.mrb[0].mxu0
    %v4975 = vadd.f32 0.0, %v4974
    %v4976 = vpop.f32.mrb[0].mxu0
    %v4977 = vpop.f32.mrb[0].mxu0
    %v4978 = vadd.f32 0.0, %v4977
    %v4979 = vpop.f32.mrb[0].mxu0
    %4980 = vdwg.mxu0
    %4981 = vrot.lane.b32.xlu0 %v400, 64
    %v4982 = vpop.permute.xlu0 %4981
    %4983 = vrot.lane.b32.xlu0 %v402, 64
    %v4984 = vpop.permute.xlu0 %4983
    %v4988 = vsel %vm137, %v4150, 0
    %v4991 = vsel %vm137, %v4151, 0
    %4993 = vmatprep.subr.bf16.mxu0 0
    %4994 = vmatpush1.bf16.msra.mxu0 %v4982
    %4995 = vmatprep.subr.bf16.mxu0 0
    %4996 = vmatpush1.bf16.msra.mxu0 %v4984
    %4997 = vmatprep.subr.bf16.mxu0 0
    %4998 = vmatpush1.bf16.msra.mxu0 0
    %4999 = vmatprep.subr.bf16.mxu0 0
    %5000 = vmatpush1.bf16.msra.mxu0 0
    %5001 = vmatprep.subr.bf16.mxu0 0
    %5002 = vmatpush1.bf16.msra.mxu0 0
    %5003 = vmatprep.subr.bf16.mxu0 0
    %5004 = vmatpush1.bf16.msra.mxu0 0
    %5005 = vmatprep.subr.bf16.mxu0 0
    %5006 = vmatpush1.bf16.msra.mxu0 0
    %5007 = vmatprep.subr.bf16.mxu0 0
    %5008 = vmatpush1.bf16.msra.mxu0 0
    %5009 = vmatprep.subr.bf16.mxu0 0
    %5010 = vmatpush1.bf16.msra.mxu0 0
    %5011 = vmatprep.subr.bf16.mxu0 0
    %5012 = vmatpush1.bf16.msra.mxu0 0
    %5013 = vmatprep.subr.bf16.mxu0 0
    %5014 = vmatpush1.bf16.msra.mxu0 0
    %5015 = vmatprep.subr.bf16.mxu0 0
    %5016 = vmatpush1.bf16.msra.mxu0 0
    %5017 = vmatprep.subr.bf16.mxu0 0
    %5018 = vmatpush1.bf16.msra.mxu0 0
    %5019 = vmatprep.subr.bf16.mxu0 0
    %5020 = vmatpush1.bf16.msra.mxu0 0
    %5021 = vmatprep.subr.bf16.mxu0 0
    %5022 = vmatpush1.bf16.msra.mxu0 0
    %5023 = vmatprep.subr.bf16.mxu0 0
    %5024 = vmatpush1.bf16.msra.mxu0 0
    %5025 = vmatprep.mubr.bf16.mxu0 0
    %5026 = vmatmul.mubr.bf16.gmra.mrb[0].mxu0 %v4988
    %v5027 = vpop.f32.mrb[0].mxu0
    %v5028 = vadd.f32 0.0, %v5027
    %v5029 = vpop.f32.mrb[0].mxu0
    %v5030 = vpop.f32.mrb[0].mxu0
    %v5031 = vadd.f32 0.0, %v5030
    %v5032 = vpop.f32.mrb[0].mxu0
    %5033 = vmatprep.mubr.bf16.mxu0 0
    %5034 = vmatmul.mubr.bf16.gmra.mrb[0].mxu0 %v4991
    %v5035 = vpop.f32.mrb[0].mxu0
    %v5036 = vadd.f32 0.0, %v5035
    %v5037 = vpop.f32.mrb[0].mxu0
    %v5038 = vpop.f32.mrb[0].mxu0
    %v5039 = vadd.f32 0.0, %v5038
    %v5040 = vpop.f32.mrb[0].mxu0
    %5041 = vdwg.mxu0
    %5042 = vrot.lane.b32.xlu0 %v404, 64
    %v5043 = vpop.permute.xlu0 %5042
    %5044 = vrot.lane.b32.xlu0 %v406, 64
    %v5045 = vpop.permute.xlu0 %5044
    %v5049 = vsel %vm137, %v4152, 0
    %v5052 = vsel %vm137, %v4153, 0
    %5054 = vmatprep.subr.bf16.mxu0 0
    %5055 = vmatpush1.bf16.msra.mxu0 %v5043
    %5056 = vmatprep.subr.bf16.mxu0 0
    %5057 = vmatpush1.bf16.msra.mxu0 %v5045
    %5058 = vmatprep.subr.bf16.mxu0 0
    %5059 = vmatpush1.bf16.msra.mxu0 0
    %5060 = vmatprep.subr.bf16.mxu0 0
    %5061 = vmatpush1.bf16.msra.mxu0 0
    %5062 = vmatprep.subr.bf16.mxu0 0
    %5063 = vmatpush1.bf16.msra.mxu0 0
    %5064 = vmatprep.subr.bf16.mxu0 0
    %5065 = vmatpush1.bf16.msra.mxu0 0
    %5066 = vmatprep.subr.bf16.mxu0 0
    %5067 = vmatpush1.bf16.msra.mxu0 0
    %5068 = vmatprep.subr.bf16.mxu0 0
    %5069 = vmatpush1.bf16.msra.mxu0 0
    %5070 = vmatprep.subr.bf16.mxu0 0
    %5071 = vmatpush1.bf16.msra.mxu0 0
    %5072 = vmatprep.subr.bf16.mxu0 0
    %5073 = vmatpush1.bf16.msra.mxu0 0
    %5074 = vmatprep.subr.bf16.mxu0 0
    %5075 = vmatpush1.bf16.msra.mxu0 0
    %5076 = vmatprep.subr.bf16.mxu0 0
    %5077 = vmatpush1.bf16.msra.mxu0 0
    %5078 = vmatprep.subr.bf16.mxu0 0
    %5079 = vmatpush1.bf16.msra.mxu0 0
    %5080 = vmatprep.subr.bf16.mxu0 0
    %5081 = vmatpush1.bf16.msra.mxu0 0
    %5082 = vmatprep.subr.bf16.mxu0 0
    %5083 = vmatpush1.bf16.msra.mxu0 0
    %5084 = vmatprep.subr.bf16.mxu0 0
    %5085 = vmatpush1.bf16.msra.mxu0 0
    %5086 = vmatprep.mubr.bf16.mxu0 0
    %5087 = vmatmul.mubr.bf16.gmra.mrb[0].mxu0 %v5049
    %v5088 = vpop.f32.mrb[0].mxu0
    %v5089 = vadd.f32 0.0, %v5088
    %v5090 = vpop.f32.mrb[0].mxu0
    %v5091 = vpop.f32.mrb[0].mxu0
    %v5092 = vadd.f32 0.0, %v5091
    %v5093 = vpop.f32.mrb[0].mxu0
    %5094 = vmatprep.mubr.bf16.mxu0 0
    %5095 = vmatmul.mubr.bf16.gmra.mrb[0].mxu0 %v5052
    %v5096 = vpop.f32.mrb[0].mxu0
    %v5097 = vadd.f32 0.0, %v5096
    %v5098 = vpop.f32.mrb[0].mxu0
    %v5099 = vpop.f32.mrb[0].mxu0
    %v5100 = vadd.f32 0.0, %v5099
    %v5101 = vpop.f32.mrb[0].mxu0
    %5102 = vdwg.mxu0
    %5103 = vrot.lane.b32.xlu0 %v408, 64
    %v5104 = vpop.permute.xlu0 %5103
    %5105 = vrot.lane.b32.xlu0 %v410, 64
    %v5106 = vpop.permute.xlu0 %5105
    %v5110 = vsel %vm137, %v4154, 0
    %v5113 = vsel %vm137, %v4155, 0
    %5115 = vmatprep.subr.bf16.mxu0 0
    %5116 = vmatpush1.bf16.msra.mxu0 %v5104
    %5117 = vmatprep.subr.bf16.mxu0 0
    %5118 = vmatpush1.bf16.msra.mxu0 %v5106
    %5119 = vmatprep.subr.bf16.mxu0 0
    %5120 = vmatpush1.bf16.msra.mxu0 0
    %5121 = vmatprep.subr.bf16.mxu0 0
    %5122 = vmatpush1.bf16.msra.mxu0 0
    %5123 = vmatprep.subr.bf16.mxu0 0
    %5124 = vmatpush1.bf16.msra.mxu0 0
    %5125 = vmatprep.subr.bf16.mxu0 0
    %5126 = vmatpush1.bf16.msra.mxu0 0
    %5127 = vmatprep.subr.bf16.mxu0 0
    %5128 = vmatpush1.bf16.msra.mxu0 0
    %5129 = vmatprep.subr.bf16.mxu0 0
    %5130 = vmatpush1.bf16.msra.mxu0 0
    %5131 = vmatprep.subr.bf16.mxu0 0
    %5132 = vmatpush1.bf16.msra.mxu0 0
    %5133 = vmatprep.subr.bf16.mxu0 0
    %5134 = vmatpush1.bf16.msra.mxu0 0
    %5135 = vmatprep.subr.bf16.mxu0 0
    %5136 = vmatpush1.bf16.msra.mxu0 0
    %5137 = vmatprep.subr.bf16.mxu0 0
    %5138 = vmatpush1.bf16.msra.mxu0 0
    %5139 = vmatprep.subr.bf16.mxu0 0
    %5140 = vmatpush1.bf16.msra.mxu0 0
    %5141 = vmatprep.subr.bf16.mxu0 0
    %5142 = vmatpush1.bf16.msra.mxu0 0
    %5143 = vmatprep.subr.bf16.mxu0 0
    %5144 = vmatpush1.bf16.msra.mxu0 0
    %5145 = vmatprep.subr.bf16.mxu0 0
    %5146 = vmatpush1.bf16.msra.mxu0 0
    %5147 = vmatprep.mubr.bf16.mxu0 0
    %5148 = vmatmul.mubr.bf16.gmra.mrb[0].mxu0 %v5110
    %v5149 = vpop.f32.mrb[0].mxu0
    %v5150 = vadd.f32 0.0, %v5149
    %v5151 = vpop.f32.mrb[0].mxu0
    %v5152 = vpop.f32.mrb[0].mxu0
    %v5153 = vadd.f32 0.0, %v5152
    %v5154 = vpop.f32.mrb[0].mxu0
    %5155 = vmatprep.mubr.bf16.mxu0 0
    %5156 = vmatmul.mubr.bf16.gmra.mrb[0].mxu0 %v5113
    %v5157 = vpop.f32.mrb[0].mxu0
    %v5158 = vadd.f32 0.0, %v5157
    %v5159 = vpop.f32.mrb[0].mxu0
    %v5160 = vpop.f32.mrb[0].mxu0
    %v5161 = vadd.f32 0.0, %v5160
    %v5162 = vpop.f32.mrb[0].mxu0
    %5163 = vdwg.mxu0
    %5164 = vrot.lane.b32.xlu0 %v412, 64
    %v5165 = vpop.permute.xlu0 %5164
    %5166 = vrot.lane.b32.xlu0 %v414, 64
    %v5167 = vpop.permute.xlu0 %5166
    %v5171 = vsel %vm137, %v4156, 0
    %v5174 = vsel %vm137, %v4157, 0
    %5176 = vmatprep.subr.bf16.mxu0 0
    %5177 = vmatpush1.bf16.msra.mxu0 %v5165
    %5178 = vmatprep.subr.bf16.mxu0 0
    %5179 = vmatpush1.bf16.msra.mxu0 %v5167
    %5180 = vmatprep.subr.bf16.mxu0 0
    %5181 = vmatpush1.bf16.msra.mxu0 0
    %5182 = vmatprep.subr.bf16.mxu0 0
    %5183 = vmatpush1.bf16.msra.mxu0 0
    %5184 = vmatprep.subr.bf16.mxu0 0
    %5185 = vmatpush1.bf16.msra.mxu0 0
    %5186 = vmatprep.subr.bf16.mxu0 0
    %5187 = vmatpush1.bf16.msra.mxu0 0
    %5188 = vmatprep.subr.bf16.mxu0 0
    %5189 = vmatpush1.bf16.msra.mxu0 0
    %5190 = vmatprep.subr.bf16.mxu0 0
    %5191 = vmatpush1.bf16.msra.mxu0 0
    %5192 = vmatprep.subr.bf16.mxu0 0
    %5193 = vmatpush1.bf16.msra.mxu0 0
    %5194 = vmatprep.subr.bf16.mxu0 0
    %5195 = vmatpush1.bf16.msra.mxu0 0
    %5196 = vmatprep.subr.bf16.mxu0 0
    %5197 = vmatpush1.bf16.msra.mxu0 0
    %5198 = vmatprep.subr.bf16.mxu0 0
    %5199 = vmatpush1.bf16.msra.mxu0 0
    %5200 = vmatprep.subr.bf16.mxu0 0
    %5201 = vmatpush1.bf16.msra.mxu0 0
    %5202 = vmatprep.subr.bf16.mxu0 0
    %5203 = vmatpush1.bf16.msra.mxu0 0
    %5204 = vmatprep.subr.bf16.mxu0 0
    %5205 = vmatpush1.bf16.msra.mxu0 0
    %5206 = vmatprep.subr.bf16.mxu0 0
    %5207 = vmatpush1.bf16.msra.mxu0 0
    %5208 = vmatprep.mubr.bf16.mxu0 0
    %5209 = vmatmul.mubr.bf16.gmra.mrb[0].mxu0 %v5171
    %v5210 = vpop.f32.mrb[0].mxu0
    %v5211 = vadd.f32 0.0, %v5210
    %v5212 = vpop.f32.mrb[0].mxu0
    %v5213 = vpop.f32.mrb[0].mxu0
    %v5214 = vadd.f32 0.0, %v5213
    %v5215 = vpop.f32.mrb[0].mxu0
    %5216 = vmatprep.mubr.bf16.mxu0 0
    %5217 = vmatmul.mubr.bf16.gmra.mrb[0].mxu0 %v5174
    %v5218 = vpop.f32.mrb[0].mxu0
    %v5219 = vadd.f32 0.0, %v5218
    %v5220 = vpop.f32.mrb[0].mxu0
    %v5221 = vpop.f32.mrb[0].mxu0
    %v5222 = vadd.f32 0.0, %v5221
    %v5223 = vpop.f32.mrb[0].mxu0
    %5224 = vdwg.mxu0
    %5225 = vrot.lane.b32.xlu0 %v416, 64
    %v5226 = vpop.permute.xlu0 %5225
    %5227 = vrot.lane.b32.xlu0 %v418, 64
    %v5228 = vpop.permute.xlu0 %5227
    %v5232 = vsel %vm137, %v4158, 0
    %v5235 = vsel %vm137, %v4159, 0
    %5237 = vmatprep.subr.bf16.mxu0 0
    %5238 = vmatpush1.bf16.msra.mxu0 %v5226
    %5239 = vmatprep.subr.bf16.mxu0 0
    %5240 = vmatpush1.bf16.msra.mxu0 %v5228
    %5241 = vmatprep.subr.bf16.mxu0 0
    %5242 = vmatpush1.bf16.msra.mxu0 0
    %5243 = vmatprep.subr.bf16.mxu0 0
    %5244 = vmatpush1.bf16.msra.mxu0 0
    %5245 = vmatprep.subr.bf16.mxu0 0
    %5246 = vmatpush1.bf16.msra.mxu0 0
    %5247 = vmatprep.subr.bf16.mxu0 0
    %5248 = vmatpush1.bf16.msra.mxu0 0
    %5249 = vmatprep.subr.bf16.mxu0 0
    %5250 = vmatpush1.bf16.msra.mxu0 0
    %5251 = vmatprep.subr.bf16.mxu0 0
    %5252 = vmatpush1.bf16.msra.mxu0 0
    %5253 = vmatprep.subr.bf16.mxu0 0
    %5254 = vmatpush1.bf16.msra.mxu0 0
    %5255 = vmatprep.subr.bf16.mxu0 0
    %5256 = vmatpush1.bf16.msra.mxu0 0
    %5257 = vmatprep.subr.bf16.mxu0 0
    %5258 = vmatpush1.bf16.msra.mxu0 0
    %5259 = vmatprep.subr.bf16.mxu0 0
    %5260 = vmatpush1.bf16.msra.mxu0 0
    %5261 = vmatprep.subr.bf16.mxu0 0
    %5262 = vmatpush1.bf16.msra.mxu0 0
    %5263 = vmatprep.subr.bf16.mxu0 0
    %5264 = vmatpush1.bf16.msra.mxu0 0
    %5265 = vmatprep.subr.bf16.mxu0 0
    %5266 = vmatpush1.bf16.msra.mxu0 0
    %5267 = vmatprep.subr.bf16.mxu0 0
    %5268 = vmatpush1.bf16.msra.mxu0 0
    %5269 = vmatprep.mubr.bf16.mxu0 0
    %5270 = vmatmul.mubr.bf16.gmra.mrb[0].mxu0 %v5232
    %v5271 = vpop.f32.mrb[0].mxu0
    %v5272 = vadd.f32 0.0, %v5271
    %v5273 = vpop.f32.mrb[0].mxu0
    %v5274 = vpop.f32.mrb[0].mxu0
    %v5275 = vadd.f32 0.0, %v5274
    %v5276 = vpop.f32.mrb[0].mxu0
    %5277 = vmatprep.mubr.bf16.mxu0 0
    %5278 = vmatmul.mubr.bf16.gmra.mrb[0].mxu0 %v5235
    %v5279 = vpop.f32.mrb[0].mxu0
    %v5280 = vadd.f32 0.0, %v5279
    %v5281 = vpop.f32.mrb[0].mxu0
    %v5282 = vpop.f32.mrb[0].mxu0
    %v5283 = vadd.f32 0.0, %v5282
    %v5284 = vpop.f32.mrb[0].mxu0
    %5285 = vdwg.mxu0
    %5286 = vrot.lane.b32.xlu0 %v420, 64
    %v5287 = vpop.permute.xlu0 %5286
    %5288 = vrot.lane.b32.xlu0 %v422, 64
    %v5289 = vpop.permute.xlu0 %5288
    %v5293 = vsel %vm137, %v4160, 0
    %v5296 = vsel %vm137, %v4161, 0
    %5298 = vmatprep.subr.bf16.mxu0 0
    %5299 = vmatpush1.bf16.msra.mxu0 %v5287
    %5300 = vmatprep.subr.bf16.mxu0 0
    %5301 = vmatpush1.bf16.msra.mxu0 %v5289
    %5302 = vmatprep.subr.bf16.mxu0 0
    %5303 = vmatpush1.bf16.msra.mxu0 0
    %5304 = vmatprep.subr.bf16.mxu0 0
    %5305 = vmatpush1.bf16.msra.mxu0 0
    %5306 = vmatprep.subr.bf16.mxu0 0
    %5307 = vmatpush1.bf16.msra.mxu0 0
    %5308 = vmatprep.subr.bf16.mxu0 0
    %5309 = vmatpush1.bf16.msra.mxu0 0
    %5310 = vmatprep.subr.bf16.mxu0 0
    %5311 = vmatpush1.bf16.msra.mxu0 0
    %5312 = vmatprep.subr.bf16.mxu0 0
    %5313 = vmatpush1.bf16.msra.mxu0 0
    %5314 = vmatprep.subr.bf16.mxu0 0
    %5315 = vmatpush1.bf16.msra.mxu0 0
    %5316 = vmatprep.subr.bf16.mxu0 0
    %5317 = vmatpush1.bf16.msra.mxu0 0
    %5318 = vmatprep.subr.bf16.mxu0 0
    %5319 = vmatpush1.bf16.msra.mxu0 0
    %5320 = vmatprep.subr.bf16.mxu0 0
    %5321 = vmatpush1.bf16.msra.mxu0 0
    %5322 = vmatprep.subr.bf16.mxu0 0
    %5323 = vmatpush1.bf16.msra.mxu0 0
    %5324 = vmatprep.subr.bf16.mxu0 0
    %5325 = vmatpush1.bf16.msra.mxu0 0
    %5326 = vmatprep.subr.bf16.mxu0 0
    %5327 = vmatpush1.bf16.msra.mxu0 0
    %5328 = vmatprep.subr.bf16.mxu0 0
    %5329 = vmatpush1.bf16.msra.mxu0 0
    %5330 = vmatprep.mubr.bf16.mxu0 0
    %5331 = vmatmul.mubr.bf16.gmra.mrb[0].mxu0 %v5293
    %v5332 = vpop.f32.mrb[0].mxu0
    %v5333 = vadd.f32 0.0, %v5332
    %v5334 = vpop.f32.mrb[0].mxu0
    %v5335 = vpop.f32.mrb[0].mxu0
    %v5336 = vadd.f32 0.0, %v5335
    %v5337 = vpop.f32.mrb[0].mxu0
    %5338 = vmatprep.mubr.bf16.mxu0 0
    %5339 = vmatmul.mubr.bf16.gmra.mrb[0].mxu0 %v5296
    %v5340 = vpop.f32.mrb[0].mxu0
    %v5341 = vadd.f32 0.0, %v5340
    %v5342 = vpop.f32.mrb[0].mxu0
    %v5343 = vpop.f32.mrb[0].mxu0
    %v5344 = vadd.f32 0.0, %v5343
    %v5345 = vpop.f32.mrb[0].mxu0
    %5346 = vdwg.mxu0
    %5347 = vrot.lane.b32.xlu0 %v424, 64
    %v5348 = vpop.permute.xlu0 %5347
    %5349 = vrot.lane.b32.xlu0 %v426, 64
    %v5350 = vpop.permute.xlu0 %5349
    %v5354 = vsel %vm137, %v4162, 0
    %v5357 = vsel %vm137, %v4163, 0
    %5359 = vmatprep.subr.bf16.mxu0 0
    %5360 = vmatpush1.bf16.msra.mxu0 %v5348
    %5361 = vmatprep.subr.bf16.mxu0 0
    %5362 = vmatpush1.bf16.msra.mxu0 %v5350
    %5363 = vmatprep.subr.bf16.mxu0 0
    %5364 = vmatpush1.bf16.msra.mxu0 0
    %5365 = vmatprep.subr.bf16.mxu0 0
    %5366 = vmatpush1.bf16.msra.mxu0 0
    %5367 = vmatprep.subr.bf16.mxu0 0
    %5368 = vmatpush1.bf16.msra.mxu0 0
    %5369 = vmatprep.subr.bf16.mxu0 0
    %5370 = vmatpush1.bf16.msra.mxu0 0
    %5371 = vmatprep.subr.bf16.mxu0 0
    %5372 = vmatpush1.bf16.msra.mxu0 0
    %5373 = vmatprep.subr.bf16.mxu0 0
    %5374 = vmatpush1.bf16.msra.mxu0 0
    %5375 = vmatprep.subr.bf16.mxu0 0
    %5376 = vmatpush1.bf16.msra.mxu0 0
    %5377 = vmatprep.subr.bf16.mxu0 0
    %5378 = vmatpush1.bf16.msra.mxu0 0
    %5379 = vmatprep.subr.bf16.mxu0 0
    %5380 = vmatpush1.bf16.msra.mxu0 0
    %5381 = vmatprep.subr.bf16.mxu0 0
    %5382 = vmatpush1.bf16.msra.mxu0 0
    %5383 = vmatprep.subr.bf16.mxu0 0
    %5384 = vmatpush1.bf16.msra.mxu0 0
    %5385 = vmatprep.subr.bf16.mxu0 0
    %5386 = vmatpush1.bf16.msra.mxu0 0
    %5387 = vmatprep.subr.bf16.mxu0 0
    %5388 = vmatpush1.bf16.msra.mxu0 0
    %5389 = vmatprep.subr.bf16.mxu0 0
    %5390 = vmatpush1.bf16.msra.mxu0 0
    %5391 = vmatprep.mubr.bf16.mxu0 0
    %5392 = vmatmul.mubr.bf16.gmra.mrb[0].mxu0 %v5354
    %v5393 = vpop.f32.mrb[0].mxu0
    %v5394 = vadd.f32 0.0, %v5393
    %v5395 = vpop.f32.mrb[0].mxu0
    %v5396 = vpop.f32.mrb[0].mxu0
    %v5397 = vadd.f32 0.0, %v5396
    %v5398 = vpop.f32.mrb[0].mxu0
    %5399 = vmatprep.mubr.bf16.mxu0 0
    %5400 = vmatmul.mubr.bf16.gmra.mrb[0].mxu0 %v5357
    %v5401 = vpop.f32.mrb[0].mxu0
    %v5402 = vadd.f32 0.0, %v5401
    %v5403 = vpop.f32.mrb[0].mxu0
    %v5404 = vpop.f32.mrb[0].mxu0
    %v5405 = vadd.f32 0.0, %v5404
    %v5406 = vpop.f32.mrb[0].mxu0
    %5407 = vdwg.mxu0
    %5408 = vrot.lane.b32.xlu0 %v428, 64
    %v5409 = vpop.permute.xlu0 %5408
    %5410 = vrot.lane.b32.xlu0 %v430, 64
    %v5411 = vpop.permute.xlu0 %5410
    %v5415 = vsel %vm137, %v4164, 0
    %v5418 = vsel %vm137, %v4165, 0
    %5420 = vmatprep.subr.bf16.mxu0 0
    %5421 = vmatpush1.bf16.msra.mxu0 %v5409
    %5422 = vmatprep.subr.bf16.mxu0 0
    %5423 = vmatpush1.bf16.msra.mxu0 %v5411
    %5424 = vmatprep.subr.bf16.mxu0 0
    %5425 = vmatpush1.bf16.msra.mxu0 0
    %5426 = vmatprep.subr.bf16.mxu0 0
    %5427 = vmatpush1.bf16.msra.mxu0 0
    %5428 = vmatprep.subr.bf16.mxu0 0
    %5429 = vmatpush1.bf16.msra.mxu0 0
    %5430 = vmatprep.subr.bf16.mxu0 0
    %5431 = vmatpush1.bf16.msra.mxu0 0
    %5432 = vmatprep.subr.bf16.mxu0 0
    %5433 = vmatpush1.bf16.msra.mxu0 0
    %5434 = vmatprep.subr.bf16.mxu0 0
    %5435 = vmatpush1.bf16.msra.mxu0 0
    %5436 = vmatprep.subr.bf16.mxu0 0
    %5437 = vmatpush1.bf16.msra.mxu0 0
    %5438 = vmatprep.subr.bf16.mxu0 0
    %5439 = vmatpush1.bf16.msra.mxu0 0
    %5440 = vmatprep.subr.bf16.mxu0 0
    %5441 = vmatpush1.bf16.msra.mxu0 0
    %5442 = vmatprep.subr.bf16.mxu0 0
    %5443 = vmatpush1.bf16.msra.mxu0 0
    %5444 = vmatprep.subr.bf16.mxu0 0
    %5445 = vmatpush1.bf16.msra.mxu0 0
    %5446 = vmatprep.subr.bf16.mxu0 0
    %5447 = vmatpush1.bf16.msra.mxu0 0
    %5448 = vmatprep.subr.bf16.mxu0 0
    %5449 = vmatpush1.bf16.msra.mxu0 0
    %5450 = vmatprep.subr.bf16.mxu0 0
    %5451 = vmatpush1.bf16.msra.mxu0 0
    %5452 = vmatprep.mubr.bf16.mxu0 0
    %5453 = vmatmul.mubr.bf16.gmra.mrb[0].mxu0 %v5415
    %v5454 = vpop.f32.mrb[0].mxu0
    %v5455 = vadd.f32 0.0, %v5454
    %v5456 = vpop.f32.mrb[0].mxu0
    %v5457 = vpop.f32.mrb[0].mxu0
    %v5458 = vadd.f32 0.0, %v5457
    %v5459 = vpop.f32.mrb[0].mxu0
    %5460 = vmatprep.mubr.bf16.mxu0 0
    %5461 = vmatmul.mubr.bf16.gmra.mrb[0].mxu0 %v5418
    %v5462 = vpop.f32.mrb[0].mxu0
    %v5463 = vadd.f32 0.0, %v5462
    %v5464 = vpop.f32.mrb[0].mxu0
    %v5465 = vpop.f32.mrb[0].mxu0
    %v5466 = vadd.f32 0.0, %v5465
    %v5467 = vpop.f32.mrb[0].mxu0
    %5468 = vdwg.mxu0
    %5469 = vrot.lane.b32.xlu0 %v432, 64
    %v5470 = vpop.permute.xlu0 %5469
    %5471 = vrot.lane.b32.xlu0 %v434, 64
    %v5472 = vpop.permute.xlu0 %5471
    %v5476 = vsel %vm137, %v4166, 0
    %v5479 = vsel %vm137, %v4167, 0
    %5481 = vmatprep.subr.bf16.mxu0 0
    %5482 = vmatpush1.bf16.msra.mxu0 %v5470
    %5483 = vmatprep.subr.bf16.mxu0 0
    %5484 = vmatpush1.bf16.msra.mxu0 %v5472
    %5485 = vmatprep.subr.bf16.mxu0 0
    %5486 = vmatpush1.bf16.msra.mxu0 0
    %5487 = vmatprep.subr.bf16.mxu0 0
    %5488 = vmatpush1.bf16.msra.mxu0 0
    %5489 = vmatprep.subr.bf16.mxu0 0
    %5490 = vmatpush1.bf16.msra.mxu0 0
    %5491 = vmatprep.subr.bf16.mxu0 0
    %5492 = vmatpush1.bf16.msra.mxu0 0
    %5493 = vmatprep.subr.bf16.mxu0 0
    %5494 = vmatpush1.bf16.msra.mxu0 0
    %5495 = vmatprep.subr.bf16.mxu0 0
    %5496 = vmatpush1.bf16.msra.mxu0 0
    %5497 = vmatprep.subr.bf16.mxu0 0
    %5498 = vmatpush1.bf16.msra.mxu0 0
    %5499 = vmatprep.subr.bf16.mxu0 0
    %5500 = vmatpush1.bf16.msra.mxu0 0
    %5501 = vmatprep.subr.bf16.mxu0 0
    %5502 = vmatpush1.bf16.msra.mxu0 0
    %5503 = vmatprep.subr.bf16.mxu0 0
    %5504 = vmatpush1.bf16.msra.mxu0 0
    %5505 = vmatprep.subr.bf16.mxu0 0
    %5506 = vmatpush1.bf16.msra.mxu0 0
    %5507 = vmatprep.subr.bf16.mxu0 0
    %5508 = vmatpush1.bf16.msra.mxu0 0
    %5509 = vmatprep.subr.bf16.mxu0 0
    %5510 = vmatpush1.bf16.msra.mxu0 0
    %5511 = vmatprep.subr.bf16.mxu0 0
    %5512 = vmatpush1.bf16.msra.mxu0 0
    %5513 = vmatprep.mubr.bf16.mxu0 0
    %5514 = vmatmul.mubr.bf16.gmra.mrb[0].mxu0 %v5476
    %v5515 = vpop.f32.mrb[0].mxu0
    %v5516 = vadd.f32 0.0, %v5515
    %v5517 = vpop.f32.mrb[0].mxu0
    %v5518 = vpop.f32.mrb[0].mxu0
    %v5519 = vadd.f32 0.0, %v5518
    %v5520 = vpop.f32.mrb[0].mxu0
    %5521 = vmatprep.mubr.bf16.mxu0 0
    %5522 = vmatmul.mubr.bf16.gmra.mrb[0].mxu0 %v5479
    %v5523 = vpop.f32.mrb[0].mxu0
    %v5524 = vadd.f32 0.0, %v5523
    %v5525 = vpop.f32.mrb[0].mxu0
    %v5526 = vpop.f32.mrb[0].mxu0
    %v5527 = vadd.f32 0.0, %v5526
    %v5528 = vpop.f32.mrb[0].mxu0
    %5529 = vdwg.mxu0
    %5530 = vrot.lane.b32.xlu0 %v436, 64
    %v5531 = vpop.permute.xlu0 %5530
    %5532 = vrot.lane.b32.xlu0 %v438, 64
    %v5533 = vpop.permute.xlu0 %5532
    %v5537 = vsel %vm137, %v4168, 0
    %v5540 = vsel %vm137, %v4169, 0
    %5542 = vmatprep.subr.bf16.mxu0 0
    %5543 = vmatpush1.bf16.msra.mxu0 %v5531
    %5544 = vmatprep.subr.bf16.mxu0 0
    %5545 = vmatpush1.bf16.msra.mxu0 %v5533
    %5546 = vmatprep.subr.bf16.mxu0 0
    %5547 = vmatpush1.bf16.msra.mxu0 0
    %5548 = vmatprep.subr.bf16.mxu0 0
    %5549 = vmatpush1.bf16.msra.mxu0 0
    %5550 = vmatprep.subr.bf16.mxu0 0
    %5551 = vmatpush1.bf16.msra.mxu0 0
    %5552 = vmatprep.subr.bf16.mxu0 0
    %5553 = vmatpush1.bf16.msra.mxu0 0
    %5554 = vmatprep.subr.bf16.mxu0 0
    %5555 = vmatpush1.bf16.msra.mxu0 0
    %5556 = vmatprep.subr.bf16.mxu0 0
    %5557 = vmatpush1.bf16.msra.mxu0 0
    %5558 = vmatprep.subr.bf16.mxu0 0
    %5559 = vmatpush1.bf16.msra.mxu0 0
    %5560 = vmatprep.subr.bf16.mxu0 0
    %5561 = vmatpush1.bf16.msra.mxu0 0
    %5562 = vmatprep.subr.bf16.mxu0 0
    %5563 = vmatpush1.bf16.msra.mxu0 0
    %5564 = vmatprep.subr.bf16.mxu0 0
    %5565 = vmatpush1.bf16.msra.mxu0 0
    %5566 = vmatprep.subr.bf16.mxu0 0
    %5567 = vmatpush1.bf16.msra.mxu0 0
    %5568 = vmatprep.subr.bf16.mxu0 0
    %5569 = vmatpush1.bf16.msra.mxu0 0
    %5570 = vmatprep.subr.bf16.mxu0 0
    %5571 = vmatpush1.bf16.msra.mxu0 0
    %5572 = vmatprep.subr.bf16.mxu0 0
    %5573 = vmatpush1.bf16.msra.mxu0 0
    %5574 = vmatprep.mubr.bf16.mxu0 0
    %5575 = vmatmul.mubr.bf16.gmra.mrb[0].mxu0 %v5537
    %v5576 = vpop.f32.mrb[0].mxu0
    %v5577 = vadd.f32 0.0, %v5576
    %v5578 = vpop.f32.mrb[0].mxu0
    %v5579 = vpop.f32.mrb[0].mxu0
    %v5580 = vadd.f32 0.0, %v5579
    %v5581 = vpop.f32.mrb[0].mxu0
    %5582 = vmatprep.mubr.bf16.mxu0 0
    %5583 = vmatmul.mubr.bf16.gmra.mrb[0].mxu0 %v5540
    %v5584 = vpop.f32.mrb[0].mxu0
    %v5585 = vadd.f32 0.0, %v5584
    %v5586 = vpop.f32.mrb[0].mxu0
    %v5587 = vpop.f32.mrb[0].mxu0
    %v5588 = vadd.f32 0.0, %v5587
    %v5589 = vpop.f32.mrb[0].mxu0
    %5590 = vdwg.mxu0
    %5591 = vrot.lane.b32.xlu0 %v440, 64
    %v5592 = vpop.permute.xlu0 %5591
    %5593 = vrot.lane.b32.xlu0 %v442, 64
    %v5594 = vpop.permute.xlu0 %5593
    %v5598 = vsel %vm137, %v4170, 0
    %v5601 = vsel %vm137, %v4171, 0
    %5603 = vmatprep.subr.bf16.mxu0 0
    %5604 = vmatpush1.bf16.msra.mxu0 %v5592
    %5605 = vmatprep.subr.bf16.mxu0 0
    %5606 = vmatpush1.bf16.msra.mxu0 %v5594
    %5607 = vmatprep.subr.bf16.mxu0 0
    %5608 = vmatpush1.bf16.msra.mxu0 0
    %5609 = vmatprep.subr.bf16.mxu0 0
    %5610 = vmatpush1.bf16.msra.mxu0 0
    %5611 = vmatprep.subr.bf16.mxu0 0
    %5612 = vmatpush1.bf16.msra.mxu0 0
    %5613 = vmatprep.subr.bf16.mxu0 0
    %5614 = vmatpush1.bf16.msra.mxu0 0
    %5615 = vmatprep.subr.bf16.mxu0 0
    %5616 = vmatpush1.bf16.msra.mxu0 0
    %5617 = vmatprep.subr.bf16.mxu0 0
    %5618 = vmatpush1.bf16.msra.mxu0 0
    %5619 = vmatprep.subr.bf16.mxu0 0
    %5620 = vmatpush1.bf16.msra.mxu0 0
    %5621 = vmatprep.subr.bf16.mxu0 0
    %5622 = vmatpush1.bf16.msra.mxu0 0
    %5623 = vmatprep.subr.bf16.mxu0 0
    %5624 = vmatpush1.bf16.msra.mxu0 0
    %5625 = vmatprep.subr.bf16.mxu0 0
    %5626 = vmatpush1.bf16.msra.mxu0 0
    %5627 = vmatprep.subr.bf16.mxu0 0
    %5628 = vmatpush1.bf16.msra.mxu0 0
    %5629 = vmatprep.subr.bf16.mxu0 0
    %5630 = vmatpush1.bf16.msra.mxu0 0
    %5631 = vmatprep.subr.bf16.mxu0 0
    %5632 = vmatpush1.bf16.msra.mxu0 0
    %5633 = vmatprep.subr.bf16.mxu0 0
    %5634 = vmatpush1.bf16.msra.mxu0 0
    %5635 = vmatprep.mubr.bf16.mxu0 0
    %5636 = vmatmul.mubr.bf16.gmra.mrb[0].mxu0 %v5598
    %v5637 = vpop.f32.mrb[0].mxu0
    %v5638 = vadd.f32 0.0, %v5637
    %v5639 = vpop.f32.mrb[0].mxu0
    %v5640 = vpop.f32.mrb[0].mxu0
    %v5641 = vadd.f32 0.0, %v5640
    %v5642 = vpop.f32.mrb[0].mxu0
    %5643 = vmatprep.mubr.bf16.mxu0 0
    %5644 = vmatmul.mubr.bf16.gmra.mrb[0].mxu0 %v5601
    %v5645 = vpop.f32.mrb[0].mxu0
    %v5646 = vadd.f32 0.0, %v5645
    %v5647 = vpop.f32.mrb[0].mxu0
    %v5648 = vpop.f32.mrb[0].mxu0
    %v5649 = vadd.f32 0.0, %v5648
    %v5650 = vpop.f32.mrb[0].mxu0
    %5651 = vdwg.mxu0
    %5652 = vrot.lane.b32.xlu0 %v444, 64
    %v5653 = vpop.permute.xlu0 %5652
    %5654 = vrot.lane.b32.xlu0 %v446, 64
    %v5655 = vpop.permute.xlu0 %5654
    %v5659 = vsel %vm137, %v4172, 0
    %v5662 = vsel %vm137, %v4173, 0
    %5664 = vmatprep.subr.bf16.mxu0 0
    %5665 = vmatpush1.bf16.msra.mxu0 %v5653
    %5666 = vmatprep.subr.bf16.mxu0 0
    %5667 = vmatpush1.bf16.msra.mxu0 %v5655
    %5668 = vmatprep.subr.bf16.mxu0 0
    %5669 = vmatpush1.bf16.msra.mxu0 0
    %5670 = vmatprep.subr.bf16.mxu0 0
    %5671 = vmatpush1.bf16.msra.mxu0 0
    %5672 = vmatprep.subr.bf16.mxu0 0
    %5673 = vmatpush1.bf16.msra.mxu0 0
    %5674 = vmatprep.subr.bf16.mxu0 0
    %5675 = vmatpush1.bf16.msra.mxu0 0
    %5676 = vmatprep.subr.bf16.mxu0 0
    %5677 = vmatpush1.bf16.msra.mxu0 0
    %5678 = vmatprep.subr.bf16.mxu0 0
    %5679 = vmatpush1.bf16.msra.mxu0 0
    %5680 = vmatprep.subr.bf16.mxu0 0
    %5681 = vmatpush1.bf16.msra.mxu0 0
    %5682 = vmatprep.subr.bf16.mxu0 0
    %5683 = vmatpush1.bf16.msra.mxu0 0
    %5684 = vmatprep.subr.bf16.mxu0 0
    %5685 = vmatpush1.bf16.msra.mxu0 0
    %5686 = vmatprep.subr.bf16.mxu0 0
    %5687 = vmatpush1.bf16.msra.mxu0 0
    %5688 = vmatprep.subr.bf16.mxu0 0
    %5689 = vmatpush1.bf16.msra.mxu0 0
    %5690 = vmatprep.subr.bf16.mxu0 0
    %5691 = vmatpush1.bf16.msra.mxu0 0
    %5692 = vmatprep.subr.bf16.mxu0 0
    %5693 = vmatpush1.bf16.msra.mxu0 0
    %5694 = vmatprep.subr.bf16.mxu0 0
    %5695 = vmatpush1.bf16.msra.mxu0 0
    %5696 = vmatprep.mubr.bf16.mxu0 0
    %5697 = vmatmul.mubr.bf16.gmra.mrb[0].mxu0 %v5659
    %v5698 = vpop.f32.mrb[0].mxu0
    %v5699 = vadd.f32 0.0, %v5698
    %v5700 = vpop.f32.mrb[0].mxu0
    %v5701 = vpop.f32.mrb[0].mxu0
    %v5702 = vadd.f32 0.0, %v5701
    %v5703 = vpop.f32.mrb[0].mxu0
    %5704 = vmatprep.mubr.bf16.mxu0 0
    %5705 = vmatmul.mubr.bf16.gmra.mrb[0].mxu0 %v5662
    %v5706 = vpop.f32.mrb[0].mxu0
    %v5707 = vadd.f32 0.0, %v5706
    %v5708 = vpop.f32.mrb[0].mxu0
    %v5709 = vpop.f32.mrb[0].mxu0
    %v5710 = vadd.f32 0.0, %v5709
    %v5711 = vpop.f32.mrb[0].mxu0
    %5712 = vdwg.mxu0
    %5713 = vrot.lane.b32.xlu0 %v448, 64
    %v5714 = vpop.permute.xlu0 %5713
    %5715 = vrot.lane.b32.xlu0 %v450, 64
    %v5716 = vpop.permute.xlu0 %5715
    %v5720 = vsel %vm137, %v4174, 0
    %v5723 = vsel %vm137, %v4175, 0
    %5725 = vmatprep.subr.bf16.mxu0 0
    %5726 = vmatpush1.bf16.msra.mxu0 %v5714
    %5727 = vmatprep.subr.bf16.mxu0 0
    %5728 = vmatpush1.bf16.msra.mxu0 %v5716
    %5729 = vmatprep.subr.bf16.mxu0 0
    %5730 = vmatpush1.bf16.msra.mxu0 0
    %5731 = vmatprep.subr.bf16.mxu0 0
    %5732 = vmatpush1.bf16.msra.mxu0 0
    %5733 = vmatprep.subr.bf16.mxu0 0
    %5734 = vmatpush1.bf16.msra.mxu0 0
    %5735 = vmatprep.subr.bf16.mxu0 0
    %5736 = vmatpush1.bf16.msra.mxu0 0
    %5737 = vmatprep.subr.bf16.mxu0 0
    %5738 = vmatpush1.bf16.msra.mxu0 0
    %5739 = vmatprep.subr.bf16.mxu0 0
    %5740 = vmatpush1.bf16.msra.mxu0 0
    %5741 = vmatprep.subr.bf16.mxu0 0
    %5742 = vmatpush1.bf16.msra.mxu0 0
    %5743 = vmatprep.subr.bf16.mxu0 0
    %5744 = vmatpush1.bf16.msra.mxu0 0
    %5745 = vmatprep.subr.bf16.mxu0 0
    %5746 = vmatpush1.bf16.msra.mxu0 0
    %5747 = vmatprep.subr.bf16.mxu0 0
    %5748 = vmatpush1.bf16.msra.mxu0 0
    %5749 = vmatprep.subr.bf16.mxu0 0
    %5750 = vmatpush1.bf16.msra.mxu0 0
    %5751 = vmatprep.subr.bf16.mxu0 0
    %5752 = vmatpush1.bf16.msra.mxu0 0
    %5753 = vmatprep.subr.bf16.mxu0 0
    %5754 = vmatpush1.bf16.msra.mxu0 0
    %5755 = vmatprep.subr.bf16.mxu0 0
    %5756 = vmatpush1.bf16.msra.mxu0 0
    %5757 = vmatprep.mubr.bf16.mxu0 0
    %5758 = vmatmul.mubr.bf16.gmra.mrb[0].mxu0 %v5720
    %v5759 = vpop.f32.mrb[0].mxu0
    %v5760 = vadd.f32 0.0, %v5759
    %v5761 = vpop.f32.mrb[0].mxu0
    %v5762 = vpop.f32.mrb[0].mxu0
    %v5763 = vadd.f32 0.0, %v5762
    %v5764 = vpop.f32.mrb[0].mxu0
    %5765 = vmatprep.mubr.bf16.mxu0 0
    %5766 = vmatmul.mubr.bf16.gmra.mrb[0].mxu0 %v5723
    %v5767 = vpop.f32.mrb[0].mxu0
    %v5768 = vadd.f32 0.0, %v5767
    %v5769 = vpop.f32.mrb[0].mxu0
    %v5770 = vpop.f32.mrb[0].mxu0
    %v5771 = vadd.f32 0.0, %v5770
    %v5772 = vpop.f32.mrb[0].mxu0
    %5773 = vdwg.mxu0
    %5774 = vrot.lane.b32.xlu0 %v452, 64
    %v5775 = vpop.permute.xlu0 %5774
    %5776 = vrot.lane.b32.xlu0 %v454, 64
    %v5777 = vpop.permute.xlu0 %5776
    %v5781 = vsel %vm137, %v4176, 0
    %v5784 = vsel %vm137, %v4177, 0
    %5786 = vmatprep.subr.bf16.mxu0 0
    %5787 = vmatpush1.bf16.msra.mxu0 %v5775
    %5788 = vmatprep.subr.bf16.mxu0 0
    %5789 = vmatpush1.bf16.msra.mxu0 %v5777
    %5790 = vmatprep.subr.bf16.mxu0 0
    %5791 = vmatpush1.bf16.msra.mxu0 0
    %5792 = vmatprep.subr.bf16.mxu0 0
    %5793 = vmatpush1.bf16.msra.mxu0 0
    %5794 = vmatprep.subr.bf16.mxu0 0
    %5795 = vmatpush1.bf16.msra.mxu0 0
    %5796 = vmatprep.subr.bf16.mxu0 0
    %5797 = vmatpush1.bf16.msra.mxu0 0
    %5798 = vmatprep.subr.bf16.mxu0 0
    %5799 = vmatpush1.bf16.msra.mxu0 0
    %5800 = vmatprep.subr.bf16.mxu0 0
    %5801 = vmatpush1.bf16.msra.mxu0 0
    %5802 = vmatprep.subr.bf16.mxu0 0
    %5803 = vmatpush1.bf16.msra.mxu0 0
    %5804 = vmatprep.subr.bf16.mxu0 0
    %5805 = vmatpush1.bf16.msra.mxu0 0
    %5806 = vmatprep.subr.bf16.mxu0 0
    %5807 = vmatpush1.bf16.msra.mxu0 0
    %5808 = vmatprep.subr.bf16.mxu0 0
    %5809 = vmatpush1.bf16.msra.mxu0 0
    %5810 = vmatprep.subr.bf16.mxu0 0
    %5811 = vmatpush1.bf16.msra.mxu0 0
    %5812 = vmatprep.subr.bf16.mxu0 0
    %5813 = vmatpush1.bf16.msra.mxu0 0
    %5814 = vmatprep.subr.bf16.mxu0 0
    %5815 = vmatpush1.bf16.msra.mxu0 0
    %5816 = vmatprep.subr.bf16.mxu0 0
    %5817 = vmatpush1.bf16.msra.mxu0 0
    %5818 = vmatprep.mubr.bf16.mxu0 0
    %5819 = vmatmul.mubr.bf16.gmra.mrb[0].mxu0 %v5781
    %v5820 = vpop.f32.mrb[0].mxu0
    %v5821 = vadd.f32 0.0, %v5820
    %v5822 = vpop.f32.mrb[0].mxu0
    %v5823 = vpop.f32.mrb[0].mxu0
    %v5824 = vadd.f32 0.0, %v5823
    %v5825 = vpop.f32.mrb[0].mxu0
    %5826 = vmatprep.mubr.bf16.mxu0 0
    %5827 = vmatmul.mubr.bf16.gmra.mrb[0].mxu0 %v5784
    %v5828 = vpop.f32.mrb[0].mxu0
    %v5829 = vadd.f32 0.0, %v5828
    %v5830 = vpop.f32.mrb[0].mxu0
    %v5831 = vpop.f32.mrb[0].mxu0
    %v5832 = vadd.f32 0.0, %v5831
    %v5833 = vpop.f32.mrb[0].mxu0
    %5834 = vdwg.mxu0
    %5835 = vrot.lane.b32.xlu0 %v456, 64
    %v5836 = vpop.permute.xlu0 %5835
    %5837 = vrot.lane.b32.xlu0 %v458, 64
    %v5838 = vpop.permute.xlu0 %5837
    %v5842 = vsel %vm137, %v4178, 0
    %v5845 = vsel %vm137, %v4179, 0
    %5847 = vmatprep.subr.bf16.mxu0 0
    %5848 = vmatpush1.bf16.msra.mxu0 %v5836
    %5849 = vmatprep.subr.bf16.mxu0 0
    %5850 = vmatpush1.bf16.msra.mxu0 %v5838
    %5851 = vmatprep.subr.bf16.mxu0 0
    %5852 = vmatpush1.bf16.msra.mxu0 0
    %5853 = vmatprep.subr.bf16.mxu0 0
    %5854 = vmatpush1.bf16.msra.mxu0 0
    %5855 = vmatprep.subr.bf16.mxu0 0
    %5856 = vmatpush1.bf16.msra.mxu0 0
    %5857 = vmatprep.subr.bf16.mxu0 0
    %5858 = vmatpush1.bf16.msra.mxu0 0
    %5859 = vmatprep.subr.bf16.mxu0 0
    %5860 = vmatpush1.bf16.msra.mxu0 0
    %5861 = vmatprep.subr.bf16.mxu0 0
    %5862 = vmatpush1.bf16.msra.mxu0 0
    %5863 = vmatprep.subr.bf16.mxu0 0
    %5864 = vmatpush1.bf16.msra.mxu0 0
    %5865 = vmatprep.subr.bf16.mxu0 0
    %5866 = vmatpush1.bf16.msra.mxu0 0
    %5867 = vmatprep.subr.bf16.mxu0 0
    %5868 = vmatpush1.bf16.msra.mxu0 0
    %5869 = vmatprep.subr.bf16.mxu0 0
    %5870 = vmatpush1.bf16.msra.mxu0 0
    %5871 = vmatprep.subr.bf16.mxu0 0
    %5872 = vmatpush1.bf16.msra.mxu0 0
    %5873 = vmatprep.subr.bf16.mxu0 0
    %5874 = vmatpush1.bf16.msra.mxu0 0
    %5875 = vmatprep.subr.bf16.mxu0 0
    %5876 = vmatpush1.bf16.msra.mxu0 0
    %5877 = vmatprep.subr.bf16.mxu0 0
    %5878 = vmatpush1.bf16.msra.mxu0 0
    %5879 = vmatprep.mubr.bf16.mxu0 0
    %5880 = vmatmul.mubr.bf16.gmra.mrb[0].mxu0 %v5842
    %v5881 = vpop.f32.mrb[0].mxu0
    %v5882 = vadd.f32 0.0, %v5881
    %v5883 = vpop.f32.mrb[0].mxu0
    %v5884 = vpop.f32.mrb[0].mxu0
    %v5885 = vadd.f32 0.0, %v5884
    %v5886 = vpop.f32.mrb[0].mxu0
    %5887 = vmatprep.mubr.bf16.mxu0 0
    %5888 = vmatmul.mubr.bf16.gmra.mrb[0].mxu0 %v5845
    %v5889 = vpop.f32.mrb[0].mxu0
    %v5890 = vadd.f32 0.0, %v5889
    %v5891 = vpop.f32.mrb[0].mxu0
    %v5892 = vpop.f32.mrb[0].mxu0
    %v5893 = vadd.f32 0.0, %v5892
    %v5894 = vpop.f32.mrb[0].mxu0
    %5895 = vdwg.mxu0
    %5896 = vrot.lane.b32.xlu0 %v460, 64
    %v5897 = vpop.permute.xlu0 %5896
    %5898 = vrot.lane.b32.xlu0 %v462, 64
    %v5899 = vpop.permute.xlu0 %5898
    %v5903 = vsel %vm137, %v4180, 0
    %v5906 = vsel %vm137, %v4181, 0
    %5908 = vmatprep.subr.bf16.mxu0 0
    %5909 = vmatpush1.bf16.msra.mxu0 %v5897
    %5910 = vmatprep.subr.bf16.mxu0 0
    %5911 = vmatpush1.bf16.msra.mxu0 %v5899
    %5912 = vmatprep.subr.bf16.mxu0 0
    %5913 = vmatpush1.bf16.msra.mxu0 0
    %5914 = vmatprep.subr.bf16.mxu0 0
    %5915 = vmatpush1.bf16.msra.mxu0 0
    %5916 = vmatprep.subr.bf16.mxu0 0
    %5917 = vmatpush1.bf16.msra.mxu0 0
    %5918 = vmatprep.subr.bf16.mxu0 0
    %5919 = vmatpush1.bf16.msra.mxu0 0
    %5920 = vmatprep.subr.bf16.mxu0 0
    %5921 = vmatpush1.bf16.msra.mxu0 0
    %5922 = vmatprep.subr.bf16.mxu0 0
    %5923 = vmatpush1.bf16.msra.mxu0 0
    %5924 = vmatprep.subr.bf16.mxu0 0
    %5925 = vmatpush1.bf16.msra.mxu0 0
    %5926 = vmatprep.subr.bf16.mxu0 0
    %5927 = vmatpush1.bf16.msra.mxu0 0
    %5928 = vmatprep.subr.bf16.mxu0 0
    %5929 = vmatpush1.bf16.msra.mxu0 0
    %5930 = vmatprep.subr.bf16.mxu0 0
    %5931 = vmatpush1.bf16.msra.mxu0 0
    %5932 = vmatprep.subr.bf16.mxu0 0
    %5933 = vmatpush1.bf16.msra.mxu0 0
    %5934 = vmatprep.subr.bf16.mxu0 0
    %5935 = vmatpush1.bf16.msra.mxu0 0
    %5936 = vmatprep.subr.bf16.mxu0 0
    %5937 = vmatpush1.bf16.msra.mxu0 0
    %5938 = vmatprep.subr.bf16.mxu0 0
    %5939 = vmatpush1.bf16.msra.mxu0 0
    %5940 = vmatprep.mubr.bf16.mxu0 0
    %5941 = vmatmul.mubr.bf16.gmra.mrb[0].mxu0 %v5903
    %v5942 = vpop.f32.mrb[0].mxu0
    %v5943 = vadd.f32 0.0, %v5942
    %v5944 = vpop.f32.mrb[0].mxu0
    %v5945 = vpop.f32.mrb[0].mxu0
    %v5946 = vadd.f32 0.0, %v5945
    %v5947 = vpop.f32.mrb[0].mxu0
    %5948 = vmatprep.mubr.bf16.mxu0 0
    %5949 = vmatmul.mubr.bf16.gmra.mrb[0].mxu0 %v5906
    %v5950 = vpop.f32.mrb[0].mxu0
    %v5951 = vadd.f32 0.0, %v5950
    %v5952 = vpop.f32.mrb[0].mxu0
    %v5953 = vpop.f32.mrb[0].mxu0
    %v5954 = vadd.f32 0.0, %v5953
    %v5955 = vpop.f32.mrb[0].mxu0
    %5956 = vdwg.mxu0
    %5957 = vrot.lane.b32.xlu0 %v464, 64
    %v5958 = vpop.permute.xlu0 %5957
    %5959 = vrot.lane.b32.xlu0 %v466, 64
    %v5960 = vpop.permute.xlu0 %5959
    %v5964 = vsel %vm137, %v4182, 0
    %v5967 = vsel %vm137, %v4183, 0
    %5969 = vmatprep.subr.bf16.mxu0 0
    %5970 = vmatpush1.bf16.msra.mxu0 %v5958
    %5971 = vmatprep.subr.bf16.mxu0 0
    %5972 = vmatpush1.bf16.msra.mxu0 %v5960
    %5973 = vmatprep.subr.bf16.mxu0 0
    %5974 = vmatpush1.bf16.msra.mxu0 0
    %5975 = vmatprep.subr.bf16.mxu0 0
    %5976 = vmatpush1.bf16.msra.mxu0 0
    %5977 = vmatprep.subr.bf16.mxu0 0
    %5978 = vmatpush1.bf16.msra.mxu0 0
    %5979 = vmatprep.subr.bf16.mxu0 0
    %5980 = vmatpush1.bf16.msra.mxu0 0
    %5981 = vmatprep.subr.bf16.mxu0 0
    %5982 = vmatpush1.bf16.msra.mxu0 0
    %5983 = vmatprep.subr.bf16.mxu0 0
    %5984 = vmatpush1.bf16.msra.mxu0 0
    %5985 = vmatprep.subr.bf16.mxu0 0
    %5986 = vmatpush1.bf16.msra.mxu0 0
    %5987 = vmatprep.subr.bf16.mxu0 0
    %5988 = vmatpush1.bf16.msra.mxu0 0
    %5989 = vmatprep.subr.bf16.mxu0 0
    %5990 = vmatpush1.bf16.msra.mxu0 0
    %5991 = vmatprep.subr.bf16.mxu0 0
    %5992 = vmatpush1.bf16.msra.mxu0 0
    %5993 = vmatprep.subr.bf16.mxu0 0
    %5994 = vmatpush1.bf16.msra.mxu0 0
    %5995 = vmatprep.subr.bf16.mxu0 0
    %5996 = vmatpush1.bf16.msra.mxu0 0
    %5997 = vmatprep.subr.bf16.mxu0 0
    %5998 = vmatpush1.bf16.msra.mxu0 0
    %5999 = vmatprep.subr.bf16.mxu0 0
    %6000 = vmatpush1.bf16.msra.mxu0 0
    %6001 = vmatprep.mubr.bf16.mxu0 0
    %6002 = vmatmul.mubr.bf16.gmra.mrb[0].mxu0 %v5964
    %v6003 = vpop.f32.mrb[0].mxu0
    %v6004 = vadd.f32 0.0, %v6003
    %v6005 = vpop.f32.mrb[0].mxu0
    %v6006 = vpop.f32.mrb[0].mxu0
    %v6007 = vadd.f32 0.0, %v6006
    %v6008 = vpop.f32.mrb[0].mxu0
    %6009 = vmatprep.mubr.bf16.mxu0 0
    %6010 = vmatmul.mubr.bf16.gmra.mrb[0].mxu0 %v5967
    %v6011 = vpop.f32.mrb[0].mxu0
    %v6012 = vadd.f32 0.0, %v6011
    %v6013 = vpop.f32.mrb[0].mxu0
    %v6014 = vpop.f32.mrb[0].mxu0
    %v6015 = vadd.f32 0.0, %v6014
    %v6016 = vpop.f32.mrb[0].mxu0
    %6017 = vdwg.mxu0
    %6018 = vrot.lane.b32.xlu0 %v468, 64
    %v6019 = vpop.permute.xlu0 %6018
    %6020 = vrot.lane.b32.xlu0 %v470, 64
    %v6021 = vpop.permute.xlu0 %6020
    %v6025 = vsel %vm137, %v4184, 0
    %v6028 = vsel %vm137, %v4185, 0
    %6030 = vmatprep.subr.bf16.mxu0 0
    %6031 = vmatpush1.bf16.msra.mxu0 %v6019
    %6032 = vmatprep.subr.bf16.mxu0 0
    %6033 = vmatpush1.bf16.msra.mxu0 %v6021
    %6034 = vmatprep.subr.bf16.mxu0 0
    %6035 = vmatpush1.bf16.msra.mxu0 0
    %6036 = vmatprep.subr.bf16.mxu0 0
    %6037 = vmatpush1.bf16.msra.mxu0 0
    %6038 = vmatprep.subr.bf16.mxu0 0
    %6039 = vmatpush1.bf16.msra.mxu0 0
    %6040 = vmatprep.subr.bf16.mxu0 0
    %6041 = vmatpush1.bf16.msra.mxu0 0
    %6042 = vmatprep.subr.bf16.mxu0 0
    %6043 = vmatpush1.bf16.msra.mxu0 0
    %6044 = vmatprep.subr.bf16.mxu0 0
    %6045 = vmatpush1.bf16.msra.mxu0 0
    %6046 = vmatprep.subr.bf16.mxu0 0
    %6047 = vmatpush1.bf16.msra.mxu0 0
    %6048 = vmatprep.subr.bf16.mxu0 0
    %6049 = vmatpush1.bf16.msra.mxu0 0
    %6050 = vmatprep.subr.bf16.mxu0 0
    %6051 = vmatpush1.bf16.msra.mxu0 0
    %6052 = vmatprep.subr.bf16.mxu0 0
    %6053 = vmatpush1.bf16.msra.mxu0 0
    %6054 = vmatprep.subr.bf16.mxu0 0
    %6055 = vmatpush1.bf16.msra.mxu0 0
    %6056 = vmatprep.subr.bf16.mxu0 0
    %6057 = vmatpush1.bf16.msra.mxu0 0
    %6058 = vmatprep.subr.bf16.mxu0 0
    %6059 = vmatpush1.bf16.msra.mxu0 0
    %6060 = vmatprep.subr.bf16.mxu0 0
    %6061 = vmatpush1.bf16.msra.mxu0 0
    %6062 = vmatprep.mubr.bf16.mxu0 0
    %6063 = vmatmul.mubr.bf16.gmra.mrb[0].mxu0 %v6025
    %v6064 = vpop.f32.mrb[0].mxu0
    %v6065 = vadd.f32 0.0, %v6064
    %v6066 = vpop.f32.mrb[0].mxu0
    %v6067 = vpop.f32.mrb[0].mxu0
    %v6068 = vadd.f32 0.0, %v6067
    %v6069 = vpop.f32.mrb[0].mxu0
    %6070 = vmatprep.mubr.bf16.mxu0 0
    %6071 = vmatmul.mubr.bf16.gmra.mrb[0].mxu0 %v6028
    %v6072 = vpop.f32.mrb[0].mxu0
    %v6073 = vadd.f32 0.0, %v6072
    %v6074 = vpop.f32.mrb[0].mxu0
    %v6075 = vpop.f32.mrb[0].mxu0
    %v6076 = vadd.f32 0.0, %v6075
    %v6077 = vpop.f32.mrb[0].mxu0
    %6078 = vdwg.mxu0
    %6079 = vrot.lane.b32.xlu0 %v472, 64
    %v6080 = vpop.permute.xlu0 %6079
    %6081 = vrot.lane.b32.xlu0 %v474, 64
    %v6082 = vpop.permute.xlu0 %6081
    %v6086 = vsel %vm137, %v4186, 0
    %v6089 = vsel %vm137, %v4187, 0
    %6091 = vmatprep.subr.bf16.mxu0 0
    %6092 = vmatpush1.bf16.msra.mxu0 %v6080
    %6093 = vmatprep.subr.bf16.mxu0 0
    %6094 = vmatpush1.bf16.msra.mxu0 %v6082
    %6095 = vmatprep.subr.bf16.mxu0 0
    %6096 = vmatpush1.bf16.msra.mxu0 0
    %6097 = vmatprep.subr.bf16.mxu0 0
    %6098 = vmatpush1.bf16.msra.mxu0 0
    %6099 = vmatprep.subr.bf16.mxu0 0
    %6100 = vmatpush1.bf16.msra.mxu0 0
    %6101 = vmatprep.subr.bf16.mxu0 0
    %6102 = vmatpush1.bf16.msra.mxu0 0
    %6103 = vmatprep.subr.bf16.mxu0 0
    %6104 = vmatpush1.bf16.msra.mxu0 0
    %6105 = vmatprep.subr.bf16.mxu0 0
    %6106 = vmatpush1.bf16.msra.mxu0 0
    %6107 = vmatprep.subr.bf16.mxu0 0
    %6108 = vmatpush1.bf16.msra.mxu0 0
    %6109 = vmatprep.subr.bf16.mxu0 0
    %6110 = vmatpush1.bf16.msra.mxu0 0
    %6111 = vmatprep.subr.bf16.mxu0 0
    %6112 = vmatpush1.bf16.msra.mxu0 0
    %6113 = vmatprep.subr.bf16.mxu0 0
    %6114 = vmatpush1.bf16.msra.mxu0 0
    %6115 = vmatprep.subr.bf16.mxu0 0
    %6116 = vmatpush1.bf16.msra.mxu0 0
    %6117 = vmatprep.subr.bf16.mxu0 0
    %6118 = vmatpush1.bf16.msra.mxu0 0
    %6119 = vmatprep.subr.bf16.mxu0 0
    %6120 = vmatpush1.bf16.msra.mxu0 0
    %6121 = vmatprep.subr.bf16.mxu0 0
    %6122 = vmatpush1.bf16.msra.mxu0 0
    %6123 = vmatprep.mubr.bf16.mxu0 0
    %6124 = vmatmul.mubr.bf16.gmra.mrb[0].mxu0 %v6086
    %v6125 = vpop.f32.mrb[0].mxu0
    %v6126 = vadd.f32 0.0, %v6125
    %v6127 = vpop.f32.mrb[0].mxu0
    %v6128 = vpop.f32.mrb[0].mxu0
    %v6129 = vadd.f32 0.0, %v6128
    %v6130 = vpop.f32.mrb[0].mxu0
    %6131 = vmatprep.mubr.bf16.mxu0 0
    %6132 = vmatmul.mubr.bf16.gmra.mrb[0].mxu0 %v6089
    %v6133 = vpop.f32.mrb[0].mxu0
    %v6134 = vadd.f32 0.0, %v6133
    %v6135 = vpop.f32.mrb[0].mxu0
    %v6136 = vpop.f32.mrb[0].mxu0
    %v6137 = vadd.f32 0.0, %v6136
    %v6138 = vpop.f32.mrb[0].mxu0
    %6139 = vdwg.mxu0
    %v6140 = vpack.c.bf16 %v4238, %v4235
    %v6141 = vpack.c.bf16 %v4246, %v4243
    %v6142 = vpack.c.bf16 %v4299, %v4296
    %v6143 = vpack.c.bf16 %v4307, %v4304
    %v6144 = vpack.c.bf16 %v4360, %v4357
    %v6145 = vpack.c.bf16 %v4368, %v4365
    %v6146 = vpack.c.bf16 %v4421, %v4418
    %v6147 = vpack.c.bf16 %v4429, %v4426
    %v6148 = vpack.c.bf16 %v4482, %v4479
    %v6149 = vpack.c.bf16 %v4490, %v4487
    %v6150 = vpack.c.bf16 %v4543, %v4540
    %v6151 = vpack.c.bf16 %v4551, %v4548
    %v6152 = vpack.c.bf16 %v4604, %v4601
    %v6153 = vpack.c.bf16 %v4612, %v4609
    %v6154 = vpack.c.bf16 %v4665, %v4662
    %v6155 = vpack.c.bf16 %v4673, %v4670
    %v6156 = vpack.c.bf16 %v4726, %v4723
    %v6157 = vpack.c.bf16 %v4734, %v4731
    %v6158 = vpack.c.bf16 %v4787, %v4784
    %v6159 = vpack.c.bf16 %v4795, %v4792
    %v6160 = vpack.c.bf16 %v4848, %v4845
    %v6161 = vpack.c.bf16 %v4856, %v4853
    %v6162 = vpack.c.bf16 %v4909, %v4906
    %v6163 = vpack.c.bf16 %v4917, %v4914
    %v6164 = vpack.c.bf16 %v4970, %v4967
    %v6165 = vpack.c.bf16 %v4978, %v4975
    %v6166 = vpack.c.bf16 %v5031, %v5028
    %v6167 = vpack.c.bf16 %v5039, %v5036
    %v6168 = vpack.c.bf16 %v5092, %v5089
    %v6169 = vpack.c.bf16 %v5100, %v5097
    %v6170 = vpack.c.bf16 %v5153, %v5150
    %v6171 = vpack.c.bf16 %v5161, %v5158
    %v6172 = vpack.c.bf16 %v5214, %v5211
    %v6173 = vpack.c.bf16 %v5222, %v5219
    %v6174 = vpack.c.bf16 %v5275, %v5272
    %v6175 = vpack.c.bf16 %v5283, %v5280
    %v6176 = vpack.c.bf16 %v5336, %v5333
    %v6177 = vpack.c.bf16 %v5344, %v5341
    %v6178 = vpack.c.bf16 %v5397, %v5394
    %v6179 = vpack.c.bf16 %v5405, %v5402
    %v6180 = vpack.c.bf16 %v5458, %v5455
    %v6181 = vpack.c.bf16 %v5466, %v5463
    %v6182 = vpack.c.bf16 %v5519, %v5516
    %v6183 = vpack.c.bf16 %v5527, %v5524
    %v6184 = vpack.c.bf16 %v5580, %v5577
    %v6185 = vpack.c.bf16 %v5588, %v5585
    %v6186 = vpack.c.bf16 %v5641, %v5638
    %v6187 = vpack.c.bf16 %v5649, %v5646
    %v6188 = vpack.c.bf16 %v5702, %v5699
    %v6189 = vpack.c.bf16 %v5710, %v5707
    %v6190 = vpack.c.bf16 %v5763, %v5760
    %v6191 = vpack.c.bf16 %v5771, %v5768
    %v6192 = vpack.c.bf16 %v5824, %v5821
    %v6193 = vpack.c.bf16 %v5832, %v5829
    %v6194 = vpack.c.bf16 %v5885, %v5882
    %v6195 = vpack.c.bf16 %v5893, %v5890
    %v6196 = vpack.c.bf16 %v5946, %v5943
    %v6197 = vpack.c.bf16 %v5954, %v5951
    %v6198 = vpack.c.bf16 %v6007, %v6004
    %v6199 = vpack.c.bf16 %v6015, %v6012
    %v6200 = vpack.c.bf16 %v6068, %v6065
    %v6201 = vpack.c.bf16 %v6076, %v6073
    %v6202 = vpack.c.bf16 %v6129, %v6126
    %v6203 = vpack.c.bf16 %v6137, %v6134
    %6220 = vrot.lane.b32.xlu0 %v6156, 8
    %v6221 = vpop.permute.xlu0 %6220
    %6222 = vrot.lane.b32.xlu0 %v6157, 8
    %v6223 = vpop.permute.xlu0 %6222
    %6224 = vrot.lane.b32.xlu0 %v6158, 8
    %v6225 = vpop.permute.xlu0 %6224
    %6226 = vrot.lane.b32.xlu0 %v6159, 8
    %v6227 = vpop.permute.xlu0 %6226
    %6228 = vrot.lane.b32.xlu0 %v6160, 8
    %v6229 = vpop.permute.xlu0 %6228
    %6230 = vrot.lane.b32.xlu0 %v6161, 8
    %v6231 = vpop.permute.xlu0 %6230
    %6232 = vrot.lane.b32.xlu0 %v6162, 8
    %v6233 = vpop.permute.xlu0 %6232
    %6234 = vrot.lane.b32.xlu0 %v6163, 8
    %v6235 = vpop.permute.xlu0 %6234
    %6236 = vrot.lane.b32.xlu0 %v6164, 8
    %v6237 = vpop.permute.xlu0 %6236
    %6238 = vrot.lane.b32.xlu0 %v6165, 8
    %v6239 = vpop.permute.xlu0 %6238
    %6240 = vrot.lane.b32.xlu0 %v6166, 8
    %v6241 = vpop.permute.xlu0 %6240
    %6242 = vrot.lane.b32.xlu0 %v6167, 8
    %v6243 = vpop.permute.xlu0 %6242
    %6244 = vrot.lane.b32.xlu0 %v6168, 8
    %v6245 = vpop.permute.xlu0 %6244
    %6246 = vrot.lane.b32.xlu0 %v6169, 8
    %v6247 = vpop.permute.xlu0 %6246
    %6248 = vrot.lane.b32.xlu0 %v6170, 8
    %v6249 = vpop.permute.xlu0 %6248
    %6250 = vrot.lane.b32.xlu0 %v6171, 8
    %v6251 = vpop.permute.xlu0 %6250
    %6268 = vrot.lane.b32.xlu0 %v6172, 16
    %v6269 = vpop.permute.xlu0 %6268
    %6270 = vrot.lane.b32.xlu0 %v6173, 16
    %v6271 = vpop.permute.xlu0 %6270
    %6272 = vrot.lane.b32.xlu0 %v6174, 16
    %v6273 = vpop.permute.xlu0 %6272
    %6274 = vrot.lane.b32.xlu0 %v6175, 16
    %v6275 = vpop.permute.xlu0 %6274
    %6276 = vrot.lane.b32.xlu0 %v6176, 16
    %v6277 = vpop.permute.xlu0 %6276
    %6278 = vrot.lane.b32.xlu0 %v6177, 16
    %v6279 = vpop.permute.xlu0 %6278
    %6280 = vrot.lane.b32.xlu0 %v6178, 16
    %v6281 = vpop.permute.xlu0 %6280
    %6282 = vrot.lane.b32.xlu0 %v6179, 16
    %v6283 = vpop.permute.xlu0 %6282
    %6284 = vrot.lane.b32.xlu0 %v6180, 16
    %v6285 = vpop.permute.xlu0 %6284
    %6286 = vrot.lane.b32.xlu0 %v6181, 16
    %v6287 = vpop.permute.xlu0 %6286
    %6288 = vrot.lane.b32.xlu0 %v6182, 16
    %v6289 = vpop.permute.xlu0 %6288
    %6290 = vrot.lane.b32.xlu0 %v6183, 16
    %v6291 = vpop.permute.xlu0 %6290
    %6292 = vrot.lane.b32.xlu0 %v6184, 16
    %v6293 = vpop.permute.xlu0 %6292
    %6294 = vrot.lane.b32.xlu0 %v6185, 16
    %v6295 = vpop.permute.xlu0 %6294
    %6296 = vrot.lane.b32.xlu0 %v6186, 16
    %v6297 = vpop.permute.xlu0 %6296
    %6298 = vrot.lane.b32.xlu0 %v6187, 16
    %v6299 = vpop.permute.xlu0 %6298
    %6316 = vrot.lane.b32.xlu0 %v6188, 24
    %v6317 = vpop.permute.xlu0 %6316
    %6318 = vrot.lane.b32.xlu0 %v6189, 24
    %v6319 = vpop.permute.xlu0 %6318
    %6320 = vrot.lane.b32.xlu0 %v6190, 24
    %v6321 = vpop.permute.xlu0 %6320
    %6322 = vrot.lane.b32.xlu0 %v6191, 24
    %v6323 = vpop.permute.xlu0 %6322
    %6324 = vrot.lane.b32.xlu0 %v6192, 24
    %v6325 = vpop.permute.xlu0 %6324
    %6326 = vrot.lane.b32.xlu0 %v6193, 24
    %v6327 = vpop.permute.xlu0 %6326
    %6328 = vrot.lane.b32.xlu0 %v6194, 24
    %v6329 = vpop.permute.xlu0 %6328
    %6330 = vrot.lane.b32.xlu0 %v6195, 24
    %v6331 = vpop.permute.xlu0 %6330
    %6332 = vrot.lane.b32.xlu0 %v6196, 24
    %v6333 = vpop.permute.xlu0 %6332
    %6334 = vrot.lane.b32.xlu0 %v6197, 24
    %v6335 = vpop.permute.xlu0 %6334
    %6336 = vrot.lane.b32.xlu0 %v6198, 24
    %v6337 = vpop.permute.xlu0 %6336
    %6338 = vrot.lane.b32.xlu0 %v6199, 24
    %v6339 = vpop.permute.xlu0 %6338
    %6340 = vrot.lane.b32.xlu0 %v6200, 24
    %v6341 = vpop.permute.xlu0 %6340
    %6342 = vrot.lane.b32.xlu0 %v6201, 24
    %v6343 = vpop.permute.xlu0 %6342
    %6344 = vrot.lane.b32.xlu0 %v6202, 24
    %v6345 = vpop.permute.xlu0 %6344
    %6346 = vrot.lane.b32.xlu0 %v6203, 24
    %v6347 = vpop.permute.xlu0 %6346
    %v6350 = vsel %vm479, %v6140, %v6221
    %v6353 = vsel %vm479, %v6141, %v6223
    %v6356 = vsel %vm479, %v6142, %v6225
    %v6359 = vsel %vm479, %v6143, %v6227
    %v6362 = vsel %vm479, %v6144, %v6229
    %v6365 = vsel %vm479, %v6145, %v6231
    %v6368 = vsel %vm479, %v6146, %v6233
    %v6371 = vsel %vm479, %v6147, %v6235
    %v6374 = vsel %vm479, %v6148, %v6237
    %v6377 = vsel %vm479, %v6149, %v6239
    %v6380 = vsel %vm479, %v6150, %v6241
    %v6383 = vsel %vm479, %v6151, %v6243
    %v6386 = vsel %vm479, %v6152, %v6245
    %v6389 = vsel %vm479, %v6153, %v6247
    %v6392 = vsel %vm479, %v6154, %v6249
    %v6395 = vsel %vm479, %v6155, %v6251
    %vm6396 = vcmask 130048
    %v6398 = vsel %vm6396, %v6350, %v6269
    %v6400 = vsel %vm6396, %v6353, %v6271
    %v6402 = vsel %vm6396, %v6356, %v6273
    %v6404 = vsel %vm6396, %v6359, %v6275
    %v6406 = vsel %vm6396, %v6362, %v6277
    %v6408 = vsel %vm6396, %v6365, %v6279
    %v6410 = vsel %vm6396, %v6368, %v6281
    %v6412 = vsel %vm6396, %v6371, %v6283
    %v6414 = vsel %vm6396, %v6374, %v6285
    %v6416 = vsel %vm6396, %v6377, %v6287
    %v6418 = vsel %vm6396, %v6380, %v6289
    %v6420 = vsel %vm6396, %v6383, %v6291
    %v6422 = vsel %vm6396, %v6386, %v6293
    %v6424 = vsel %vm6396, %v6389, %v6295
    %v6426 = vsel %vm6396, %v6392, %v6297
    %v6428 = vsel %vm6396, %v6395, %v6299
    %vm6429 = vcmask 195584
    %v6431 = vsel %vm6429, %v6398, %v6317
    %v6433 = vsel %vm6429, %v6400, %v6319
    %v6435 = vsel %vm6429, %v6402, %v6321
    %v6437 = vsel %vm6429, %v6404, %v6323
    %v6439 = vsel %vm6429, %v6406, %v6325
    %v6441 = vsel %vm6429, %v6408, %v6327
    %v6443 = vsel %vm6429, %v6410, %v6329
    %v6445 = vsel %vm6429, %v6412, %v6331
    %v6447 = vsel %vm6429, %v6414, %v6333
    %v6449 = vsel %vm6429, %v6416, %v6335
    %v6451 = vsel %vm6429, %v6418, %v6337
    %v6453 = vsel %vm6429, %v6420, %v6339
    %v6455 = vsel %vm6429, %v6422, %v6341
    %v6457 = vsel %vm6429, %v6424, %v6343
    %v6459 = vsel %vm6429, %v6426, %v6345
    %v6461 = vsel %vm6429, %v6428, %v6347
    %v6462 = vld [vmem:[%s4] sm:$0xf]
    %v6463 = vld [vmem:[%s4 + $0x4] sm:$0xf]
    %v6464 = vld [vmem:[%s4 + $0x8] sm:$0xf]
    %v6465 = vld [vmem:[%s4 + $0xc] sm:$0xf]
    %v6466 = vld [vmem:[%s5] sm:$0x1]
    %v6468 = vlaneseq
    %v6469 = vshrl.u32 %v6468, 7
    %v6470 = vsub.s32 0, %v6469
    %v6471 = vrot.slane %v6466, %v6470
    %v6477 = vunpack.c.l.b16 %v6462
    %v6478 = vunpack.c.l.b16 %v6463
    %v6479 = vunpack.c.l.b16 %v6464
    %v6480 = vunpack.c.l.b16 %v6465
    %v6481 = vpack.c.b16 %v6478, %v6477
    %v6482 = vpack.c.b16 %v6480, %v6479
    %v6485 = vsel %vm137, %v6431, 0
    %v6487 = vsel %vm137, %v6433, 0
    %v6489 = vsel %vm137, %v6435, 0
    %v6491 = vsel %vm137, %v6437, 0
    %v6493 = vsel %vm137, %v6439, 0
    %v6495 = vsel %vm137, %v6441, 0
    %v6497 = vsel %vm137, %v6443, 0
    %v6499 = vsel %vm137, %v6445, 0
    %v6501 = vsel %vm137, %v6447, 0
    %v6503 = vsel %vm137, %v6449, 0
    %v6505 = vsel %vm137, %v6451, 0
    %v6507 = vsel %vm137, %v6453, 0
    %v6509 = vsel %vm137, %v6455, 0
    %v6511 = vsel %vm137, %v6457, 0
    %v6513 = vsel %vm137, %v6459, 0
    %v6515 = vsel %vm137, %v6461, 0
    %6517 = vmatprep.subr.bf16.mxu0 0
    %6518 = vmatpush1.bf16.msra.mxu0 %v6481
    %6519 = vmatprep.subr.bf16.mxu0 0
    %6520 = vmatpush1.bf16.msra.mxu0 %v6482
    %6521 = vmatprep.subr.bf16.mxu0 0
    %6522 = vmatpush1.bf16.msra.mxu0 0
    %6523 = vmatprep.subr.bf16.mxu0 0
    %6524 = vmatpush1.bf16.msra.mxu0 0
    %6525 = vmatprep.subr.bf16.mxu0 0
    %6526 = vmatpush1.bf16.msra.mxu0 0
    %6527 = vmatprep.subr.bf16.mxu0 0
    %6528 = vmatpush1.bf16.msra.mxu0 0
    %6529 = vmatprep.subr.bf16.mxu0 0
    %6530 = vmatpush1.bf16.msra.mxu0 0
    %6531 = vmatprep.subr.bf16.mxu0 0
    %6532 = vmatpush1.bf16.msra.mxu0 0
    %6533 = vmatprep.subr.bf16.mxu0 0
    %6534 = vmatpush1.bf16.msra.mxu0 0
    %6535 = vmatprep.subr.bf16.mxu0 0
    %6536 = vmatpush1.bf16.msra.mxu0 0
    %6537 = vmatprep.subr.bf16.mxu0 0
    %6538 = vmatpush1.bf16.msra.mxu0 0
    %6539 = vmatprep.subr.bf16.mxu0 0
    %6540 = vmatpush1.bf16.msra.mxu0 0
    %6541 = vmatprep.subr.bf16.mxu0 0
    %6542 = vmatpush1.bf16.msra.mxu0 0
    %6543 = vmatprep.subr.bf16.mxu0 0
    %6544 = vmatpush1.bf16.msra.mxu0 0
    %6545 = vmatprep.subr.bf16.mxu0 0
    %6546 = vmatpush1.bf16.msra.mxu0 0
    %6547 = vmatprep.subr.bf16.mxu0 0
    %6548 = vmatpush1.bf16.msra.mxu0 0
    %6549 = vmatprep.mubr.bf16.mxu0 0
    %6550 = vmatmul.mubr.bf16.gmra.mrb[0].mxu0 %v6485
    %v6551 = vpop.f32.mrb[0].mxu0
    %v6552 = vadd.f32 %v6471, %v6551
    %v6553 = vpop.f32.mrb[0].mxu0
    %v6554 = vpop.f32.mrb[0].mxu0
    %v6555 = vadd.f32 %v6471, %v6554
    %v6556 = vpop.f32.mrb[0].mxu0
    %6557 = vmatprep.mubr.bf16.mxu0 0
    %6558 = vmatmul.mubr.bf16.gmra.mrb[0].mxu0 %v6487
    %v6559 = vpop.f32.mrb[0].mxu0
    %v6560 = vadd.f32 %v6471, %v6559
    %v6561 = vpop.f32.mrb[0].mxu0
    %v6562 = vpop.f32.mrb[0].mxu0
    %v6563 = vadd.f32 %v6471, %v6562
    %v6564 = vpop.f32.mrb[0].mxu0
    %6565 = vmatprep.mubr.bf16.mxu0 0
    %6566 = vmatmul.mubr.bf16.gmra.mrb[0].mxu0 %v6489
    %v6567 = vpop.f32.mrb[0].mxu0
    %v6568 = vadd.f32 %v6471, %v6567
    %v6569 = vpop.f32.mrb[0].mxu0
    %v6570 = vpop.f32.mrb[0].mxu0
    %v6571 = vadd.f32 %v6471, %v6570
    %v6572 = vpop.f32.mrb[0].mxu0
    %6573 = vmatprep.mubr.bf16.mxu0 0
    %6574 = vmatmul.mubr.bf16.gmra.mrb[0].mxu0 %v6491
    %v6575 = vpop.f32.mrb[0].mxu0
    %v6576 = vadd.f32 %v6471, %v6575
    %v6577 = vpop.f32.mrb[0].mxu0
    %v6578 = vpop.f32.mrb[0].mxu0
    %v6579 = vadd.f32 %v6471, %v6578
    %v6580 = vpop.f32.mrb[0].mxu0
    %6581 = vmatprep.mubr.bf16.mxu0 0
    %6582 = vmatmul.mubr.bf16.gmra.mrb[0].mxu0 %v6493
    %v6583 = vpop.f32.mrb[0].mxu0
    %v6584 = vadd.f32 %v6471, %v6583
    %v6585 = vpop.f32.mrb[0].mxu0
    %v6586 = vpop.f32.mrb[0].mxu0
    %v6587 = vadd.f32 %v6471, %v6586
    %v6588 = vpop.f32.mrb[0].mxu0
    %6589 = vmatprep.mubr.bf16.mxu0 0
    %6590 = vmatmul.mubr.bf16.gmra.mrb[0].mxu0 %v6495
    %v6591 = vpop.f32.mrb[0].mxu0
    %v6592 = vadd.f32 %v6471, %v6591
    %v6593 = vpop.f32.mrb[0].mxu0
    %v6594 = vpop.f32.mrb[0].mxu0
    %v6595 = vadd.f32 %v6471, %v6594
    %v6596 = vpop.f32.mrb[0].mxu0
    %6597 = vmatprep.mubr.bf16.mxu0 0
    %6598 = vmatmul.mubr.bf16.gmra.mrb[0].mxu0 %v6497
    %v6599 = vpop.f32.mrb[0].mxu0
    %v6600 = vadd.f32 %v6471, %v6599
    %v6601 = vpop.f32.mrb[0].mxu0
    %v6602 = vpop.f32.mrb[0].mxu0
    %v6603 = vadd.f32 %v6471, %v6602
    %v6604 = vpop.f32.mrb[0].mxu0
    %6605 = vmatprep.mubr.bf16.mxu0 0
    %6606 = vmatmul.mubr.bf16.gmra.mrb[0].mxu0 %v6499
    %v6607 = vpop.f32.mrb[0].mxu0
    %v6608 = vadd.f32 %v6471, %v6607
    %v6609 = vpop.f32.mrb[0].mxu0
    %v6610 = vpop.f32.mrb[0].mxu0
    %v6611 = vadd.f32 %v6471, %v6610
    %v6612 = vpop.f32.mrb[0].mxu0
    %6613 = vmatprep.mubr.bf16.mxu0 0
    %6614 = vmatmul.mubr.bf16.gmra.mrb[0].mxu0 %v6501
    %v6615 = vpop.f32.mrb[0].mxu0
    %v6616 = vadd.f32 %v6471, %v6615
    %v6617 = vpop.f32.mrb[0].mxu0
    %v6618 = vpop.f32.mrb[0].mxu0
    %v6619 = vadd.f32 %v6471, %v6618
    %v6620 = vpop.f32.mrb[0].mxu0
    %6621 = vmatprep.mubr.bf16.mxu0 0
    %6622 = vmatmul.mubr.bf16.gmra.mrb[0].mxu0 %v6503
    %v6623 = vpop.f32.mrb[0].mxu0
    %v6624 = vadd.f32 %v6471, %v6623
    %v6625 = vpop.f32.mrb[0].mxu0
    %v6626 = vpop.f32.mrb[0].mxu0
    %v6627 = vadd.f32 %v6471, %v6626
    %v6628 = vpop.f32.mrb[0].mxu0
    %6629 = vmatprep.mubr.bf16.mxu0 0
    %6630 = vmatmul.mubr.bf16.gmra.mrb[0].mxu0 %v6505
    %v6631 = vpop.f32.mrb[0].mxu0
    %v6632 = vadd.f32 %v6471, %v6631
    %v6633 = vpop.f32.mrb[0].mxu0
    %v6634 = vpop.f32.mrb[0].mxu0
    %v6635 = vadd.f32 %v6471, %v6634
    %v6636 = vpop.f32.mrb[0].mxu0
    %6637 = vmatprep.mubr.bf16.mxu0 0
    %6638 = vmatmul.mubr.bf16.gmra.mrb[0].mxu0 %v6507
    %v6639 = vpop.f32.mrb[0].mxu0
    %v6640 = vadd.f32 %v6471, %v6639
    %v6641 = vpop.f32.mrb[0].mxu0
    %v6642 = vpop.f32.mrb[0].mxu0
    %v6643 = vadd.f32 %v6471, %v6642
    %v6644 = vpop.f32.mrb[0].mxu0
    %6645 = vmatprep.mubr.bf16.mxu0 0
    %6646 = vmatmul.mubr.bf16.gmra.mrb[0].mxu0 %v6509
    %v6647 = vpop.f32.mrb[0].mxu0
    %v6648 = vadd.f32 %v6471, %v6647
    %v6649 = vpop.f32.mrb[0].mxu0
    %v6650 = vpop.f32.mrb[0].mxu0
    %v6651 = vadd.f32 %v6471, %v6650
    %v6652 = vpop.f32.mrb[0].mxu0
    %6653 = vmatprep.mubr.bf16.mxu0 0
    %6654 = vmatmul.mubr.bf16.gmra.mrb[0].mxu0 %v6511
    %v6655 = vpop.f32.mrb[0].mxu0
    %v6656 = vadd.f32 %v6471, %v6655
    %v6657 = vpop.f32.mrb[0].mxu0
    %v6658 = vpop.f32.mrb[0].mxu0
    %v6659 = vadd.f32 %v6471, %v6658
    %v6660 = vpop.f32.mrb[0].mxu0
    %6661 = vmatprep.mubr.bf16.mxu0 0
    %6662 = vmatmul.mubr.bf16.gmra.mrb[0].mxu0 %v6513
    %v6663 = vpop.f32.mrb[0].mxu0
    %v6664 = vadd.f32 %v6471, %v6663
    %v6665 = vpop.f32.mrb[0].mxu0
    %v6666 = vpop.f32.mrb[0].mxu0
    %v6667 = vadd.f32 %v6471, %v6666
    %v6668 = vpop.f32.mrb[0].mxu0
    %6669 = vmatprep.mubr.bf16.mxu0 0
    %6670 = vmatmul.mubr.bf16.gmra.mrb[0].mxu0 %v6515
    %v6671 = vpop.f32.mrb[0].mxu0
    %v6672 = vadd.f32 %v6471, %v6671
    %v6673 = vpop.f32.mrb[0].mxu0
    %v6674 = vpop.f32.mrb[0].mxu0
    %v6675 = vadd.f32 %v6471, %v6674
    %v6676 = vpop.f32.mrb[0].mxu0
    %6677 = vdwg.mxu0
    %6678 = vst.msk [vmem:[#allocation8] sm:$0xff] %vm137, %v6552
    %6679 = vst.msk [vmem:[#allocation8 + $0x8] sm:$0xff] %vm137, %v6555
    %6680 = vst.msk [vmem:[#allocation8 + $0x10] sm:$0xff] %vm137, %v6560
    %6681 = vst.msk [vmem:[#allocation8 + $0x18] sm:$0xff] %vm137, %v6563
    %6682 = vst.msk [vmem:[#allocation8 + $0x20] sm:$0xff] %vm137, %v6568
    %6683 = vst.msk [vmem:[#allocation8 + $0x28] sm:$0xff] %vm137, %v6571
    %6684 = vst.msk [vmem:[#allocation8 + $0x30] sm:$0xff] %vm137, %v6576
    %6685 = vst.msk [vmem:[#allocation8 + $0x38] sm:$0xff] %vm137, %v6579
    %6686 = vst.msk [vmem:[#allocation8 + $0x40] sm:$0xff] %vm137, %v6584
    %6687 = vst.msk [vmem:[#allocation8 + $0x48] sm:$0xff] %vm137, %v6587
    %6688 = vst.msk [vmem:[#allocation8 + $0x50] sm:$0xff] %vm137, %v6592
    %6689 = vst.msk [vmem:[#allocation8 + $0x58] sm:$0xff] %vm137, %v6595
    %6690 = vst.msk [vmem:[#allocation8 + $0x60] sm:$0xff] %vm137, %v6600
    %6691 = vst.msk [vmem:[#allocation8 + $0x68] sm:$0xff] %vm137, %v6603
    %6692 = vst.msk [vmem:[#allocation8 + $0x70] sm:$0xff] %vm137, %v6608
    %6693 = vst.msk [vmem:[#allocation8 + $0x78] sm:$0xff] %vm137, %v6611
    %6694 = vst.msk [vmem:[#allocation8 + $0x80] sm:$0xff] %vm137, %v6616
    %6695 = vst.msk [vmem:[#allocation8 + $0x88] sm:$0xff] %vm137, %v6619
    %6696 = vst.msk [vmem:[#allocation8 + $0x90] sm:$0xff] %vm137, %v6624
    %6697 = vst.msk [vmem:[#allocation8 + $0x98] sm:$0xff] %vm137, %v6627
    %6698 = vst.msk [vmem:[#allocation8 + $0xa0] sm:$0xff] %vm137, %v6632
    %6699 = vst.msk [vmem:[#allocation8 + $0xa8] sm:$0xff] %vm137, %v6635
    %6700 = vst.msk [vmem:[#allocation8 + $0xb0] sm:$0xff] %vm137, %v6640
    %6701 = vst.msk [vmem:[#allocation8 + $0xb8] sm:$0xff] %vm137, %v6643
    %6702 = vst.msk [vmem:[#allocation8 + $0xc0] sm:$0xff] %vm137, %v6648
    %6703 = vst.msk [vmem:[#allocation8 + $0xc8] sm:$0xff] %vm137, %v6651
    %6704 = vst.msk [vmem:[#allocation8 + $0xd0] sm:$0xff] %vm137, %v6656
    %6705 = vst.msk [vmem:[#allocation8 + $0xd8] sm:$0xff] %vm137, %v6659
    %6706 = vst.msk [vmem:[#allocation8 + $0xe0] sm:$0xff] %vm137, %v6664
    %6707 = vst.msk [vmem:[#allocation8 + $0xe8] sm:$0xff] %vm137, %v6667
    %6708 = vst.msk [vmem:[#allocation8 + $0xf0] sm:$0xff] %vm137, %v6672
    %6709 = vst.msk [vmem:[#allocation8 + $0xf8] sm:$0xff] %vm137, %v6675
    // Predicated region
    $region38: #{forward.1} parent=1 // pred_check
      _
    $region39: #{forward.1} parent=1 // pred_check_branch
      %6711 = sbr.rel (0) target = $region41
    $region40: #{forward.1} parent=1 // pred_region
      %s6713 = ssub.s32 4096, 4096
      %6714 = vsyncadd [#allocation4], %s6713
      %s6715 = sshll.u32 [#allocation8], 4
      %s6716 = int_to_ptr.vmem [resolvable:$true] %s6715
      %6721 = dma.vmem_to_hbm [thread:$0]  %s6716, 4096, %s6, [#allocation4], 128, 128, 8
    $region41: #{forward.1} parent=1 // pred_fallthru
      _
    // Predicated region
    $region42: #{forward.1} parent=1 // pred_check
      _
    $region43: #{forward.1} parent=1 // pred_check_branch
      %6723 = sbr.rel (0) target = $region45
    $region44: #{forward.1} parent=1 // pred_region
      %6724 = dma.done [#allocation4], 4096
    $region45: #{forward.1} parent=1 // pred_fallthru
      _
    %6725 = vsyncpa [#allocation3], 1
    %6726 = vsyncpa [#allocation6], 1
    %6727 = vsyncpa [#allocation4], 1

</llo_original>
